<compile_context>
chip_gen: v7x
topology: tpu7x:2x2x1
jax: 0.10.0
libtpu: 0.0.40
codegen_flags: <defaults>
</compile_context>

<pallas_src>
import math

import jax
import jax.numpy as jnp
from jax import lax
from jax.experimental import pallas as pl
from jax.experimental.pallas import tpu as pltpu  # noqa: F401  (TPU backend)

# ----------------------------- config ---------------------------------------
S, B = 3, 2          # z is (S, B, D)
D = 16               # latent_dim
L = 8                # max_seq_len
H = 32               # hidden_size
NH = 2               # num attention heads
DH = H // NH         # head dim
FF = 64              # intermediate size
V = 50               # vocab_size
NLAYERS = 2
PAD_ID = 1           # roberta pad_token_id
MAXPOS = L + PAD_ID + 2
LN_EPS = 1e-5
VPAD = 128           # lane-dense padded output width (>= V and >= L + 1)


# ------------------------- in-kernel helpers ---------------------------------
def _mxu(a, b):
    """MXU matmul with bf16 operands and fp32 accumulation."""
    return jnp.dot(a.astype(jnp.bfloat16), b.astype(jnp.bfloat16),
                   preferred_element_type=jnp.float32)


def _gelu(x):
    # exact (erf) gelu -- matches HF "gelu" activation
    return 0.5 * x * (1.0 + lax.erf(x * 0.7071067811865476))


def _layernorm(x, g, b, eps=LN_EPS):
    mean = jnp.mean(x, axis=-1, keepdims=True)
    var = jnp.mean((x - mean) ** 2, axis=-1, keepdims=True)
    return (x - mean) * lax.rsqrt(var + eps) * g + b


def _softmax_rows(s):
    m = jnp.max(s, axis=-1, keepdims=True)
    p = jnp.exp(s - m)
    return p * pl.reciprocal(jnp.sum(p, axis=-1, keepdims=True), approx=True)


# ------------------------------ fused kernel ---------------------------------
def _decoder_kernel(
    z_ref, zrep_ref, pe_ref,
    h0_w, h0_b, len_w, len_b, emb_g, emb_b,
    qkv_w, qkv_b, o_w, o_b, ln1_g, ln1_b,
    ff1_w, ff1_b, ff2_w, ff2_b, ln2_g, ln2_b,
    lmh_w, lmh_b, lmh_g, lmh_beta, dec_w, dec_b,
    logits_ref, len_ref,
):
    f32 = jnp.float32
    N = z_ref.shape[0]                      # S * B
    scale = 1.0 / math.sqrt(DH)

    # ---- latent -> length logits (lane-dense padded slab) -------------------
    z = z_ref[...].astype(f32)                                     # (N, D)
    len_ref[...] = (_mxu(z, len_w[...]) + len_b[...]).astype(len_ref.dtype)

    # ---- embeddings: h0 broadcast over L, + position/type emb, LN -----------
    # zrep is z repeated L times per sample, so this single matmul produces the
    # (N*L, H) "input_embeds = stack([h0]*L)" directly.
    h0_full = _mxu(zrep_ref[...], h0_w[...]) + h0_b[...]           # (N*L, H)
    pe = pe_ref[...].astype(f32)                                   # (L, H)
    pe_full = jnp.concatenate([pe] * N, axis=0)                    # (N*L, H)
    x = _layernorm(h0_full + pe_full, emb_g[...], emb_b[...])      # (N*L, H)

    # ---- transformer layers (statically unrolled) ----------------------------
    for l in range(NLAYERS):
        qkv = _mxu(x, qkv_w[l]) + qkv_b[l]                         # (N*L, 3H)
        q = qkv[:, 0 * H:1 * H]
        k = qkv[:, 1 * H:2 * H]
        v = qkv[:, 2 * H:3 * H]

        ctx_seqs = []
        for n in range(N):                 # per-sequence attention (no mask)
            rows = slice(n * L, (n + 1) * L)
            qs, ks, vs = q[rows], k[rows], v[rows]                 # (L, H)
            heads = []
            for h in range(NH):            # head split via lane slices
                cols = slice(h * DH, (h + 1) * DH)
                qh, kh, vh = qs[:, cols], ks[:, cols], vs[:, cols]
                s = lax.dot_general(
                    qh.astype(jnp.bfloat16), kh.astype(jnp.bfloat16),
                    (((1,), (1,)), ((), ())),
                    preferred_element_type=f32) * scale            # (L, L)
                p = _softmax_rows(s)
                heads.append(_mxu(p, vh))                          # (L, DH)
            ctx_seqs.append(jnp.concatenate(heads, axis=1))        # (L, H)
        ctx = jnp.concatenate(ctx_seqs, axis=0)                    # (N*L, H)

        attn = _mxu(ctx, o_w[l]) + o_b[l]
        x = _layernorm(attn + x, ln1_g[l], ln1_b[l])
        f = _gelu(_mxu(x, ff1_w[l]) + ff1_b[l])
        f = _mxu(f, ff2_w[l]) + ff2_b[l]
        x = _layernorm(f + x, ln2_g[l], ln2_b[l])

    # ---- MLM head: dense -> gelu -> LN -> decoder (padded, lane-dense) ------
    hh = _gelu(_mxu(x, lmh_w[...]) + lmh_b[...])
    hh = _layernorm(hh, lmh_g[...], lmh_beta[...])
    logits_ref[...] = (_mxu(hh, dec_w[...]) + dec_b[...]).astype(logits_ref.dtype)


# --------------------------- parameters --------------------------------------
def init_params(key):
    keys = iter(jax.random.split(key, 32))

    def w(shape):
        return (0.02 * jax.random.normal(next(keys), shape)).astype(jnp.float32)

    def zeros(shape):
        return jnp.zeros(shape, jnp.float32)

    def ones(shape):
        return jnp.ones(shape, jnp.float32)

    layers = []
    for _ in range(NLAYERS):
        layers.append(dict(
            q_w=w((H, H)), q_b=zeros((H,)),
            k_w=w((H, H)), k_b=zeros((H,)),
            v_w=w((H, H)), v_b=zeros((H,)),
            o_w=w((H, H)), o_b=zeros((H,)),
            ln1_g=ones((H,)), ln1_b=zeros((H,)),
            ff1_w=w((H, FF)), ff1_b=zeros((FF,)),
            ff2_w=w((FF, H)), ff2_b=zeros((H,)),
            ln2_g=ones((H,)), ln2_b=zeros((H,)),
        ))

    return dict(
        h0_w=w((D, H)), h0_b=zeros((H,)),            # latent_to_h0_proj
        len_w=w((D, L + 1)), len_b=zeros((L + 1,)),  # latent_to_length
        pos_emb=w((MAXPOS, H)),
        type_emb=w((1, H)),
        emb_ln_g=ones((H,)), emb_ln_b=zeros((H,)),
        layers=layers,
        lmh_w=w((H, H)), lmh_b=zeros((H,)),
        lmh_ln_g=ones((H,)), lmh_ln_b=zeros((H,)),
        dec_w=w((H, V)), dec_b=zeros((V,)),
    )


# ----------------------------- forward ---------------------------------------
def decoder_forward(params, z):
    """z: (S, B, D) -> (logits (S,B,L,V), length_logits (S,B,L+1))."""
    # TODO(synk): x_in pad-embedding overwrite path not implemented (x_in=None).
    Ss, Bs, Dd = z.shape
    N = Ss * Bs
    z2d = z.reshape(N, Dd).astype(jnp.float32)
    # each latent row repeated L times -> rows already in (sample, position) order
    z_rep = jnp.repeat(z2d, L, axis=0)                             # (N*L, D), ~3 KB

    # position (+ token-type-0) embedding rows: ids = pad_id + 1 + arange(L)
    pos_ids = PAD_ID + 1 + jnp.arange(L)
    pe = params["pos_emb"][pos_ids] + params["type_emb"][0]        # (L, H)

    bf = lambda a: a.astype(jnp.bfloat16)
    row = lambda a: a.reshape(1, -1).astype(jnp.float32)

    # pad the two output projections to lane-dense 128-wide slabs
    len_w = jnp.zeros((Dd, VPAD), jnp.float32).at[:, :L + 1].set(params["len_w"])
    len_b = jnp.zeros((1, VPAD), jnp.float32).at[:, :L + 1].set(params["len_b"])
    dec_w = jnp.zeros((H, VPAD), jnp.float32).at[:, :V].set(params["dec_w"])
    dec_b = jnp.zeros((1, VPAD), jnp.float32).at[:, :V].set(params["dec_b"])

    ls = params["layers"]
    stack_w = lambda name: bf(jnp.stack([lp[name] for lp in ls]))
    stack_row = lambda name: jnp.stack(
        [lp[name].reshape(1, -1) for lp in ls]).astype(jnp.float32)
    qkv_w = bf(jnp.stack(
        [jnp.concatenate([lp["q_w"], lp["k_w"], lp["v_w"]], axis=1) for lp in ls]))
    qkv_b = jnp.stack(
        [jnp.concatenate([lp["q_b"], lp["k_b"], lp["v_b"]]).reshape(1, -1)
         for lp in ls]).astype(jnp.float32)

    out_shapes = (
        jax.ShapeDtypeStruct((N * L, VPAD), jnp.float32),   # padded logits
        jax.ShapeDtypeStruct((N, VPAD), jnp.float32),       # padded length logits
    )
    # Single fused pallas_call: whole-array (no-grid) blocks, everything in VMEM.
    logits_p, len_p = pl.pallas_call(
        _decoder_kernel,
        out_shape=out_shapes,
    )(
        z2d, bf(z_rep), pe,
        bf(params["h0_w"]), row(params["h0_b"]), bf(len_w), len_b,
        row(params["emb_ln_g"]), row(params["emb_ln_b"]),
        qkv_w, qkv_b,
        stack_w("o_w"), stack_row("o_b"),
        stack_row("ln1_g"), stack_row("ln1_b"),
        stack_w("ff1_w"), stack_row("ff1_b"),
        stack_w("ff2_w"), stack_row("ff2_b"),
        stack_row("ln2_g"), stack_row("ln2_b"),
        bf(params["lmh_w"]), row(params["lmh_b"]),
        row(params["lmh_ln_g"]), row(params["lmh_ln_b"]),
        bf(dec_w), dec_b,
    )

    logits = logits_p[:, :V].reshape(Ss, Bs, L, V)
    length_logits = len_p[:, :L + 1].reshape(Ss, Bs, L + 1)
    return logits, length_logits


# ------------------------------- main ----------------------------------------
if __name__ == "__main__":
    key = jax.random.PRNGKey(0)
    pkey, zkey = jax.random.split(key)
    params = init_params(pkey)
    z = jax.random.normal(zkey, (S, B, D), dtype=jnp.float32)

    logits, length_logits = jax.jit(decoder_forward)(params, z)
    jax.block_until_ready((logits, length_logits))

    assert logits.shape == (S, B, L, V), logits.shape
    assert length_logits.shape == (S, B, L + 1), length_logits.shape
    assert jnp.all(jnp.isfinite(logits)) and jnp.all(jnp.isfinite(length_logits))
    print("KERNEL_OK")
</pallas_src>

<mosaic_0001>
module attributes {stable_mosaic.version = 11 : i64} {
  func.func @_decoder_kernel(%arg0: memref<6x16xf32, #tpu.memory_space<vmem>>, %arg1: memref<48x16xbf16, #tpu.memory_space<vmem>>, %arg2: memref<8x32xf32, #tpu.memory_space<vmem>>, %arg3: memref<16x32xbf16, #tpu.memory_space<vmem>>, %arg4: memref<1x32xf32, #tpu.memory_space<vmem>>, %arg5: memref<16x128xbf16, #tpu.memory_space<vmem>>, %arg6: memref<1x128xf32, #tpu.memory_space<vmem>>, %arg7: memref<1x32xf32, #tpu.memory_space<vmem>>, %arg8: memref<1x32xf32, #tpu.memory_space<vmem>>, %arg9: memref<2x32x96xbf16, #tpu.memory_space<vmem>>, %arg10: memref<2x1x96xf32, #tpu.memory_space<vmem>>, %arg11: memref<2x32x32xbf16, #tpu.memory_space<vmem>>, %arg12: memref<2x1x32xf32, #tpu.memory_space<vmem>>, %arg13: memref<2x1x32xf32, #tpu.memory_space<vmem>>, %arg14: memref<2x1x32xf32, #tpu.memory_space<vmem>>, %arg15: memref<2x32x64xbf16, #tpu.memory_space<vmem>>, %arg16: memref<2x1x64xf32, #tpu.memory_space<vmem>>, %arg17: memref<2x64x32xbf16, #tpu.memory_space<vmem>>, %arg18: memref<2x1x32xf32, #tpu.memory_space<vmem>>, %arg19: memref<2x1x32xf32, #tpu.memory_space<vmem>>, %arg20: memref<2x1x32xf32, #tpu.memory_space<vmem>>, %arg21: memref<32x32xbf16, #tpu.memory_space<vmem>>, %arg22: memref<1x32xf32, #tpu.memory_space<vmem>>, %arg23: memref<1x32xf32, #tpu.memory_space<vmem>>, %arg24: memref<1x32xf32, #tpu.memory_space<vmem>>, %arg25: memref<32x128xbf16, #tpu.memory_space<vmem>>, %arg26: memref<1x128xf32, #tpu.memory_space<vmem>>, %arg27: memref<48x128xf32, #tpu.memory_space<vmem>>, %arg28: memref<6x128xf32, #tpu.memory_space<vmem>>) attributes {dimension_semantics = [], scalar_prefetch = 0 : i64, scratch_operands = 0 : i64, tpu.core_type = #tpu.core_type<tc>} {
    %c0 = arith.constant 0 : index
    %c0_0 = arith.constant 0 : index
    %0 = vector.load %arg0[%c0, %c0_0] : memref<6x16xf32, #tpu.memory_space<vmem>>, vector<6x16xf32>
    %c0_1 = arith.constant 0 : index
    %c0_2 = arith.constant 0 : index
    %1 = vector.load %arg5[%c0_1, %c0_2] : memref<16x128xbf16, #tpu.memory_space<vmem>>, vector<16x128xbf16>
    %2 = arith.truncf %0 : vector<6x16xf32> to vector<6x16xbf16>
    %cst = arith.constant dense<0.000000e+00> : vector<6x128xf32>
    %3 = tpu.matmul %2, %1, %cst {dimension_numbers = #tpu.dot_dimension_numbers<[1], [0], [0], [1], [0, 0, 1, 1], [], []>} : vector<6x16xbf16>, vector<16x128xbf16>, vector<6x128xf32> -> vector<6x128xf32>
    %c0_3 = arith.constant 0 : index
    %c0_4 = arith.constant 0 : index
    %4 = vector.load %arg6[%c0_3, %c0_4] : memref<1x128xf32, #tpu.memory_space<vmem>>, vector<1x128xf32>
    %5 = vector.broadcast %4 : vector<1x128xf32> to vector<6x128xf32>
    %6 = arith.addf %3, %5 : vector<6x128xf32>
    %c0_5 = arith.constant 0 : index
    %c0_6 = arith.constant 0 : index
    %7 = vector.load %arg28[%c0_5, %c0_6] : memref<6x128xf32, #tpu.memory_space<vmem>>, vector<6x128xf32>
    tpu.vector_store %arg28[%c0_5, %c0_6], %6 {strides = array<i32>} : memref<6x128xf32, #tpu.memory_space<vmem>>, vector<6x128xf32>,
    %c0_7 = arith.constant 0 : index
    %c0_8 = arith.constant 0 : index
    %8 = vector.load %arg1[%c0_7, %c0_8] : memref<48x16xbf16, #tpu.memory_space<vmem>>, vector<48x16xbf16>
    %c0_9 = arith.constant 0 : index
    %c0_10 = arith.constant 0 : index
    %9 = vector.load %arg3[%c0_9, %c0_10] : memref<16x32xbf16, #tpu.memory_space<vmem>>, vector<16x32xbf16>
    %cst_11 = arith.constant dense<0.000000e+00> : vector<48x32xf32>
    %10 = tpu.matmul %8, %9, %cst_11 {dimension_numbers = #tpu.dot_dimension_numbers<[1], [0], [0], [1], [0, 0, 1, 1], [], []>} : vector<48x16xbf16>, vector<16x32xbf16>, vector<48x32xf32> -> vector<48x32xf32>
    %c0_12 = arith.constant 0 : index
    %c0_13 = arith.constant 0 : index
    %11 = vector.load %arg4[%c0_12, %c0_13] : memref<1x32xf32, #tpu.memory_space<vmem>>, vector<1x32xf32>
    %12 = vector.broadcast %11 : vector<1x32xf32> to vector<48x32xf32>
    %13 = arith.addf %10, %12 : vector<48x32xf32>
    %c0_14 = arith.constant 0 : index
    %c0_15 = arith.constant 0 : index
    %14 = vector.load %arg2[%c0_14, %c0_15] : memref<8x32xf32, #tpu.memory_space<vmem>>, vector<8x32xf32>
    %15 = tpu.concatenate %14, %14, %14, %14, %14, %14 in 0 : vector<8x32xf32>, vector<8x32xf32>, vector<8x32xf32>, vector<8x32xf32>, vector<8x32xf32>, vector<8x32xf32> -> vector<48x32xf32>
    %16 = arith.addf %13, %15 : vector<48x32xf32>
    %c0_16 = arith.constant 0 : index
    %c0_17 = arith.constant 0 : index
    %17 = vector.load %arg7[%c0_16, %c0_17] : memref<1x32xf32, #tpu.memory_space<vmem>>, vector<1x32xf32>
    %c0_18 = arith.constant 0 : index
    %c0_19 = arith.constant 0 : index
    %18 = vector.load %arg8[%c0_18, %c0_19] : memref<1x32xf32, #tpu.memory_space<vmem>>, vector<1x32xf32>
    %cst_20 = arith.constant dense<0.000000e+00> : vector<48xf32>
    %19 = vector.multi_reduction <add>, %16, %cst_20 [1] : vector<48x32xf32> to vector<48xf32>
    %20 = vector.shape_cast %19 : vector<48xf32> to vector<48x1xf32>
    %cst_21 = arith.constant 3.200000e+01 : f32
    %21 = vector.broadcast %cst_21 : f32 to vector<48x1xf32>
    %22 = arith.divf %20, %21 : vector<48x1xf32>
    %23 = vector.broadcast %22 : vector<48x1xf32> to vector<48x32xf32>
    %24 = arith.subf %16, %23 : vector<48x32xf32>
    %25 = arith.mulf %24, %24 : vector<48x32xf32>
    %cst_22 = arith.constant dense<0.000000e+00> : vector<48xf32>
    %26 = vector.multi_reduction <add>, %25, %cst_22 [1] : vector<48x32xf32> to vector<48xf32>
    %27 = vector.shape_cast %26 : vector<48xf32> to vector<48x1xf32>
    %cst_23 = arith.constant 3.200000e+01 : f32
    %28 = vector.broadcast %cst_23 : f32 to vector<48x1xf32>
    %29 = arith.divf %27, %28 : vector<48x1xf32>
    %30 = vector.broadcast %22 : vector<48x1xf32> to vector<48x32xf32>
    %31 = arith.subf %16, %30 : vector<48x32xf32>
    %cst_24 = arith.constant 9.99999974E-6 : f32
    %32 = vector.broadcast %cst_24 : f32 to vector<48x1xf32>
    %33 = arith.addf %29, %32 : vector<48x1xf32>
    %34 = math.rsqrt %33 : vector<48x1xf32>
    %35 = vector.broadcast %34 : vector<48x1xf32> to vector<48x32xf32>
    %36 = arith.mulf %31, %35 : vector<48x32xf32>
    %37 = vector.broadcast %17 : vector<1x32xf32> to vector<48x32xf32>
    %38 = arith.mulf %36, %37 : vector<48x32xf32>
    %39 = vector.broadcast %18 : vector<1x32xf32> to vector<48x32xf32>
    %40 = arith.addf %38, %39 : vector<48x32xf32>
    %c0_25 = arith.constant 0 : index
    %c0_26 = arith.constant 0 : index
    %c0_27 = arith.constant 0 : index
    %41 = vector.load %arg9[%c0_25, %c0_26, %c0_27] : memref<2x32x96xbf16, #tpu.memory_space<vmem>>, vector<1x32x96xbf16>
    %42 = vector.shape_cast %41 : vector<1x32x96xbf16> to vector<32x96xbf16>
    %43 = arith.truncf %40 : vector<48x32xf32> to vector<48x32xbf16>
    %cst_28 = arith.constant dense<0.000000e+00> : vector<48x96xf32>
    %44 = tpu.matmul %43, %42, %cst_28 {dimension_numbers = #tpu.dot_dimension_numbers<[1], [0], [0], [1], [0, 0, 1, 1], [], []>} : vector<48x32xbf16>, vector<32x96xbf16>, vector<48x96xf32> -> vector<48x96xf32>
    %c0_29 = arith.constant 0 : index
    %c0_30 = arith.constant 0 : index
    %c0_31 = arith.constant 0 : index
    %45 = vector.load %arg10[%c0_29, %c0_30, %c0_31] : memref<2x1x96xf32, #tpu.memory_space<vmem>>, vector<1x1x96xf32>
    %46 = vector.shape_cast %45 : vector<1x1x96xf32> to vector<1x96xf32>
    %47 = vector.broadcast %46 : vector<1x96xf32> to vector<48x96xf32>
    %48 = arith.addf %44, %47 : vector<48x96xf32>
    %49 = vector.extract_strided_slice %48 {offsets = [0, 0], sizes = [48, 32], strides = [1, 1]} : vector<48x96xf32> to vector<48x32xf32>
    %50 = vector.extract_strided_slice %48 {offsets = [0, 32], sizes = [48, 32], strides = [1, 1]} : vector<48x96xf32> to vector<48x32xf32>
    %51 = vector.extract_strided_slice %48 {offsets = [0, 64], sizes = [48, 32], strides = [1, 1]} : vector<48x96xf32> to vector<48x32xf32>
    %52 = vector.extract_strided_slice %49 {offsets = [0, 0], sizes = [8, 32], strides = [1, 1]} : vector<48x32xf32> to vector<8x32xf32>
    %53 = vector.extract_strided_slice %50 {offsets = [0, 0], sizes = [8, 32], strides = [1, 1]} : vector<48x32xf32> to vector<8x32xf32>
    %54 = vector.extract_strided_slice %51 {offsets = [0, 0], sizes = [8, 32], strides = [1, 1]} : vector<48x32xf32> to vector<8x32xf32>
    %55 = vector.extract_strided_slice %52 {offsets = [0, 0], sizes = [8, 16], strides = [1, 1]} : vector<8x32xf32> to vector<8x16xf32>
    %56 = vector.extract_strided_slice %53 {offsets = [0, 0], sizes = [8, 16], strides = [1, 1]} : vector<8x32xf32> to vector<8x16xf32>
    %57 = vector.extract_strided_slice %54 {offsets = [0, 0], sizes = [8, 16], strides = [1, 1]} : vector<8x32xf32> to vector<8x16xf32>
    %58 = arith.truncf %55 : vector<8x16xf32> to vector<8x16xbf16>
    %59 = arith.truncf %56 : vector<8x16xf32> to vector<8x16xbf16>
    %cst_32 = arith.constant dense<0.000000e+00> : vector<8x8xf32>
    %60 = tpu.matmul %58, %59, %cst_32 {dimension_numbers = #tpu.dot_dimension_numbers<[1], [1], [0], [0], [0, 0, 1, 0], [], []>} : vector<8x16xbf16>, vector<8x16xbf16>, vector<8x8xf32> -> vector<8x8xf32>
    %cst_33 = arith.constant 2.500000e-01 : f32
    %61 = vector.broadcast %cst_33 : f32 to vector<8x8xf32>
    %62 = arith.mulf %60, %61 : vector<8x8xf32>
    %cst_34 = arith.constant dense<0xFF800000> : vector<8xf32>
    %63 = vector.multi_reduction <maximumf>, %62, %cst_34 [1] : vector<8x8xf32> to vector<8xf32>
    %64 = vector.shape_cast %63 : vector<8xf32> to vector<8x1xf32>
    %65 = vector.broadcast %64 : vector<8x1xf32> to vector<8x8xf32>
    %66 = arith.subf %62, %65 : vector<8x8xf32>
    %67 = math.exp %66 : vector<8x8xf32>
    %cst_35 = arith.constant dense<0.000000e+00> : vector<8xf32>
    %68 = vector.multi_reduction <add>, %67, %cst_35 [1] : vector<8x8xf32> to vector<8xf32>
    %69 = vector.shape_cast %68 : vector<8xf32> to vector<8x1xf32>
    %70 = tpu.reciprocal %69 {approx = true} : vector<8x1xf32> -> vector<8x1xf32>
    %71 = vector.broadcast %70 : vector<8x1xf32> to vector<8x8xf32>
    %72 = arith.mulf %67, %71 : vector<8x8xf32>
    %73 = arith.truncf %72 : vector<8x8xf32> to vector<8x8xbf16>
    %74 = arith.truncf %57 : vector<8x16xf32> to vector<8x16xbf16>
    %cst_36 = arith.constant dense<0.000000e+00> : vector<8x16xf32>
    %75 = tpu.matmul %73, %74, %cst_36 {dimension_numbers = #tpu.dot_dimension_numbers<[1], [0], [0], [1], [0, 0, 1, 1], [], []>} : vector<8x8xbf16>, vector<8x16xbf16>, vector<8x16xf32> -> vector<8x16xf32>
    %76 = vector.extract_strided_slice %52 {offsets = [0, 16], sizes = [8, 16], strides = [1, 1]} : vector<8x32xf32> to vector<8x16xf32>
    %77 = vector.extract_strided_slice %53 {offsets = [0, 16], sizes = [8, 16], strides = [1, 1]} : vector<8x32xf32> to vector<8x16xf32>
    %78 = vector.extract_strided_slice %54 {offsets = [0, 16], sizes = [8, 16], strides = [1, 1]} : vector<8x32xf32> to vector<8x16xf32>
    %79 = arith.truncf %76 : vector<8x16xf32> to vector<8x16xbf16>
    %80 = arith.truncf %77 : vector<8x16xf32> to vector<8x16xbf16>
    %cst_37 = arith.constant dense<0.000000e+00> : vector<8x8xf32>
    %81 = tpu.matmul %79, %80, %cst_37 {dimension_numbers = #tpu.dot_dimension_numbers<[1], [1], [0], [0], [0, 0, 1, 0], [], []>} : vector<8x16xbf16>, vector<8x16xbf16>, vector<8x8xf32> -> vector<8x8xf32>
    %cst_38 = arith.constant 2.500000e-01 : f32
    %82 = vector.broadcast %cst_38 : f32 to vector<8x8xf32>
    %83 = arith.mulf %81, %82 : vector<8x8xf32>
    %cst_39 = arith.constant dense<0xFF800000> : vector<8xf32>
    %84 = vector.multi_reduction <maximumf>, %83, %cst_39 [1] : vector<8x8xf32> to vector<8xf32>
    %85 = vector.shape_cast %84 : vector<8xf32> to vector<8x1xf32>
    %86 = vector.broadcast %85 : vector<8x1xf32> to vector<8x8xf32>
    %87 = arith.subf %83, %86 : vector<8x8xf32>
    %88 = math.exp %87 : vector<8x8xf32>
    %cst_40 = arith.constant dense<0.000000e+00> : vector<8xf32>
    %89 = vector.multi_reduction <add>, %88, %cst_40 [1] : vector<8x8xf32> to vector<8xf32>
    %90 = vector.shape_cast %89 : vector<8xf32> to vector<8x1xf32>
    %91 = tpu.reciprocal %90 {approx = true} : vector<8x1xf32> -> vector<8x1xf32>
    %92 = vector.broadcast %91 : vector<8x1xf32> to vector<8x8xf32>
    %93 = arith.mulf %88, %92 : vector<8x8xf32>
    %94 = arith.truncf %93 : vector<8x8xf32> to vector<8x8xbf16>
    %95 = arith.truncf %78 : vector<8x16xf32> to vector<8x16xbf16>
    %cst_41 = arith.constant dense<0.000000e+00> : vector<8x16xf32>
    %96 = tpu.matmul %94, %95, %cst_41 {dimension_numbers = #tpu.dot_dimension_numbers<[1], [0], [0], [1], [0, 0, 1, 1], [], []>} : vector<8x8xbf16>, vector<8x16xbf16>, vector<8x16xf32> -> vector<8x16xf32>
    %97 = tpu.concatenate %75, %96 in 1 : vector<8x16xf32>, vector<8x16xf32> -> vector<8x32xf32>
    %98 = vector.extract_strided_slice %49 {offsets = [8, 0], sizes = [8, 32], strides = [1, 1]} : vector<48x32xf32> to vector<8x32xf32>
    %99 = vector.extract_strided_slice %50 {offsets = [8, 0], sizes = [8, 32], strides = [1, 1]} : vector<48x32xf32> to vector<8x32xf32>
    %100 = vector.extract_strided_slice %51 {offsets = [8, 0], sizes = [8, 32], strides = [1, 1]} : vector<48x32xf32> to vector<8x32xf32>
    %101 = vector.extract_strided_slice %98 {offsets = [0, 0], sizes = [8, 16], strides = [1, 1]} : vector<8x32xf32> to vector<8x16xf32>
    %102 = vector.extract_strided_slice %99 {offsets = [0, 0], sizes = [8, 16], strides = [1, 1]} : vector<8x32xf32> to vector<8x16xf32>
    %103 = vector.extract_strided_slice %100 {offsets = [0, 0], sizes = [8, 16], strides = [1, 1]} : vector<8x32xf32> to vector<8x16xf32>
    %104 = arith.truncf %101 : vector<8x16xf32> to vector<8x16xbf16>
    %105 = arith.truncf %102 : vector<8x16xf32> to vector<8x16xbf16>
    %cst_42 = arith.constant dense<0.000000e+00> : vector<8x8xf32>
    %106 = tpu.matmul %104, %105, %cst_42 {dimension_numbers = #tpu.dot_dimension_numbers<[1], [1], [0], [0], [0, 0, 1, 0], [], []>} : vector<8x16xbf16>, vector<8x16xbf16>, vector<8x8xf32> -> vector<8x8xf32>
    %cst_43 = arith.constant 2.500000e-01 : f32
    %107 = vector.broadcast %cst_43 : f32 to vector<8x8xf32>
    %108 = arith.mulf %106, %107 : vector<8x8xf32>
    %cst_44 = arith.constant dense<0xFF800000> : vector<8xf32>
    %109 = vector.multi_reduction <maximumf>, %108, %cst_44 [1] : vector<8x8xf32> to vector<8xf32>
    %110 = vector.shape_cast %109 : vector<8xf32> to vector<8x1xf32>
    %111 = vector.broadcast %110 : vector<8x1xf32> to vector<8x8xf32>
    %112 = arith.subf %108, %111 : vector<8x8xf32>
    %113 = math.exp %112 : vector<8x8xf32>
    %cst_45 = arith.constant dense<0.000000e+00> : vector<8xf32>
    %114 = vector.multi_reduction <add>, %113, %cst_45 [1] : vector<8x8xf32> to vector<8xf32>
    %115 = vector.shape_cast %114 : vector<8xf32> to vector<8x1xf32>
    %116 = tpu.reciprocal %115 {approx = true} : vector<8x1xf32> -> vector<8x1xf32>
    %117 = vector.broadcast %116 : vector<8x1xf32> to vector<8x8xf32>
    %118 = arith.mulf %113, %117 : vector<8x8xf32>
    %119 = arith.truncf %118 : vector<8x8xf32> to vector<8x8xbf16>
    %120 = arith.truncf %103 : vector<8x16xf32> to vector<8x16xbf16>
    %cst_46 = arith.constant dense<0.000000e+00> : vector<8x16xf32>
    %121 = tpu.matmul %119, %120, %cst_46 {dimension_numbers = #tpu.dot_dimension_numbers<[1], [0], [0], [1], [0, 0, 1, 1], [], []>} : vector<8x8xbf16>, vector<8x16xbf16>, vector<8x16xf32> -> vector<8x16xf32>
    %122 = vector.extract_strided_slice %98 {offsets = [0, 16], sizes = [8, 16], strides = [1, 1]} : vector<8x32xf32> to vector<8x16xf32>
    %123 = vector.extract_strided_slice %99 {offsets = [0, 16], sizes = [8, 16], strides = [1, 1]} : vector<8x32xf32> to vector<8x16xf32>
    %124 = vector.extract_strided_slice %100 {offsets = [0, 16], sizes = [8, 16], strides = [1, 1]} : vector<8x32xf32> to vector<8x16xf32>
    %125 = arith.truncf %122 : vector<8x16xf32> to vector<8x16xbf16>
    %126 = arith.truncf %123 : vector<8x16xf32> to vector<8x16xbf16>
    %cst_47 = arith.constant dense<0.000000e+00> : vector<8x8xf32>
    %127 = tpu.matmul %125, %126, %cst_47 {dimension_numbers = #tpu.dot_dimension_numbers<[1], [1], [0], [0], [0, 0, 1, 0], [], []>} : vector<8x16xbf16>, vector<8x16xbf16>, vector<8x8xf32> -> vector<8x8xf32>
    %cst_48 = arith.constant 2.500000e-01 : f32
    %128 = vector.broadcast %cst_48 : f32 to vector<8x8xf32>
    %129 = arith.mulf %127, %128 : vector<8x8xf32>
    %cst_49 = arith.constant dense<0xFF800000> : vector<8xf32>
    %130 = vector.multi_reduction <maximumf>, %129, %cst_49 [1] : vector<8x8xf32> to vector<8xf32>
    %131 = vector.shape_cast %130 : vector<8xf32> to vector<8x1xf32>
    %132 = vector.broadcast %131 : vector<8x1xf32> to vector<8x8xf32>
    %133 = arith.subf %129, %132 : vector<8x8xf32>
    %134 = math.exp %133 : vector<8x8xf32>
    %cst_50 = arith.constant dense<0.000000e+00> : vector<8xf32>
    %135 = vector.multi_reduction <add>, %134, %cst_50 [1] : vector<8x8xf32> to vector<8xf32>
    %136 = vector.shape_cast %135 : vector<8xf32> to vector<8x1xf32>
    %137 = tpu.reciprocal %136 {approx = true} : vector<8x1xf32> -> vector<8x1xf32>
    %138 = vector.broadcast %137 : vector<8x1xf32> to vector<8x8xf32>
    %139 = arith.mulf %134, %138 : vector<8x8xf32>
    %140 = arith.truncf %139 : vector<8x8xf32> to vector<8x8xbf16>
    %141 = arith.truncf %124 : vector<8x16xf32> to vector<8x16xbf16>
    %cst_51 = arith.constant dense<0.000000e+00> : vector<8x16xf32>
    %142 = tpu.matmul %140, %141, %cst_51 {dimension_numbers = #tpu.dot_dimension_numbers<[1], [0], [0], [1], [0, 0, 1, 1], [], []>} : vector<8x8xbf16>, vector<8x16xbf16>, vector<8x16xf32> -> vector<8x16xf32>
    %143 = tpu.concatenate %121, %142 in 1 : vector<8x16xf32>, vector<8x16xf32> -> vector<8x32xf32>
    %144 = vector.extract_strided_slice %49 {offsets = [16, 0], sizes = [8, 32], strides = [1, 1]} : vector<48x32xf32> to vector<8x32xf32>
    %145 = vector.extract_strided_slice %50 {offsets = [16, 0], sizes = [8, 32], strides = [1, 1]} : vector<48x32xf32> to vector<8x32xf32>
    %146 = vector.extract_strided_slice %51 {offsets = [16, 0], sizes = [8, 32], strides = [1, 1]} : vector<48x32xf32> to vector<8x32xf32>
    %147 = vector.extract_strided_slice %144 {offsets = [0, 0], sizes = [8, 16], strides = [1, 1]} : vector<8x32xf32> to vector<8x16xf32>
    %148 = vector.extract_strided_slice %145 {offsets = [0, 0], sizes = [8, 16], strides = [1, 1]} : vector<8x32xf32> to vector<8x16xf32>
    %149 = vector.extract_strided_slice %146 {offsets = [0, 0], sizes = [8, 16], strides = [1, 1]} : vector<8x32xf32> to vector<8x16xf32>
    %150 = arith.truncf %147 : vector<8x16xf32> to vector<8x16xbf16>
    %151 = arith.truncf %148 : vector<8x16xf32> to vector<8x16xbf16>
    %cst_52 = arith.constant dense<0.000000e+00> : vector<8x8xf32>
    %152 = tpu.matmul %150, %151, %cst_52 {dimension_numbers = #tpu.dot_dimension_numbers<[1], [1], [0], [0], [0, 0, 1, 0], [], []>} : vector<8x16xbf16>, vector<8x16xbf16>, vector<8x8xf32> -> vector<8x8xf32>
    %cst_53 = arith.constant 2.500000e-01 : f32
    %153 = vector.broadcast %cst_53 : f32 to vector<8x8xf32>
    %154 = arith.mulf %152, %153 : vector<8x8xf32>
    %cst_54 = arith.constant dense<0xFF800000> : vector<8xf32>
    %155 = vector.multi_reduction <maximumf>, %154, %cst_54 [1] : vector<8x8xf32> to vector<8xf32>
    %156 = vector.shape_cast %155 : vector<8xf32> to vector<8x1xf32>
    %157 = vector.broadcast %156 : vector<8x1xf32> to vector<8x8xf32>
    %158 = arith.subf %154, %157 : vector<8x8xf32>
    %159 = math.exp %158 : vector<8x8xf32>
    %cst_55 = arith.constant dense<0.000000e+00> : vector<8xf32>
    %160 = vector.multi_reduction <add>, %159, %cst_55 [1] : vector<8x8xf32> to vector<8xf32>
    %161 = vector.shape_cast %160 : vector<8xf32> to vector<8x1xf32>
    %162 = tpu.reciprocal %161 {approx = true} : vector<8x1xf32> -> vector<8x1xf32>
    %163 = vector.broadcast %162 : vector<8x1xf32> to vector<8x8xf32>
    %164 = arith.mulf %159, %163 : vector<8x8xf32>
    %165 = arith.truncf %164 : vector<8x8xf32> to vector<8x8xbf16>
    %166 = arith.truncf %149 : vector<8x16xf32> to vector<8x16xbf16>
    %cst_56 = arith.constant dense<0.000000e+00> : vector<8x16xf32>
    %167 = tpu.matmul %165, %166, %cst_56 {dimension_numbers = #tpu.dot_dimension_numbers<[1], [0], [0], [1], [0, 0, 1, 1], [], []>} : vector<8x8xbf16>, vector<8x16xbf16>, vector<8x16xf32> -> vector<8x16xf32>
    %168 = vector.extract_strided_slice %144 {offsets = [0, 16], sizes = [8, 16], strides = [1, 1]} : vector<8x32xf32> to vector<8x16xf32>
    %169 = vector.extract_strided_slice %145 {offsets = [0, 16], sizes = [8, 16], strides = [1, 1]} : vector<8x32xf32> to vector<8x16xf32>
    %170 = vector.extract_strided_slice %146 {offsets = [0, 16], sizes = [8, 16], strides = [1, 1]} : vector<8x32xf32> to vector<8x16xf32>
    %171 = arith.truncf %168 : vector<8x16xf32> to vector<8x16xbf16>
    %172 = arith.truncf %169 : vector<8x16xf32> to vector<8x16xbf16>
    %cst_57 = arith.constant dense<0.000000e+00> : vector<8x8xf32>
    %173 = tpu.matmul %171, %172, %cst_57 {dimension_numbers = #tpu.dot_dimension_numbers<[1], [1], [0], [0], [0, 0, 1, 0], [], []>} : vector<8x16xbf16>, vector<8x16xbf16>, vector<8x8xf32> -> vector<8x8xf32>
    %cst_58 = arith.constant 2.500000e-01 : f32
    %174 = vector.broadcast %cst_58 : f32 to vector<8x8xf32>
    %175 = arith.mulf %173, %174 : vector<8x8xf32>
    %cst_59 = arith.constant dense<0xFF800000> : vector<8xf32>
    %176 = vector.multi_reduction <maximumf>, %175, %cst_59 [1] : vector<8x8xf32> to vector<8xf32>
    %177 = vector.shape_cast %176 : vector<8xf32> to vector<8x1xf32>
    %178 = vector.broadcast %177 : vector<8x1xf32> to vector<8x8xf32>
    %179 = arith.subf %175, %178 : vector<8x8xf32>
    %180 = math.exp %179 : vector<8x8xf32>
    %cst_60 = arith.constant dense<0.000000e+00> : vector<8xf32>
    %181 = vector.multi_reduction <add>, %180, %cst_60 [1] : vector<8x8xf32> to vector<8xf32>
    %182 = vector.shape_cast %181 : vector<8xf32> to vector<8x1xf32>
    %183 = tpu.reciprocal %182 {approx = true} : vector<8x1xf32> -> vector<8x1xf32>
    %184 = vector.broadcast %183 : vector<8x1xf32> to vector<8x8xf32>
    %185 = arith.mulf %180, %184 : vector<8x8xf32>
    %186 = arith.truncf %185 : vector<8x8xf32> to vector<8x8xbf16>
    %187 = arith.truncf %170 : vector<8x16xf32> to vector<8x16xbf16>
    %cst_61 = arith.constant dense<0.000000e+00> : vector<8x16xf32>
    %188 = tpu.matmul %186, %187, %cst_61 {dimension_numbers = #tpu.dot_dimension_numbers<[1], [0], [0], [1], [0, 0, 1, 1], [], []>} : vector<8x8xbf16>, vector<8x16xbf16>, vector<8x16xf32> -> vector<8x16xf32>
    %189 = tpu.concatenate %167, %188 in 1 : vector<8x16xf32>, vector<8x16xf32> -> vector<8x32xf32>
    %190 = vector.extract_strided_slice %49 {offsets = [24, 0], sizes = [8, 32], strides = [1, 1]} : vector<48x32xf32> to vector<8x32xf32>
    %191 = vector.extract_strided_slice %50 {offsets = [24, 0], sizes = [8, 32], strides = [1, 1]} : vector<48x32xf32> to vector<8x32xf32>
    %192 = vector.extract_strided_slice %51 {offsets = [24, 0], sizes = [8, 32], strides = [1, 1]} : vector<48x32xf32> to vector<8x32xf32>
    %193 = vector.extract_strided_slice %190 {offsets = [0, 0], sizes = [8, 16], strides = [1, 1]} : vector<8x32xf32> to vector<8x16xf32>
    %194 = vector.extract_strided_slice %191 {offsets = [0, 0], sizes = [8, 16], strides = [1, 1]} : vector<8x32xf32> to vector<8x16xf32>
    %195 = vector.extract_strided_slice %192 {offsets = [0, 0], sizes = [8, 16], strides = [1, 1]} : vector<8x32xf32> to vector<8x16xf32>
    %196 = arith.truncf %193 : vector<8x16xf32> to vector<8x16xbf16>
    %197 = arith.truncf %194 : vector<8x16xf32> to vector<8x16xbf16>
    %cst_62 = arith.constant dense<0.000000e+00> : vector<8x8xf32>
    %198 = tpu.matmul %196, %197, %cst_62 {dimension_numbers = #tpu.dot_dimension_numbers<[1], [1], [0], [0], [0, 0, 1, 0], [], []>} : vector<8x16xbf16>, vector<8x16xbf16>, vector<8x8xf32> -> vector<8x8xf32>
    %cst_63 = arith.constant 2.500000e-01 : f32
    %199 = vector.broadcast %cst_63 : f32 to vector<8x8xf32>
    %200 = arith.mulf %198, %199 : vector<8x8xf32>
    %cst_64 = arith.constant dense<0xFF800000> : vector<8xf32>
    %201 = vector.multi_reduction <maximumf>, %200, %cst_64 [1] : vector<8x8xf32> to vector<8xf32>
    %202 = vector.shape_cast %201 : vector<8xf32> to vector<8x1xf32>
    %203 = vector.broadcast %202 : vector<8x1xf32> to vector<8x8xf32>
    %204 = arith.subf %200, %203 : vector<8x8xf32>
    %205 = math.exp %204 : vector<8x8xf32>
    %cst_65 = arith.constant dense<0.000000e+00> : vector<8xf32>
    %206 = vector.multi_reduction <add>, %205, %cst_65 [1] : vector<8x8xf32> to vector<8xf32>
    %207 = vector.shape_cast %206 : vector<8xf32> to vector<8x1xf32>
    %208 = tpu.reciprocal %207 {approx = true} : vector<8x1xf32> -> vector<8x1xf32>
    %209 = vector.broadcast %208 : vector<8x1xf32> to vector<8x8xf32>
    %210 = arith.mulf %205, %209 : vector<8x8xf32>
    %211 = arith.truncf %210 : vector<8x8xf32> to vector<8x8xbf16>
    %212 = arith.truncf %195 : vector<8x16xf32> to vector<8x16xbf16>
    %cst_66 = arith.constant dense<0.000000e+00> : vector<8x16xf32>
    %213 = tpu.matmul %211, %212, %cst_66 {dimension_numbers = #tpu.dot_dimension_numbers<[1], [0], [0], [1], [0, 0, 1, 1], [], []>} : vector<8x8xbf16>, vector<8x16xbf16>, vector<8x16xf32> -> vector<8x16xf32>
    %214 = vector.extract_strided_slice %190 {offsets = [0, 16], sizes = [8, 16], strides = [1, 1]} : vector<8x32xf32> to vector<8x16xf32>
    %215 = vector.extract_strided_slice %191 {offsets = [0, 16], sizes = [8, 16], strides = [1, 1]} : vector<8x32xf32> to vector<8x16xf32>
    %216 = vector.extract_strided_slice %192 {offsets = [0, 16], sizes = [8, 16], strides = [1, 1]} : vector<8x32xf32> to vector<8x16xf32>
    %217 = arith.truncf %214 : vector<8x16xf32> to vector<8x16xbf16>
    %218 = arith.truncf %215 : vector<8x16xf32> to vector<8x16xbf16>
    %cst_67 = arith.constant dense<0.000000e+00> : vector<8x8xf32>
    %219 = tpu.matmul %217, %218, %cst_67 {dimension_numbers = #tpu.dot_dimension_numbers<[1], [1], [0], [0], [0, 0, 1, 0], [], []>} : vector<8x16xbf16>, vector<8x16xbf16>, vector<8x8xf32> -> vector<8x8xf32>
    %cst_68 = arith.constant 2.500000e-01 : f32
    %220 = vector.broadcast %cst_68 : f32 to vector<8x8xf32>
    %221 = arith.mulf %219, %220 : vector<8x8xf32>
    %cst_69 = arith.constant dense<0xFF800000> : vector<8xf32>
    %222 = vector.multi_reduction <maximumf>, %221, %cst_69 [1] : vector<8x8xf32> to vector<8xf32>
    %223 = vector.shape_cast %222 : vector<8xf32> to vector<8x1xf32>
    %224 = vector.broadcast %223 : vector<8x1xf32> to vector<8x8xf32>
    %225 = arith.subf %221, %224 : vector<8x8xf32>
    %226 = math.exp %225 : vector<8x8xf32>
    %cst_70 = arith.constant dense<0.000000e+00> : vector<8xf32>
    %227 = vector.multi_reduction <add>, %226, %cst_70 [1] : vector<8x8xf32> to vector<8xf32>
    %228 = vector.shape_cast %227 : vector<8xf32> to vector<8x1xf32>
    %229 = tpu.reciprocal %228 {approx = true} : vector<8x1xf32> -> vector<8x1xf32>
    %230 = vector.broadcast %229 : vector<8x1xf32> to vector<8x8xf32>
    %231 = arith.mulf %226, %230 : vector<8x8xf32>
    %232 = arith.truncf %231 : vector<8x8xf32> to vector<8x8xbf16>
    %233 = arith.truncf %216 : vector<8x16xf32> to vector<8x16xbf16>
    %cst_71 = arith.constant dense<0.000000e+00> : vector<8x16xf32>
    %234 = tpu.matmul %232, %233, %cst_71 {dimension_numbers = #tpu.dot_dimension_numbers<[1], [0], [0], [1], [0, 0, 1, 1], [], []>} : vector<8x8xbf16>, vector<8x16xbf16>, vector<8x16xf32> -> vector<8x16xf32>
    %235 = tpu.concatenate %213, %234 in 1 : vector<8x16xf32>, vector<8x16xf32> -> vector<8x32xf32>
    %236 = vector.extract_strided_slice %49 {offsets = [32, 0], sizes = [8, 32], strides = [1, 1]} : vector<48x32xf32> to vector<8x32xf32>
    %237 = vector.extract_strided_slice %50 {offsets = [32, 0], sizes = [8, 32], strides = [1, 1]} : vector<48x32xf32> to vector<8x32xf32>
    %238 = vector.extract_strided_slice %51 {offsets = [32, 0], sizes = [8, 32], strides = [1, 1]} : vector<48x32xf32> to vector<8x32xf32>
    %239 = vector.extract_strided_slice %236 {offsets = [0, 0], sizes = [8, 16], strides = [1, 1]} : vector<8x32xf32> to vector<8x16xf32>
    %240 = vector.extract_strided_slice %237 {offsets = [0, 0], sizes = [8, 16], strides = [1, 1]} : vector<8x32xf32> to vector<8x16xf32>
    %241 = vector.extract_strided_slice %238 {offsets = [0, 0], sizes = [8, 16], strides = [1, 1]} : vector<8x32xf32> to vector<8x16xf32>
    %242 = arith.truncf %239 : vector<8x16xf32> to vector<8x16xbf16>
    %243 = arith.truncf %240 : vector<8x16xf32> to vector<8x16xbf16>
    %cst_72 = arith.constant dense<0.000000e+00> : vector<8x8xf32>
    %244 = tpu.matmul %242, %243, %cst_72 {dimension_numbers = #tpu.dot_dimension_numbers<[1], [1], [0], [0], [0, 0, 1, 0], [], []>} : vector<8x16xbf16>, vector<8x16xbf16>, vector<8x8xf32> -> vector<8x8xf32>
    %cst_73 = arith.constant 2.500000e-01 : f32
    %245 = vector.broadcast %cst_73 : f32 to vector<8x8xf32>
    %246 = arith.mulf %244, %245 : vector<8x8xf32>
    %cst_74 = arith.constant dense<0xFF800000> : vector<8xf32>
    %247 = vector.multi_reduction <maximumf>, %246, %cst_74 [1] : vector<8x8xf32> to vector<8xf32>
    %248 = vector.shape_cast %247 : vector<8xf32> to vector<8x1xf32>
    %249 = vector.broadcast %248 : vector<8x1xf32> to vector<8x8xf32>
    %250 = arith.subf %246, %249 : vector<8x8xf32>
    %251 = math.exp %250 : vector<8x8xf32>
    %cst_75 = arith.constant dense<0.000000e+00> : vector<8xf32>
    %252 = vector.multi_reduction <add>, %251, %cst_75 [1] : vector<8x8xf32> to vector<8xf32>
    %253 = vector.shape_cast %252 : vector<8xf32> to vector<8x1xf32>
    %254 = tpu.reciprocal %253 {approx = true} : vector<8x1xf32> -> vector<8x1xf32>
    %255 = vector.broadcast %254 : vector<8x1xf32> to vector<8x8xf32>
    %256 = arith.mulf %251, %255 : vector<8x8xf32>
    %257 = arith.truncf %256 : vector<8x8xf32> to vector<8x8xbf16>
    %258 = arith.truncf %241 : vector<8x16xf32> to vector<8x16xbf16>
    %cst_76 = arith.constant dense<0.000000e+00> : vector<8x16xf32>
    %259 = tpu.matmul %257, %258, %cst_76 {dimension_numbers = #tpu.dot_dimension_numbers<[1], [0], [0], [1], [0, 0, 1, 1], [], []>} : vector<8x8xbf16>, vector<8x16xbf16>, vector<8x16xf32> -> vector<8x16xf32>
    %260 = vector.extract_strided_slice %236 {offsets = [0, 16], sizes = [8, 16], strides = [1, 1]} : vector<8x32xf32> to vector<8x16xf32>
    %261 = vector.extract_strided_slice %237 {offsets = [0, 16], sizes = [8, 16], strides = [1, 1]} : vector<8x32xf32> to vector<8x16xf32>
    %262 = vector.extract_strided_slice %238 {offsets = [0, 16], sizes = [8, 16], strides = [1, 1]} : vector<8x32xf32> to vector<8x16xf32>
    %263 = arith.truncf %260 : vector<8x16xf32> to vector<8x16xbf16>
    %264 = arith.truncf %261 : vector<8x16xf32> to vector<8x16xbf16>
    %cst_77 = arith.constant dense<0.000000e+00> : vector<8x8xf32>
    %265 = tpu.matmul %263, %264, %cst_77 {dimension_numbers = #tpu.dot_dimension_numbers<[1], [1], [0], [0], [0, 0, 1, 0], [], []>} : vector<8x16xbf16>, vector<8x16xbf16>, vector<8x8xf32> -> vector<8x8xf32>
    %cst_78 = arith.constant 2.500000e-01 : f32
    %266 = vector.broadcast %cst_78 : f32 to vector<8x8xf32>
    %267 = arith.mulf %265, %266 : vector<8x8xf32>
    %cst_79 = arith.constant dense<0xFF800000> : vector<8xf32>
    %268 = vector.multi_reduction <maximumf>, %267, %cst_79 [1] : vector<8x8xf32> to vector<8xf32>
    %269 = vector.shape_cast %268 : vector<8xf32> to vector<8x1xf32>
    %270 = vector.broadcast %269 : vector<8x1xf32> to vector<8x8xf32>
    %271 = arith.subf %267, %270 : vector<8x8xf32>
    %272 = math.exp %271 : vector<8x8xf32>
    %cst_80 = arith.constant dense<0.000000e+00> : vector<8xf32>
    %273 = vector.multi_reduction <add>, %272, %cst_80 [1] : vector<8x8xf32> to vector<8xf32>
    %274 = vector.shape_cast %273 : vector<8xf32> to vector<8x1xf32>
    %275 = tpu.reciprocal %274 {approx = true} : vector<8x1xf32> -> vector<8x1xf32>
    %276 = vector.broadcast %275 : vector<8x1xf32> to vector<8x8xf32>
    %277 = arith.mulf %272, %276 : vector<8x8xf32>
    %278 = arith.truncf %277 : vector<8x8xf32> to vector<8x8xbf16>
    %279 = arith.truncf %262 : vector<8x16xf32> to vector<8x16xbf16>
    %cst_81 = arith.constant dense<0.000000e+00> : vector<8x16xf32>
    %280 = tpu.matmul %278, %279, %cst_81 {dimension_numbers = #tpu.dot_dimension_numbers<[1], [0], [0], [1], [0, 0, 1, 1], [], []>} : vector<8x8xbf16>, vector<8x16xbf16>, vector<8x16xf32> -> vector<8x16xf32>
    %281 = tpu.concatenate %259, %280 in 1 : vector<8x16xf32>, vector<8x16xf32> -> vector<8x32xf32>
    %282 = vector.extract_strided_slice %49 {offsets = [40, 0], sizes = [8, 32], strides = [1, 1]} : vector<48x32xf32> to vector<8x32xf32>
    %283 = vector.extract_strided_slice %50 {offsets = [40, 0], sizes = [8, 32], strides = [1, 1]} : vector<48x32xf32> to vector<8x32xf32>
    %284 = vector.extract_strided_slice %51 {offsets = [40, 0], sizes = [8, 32], strides = [1, 1]} : vector<48x32xf32> to vector<8x32xf32>
    %285 = vector.extract_strided_slice %282 {offsets = [0, 0], sizes = [8, 16], strides = [1, 1]} : vector<8x32xf32> to vector<8x16xf32>
    %286 = vector.extract_strided_slice %283 {offsets = [0, 0], sizes = [8, 16], strides = [1, 1]} : vector<8x32xf32> to vector<8x16xf32>
    %287 = vector.extract_strided_slice %284 {offsets = [0, 0], sizes = [8, 16], strides = [1, 1]} : vector<8x32xf32> to vector<8x16xf32>
    %288 = arith.truncf %285 : vector<8x16xf32> to vector<8x16xbf16>
    %289 = arith.truncf %286 : vector<8x16xf32> to vector<8x16xbf16>
    %cst_82 = arith.constant dense<0.000000e+00> : vector<8x8xf32>
    %290 = tpu.matmul %288, %289, %cst_82 {dimension_numbers = #tpu.dot_dimension_numbers<[1], [1], [0], [0], [0, 0, 1, 0], [], []>} : vector<8x16xbf16>, vector<8x16xbf16>, vector<8x8xf32> -> vector<8x8xf32>
    %cst_83 = arith.constant 2.500000e-01 : f32
    %291 = vector.broadcast %cst_83 : f32 to vector<8x8xf32>
    %292 = arith.mulf %290, %291 : vector<8x8xf32>
    %cst_84 = arith.constant dense<0xFF800000> : vector<8xf32>
    %293 = vector.multi_reduction <maximumf>, %292, %cst_84 [1] : vector<8x8xf32> to vector<8xf32>
    %294 = vector.shape_cast %293 : vector<8xf32> to vector<8x1xf32>
    %295 = vector.broadcast %294 : vector<8x1xf32> to vector<8x8xf32>
    %296 = arith.subf %292, %295 : vector<8x8xf32>
    %297 = math.exp %296 : vector<8x8xf32>
    %cst_85 = arith.constant dense<0.000000e+00> : vector<8xf32>
    %298 = vector.multi_reduction <add>, %297, %cst_85 [1] : vector<8x8xf32> to vector<8xf32>
    %299 = vector.shape_cast %298 : vector<8xf32> to vector<8x1xf32>
    %300 = tpu.reciprocal %299 {approx = true} : vector<8x1xf32> -> vector<8x1xf32>
    %301 = vector.broadcast %300 : vector<8x1xf32> to vector<8x8xf32>
    %302 = arith.mulf %297, %301 : vector<8x8xf32>
    %303 = arith.truncf %302 : vector<8x8xf32> to vector<8x8xbf16>
    %304 = arith.truncf %287 : vector<8x16xf32> to vector<8x16xbf16>
    %cst_86 = arith.constant dense<0.000000e+00> : vector<8x16xf32>
    %305 = tpu.matmul %303, %304, %cst_86 {dimension_numbers = #tpu.dot_dimension_numbers<[1], [0], [0], [1], [0, 0, 1, 1], [], []>} : vector<8x8xbf16>, vector<8x16xbf16>, vector<8x16xf32> -> vector<8x16xf32>
    %306 = vector.extract_strided_slice %282 {offsets = [0, 16], sizes = [8, 16], strides = [1, 1]} : vector<8x32xf32> to vector<8x16xf32>
    %307 = vector.extract_strided_slice %283 {offsets = [0, 16], sizes = [8, 16], strides = [1, 1]} : vector<8x32xf32> to vector<8x16xf32>
    %308 = vector.extract_strided_slice %284 {offsets = [0, 16], sizes = [8, 16], strides = [1, 1]} : vector<8x32xf32> to vector<8x16xf32>
    %309 = arith.truncf %306 : vector<8x16xf32> to vector<8x16xbf16>
    %310 = arith.truncf %307 : vector<8x16xf32> to vector<8x16xbf16>
    %cst_87 = arith.constant dense<0.000000e+00> : vector<8x8xf32>
    %311 = tpu.matmul %309, %310, %cst_87 {dimension_numbers = #tpu.dot_dimension_numbers<[1], [1], [0], [0], [0, 0, 1, 0], [], []>} : vector<8x16xbf16>, vector<8x16xbf16>, vector<8x8xf32> -> vector<8x8xf32>
    %cst_88 = arith.constant 2.500000e-01 : f32
    %312 = vector.broadcast %cst_88 : f32 to vector<8x8xf32>
    %313 = arith.mulf %311, %312 : vector<8x8xf32>
    %cst_89 = arith.constant dense<0xFF800000> : vector<8xf32>
    %314 = vector.multi_reduction <maximumf>, %313, %cst_89 [1] : vector<8x8xf32> to vector<8xf32>
    %315 = vector.shape_cast %314 : vector<8xf32> to vector<8x1xf32>
    %316 = vector.broadcast %315 : vector<8x1xf32> to vector<8x8xf32>
    %317 = arith.subf %313, %316 : vector<8x8xf32>
    %318 = math.exp %317 : vector<8x8xf32>
    %cst_90 = arith.constant dense<0.000000e+00> : vector<8xf32>
    %319 = vector.multi_reduction <add>, %318, %cst_90 [1] : vector<8x8xf32> to vector<8xf32>
    %320 = vector.shape_cast %319 : vector<8xf32> to vector<8x1xf32>
    %321 = tpu.reciprocal %320 {approx = true} : vector<8x1xf32> -> vector<8x1xf32>
    %322 = vector.broadcast %321 : vector<8x1xf32> to vector<8x8xf32>
    %323 = arith.mulf %318, %322 : vector<8x8xf32>
    %324 = arith.truncf %323 : vector<8x8xf32> to vector<8x8xbf16>
    %325 = arith.truncf %308 : vector<8x16xf32> to vector<8x16xbf16>
    %cst_91 = arith.constant dense<0.000000e+00> : vector<8x16xf32>
    %326 = tpu.matmul %324, %325, %cst_91 {dimension_numbers = #tpu.dot_dimension_numbers<[1], [0], [0], [1], [0, 0, 1, 1], [], []>} : vector<8x8xbf16>, vector<8x16xbf16>, vector<8x16xf32> -> vector<8x16xf32>
    %327 = tpu.concatenate %305, %326 in 1 : vector<8x16xf32>, vector<8x16xf32> -> vector<8x32xf32>
    %328 = tpu.concatenate %97, %143, %189, %235, %281, %327 in 0 : vector<8x32xf32>, vector<8x32xf32>, vector<8x32xf32>, vector<8x32xf32>, vector<8x32xf32>, vector<8x32xf32> -> vector<48x32xf32>
    %c0_92 = arith.constant 0 : index
    %c0_93 = arith.constant 0 : index
    %c0_94 = arith.constant 0 : index
    %329 = vector.load %arg11[%c0_92, %c0_93, %c0_94] : memref<2x32x32xbf16, #tpu.memory_space<vmem>>, vector<1x32x32xbf16>
    %330 = vector.shape_cast %329 : vector<1x32x32xbf16> to vector<32x32xbf16>
    %331 = arith.truncf %328 : vector<48x32xf32> to vector<48x32xbf16>
    %cst_95 = arith.constant dense<0.000000e+00> : vector<48x32xf32>
    %332 = tpu.matmul %331, %330, %cst_95 {dimension_numbers = #tpu.dot_dimension_numbers<[1], [0], [0], [1], [0, 0, 1, 1], [], []>} : vector<48x32xbf16>, vector<32x32xbf16>, vector<48x32xf32> -> vector<48x32xf32>
    %c0_96 = arith.constant 0 : index
    %c0_97 = arith.constant 0 : index
    %c0_98 = arith.constant 0 : index
    %333 = vector.load %arg12[%c0_96, %c0_97, %c0_98] : memref<2x1x32xf32, #tpu.memory_space<vmem>>, vector<1x1x32xf32>
    %334 = vector.shape_cast %333 : vector<1x1x32xf32> to vector<1x32xf32>
    %335 = vector.broadcast %334 : vector<1x32xf32> to vector<48x32xf32>
    %336 = arith.addf %332, %335 : vector<48x32xf32>
    %337 = arith.addf %336, %40 : vector<48x32xf32>
    %c0_99 = arith.constant 0 : index
    %c0_100 = arith.constant 0 : index
    %c0_101 = arith.constant 0 : index
    %338 = vector.load %arg13[%c0_99, %c0_100, %c0_101] : memref<2x1x32xf32, #tpu.memory_space<vmem>>, vector<1x1x32xf32>
    %339 = vector.shape_cast %338 : vector<1x1x32xf32> to vector<1x32xf32>
    %c0_102 = arith.constant 0 : index
    %c0_103 = arith.constant 0 : index
    %c0_104 = arith.constant 0 : index
    %340 = vector.load %arg14[%c0_102, %c0_103, %c0_104] : memref<2x1x32xf32, #tpu.memory_space<vmem>>, vector<1x1x32xf32>
    %341 = vector.shape_cast %340 : vector<1x1x32xf32> to vector<1x32xf32>
    %cst_105 = arith.constant dense<0.000000e+00> : vector<48xf32>
    %342 = vector.multi_reduction <add>, %337, %cst_105 [1] : vector<48x32xf32> to vector<48xf32>
    %343 = vector.shape_cast %342 : vector<48xf32> to vector<48x1xf32>
    %cst_106 = arith.constant 3.200000e+01 : f32
    %344 = vector.broadcast %cst_106 : f32 to vector<48x1xf32>
    %345 = arith.divf %343, %344 : vector<48x1xf32>
    %346 = vector.broadcast %345 : vector<48x1xf32> to vector<48x32xf32>
    %347 = arith.subf %337, %346 : vector<48x32xf32>
    %348 = arith.mulf %347, %347 : vector<48x32xf32>
    %cst_107 = arith.constant dense<0.000000e+00> : vector<48xf32>
    %349 = vector.multi_reduction <add>, %348, %cst_107 [1] : vector<48x32xf32> to vector<48xf32>
    %350 = vector.shape_cast %349 : vector<48xf32> to vector<48x1xf32>
    %cst_108 = arith.constant 3.200000e+01 : f32
    %351 = vector.broadcast %cst_108 : f32 to vector<48x1xf32>
    %352 = arith.divf %350, %351 : vector<48x1xf32>
    %353 = vector.broadcast %345 : vector<48x1xf32> to vector<48x32xf32>
    %354 = arith.subf %337, %353 : vector<48x32xf32>
    %cst_109 = arith.constant 9.99999974E-6 : f32
    %355 = vector.broadcast %cst_109 : f32 to vector<48x1xf32>
    %356 = arith.addf %352, %355 : vector<48x1xf32>
    %357 = math.rsqrt %356 : vector<48x1xf32>
    %358 = vector.broadcast %357 : vector<48x1xf32> to vector<48x32xf32>
    %359 = arith.mulf %354, %358 : vector<48x32xf32>
    %360 = vector.broadcast %339 : vector<1x32xf32> to vector<48x32xf32>
    %361 = arith.mulf %359, %360 : vector<48x32xf32>
    %362 = vector.broadcast %341 : vector<1x32xf32> to vector<48x32xf32>
    %363 = arith.addf %361, %362 : vector<48x32xf32>
    %c0_110 = arith.constant 0 : index
    %c0_111 = arith.constant 0 : index
    %c0_112 = arith.constant 0 : index
    %364 = vector.load %arg15[%c0_110, %c0_111, %c0_112] : memref<2x32x64xbf16, #tpu.memory_space<vmem>>, vector<1x32x64xbf16>
    %365 = vector.shape_cast %364 : vector<1x32x64xbf16> to vector<32x64xbf16>
    %366 = arith.truncf %363 : vector<48x32xf32> to vector<48x32xbf16>
    %cst_113 = arith.constant dense<0.000000e+00> : vector<48x64xf32>
    %367 = tpu.matmul %366, %365, %cst_113 {dimension_numbers = #tpu.dot_dimension_numbers<[1], [0], [0], [1], [0, 0, 1, 1], [], []>} : vector<48x32xbf16>, vector<32x64xbf16>, vector<48x64xf32> -> vector<48x64xf32>
    %c0_114 = arith.constant 0 : index
    %c0_115 = arith.constant 0 : index
    %c0_116 = arith.constant 0 : index
    %368 = vector.load %arg16[%c0_114, %c0_115, %c0_116] : memref<2x1x64xf32, #tpu.memory_space<vmem>>, vector<1x1x64xf32>
    %369 = vector.shape_cast %368 : vector<1x1x64xf32> to vector<1x64xf32>
    %370 = vector.broadcast %369 : vector<1x64xf32> to vector<48x64xf32>
    %371 = arith.addf %367, %370 : vector<48x64xf32>
    %cst_117 = arith.constant 5.000000e-01 : f32
    %372 = vector.broadcast %cst_117 : f32 to vector<48x64xf32>
    %373 = arith.mulf %372, %371 : vector<48x64xf32>
    %cst_118 = arith.constant 0.707106769 : f32
    %374 = vector.broadcast %cst_118 : f32 to vector<48x64xf32>
    %375 = arith.mulf %371, %374 : vector<48x64xf32>
    %376 = math.erf %375 : vector<48x64xf32>
    %cst_119 = arith.constant 1.000000e+00 : f32
    %377 = vector.broadcast %cst_119 : f32 to vector<48x64xf32>
    %378 = arith.addf %377, %376 : vector<48x64xf32>
    %379 = arith.mulf %373, %378 : vector<48x64xf32>
    %c0_120 = arith.constant 0 : index
    %c0_121 = arith.constant 0 : index
    %c0_122 = arith.constant 0 : index
    %380 = vector.load %arg17[%c0_120, %c0_121, %c0_122] : memref<2x64x32xbf16, #tpu.memory_space<vmem>>, vector<1x64x32xbf16>
    %381 = vector.shape_cast %380 : vector<1x64x32xbf16> to vector<64x32xbf16>
    %382 = arith.truncf %379 : vector<48x64xf32> to vector<48x64xbf16>
    %cst_123 = arith.constant dense<0.000000e+00> : vector<48x32xf32>
    %383 = tpu.matmul %382, %381, %cst_123 {dimension_numbers = #tpu.dot_dimension_numbers<[1], [0], [0], [1], [0, 0, 1, 1], [], []>} : vector<48x64xbf16>, vector<64x32xbf16>, vector<48x32xf32> -> vector<48x32xf32>
    %c0_124 = arith.constant 0 : index
    %c0_125 = arith.constant 0 : index
    %c0_126 = arith.constant 0 : index
    %384 = vector.load %arg18[%c0_124, %c0_125, %c0_126] : memref<2x1x32xf32, #tpu.memory_space<vmem>>, vector<1x1x32xf32>
    %385 = vector.shape_cast %384 : vector<1x1x32xf32> to vector<1x32xf32>
    %386 = vector.broadcast %385 : vector<1x32xf32> to vector<48x32xf32>
    %387 = arith.addf %383, %386 : vector<48x32xf32>
    %388 = arith.addf %387, %363 : vector<48x32xf32>
    %c0_127 = arith.constant 0 : index
    %c0_128 = arith.constant 0 : index
    %c0_129 = arith.constant 0 : index
    %389 = vector.load %arg19[%c0_127, %c0_128, %c0_129] : memref<2x1x32xf32, #tpu.memory_space<vmem>>, vector<1x1x32xf32>
    %390 = vector.shape_cast %389 : vector<1x1x32xf32> to vector<1x32xf32>
    %c0_130 = arith.constant 0 : index
    %c0_131 = arith.constant 0 : index
    %c0_132 = arith.constant 0 : index
    %391 = vector.load %arg20[%c0_130, %c0_131, %c0_132] : memref<2x1x32xf32, #tpu.memory_space<vmem>>, vector<1x1x32xf32>
    %392 = vector.shape_cast %391 : vector<1x1x32xf32> to vector<1x32xf32>
    %cst_133 = arith.constant dense<0.000000e+00> : vector<48xf32>
    %393 = vector.multi_reduction <add>, %388, %cst_133 [1] : vector<48x32xf32> to vector<48xf32>
    %394 = vector.shape_cast %393 : vector<48xf32> to vector<48x1xf32>
    %cst_134 = arith.constant 3.200000e+01 : f32
    %395 = vector.broadcast %cst_134 : f32 to vector<48x1xf32>
    %396 = arith.divf %394, %395 : vector<48x1xf32>
    %397 = vector.broadcast %396 : vector<48x1xf32> to vector<48x32xf32>
    %398 = arith.subf %388, %397 : vector<48x32xf32>
    %399 = arith.mulf %398, %398 : vector<48x32xf32>
    %cst_135 = arith.constant dense<0.000000e+00> : vector<48xf32>
    %400 = vector.multi_reduction <add>, %399, %cst_135 [1] : vector<48x32xf32> to vector<48xf32>
    %401 = vector.shape_cast %400 : vector<48xf32> to vector<48x1xf32>
    %cst_136 = arith.constant 3.200000e+01 : f32
    %402 = vector.broadcast %cst_136 : f32 to vector<48x1xf32>
    %403 = arith.divf %401, %402 : vector<48x1xf32>
    %404 = vector.broadcast %396 : vector<48x1xf32> to vector<48x32xf32>
    %405 = arith.subf %388, %404 : vector<48x32xf32>
    %cst_137 = arith.constant 9.99999974E-6 : f32
    %406 = vector.broadcast %cst_137 : f32 to vector<48x1xf32>
    %407 = arith.addf %403, %406 : vector<48x1xf32>
    %408 = math.rsqrt %407 : vector<48x1xf32>
    %409 = vector.broadcast %408 : vector<48x1xf32> to vector<48x32xf32>
    %410 = arith.mulf %405, %409 : vector<48x32xf32>
    %411 = vector.broadcast %390 : vector<1x32xf32> to vector<48x32xf32>
    %412 = arith.mulf %410, %411 : vector<48x32xf32>
    %413 = vector.broadcast %392 : vector<1x32xf32> to vector<48x32xf32>
    %414 = arith.addf %412, %413 : vector<48x32xf32>
    %c1 = arith.constant 1 : index
    %c0_138 = arith.constant 0 : index
    %c0_139 = arith.constant 0 : index
    %415 = vector.load %arg9[%c1, %c0_138, %c0_139] : memref<2x32x96xbf16, #tpu.memory_space<vmem>>, vector<1x32x96xbf16>
    %416 = vector.shape_cast %415 : vector<1x32x96xbf16> to vector<32x96xbf16>
    %417 = arith.truncf %414 : vector<48x32xf32> to vector<48x32xbf16>
    %cst_140 = arith.constant dense<0.000000e+00> : vector<48x96xf32>
    %418 = tpu.matmul %417, %416, %cst_140 {dimension_numbers = #tpu.dot_dimension_numbers<[1], [0], [0], [1], [0, 0, 1, 1], [], []>} : vector<48x32xbf16>, vector<32x96xbf16>, vector<48x96xf32> -> vector<48x96xf32>
    %c1_141 = arith.constant 1 : index
    %c0_142 = arith.constant 0 : index
    %c0_143 = arith.constant 0 : index
    %419 = vector.load %arg10[%c1_141, %c0_142, %c0_143] : memref<2x1x96xf32, #tpu.memory_space<vmem>>, vector<1x1x96xf32>
    %420 = vector.shape_cast %419 : vector<1x1x96xf32> to vector<1x96xf32>
    %421 = vector.broadcast %420 : vector<1x96xf32> to vector<48x96xf32>
    %422 = arith.addf %418, %421 : vector<48x96xf32>
    %423 = vector.extract_strided_slice %422 {offsets = [0, 0], sizes = [48, 32], strides = [1, 1]} : vector<48x96xf32> to vector<48x32xf32>
    %424 = vector.extract_strided_slice %422 {offsets = [0, 32], sizes = [48, 32], strides = [1, 1]} : vector<48x96xf32> to vector<48x32xf32>
    %425 = vector.extract_strided_slice %422 {offsets = [0, 64], sizes = [48, 32], strides = [1, 1]} : vector<48x96xf32> to vector<48x32xf32>
    %426 = vector.extract_strided_slice %423 {offsets = [0, 0], sizes = [8, 32], strides = [1, 1]} : vector<48x32xf32> to vector<8x32xf32>
    %427 = vector.extract_strided_slice %424 {offsets = [0, 0], sizes = [8, 32], strides = [1, 1]} : vector<48x32xf32> to vector<8x32xf32>
    %428 = vector.extract_strided_slice %425 {offsets = [0, 0], sizes = [8, 32], strides = [1, 1]} : vector<48x32xf32> to vector<8x32xf32>
    %429 = vector.extract_strided_slice %426 {offsets = [0, 0], sizes = [8, 16], strides = [1, 1]} : vector<8x32xf32> to vector<8x16xf32>
    %430 = vector.extract_strided_slice %427 {offsets = [0, 0], sizes = [8, 16], strides = [1, 1]} : vector<8x32xf32> to vector<8x16xf32>
    %431 = vector.extract_strided_slice %428 {offsets = [0, 0], sizes = [8, 16], strides = [1, 1]} : vector<8x32xf32> to vector<8x16xf32>
    %432 = arith.truncf %429 : vector<8x16xf32> to vector<8x16xbf16>
    %433 = arith.truncf %430 : vector<8x16xf32> to vector<8x16xbf16>
    %cst_144 = arith.constant dense<0.000000e+00> : vector<8x8xf32>
    %434 = tpu.matmul %432, %433, %cst_144 {dimension_numbers = #tpu.dot_dimension_numbers<[1], [1], [0], [0], [0, 0, 1, 0], [], []>} : vector<8x16xbf16>, vector<8x16xbf16>, vector<8x8xf32> -> vector<8x8xf32>
    %cst_145 = arith.constant 2.500000e-01 : f32
    %435 = vector.broadcast %cst_145 : f32 to vector<8x8xf32>
    %436 = arith.mulf %434, %435 : vector<8x8xf32>
    %cst_146 = arith.constant dense<0xFF800000> : vector<8xf32>
    %437 = vector.multi_reduction <maximumf>, %436, %cst_146 [1] : vector<8x8xf32> to vector<8xf32>
    %438 = vector.shape_cast %437 : vector<8xf32> to vector<8x1xf32>
    %439 = vector.broadcast %438 : vector<8x1xf32> to vector<8x8xf32>
    %440 = arith.subf %436, %439 : vector<8x8xf32>
    %441 = math.exp %440 : vector<8x8xf32>
    %cst_147 = arith.constant dense<0.000000e+00> : vector<8xf32>
    %442 = vector.multi_reduction <add>, %441, %cst_147 [1] : vector<8x8xf32> to vector<8xf32>
    %443 = vector.shape_cast %442 : vector<8xf32> to vector<8x1xf32>
    %444 = tpu.reciprocal %443 {approx = true} : vector<8x1xf32> -> vector<8x1xf32>
    %445 = vector.broadcast %444 : vector<8x1xf32> to vector<8x8xf32>
    %446 = arith.mulf %441, %445 : vector<8x8xf32>
    %447 = arith.truncf %446 : vector<8x8xf32> to vector<8x8xbf16>
    %448 = arith.truncf %431 : vector<8x16xf32> to vector<8x16xbf16>
    %cst_148 = arith.constant dense<0.000000e+00> : vector<8x16xf32>
    %449 = tpu.matmul %447, %448, %cst_148 {dimension_numbers = #tpu.dot_dimension_numbers<[1], [0], [0], [1], [0, 0, 1, 1], [], []>} : vector<8x8xbf16>, vector<8x16xbf16>, vector<8x16xf32> -> vector<8x16xf32>
    %450 = vector.extract_strided_slice %426 {offsets = [0, 16], sizes = [8, 16], strides = [1, 1]} : vector<8x32xf32> to vector<8x16xf32>
    %451 = vector.extract_strided_slice %427 {offsets = [0, 16], sizes = [8, 16], strides = [1, 1]} : vector<8x32xf32> to vector<8x16xf32>
    %452 = vector.extract_strided_slice %428 {offsets = [0, 16], sizes = [8, 16], strides = [1, 1]} : vector<8x32xf32> to vector<8x16xf32>
    %453 = arith.truncf %450 : vector<8x16xf32> to vector<8x16xbf16>
    %454 = arith.truncf %451 : vector<8x16xf32> to vector<8x16xbf16>
    %cst_149 = arith.constant dense<0.000000e+00> : vector<8x8xf32>
    %455 = tpu.matmul %453, %454, %cst_149 {dimension_numbers = #tpu.dot_dimension_numbers<[1], [1], [0], [0], [0, 0, 1, 0], [], []>} : vector<8x16xbf16>, vector<8x16xbf16>, vector<8x8xf32> -> vector<8x8xf32>
    %cst_150 = arith.constant 2.500000e-01 : f32
    %456 = vector.broadcast %cst_150 : f32 to vector<8x8xf32>
    %457 = arith.mulf %455, %456 : vector<8x8xf32>
    %cst_151 = arith.constant dense<0xFF800000> : vector<8xf32>
    %458 = vector.multi_reduction <maximumf>, %457, %cst_151 [1] : vector<8x8xf32> to vector<8xf32>
    %459 = vector.shape_cast %458 : vector<8xf32> to vector<8x1xf32>
    %460 = vector.broadcast %459 : vector<8x1xf32> to vector<8x8xf32>
    %461 = arith.subf %457, %460 : vector<8x8xf32>
    %462 = math.exp %461 : vector<8x8xf32>
    %cst_152 = arith.constant dense<0.000000e+00> : vector<8xf32>
    %463 = vector.multi_reduction <add>, %462, %cst_152 [1] : vector<8x8xf32> to vector<8xf32>
    %464 = vector.shape_cast %463 : vector<8xf32> to vector<8x1xf32>
    %465 = tpu.reciprocal %464 {approx = true} : vector<8x1xf32> -> vector<8x1xf32>
    %466 = vector.broadcast %465 : vector<8x1xf32> to vector<8x8xf32>
    %467 = arith.mulf %462, %466 : vector<8x8xf32>
    %468 = arith.truncf %467 : vector<8x8xf32> to vector<8x8xbf16>
    %469 = arith.truncf %452 : vector<8x16xf32> to vector<8x16xbf16>
    %cst_153 = arith.constant dense<0.000000e+00> : vector<8x16xf32>
    %470 = tpu.matmul %468, %469, %cst_153 {dimension_numbers = #tpu.dot_dimension_numbers<[1], [0], [0], [1], [0, 0, 1, 1], [], []>} : vector<8x8xbf16>, vector<8x16xbf16>, vector<8x16xf32> -> vector<8x16xf32>
    %471 = tpu.concatenate %449, %470 in 1 : vector<8x16xf32>, vector<8x16xf32> -> vector<8x32xf32>
    %472 = vector.extract_strided_slice %423 {offsets = [8, 0], sizes = [8, 32], strides = [1, 1]} : vector<48x32xf32> to vector<8x32xf32>
    %473 = vector.extract_strided_slice %424 {offsets = [8, 0], sizes = [8, 32], strides = [1, 1]} : vector<48x32xf32> to vector<8x32xf32>
    %474 = vector.extract_strided_slice %425 {offsets = [8, 0], sizes = [8, 32], strides = [1, 1]} : vector<48x32xf32> to vector<8x32xf32>
    %475 = vector.extract_strided_slice %472 {offsets = [0, 0], sizes = [8, 16], strides = [1, 1]} : vector<8x32xf32> to vector<8x16xf32>
    %476 = vector.extract_strided_slice %473 {offsets = [0, 0], sizes = [8, 16], strides = [1, 1]} : vector<8x32xf32> to vector<8x16xf32>
    %477 = vector.extract_strided_slice %474 {offsets = [0, 0], sizes = [8, 16], strides = [1, 1]} : vector<8x32xf32> to vector<8x16xf32>
    %478 = arith.truncf %475 : vector<8x16xf32> to vector<8x16xbf16>
    %479 = arith.truncf %476 : vector<8x16xf32> to vector<8x16xbf16>
    %cst_154 = arith.constant dense<0.000000e+00> : vector<8x8xf32>
    %480 = tpu.matmul %478, %479, %cst_154 {dimension_numbers = #tpu.dot_dimension_numbers<[1], [1], [0], [0], [0, 0, 1, 0], [], []>} : vector<8x16xbf16>, vector<8x16xbf16>, vector<8x8xf32> -> vector<8x8xf32>
    %cst_155 = arith.constant 2.500000e-01 : f32
    %481 = vector.broadcast %cst_155 : f32 to vector<8x8xf32>
    %482 = arith.mulf %480, %481 : vector<8x8xf32>
    %cst_156 = arith.constant dense<0xFF800000> : vector<8xf32>
    %483 = vector.multi_reduction <maximumf>, %482, %cst_156 [1] : vector<8x8xf32> to vector<8xf32>
    %484 = vector.shape_cast %483 : vector<8xf32> to vector<8x1xf32>
    %485 = vector.broadcast %484 : vector<8x1xf32> to vector<8x8xf32>
    %486 = arith.subf %482, %485 : vector<8x8xf32>
    %487 = math.exp %486 : vector<8x8xf32>
    %cst_157 = arith.constant dense<0.000000e+00> : vector<8xf32>
    %488 = vector.multi_reduction <add>, %487, %cst_157 [1] : vector<8x8xf32> to vector<8xf32>
    %489 = vector.shape_cast %488 : vector<8xf32> to vector<8x1xf32>
    %490 = tpu.reciprocal %489 {approx = true} : vector<8x1xf32> -> vector<8x1xf32>
    %491 = vector.broadcast %490 : vector<8x1xf32> to vector<8x8xf32>
    %492 = arith.mulf %487, %491 : vector<8x8xf32>
    %493 = arith.truncf %492 : vector<8x8xf32> to vector<8x8xbf16>
    %494 = arith.truncf %477 : vector<8x16xf32> to vector<8x16xbf16>
    %cst_158 = arith.constant dense<0.000000e+00> : vector<8x16xf32>
    %495 = tpu.matmul %493, %494, %cst_158 {dimension_numbers = #tpu.dot_dimension_numbers<[1], [0], [0], [1], [0, 0, 1, 1], [], []>} : vector<8x8xbf16>, vector<8x16xbf16>, vector<8x16xf32> -> vector<8x16xf32>
    %496 = vector.extract_strided_slice %472 {offsets = [0, 16], sizes = [8, 16], strides = [1, 1]} : vector<8x32xf32> to vector<8x16xf32>
    %497 = vector.extract_strided_slice %473 {offsets = [0, 16], sizes = [8, 16], strides = [1, 1]} : vector<8x32xf32> to vector<8x16xf32>
    %498 = vector.extract_strided_slice %474 {offsets = [0, 16], sizes = [8, 16], strides = [1, 1]} : vector<8x32xf32> to vector<8x16xf32>
    %499 = arith.truncf %496 : vector<8x16xf32> to vector<8x16xbf16>
    %500 = arith.truncf %497 : vector<8x16xf32> to vector<8x16xbf16>
    %cst_159 = arith.constant dense<0.000000e+00> : vector<8x8xf32>
    %501 = tpu.matmul %499, %500, %cst_159 {dimension_numbers = #tpu.dot_dimension_numbers<[1], [1], [0], [0], [0, 0, 1, 0], [], []>} : vector<8x16xbf16>, vector<8x16xbf16>, vector<8x8xf32> -> vector<8x8xf32>
    %cst_160 = arith.constant 2.500000e-01 : f32
    %502 = vector.broadcast %cst_160 : f32 to vector<8x8xf32>
    %503 = arith.mulf %501, %502 : vector<8x8xf32>
    %cst_161 = arith.constant dense<0xFF800000> : vector<8xf32>
    %504 = vector.multi_reduction <maximumf>, %503, %cst_161 [1] : vector<8x8xf32> to vector<8xf32>
    %505 = vector.shape_cast %504 : vector<8xf32> to vector<8x1xf32>
    %506 = vector.broadcast %505 : vector<8x1xf32> to vector<8x8xf32>
    %507 = arith.subf %503, %506 : vector<8x8xf32>
    %508 = math.exp %507 : vector<8x8xf32>
    %cst_162 = arith.constant dense<0.000000e+00> : vector<8xf32>
    %509 = vector.multi_reduction <add>, %508, %cst_162 [1] : vector<8x8xf32> to vector<8xf32>
    %510 = vector.shape_cast %509 : vector<8xf32> to vector<8x1xf32>
    %511 = tpu.reciprocal %510 {approx = true} : vector<8x1xf32> -> vector<8x1xf32>
    %512 = vector.broadcast %511 : vector<8x1xf32> to vector<8x8xf32>
    %513 = arith.mulf %508, %512 : vector<8x8xf32>
    %514 = arith.truncf %513 : vector<8x8xf32> to vector<8x8xbf16>
    %515 = arith.truncf %498 : vector<8x16xf32> to vector<8x16xbf16>
    %cst_163 = arith.constant dense<0.000000e+00> : vector<8x16xf32>
    %516 = tpu.matmul %514, %515, %cst_163 {dimension_numbers = #tpu.dot_dimension_numbers<[1], [0], [0], [1], [0, 0, 1, 1], [], []>} : vector<8x8xbf16>, vector<8x16xbf16>, vector<8x16xf32> -> vector<8x16xf32>
    %517 = tpu.concatenate %495, %516 in 1 : vector<8x16xf32>, vector<8x16xf32> -> vector<8x32xf32>
    %518 = vector.extract_strided_slice %423 {offsets = [16, 0], sizes = [8, 32], strides = [1, 1]} : vector<48x32xf32> to vector<8x32xf32>
    %519 = vector.extract_strided_slice %424 {offsets = [16, 0], sizes = [8, 32], strides = [1, 1]} : vector<48x32xf32> to vector<8x32xf32>
    %520 = vector.extract_strided_slice %425 {offsets = [16, 0], sizes = [8, 32], strides = [1, 1]} : vector<48x32xf32> to vector<8x32xf32>
    %521 = vector.extract_strided_slice %518 {offsets = [0, 0], sizes = [8, 16], strides = [1, 1]} : vector<8x32xf32> to vector<8x16xf32>
    %522 = vector.extract_strided_slice %519 {offsets = [0, 0], sizes = [8, 16], strides = [1, 1]} : vector<8x32xf32> to vector<8x16xf32>
    %523 = vector.extract_strided_slice %520 {offsets = [0, 0], sizes = [8, 16], strides = [1, 1]} : vector<8x32xf32> to vector<8x16xf32>
    %524 = arith.truncf %521 : vector<8x16xf32> to vector<8x16xbf16>
    %525 = arith.truncf %522 : vector<8x16xf32> to vector<8x16xbf16>
    %cst_164 = arith.constant dense<0.000000e+00> : vector<8x8xf32>
    %526 = tpu.matmul %524, %525, %cst_164 {dimension_numbers = #tpu.dot_dimension_numbers<[1], [1], [0], [0], [0, 0, 1, 0], [], []>} : vector<8x16xbf16>, vector<8x16xbf16>, vector<8x8xf32> -> vector<8x8xf32>
    %cst_165 = arith.constant 2.500000e-01 : f32
    %527 = vector.broadcast %cst_165 : f32 to vector<8x8xf32>
    %528 = arith.mulf %526, %527 : vector<8x8xf32>
    %cst_166 = arith.constant dense<0xFF800000> : vector<8xf32>
    %529 = vector.multi_reduction <maximumf>, %528, %cst_166 [1] : vector<8x8xf32> to vector<8xf32>
    %530 = vector.shape_cast %529 : vector<8xf32> to vector<8x1xf32>
    %531 = vector.broadcast %530 : vector<8x1xf32> to vector<8x8xf32>
    %532 = arith.subf %528, %531 : vector<8x8xf32>
    %533 = math.exp %532 : vector<8x8xf32>
    %cst_167 = arith.constant dense<0.000000e+00> : vector<8xf32>
    %534 = vector.multi_reduction <add>, %533, %cst_167 [1] : vector<8x8xf32> to vector<8xf32>
    %535 = vector.shape_cast %534 : vector<8xf32> to vector<8x1xf32>
    %536 = tpu.reciprocal %535 {approx = true} : vector<8x1xf32> -> vector<8x1xf32>
    %537 = vector.broadcast %536 : vector<8x1xf32> to vector<8x8xf32>
    %538 = arith.mulf %533, %537 : vector<8x8xf32>
    %539 = arith.truncf %538 : vector<8x8xf32> to vector<8x8xbf16>
    %540 = arith.truncf %523 : vector<8x16xf32> to vector<8x16xbf16>
    %cst_168 = arith.constant dense<0.000000e+00> : vector<8x16xf32>
    %541 = tpu.matmul %539, %540, %cst_168 {dimension_numbers = #tpu.dot_dimension_numbers<[1], [0], [0], [1], [0, 0, 1, 1], [], []>} : vector<8x8xbf16>, vector<8x16xbf16>, vector<8x16xf32> -> vector<8x16xf32>
    %542 = vector.extract_strided_slice %518 {offsets = [0, 16], sizes = [8, 16], strides = [1, 1]} : vector<8x32xf32> to vector<8x16xf32>
    %543 = vector.extract_strided_slice %519 {offsets = [0, 16], sizes = [8, 16], strides = [1, 1]} : vector<8x32xf32> to vector<8x16xf32>
    %544 = vector.extract_strided_slice %520 {offsets = [0, 16], sizes = [8, 16], strides = [1, 1]} : vector<8x32xf32> to vector<8x16xf32>
    %545 = arith.truncf %542 : vector<8x16xf32> to vector<8x16xbf16>
    %546 = arith.truncf %543 : vector<8x16xf32> to vector<8x16xbf16>
    %cst_169 = arith.constant dense<0.000000e+00> : vector<8x8xf32>
    %547 = tpu.matmul %545, %546, %cst_169 {dimension_numbers = #tpu.dot_dimension_numbers<[1], [1], [0], [0], [0, 0, 1, 0], [], []>} : vector<8x16xbf16>, vector<8x16xbf16>, vector<8x8xf32> -> vector<8x8xf32>
    %cst_170 = arith.constant 2.500000e-01 : f32
    %548 = vector.broadcast %cst_170 : f32 to vector<8x8xf32>
    %549 = arith.mulf %547, %548 : vector<8x8xf32>
    %cst_171 = arith.constant dense<0xFF800000> : vector<8xf32>
    %550 = vector.multi_reduction <maximumf>, %549, %cst_171 [1] : vector<8x8xf32> to vector<8xf32>
    %551 = vector.shape_cast %550 : vector<8xf32> to vector<8x1xf32>
    %552 = vector.broadcast %551 : vector<8x1xf32> to vector<8x8xf32>
    %553 = arith.subf %549, %552 : vector<8x8xf32>
    %554 = math.exp %553 : vector<8x8xf32>
    %cst_172 = arith.constant dense<0.000000e+00> : vector<8xf32>
    %555 = vector.multi_reduction <add>, %554, %cst_172 [1] : vector<8x8xf32> to vector<8xf32>
    %556 = vector.shape_cast %555 : vector<8xf32> to vector<8x1xf32>
    %557 = tpu.reciprocal %556 {approx = true} : vector<8x1xf32> -> vector<8x1xf32>
    %558 = vector.broadcast %557 : vector<8x1xf32> to vector<8x8xf32>
    %559 = arith.mulf %554, %558 : vector<8x8xf32>
    %560 = arith.truncf %559 : vector<8x8xf32> to vector<8x8xbf16>
    %561 = arith.truncf %544 : vector<8x16xf32> to vector<8x16xbf16>
    %cst_173 = arith.constant dense<0.000000e+00> : vector<8x16xf32>
    %562 = tpu.matmul %560, %561, %cst_173 {dimension_numbers = #tpu.dot_dimension_numbers<[1], [0], [0], [1], [0, 0, 1, 1], [], []>} : vector<8x8xbf16>, vector<8x16xbf16>, vector<8x16xf32> -> vector<8x16xf32>
    %563 = tpu.concatenate %541, %562 in 1 : vector<8x16xf32>, vector<8x16xf32> -> vector<8x32xf32>
    %564 = vector.extract_strided_slice %423 {offsets = [24, 0], sizes = [8, 32], strides = [1, 1]} : vector<48x32xf32> to vector<8x32xf32>
    %565 = vector.extract_strided_slice %424 {offsets = [24, 0], sizes = [8, 32], strides = [1, 1]} : vector<48x32xf32> to vector<8x32xf32>
    %566 = vector.extract_strided_slice %425 {offsets = [24, 0], sizes = [8, 32], strides = [1, 1]} : vector<48x32xf32> to vector<8x32xf32>
    %567 = vector.extract_strided_slice %564 {offsets = [0, 0], sizes = [8, 16], strides = [1, 1]} : vector<8x32xf32> to vector<8x16xf32>
    %568 = vector.extract_strided_slice %565 {offsets = [0, 0], sizes = [8, 16], strides = [1, 1]} : vector<8x32xf32> to vector<8x16xf32>
    %569 = vector.extract_strided_slice %566 {offsets = [0, 0], sizes = [8, 16], strides = [1, 1]} : vector<8x32xf32> to vector<8x16xf32>
    %570 = arith.truncf %567 : vector<8x16xf32> to vector<8x16xbf16>
    %571 = arith.truncf %568 : vector<8x16xf32> to vector<8x16xbf16>
    %cst_174 = arith.constant dense<0.000000e+00> : vector<8x8xf32>
    %572 = tpu.matmul %570, %571, %cst_174 {dimension_numbers = #tpu.dot_dimension_numbers<[1], [1], [0], [0], [0, 0, 1, 0], [], []>} : vector<8x16xbf16>, vector<8x16xbf16>, vector<8x8xf32> -> vector<8x8xf32>
    %cst_175 = arith.constant 2.500000e-01 : f32
    %573 = vector.broadcast %cst_175 : f32 to vector<8x8xf32>
    %574 = arith.mulf %572, %573 : vector<8x8xf32>
    %cst_176 = arith.constant dense<0xFF800000> : vector<8xf32>
    %575 = vector.multi_reduction <maximumf>, %574, %cst_176 [1] : vector<8x8xf32> to vector<8xf32>
    %576 = vector.shape_cast %575 : vector<8xf32> to vector<8x1xf32>
    %577 = vector.broadcast %576 : vector<8x1xf32> to vector<8x8xf32>
    %578 = arith.subf %574, %577 : vector<8x8xf32>
    %579 = math.exp %578 : vector<8x8xf32>
    %cst_177 = arith.constant dense<0.000000e+00> : vector<8xf32>
    %580 = vector.multi_reduction <add>, %579, %cst_177 [1] : vector<8x8xf32> to vector<8xf32>
    %581 = vector.shape_cast %580 : vector<8xf32> to vector<8x1xf32>
    %582 = tpu.reciprocal %581 {approx = true} : vector<8x1xf32> -> vector<8x1xf32>
    %583 = vector.broadcast %582 : vector<8x1xf32> to vector<8x8xf32>
    %584 = arith.mulf %579, %583 : vector<8x8xf32>
    %585 = arith.truncf %584 : vector<8x8xf32> to vector<8x8xbf16>
    %586 = arith.truncf %569 : vector<8x16xf32> to vector<8x16xbf16>
    %cst_178 = arith.constant dense<0.000000e+00> : vector<8x16xf32>
    %587 = tpu.matmul %585, %586, %cst_178 {dimension_numbers = #tpu.dot_dimension_numbers<[1], [0], [0], [1], [0, 0, 1, 1], [], []>} : vector<8x8xbf16>, vector<8x16xbf16>, vector<8x16xf32> -> vector<8x16xf32>
    %588 = vector.extract_strided_slice %564 {offsets = [0, 16], sizes = [8, 16], strides = [1, 1]} : vector<8x32xf32> to vector<8x16xf32>
    %589 = vector.extract_strided_slice %565 {offsets = [0, 16], sizes = [8, 16], strides = [1, 1]} : vector<8x32xf32> to vector<8x16xf32>
    %590 = vector.extract_strided_slice %566 {offsets = [0, 16], sizes = [8, 16], strides = [1, 1]} : vector<8x32xf32> to vector<8x16xf32>
    %591 = arith.truncf %588 : vector<8x16xf32> to vector<8x16xbf16>
    %592 = arith.truncf %589 : vector<8x16xf32> to vector<8x16xbf16>
    %cst_179 = arith.constant dense<0.000000e+00> : vector<8x8xf32>
    %593 = tpu.matmul %591, %592, %cst_179 {dimension_numbers = #tpu.dot_dimension_numbers<[1], [1], [0], [0], [0, 0, 1, 0], [], []>} : vector<8x16xbf16>, vector<8x16xbf16>, vector<8x8xf32> -> vector<8x8xf32>
    %cst_180 = arith.constant 2.500000e-01 : f32
    %594 = vector.broadcast %cst_180 : f32 to vector<8x8xf32>
    %595 = arith.mulf %593, %594 : vector<8x8xf32>
    %cst_181 = arith.constant dense<0xFF800000> : vector<8xf32>
    %596 = vector.multi_reduction <maximumf>, %595, %cst_181 [1] : vector<8x8xf32> to vector<8xf32>
    %597 = vector.shape_cast %596 : vector<8xf32> to vector<8x1xf32>
    %598 = vector.broadcast %597 : vector<8x1xf32> to vector<8x8xf32>
    %599 = arith.subf %595, %598 : vector<8x8xf32>
    %600 = math.exp %599 : vector<8x8xf32>
    %cst_182 = arith.constant dense<0.000000e+00> : vector<8xf32>
    %601 = vector.multi_reduction <add>, %600, %cst_182 [1] : vector<8x8xf32> to vector<8xf32>
    %602 = vector.shape_cast %601 : vector<8xf32> to vector<8x1xf32>
    %603 = tpu.reciprocal %602 {approx = true} : vector<8x1xf32> -> vector<8x1xf32>
    %604 = vector.broadcast %603 : vector<8x1xf32> to vector<8x8xf32>
    %605 = arith.mulf %600, %604 : vector<8x8xf32>
    %606 = arith.truncf %605 : vector<8x8xf32> to vector<8x8xbf16>
    %607 = arith.truncf %590 : vector<8x16xf32> to vector<8x16xbf16>
    %cst_183 = arith.constant dense<0.000000e+00> : vector<8x16xf32>
    %608 = tpu.matmul %606, %607, %cst_183 {dimension_numbers = #tpu.dot_dimension_numbers<[1], [0], [0], [1], [0, 0, 1, 1], [], []>} : vector<8x8xbf16>, vector<8x16xbf16>, vector<8x16xf32> -> vector<8x16xf32>
    %609 = tpu.concatenate %587, %608 in 1 : vector<8x16xf32>, vector<8x16xf32> -> vector<8x32xf32>
    %610 = vector.extract_strided_slice %423 {offsets = [32, 0], sizes = [8, 32], strides = [1, 1]} : vector<48x32xf32> to vector<8x32xf32>
    %611 = vector.extract_strided_slice %424 {offsets = [32, 0], sizes = [8, 32], strides = [1, 1]} : vector<48x32xf32> to vector<8x32xf32>
    %612 = vector.extract_strided_slice %425 {offsets = [32, 0], sizes = [8, 32], strides = [1, 1]} : vector<48x32xf32> to vector<8x32xf32>
    %613 = vector.extract_strided_slice %610 {offsets = [0, 0], sizes = [8, 16], strides = [1, 1]} : vector<8x32xf32> to vector<8x16xf32>
    %614 = vector.extract_strided_slice %611 {offsets = [0, 0], sizes = [8, 16], strides = [1, 1]} : vector<8x32xf32> to vector<8x16xf32>
    %615 = vector.extract_strided_slice %612 {offsets = [0, 0], sizes = [8, 16], strides = [1, 1]} : vector<8x32xf32> to vector<8x16xf32>
    %616 = arith.truncf %613 : vector<8x16xf32> to vector<8x16xbf16>
    %617 = arith.truncf %614 : vector<8x16xf32> to vector<8x16xbf16>
    %cst_184 = arith.constant dense<0.000000e+00> : vector<8x8xf32>
    %618 = tpu.matmul %616, %617, %cst_184 {dimension_numbers = #tpu.dot_dimension_numbers<[1], [1], [0], [0], [0, 0, 1, 0], [], []>} : vector<8x16xbf16>, vector<8x16xbf16>, vector<8x8xf32> -> vector<8x8xf32>
    %cst_185 = arith.constant 2.500000e-01 : f32
    %619 = vector.broadcast %cst_185 : f32 to vector<8x8xf32>
    %620 = arith.mulf %618, %619 : vector<8x8xf32>
    %cst_186 = arith.constant dense<0xFF800000> : vector<8xf32>
    %621 = vector.multi_reduction <maximumf>, %620, %cst_186 [1] : vector<8x8xf32> to vector<8xf32>
    %622 = vector.shape_cast %621 : vector<8xf32> to vector<8x1xf32>
    %623 = vector.broadcast %622 : vector<8x1xf32> to vector<8x8xf32>
    %624 = arith.subf %620, %623 : vector<8x8xf32>
    %625 = math.exp %624 : vector<8x8xf32>
    %cst_187 = arith.constant dense<0.000000e+00> : vector<8xf32>
    %626 = vector.multi_reduction <add>, %625, %cst_187 [1] : vector<8x8xf32> to vector<8xf32>
    %627 = vector.shape_cast %626 : vector<8xf32> to vector<8x1xf32>
    %628 = tpu.reciprocal %627 {approx = true} : vector<8x1xf32> -> vector<8x1xf32>
    %629 = vector.broadcast %628 : vector<8x1xf32> to vector<8x8xf32>
    %630 = arith.mulf %625, %629 : vector<8x8xf32>
    %631 = arith.truncf %630 : vector<8x8xf32> to vector<8x8xbf16>
    %632 = arith.truncf %615 : vector<8x16xf32> to vector<8x16xbf16>
    %cst_188 = arith.constant dense<0.000000e+00> : vector<8x16xf32>
    %633 = tpu.matmul %631, %632, %cst_188 {dimension_numbers = #tpu.dot_dimension_numbers<[1], [0], [0], [1], [0, 0, 1, 1], [], []>} : vector<8x8xbf16>, vector<8x16xbf16>, vector<8x16xf32> -> vector<8x16xf32>
    %634 = vector.extract_strided_slice %610 {offsets = [0, 16], sizes = [8, 16], strides = [1, 1]} : vector<8x32xf32> to vector<8x16xf32>
    %635 = vector.extract_strided_slice %611 {offsets = [0, 16], sizes = [8, 16], strides = [1, 1]} : vector<8x32xf32> to vector<8x16xf32>
    %636 = vector.extract_strided_slice %612 {offsets = [0, 16], sizes = [8, 16], strides = [1, 1]} : vector<8x32xf32> to vector<8x16xf32>
    %637 = arith.truncf %634 : vector<8x16xf32> to vector<8x16xbf16>
    %638 = arith.truncf %635 : vector<8x16xf32> to vector<8x16xbf16>
    %cst_189 = arith.constant dense<0.000000e+00> : vector<8x8xf32>
    %639 = tpu.matmul %637, %638, %cst_189 {dimension_numbers = #tpu.dot_dimension_numbers<[1], [1], [0], [0], [0, 0, 1, 0], [], []>} : vector<8x16xbf16>, vector<8x16xbf16>, vector<8x8xf32> -> vector<8x8xf32>
    %cst_190 = arith.constant 2.500000e-01 : f32
    %640 = vector.broadcast %cst_190 : f32 to vector<8x8xf32>
    %641 = arith.mulf %639, %640 : vector<8x8xf32>
    %cst_191 = arith.constant dense<0xFF800000> : vector<8xf32>
    %642 = vector.multi_reduction <maximumf>, %641, %cst_191 [1] : vector<8x8xf32> to vector<8xf32>
    %643 = vector.shape_cast %642 : vector<8xf32> to vector<8x1xf32>
    %644 = vector.broadcast %643 : vector<8x1xf32> to vector<8x8xf32>
    %645 = arith.subf %641, %644 : vector<8x8xf32>
    %646 = math.exp %645 : vector<8x8xf32>
    %cst_192 = arith.constant dense<0.000000e+00> : vector<8xf32>
    %647 = vector.multi_reduction <add>, %646, %cst_192 [1] : vector<8x8xf32> to vector<8xf32>
    %648 = vector.shape_cast %647 : vector<8xf32> to vector<8x1xf32>
    %649 = tpu.reciprocal %648 {approx = true} : vector<8x1xf32> -> vector<8x1xf32>
    %650 = vector.broadcast %649 : vector<8x1xf32> to vector<8x8xf32>
    %651 = arith.mulf %646, %650 : vector<8x8xf32>
    %652 = arith.truncf %651 : vector<8x8xf32> to vector<8x8xbf16>
    %653 = arith.truncf %636 : vector<8x16xf32> to vector<8x16xbf16>
    %cst_193 = arith.constant dense<0.000000e+00> : vector<8x16xf32>
    %654 = tpu.matmul %652, %653, %cst_193 {dimension_numbers = #tpu.dot_dimension_numbers<[1], [0], [0], [1], [0, 0, 1, 1], [], []>} : vector<8x8xbf16>, vector<8x16xbf16>, vector<8x16xf32> -> vector<8x16xf32>
    %655 = tpu.concatenate %633, %654 in 1 : vector<8x16xf32>, vector<8x16xf32> -> vector<8x32xf32>
    %656 = vector.extract_strided_slice %423 {offsets = [40, 0], sizes = [8, 32], strides = [1, 1]} : vector<48x32xf32> to vector<8x32xf32>
    %657 = vector.extract_strided_slice %424 {offsets = [40, 0], sizes = [8, 32], strides = [1, 1]} : vector<48x32xf32> to vector<8x32xf32>
    %658 = vector.extract_strided_slice %425 {offsets = [40, 0], sizes = [8, 32], strides = [1, 1]} : vector<48x32xf32> to vector<8x32xf32>
    %659 = vector.extract_strided_slice %656 {offsets = [0, 0], sizes = [8, 16], strides = [1, 1]} : vector<8x32xf32> to vector<8x16xf32>
    %660 = vector.extract_strided_slice %657 {offsets = [0, 0], sizes = [8, 16], strides = [1, 1]} : vector<8x32xf32> to vector<8x16xf32>
    %661 = vector.extract_strided_slice %658 {offsets = [0, 0], sizes = [8, 16], strides = [1, 1]} : vector<8x32xf32> to vector<8x16xf32>
    %662 = arith.truncf %659 : vector<8x16xf32> to vector<8x16xbf16>
    %663 = arith.truncf %660 : vector<8x16xf32> to vector<8x16xbf16>
    %cst_194 = arith.constant dense<0.000000e+00> : vector<8x8xf32>
    %664 = tpu.matmul %662, %663, %cst_194 {dimension_numbers = #tpu.dot_dimension_numbers<[1], [1], [0], [0], [0, 0, 1, 0], [], []>} : vector<8x16xbf16>, vector<8x16xbf16>, vector<8x8xf32> -> vector<8x8xf32>
    %cst_195 = arith.constant 2.500000e-01 : f32
    %665 = vector.broadcast %cst_195 : f32 to vector<8x8xf32>
    %666 = arith.mulf %664, %665 : vector<8x8xf32>
    %cst_196 = arith.constant dense<0xFF800000> : vector<8xf32>
    %667 = vector.multi_reduction <maximumf>, %666, %cst_196 [1] : vector<8x8xf32> to vector<8xf32>
    %668 = vector.shape_cast %667 : vector<8xf32> to vector<8x1xf32>
    %669 = vector.broadcast %668 : vector<8x1xf32> to vector<8x8xf32>
    %670 = arith.subf %666, %669 : vector<8x8xf32>
    %671 = math.exp %670 : vector<8x8xf32>
    %cst_197 = arith.constant dense<0.000000e+00> : vector<8xf32>
    %672 = vector.multi_reduction <add>, %671, %cst_197 [1] : vector<8x8xf32> to vector<8xf32>
    %673 = vector.shape_cast %672 : vector<8xf32> to vector<8x1xf32>
    %674 = tpu.reciprocal %673 {approx = true} : vector<8x1xf32> -> vector<8x1xf32>
    %675 = vector.broadcast %674 : vector<8x1xf32> to vector<8x8xf32>
    %676 = arith.mulf %671, %675 : vector<8x8xf32>
    %677 = arith.truncf %676 : vector<8x8xf32> to vector<8x8xbf16>
    %678 = arith.truncf %661 : vector<8x16xf32> to vector<8x16xbf16>
    %cst_198 = arith.constant dense<0.000000e+00> : vector<8x16xf32>
    %679 = tpu.matmul %677, %678, %cst_198 {dimension_numbers = #tpu.dot_dimension_numbers<[1], [0], [0], [1], [0, 0, 1, 1], [], []>} : vector<8x8xbf16>, vector<8x16xbf16>, vector<8x16xf32> -> vector<8x16xf32>
    %680 = vector.extract_strided_slice %656 {offsets = [0, 16], sizes = [8, 16], strides = [1, 1]} : vector<8x32xf32> to vector<8x16xf32>
    %681 = vector.extract_strided_slice %657 {offsets = [0, 16], sizes = [8, 16], strides = [1, 1]} : vector<8x32xf32> to vector<8x16xf32>
    %682 = vector.extract_strided_slice %658 {offsets = [0, 16], sizes = [8, 16], strides = [1, 1]} : vector<8x32xf32> to vector<8x16xf32>
    %683 = arith.truncf %680 : vector<8x16xf32> to vector<8x16xbf16>
    %684 = arith.truncf %681 : vector<8x16xf32> to vector<8x16xbf16>
    %cst_199 = arith.constant dense<0.000000e+00> : vector<8x8xf32>
    %685 = tpu.matmul %683, %684, %cst_199 {dimension_numbers = #tpu.dot_dimension_numbers<[1], [1], [0], [0], [0, 0, 1, 0], [], []>} : vector<8x16xbf16>, vector<8x16xbf16>, vector<8x8xf32> -> vector<8x8xf32>
    %cst_200 = arith.constant 2.500000e-01 : f32
    %686 = vector.broadcast %cst_200 : f32 to vector<8x8xf32>
    %687 = arith.mulf %685, %686 : vector<8x8xf32>
    %cst_201 = arith.constant dense<0xFF800000> : vector<8xf32>
    %688 = vector.multi_reduction <maximumf>, %687, %cst_201 [1] : vector<8x8xf32> to vector<8xf32>
    %689 = vector.shape_cast %688 : vector<8xf32> to vector<8x1xf32>
    %690 = vector.broadcast %689 : vector<8x1xf32> to vector<8x8xf32>
    %691 = arith.subf %687, %690 : vector<8x8xf32>
    %692 = math.exp %691 : vector<8x8xf32>
    %cst_202 = arith.constant dense<0.000000e+00> : vector<8xf32>
    %693 = vector.multi_reduction <add>, %692, %cst_202 [1] : vector<8x8xf32> to vector<8xf32>
    %694 = vector.shape_cast %693 : vector<8xf32> to vector<8x1xf32>
    %695 = tpu.reciprocal %694 {approx = true} : vector<8x1xf32> -> vector<8x1xf32>
    %696 = vector.broadcast %695 : vector<8x1xf32> to vector<8x8xf32>
    %697 = arith.mulf %692, %696 : vector<8x8xf32>
    %698 = arith.truncf %697 : vector<8x8xf32> to vector<8x8xbf16>
    %699 = arith.truncf %682 : vector<8x16xf32> to vector<8x16xbf16>
    %cst_203 = arith.constant dense<0.000000e+00> : vector<8x16xf32>
    %700 = tpu.matmul %698, %699, %cst_203 {dimension_numbers = #tpu.dot_dimension_numbers<[1], [0], [0], [1], [0, 0, 1, 1], [], []>} : vector<8x8xbf16>, vector<8x16xbf16>, vector<8x16xf32> -> vector<8x16xf32>
    %701 = tpu.concatenate %679, %700 in 1 : vector<8x16xf32>, vector<8x16xf32> -> vector<8x32xf32>
    %702 = tpu.concatenate %471, %517, %563, %609, %655, %701 in 0 : vector<8x32xf32>, vector<8x32xf32>, vector<8x32xf32>, vector<8x32xf32>, vector<8x32xf32>, vector<8x32xf32> -> vector<48x32xf32>
    %c1_204 = arith.constant 1 : index
    %c0_205 = arith.constant 0 : index
    %c0_206 = arith.constant 0 : index
    %703 = vector.load %arg11[%c1_204, %c0_205, %c0_206] : memref<2x32x32xbf16, #tpu.memory_space<vmem>>, vector<1x32x32xbf16>
    %704 = vector.shape_cast %703 : vector<1x32x32xbf16> to vector<32x32xbf16>
    %705 = arith.truncf %702 : vector<48x32xf32> to vector<48x32xbf16>
    %cst_207 = arith.constant dense<0.000000e+00> : vector<48x32xf32>
    %706 = tpu.matmul %705, %704, %cst_207 {dimension_numbers = #tpu.dot_dimension_numbers<[1], [0], [0], [1], [0, 0, 1, 1], [], []>} : vector<48x32xbf16>, vector<32x32xbf16>, vector<48x32xf32> -> vector<48x32xf32>
    %c1_208 = arith.constant 1 : index
    %c0_209 = arith.constant 0 : index
    %c0_210 = arith.constant 0 : index
    %707 = vector.load %arg12[%c1_208, %c0_209, %c0_210] : memref<2x1x32xf32, #tpu.memory_space<vmem>>, vector<1x1x32xf32>
    %708 = vector.shape_cast %707 : vector<1x1x32xf32> to vector<1x32xf32>
    %709 = vector.broadcast %708 : vector<1x32xf32> to vector<48x32xf32>
    %710 = arith.addf %706, %709 : vector<48x32xf32>
    %711 = arith.addf %710, %414 : vector<48x32xf32>
    %c1_211 = arith.constant 1 : index
    %c0_212 = arith.constant 0 : index
    %c0_213 = arith.constant 0 : index
    %712 = vector.load %arg13[%c1_211, %c0_212, %c0_213] : memref<2x1x32xf32, #tpu.memory_space<vmem>>, vector<1x1x32xf32>
    %713 = vector.shape_cast %712 : vector<1x1x32xf32> to vector<1x32xf32>
    %c1_214 = arith.constant 1 : index
    %c0_215 = arith.constant 0 : index
    %c0_216 = arith.constant 0 : index
    %714 = vector.load %arg14[%c1_214, %c0_215, %c0_216] : memref<2x1x32xf32, #tpu.memory_space<vmem>>, vector<1x1x32xf32>
    %715 = vector.shape_cast %714 : vector<1x1x32xf32> to vector<1x32xf32>
    %cst_217 = arith.constant dense<0.000000e+00> : vector<48xf32>
    %716 = vector.multi_reduction <add>, %711, %cst_217 [1] : vector<48x32xf32> to vector<48xf32>
    %717 = vector.shape_cast %716 : vector<48xf32> to vector<48x1xf32>
    %cst_218 = arith.constant 3.200000e+01 : f32
    %718 = vector.broadcast %cst_218 : f32 to vector<48x1xf32>
    %719 = arith.divf %717, %718 : vector<48x1xf32>
    %720 = vector.broadcast %719 : vector<48x1xf32> to vector<48x32xf32>
    %721 = arith.subf %711, %720 : vector<48x32xf32>
    %722 = arith.mulf %721, %721 : vector<48x32xf32>
    %cst_219 = arith.constant dense<0.000000e+00> : vector<48xf32>
    %723 = vector.multi_reduction <add>, %722, %cst_219 [1] : vector<48x32xf32> to vector<48xf32>
    %724 = vector.shape_cast %723 : vector<48xf32> to vector<48x1xf32>
    %cst_220 = arith.constant 3.200000e+01 : f32
    %725 = vector.broadcast %cst_220 : f32 to vector<48x1xf32>
    %726 = arith.divf %724, %725 : vector<48x1xf32>
    %727 = vector.broadcast %719 : vector<48x1xf32> to vector<48x32xf32>
    %728 = arith.subf %711, %727 : vector<48x32xf32>
    %cst_221 = arith.constant 9.99999974E-6 : f32
    %729 = vector.broadcast %cst_221 : f32 to vector<48x1xf32>
    %730 = arith.addf %726, %729 : vector<48x1xf32>
    %731 = math.rsqrt %730 : vector<48x1xf32>
    %732 = vector.broadcast %731 : vector<48x1xf32> to vector<48x32xf32>
    %733 = arith.mulf %728, %732 : vector<48x32xf32>
    %734 = vector.broadcast %713 : vector<1x32xf32> to vector<48x32xf32>
    %735 = arith.mulf %733, %734 : vector<48x32xf32>
    %736 = vector.broadcast %715 : vector<1x32xf32> to vector<48x32xf32>
    %737 = arith.addf %735, %736 : vector<48x32xf32>
    %c1_222 = arith.constant 1 : index
    %c0_223 = arith.constant 0 : index
    %c0_224 = arith.constant 0 : index
    %738 = vector.load %arg15[%c1_222, %c0_223, %c0_224] : memref<2x32x64xbf16, #tpu.memory_space<vmem>>, vector<1x32x64xbf16>
    %739 = vector.shape_cast %738 : vector<1x32x64xbf16> to vector<32x64xbf16>
    %740 = arith.truncf %737 : vector<48x32xf32> to vector<48x32xbf16>
    %cst_225 = arith.constant dense<0.000000e+00> : vector<48x64xf32>
    %741 = tpu.matmul %740, %739, %cst_225 {dimension_numbers = #tpu.dot_dimension_numbers<[1], [0], [0], [1], [0, 0, 1, 1], [], []>} : vector<48x32xbf16>, vector<32x64xbf16>, vector<48x64xf32> -> vector<48x64xf32>
    %c1_226 = arith.constant 1 : index
    %c0_227 = arith.constant 0 : index
    %c0_228 = arith.constant 0 : index
    %742 = vector.load %arg16[%c1_226, %c0_227, %c0_228] : memref<2x1x64xf32, #tpu.memory_space<vmem>>, vector<1x1x64xf32>
    %743 = vector.shape_cast %742 : vector<1x1x64xf32> to vector<1x64xf32>
    %744 = vector.broadcast %743 : vector<1x64xf32> to vector<48x64xf32>
    %745 = arith.addf %741, %744 : vector<48x64xf32>
    %cst_229 = arith.constant 5.000000e-01 : f32
    %746 = vector.broadcast %cst_229 : f32 to vector<48x64xf32>
    %747 = arith.mulf %746, %745 : vector<48x64xf32>
    %cst_230 = arith.constant 0.707106769 : f32
    %748 = vector.broadcast %cst_230 : f32 to vector<48x64xf32>
    %749 = arith.mulf %745, %748 : vector<48x64xf32>
    %750 = math.erf %749 : vector<48x64xf32>
    %cst_231 = arith.constant 1.000000e+00 : f32
    %751 = vector.broadcast %cst_231 : f32 to vector<48x64xf32>
    %752 = arith.addf %751, %750 : vector<48x64xf32>
    %753 = arith.mulf %747, %752 : vector<48x64xf32>
    %c1_232 = arith.constant 1 : index
    %c0_233 = arith.constant 0 : index
    %c0_234 = arith.constant 0 : index
    %754 = vector.load %arg17[%c1_232, %c0_233, %c0_234] : memref<2x64x32xbf16, #tpu.memory_space<vmem>>, vector<1x64x32xbf16>
    %755 = vector.shape_cast %754 : vector<1x64x32xbf16> to vector<64x32xbf16>
    %756 = arith.truncf %753 : vector<48x64xf32> to vector<48x64xbf16>
    %cst_235 = arith.constant dense<0.000000e+00> : vector<48x32xf32>
    %757 = tpu.matmul %756, %755, %cst_235 {dimension_numbers = #tpu.dot_dimension_numbers<[1], [0], [0], [1], [0, 0, 1, 1], [], []>} : vector<48x64xbf16>, vector<64x32xbf16>, vector<48x32xf32> -> vector<48x32xf32>
    %c1_236 = arith.constant 1 : index
    %c0_237 = arith.constant 0 : index
    %c0_238 = arith.constant 0 : index
    %758 = vector.load %arg18[%c1_236, %c0_237, %c0_238] : memref<2x1x32xf32, #tpu.memory_space<vmem>>, vector<1x1x32xf32>
    %759 = vector.shape_cast %758 : vector<1x1x32xf32> to vector<1x32xf32>
    %760 = vector.broadcast %759 : vector<1x32xf32> to vector<48x32xf32>
    %761 = arith.addf %757, %760 : vector<48x32xf32>
    %762 = arith.addf %761, %737 : vector<48x32xf32>
    %c1_239 = arith.constant 1 : index
    %c0_240 = arith.constant 0 : index
    %c0_241 = arith.constant 0 : index
    %763 = vector.load %arg19[%c1_239, %c0_240, %c0_241] : memref<2x1x32xf32, #tpu.memory_space<vmem>>, vector<1x1x32xf32>
    %764 = vector.shape_cast %763 : vector<1x1x32xf32> to vector<1x32xf32>
    %c1_242 = arith.constant 1 : index
    %c0_243 = arith.constant 0 : index
    %c0_244 = arith.constant 0 : index
    %765 = vector.load %arg20[%c1_242, %c0_243, %c0_244] : memref<2x1x32xf32, #tpu.memory_space<vmem>>, vector<1x1x32xf32>
    %766 = vector.shape_cast %765 : vector<1x1x32xf32> to vector<1x32xf32>
    %cst_245 = arith.constant dense<0.000000e+00> : vector<48xf32>
    %767 = vector.multi_reduction <add>, %762, %cst_245 [1] : vector<48x32xf32> to vector<48xf32>
    %768 = vector.shape_cast %767 : vector<48xf32> to vector<48x1xf32>
    %cst_246 = arith.constant 3.200000e+01 : f32
    %769 = vector.broadcast %cst_246 : f32 to vector<48x1xf32>
    %770 = arith.divf %768, %769 : vector<48x1xf32>
    %771 = vector.broadcast %770 : vector<48x1xf32> to vector<48x32xf32>
    %772 = arith.subf %762, %771 : vector<48x32xf32>
    %773 = arith.mulf %772, %772 : vector<48x32xf32>
    %cst_247 = arith.constant dense<0.000000e+00> : vector<48xf32>
    %774 = vector.multi_reduction <add>, %773, %cst_247 [1] : vector<48x32xf32> to vector<48xf32>
    %775 = vector.shape_cast %774 : vector<48xf32> to vector<48x1xf32>
    %cst_248 = arith.constant 3.200000e+01 : f32
    %776 = vector.broadcast %cst_248 : f32 to vector<48x1xf32>
    %777 = arith.divf %775, %776 : vector<48x1xf32>
    %778 = vector.broadcast %770 : vector<48x1xf32> to vector<48x32xf32>
    %779 = arith.subf %762, %778 : vector<48x32xf32>
    %cst_249 = arith.constant 9.99999974E-6 : f32
    %780 = vector.broadcast %cst_249 : f32 to vector<48x1xf32>
    %781 = arith.addf %777, %780 : vector<48x1xf32>
    %782 = math.rsqrt %781 : vector<48x1xf32>
    %783 = vector.broadcast %782 : vector<48x1xf32> to vector<48x32xf32>
    %784 = arith.mulf %779, %783 : vector<48x32xf32>
    %785 = vector.broadcast %764 : vector<1x32xf32> to vector<48x32xf32>
    %786 = arith.mulf %784, %785 : vector<48x32xf32>
    %787 = vector.broadcast %766 : vector<1x32xf32> to vector<48x32xf32>
    %788 = arith.addf %786, %787 : vector<48x32xf32>
    %c0_250 = arith.constant 0 : index
    %c0_251 = arith.constant 0 : index
    %789 = vector.load %arg21[%c0_250, %c0_251] : memref<32x32xbf16, #tpu.memory_space<vmem>>, vector<32x32xbf16>
    %790 = arith.truncf %788 : vector<48x32xf32> to vector<48x32xbf16>
    %cst_252 = arith.constant dense<0.000000e+00> : vector<48x32xf32>
    %791 = tpu.matmul %790, %789, %cst_252 {dimension_numbers = #tpu.dot_dimension_numbers<[1], [0], [0], [1], [0, 0, 1, 1], [], []>} : vector<48x32xbf16>, vector<32x32xbf16>, vector<48x32xf32> -> vector<48x32xf32>
    %c0_253 = arith.constant 0 : index
    %c0_254 = arith.constant 0 : index
    %792 = vector.load %arg22[%c0_253, %c0_254] : memref<1x32xf32, #tpu.memory_space<vmem>>, vector<1x32xf32>
    %793 = vector.broadcast %792 : vector<1x32xf32> to vector<48x32xf32>
    %794 = arith.addf %791, %793 : vector<48x32xf32>
    %cst_255 = arith.constant 5.000000e-01 : f32
    %795 = vector.broadcast %cst_255 : f32 to vector<48x32xf32>
    %796 = arith.mulf %795, %794 : vector<48x32xf32>
    %cst_256 = arith.constant 0.707106769 : f32
    %797 = vector.broadcast %cst_256 : f32 to vector<48x32xf32>
    %798 = arith.mulf %794, %797 : vector<48x32xf32>
    %799 = math.erf %798 : vector<48x32xf32>
    %cst_257 = arith.constant 1.000000e+00 : f32
    %800 = vector.broadcast %cst_257 : f32 to vector<48x32xf32>
    %801 = arith.addf %800, %799 : vector<48x32xf32>
    %802 = arith.mulf %796, %801 : vector<48x32xf32>
    %c0_258 = arith.constant 0 : index
    %c0_259 = arith.constant 0 : index
    %803 = vector.load %arg23[%c0_258, %c0_259] : memref<1x32xf32, #tpu.memory_space<vmem>>, vector<1x32xf32>
    %c0_260 = arith.constant 0 : index
    %c0_261 = arith.constant 0 : index
    %804 = vector.load %arg24[%c0_260, %c0_261] : memref<1x32xf32, #tpu.memory_space<vmem>>, vector<1x32xf32>
    %cst_262 = arith.constant dense<0.000000e+00> : vector<48xf32>
    %805 = vector.multi_reduction <add>, %802, %cst_262 [1] : vector<48x32xf32> to vector<48xf32>
    %806 = vector.shape_cast %805 : vector<48xf32> to vector<48x1xf32>
    %cst_263 = arith.constant 3.200000e+01 : f32
    %807 = vector.broadcast %cst_263 : f32 to vector<48x1xf32>
    %808 = arith.divf %806, %807 : vector<48x1xf32>
    %809 = vector.broadcast %808 : vector<48x1xf32> to vector<48x32xf32>
    %810 = arith.subf %802, %809 : vector<48x32xf32>
    %811 = arith.mulf %810, %810 : vector<48x32xf32>
    %cst_264 = arith.constant dense<0.000000e+00> : vector<48xf32>
    %812 = vector.multi_reduction <add>, %811, %cst_264 [1] : vector<48x32xf32> to vector<48xf32>
    %813 = vector.shape_cast %812 : vector<48xf32> to vector<48x1xf32>
    %cst_265 = arith.constant 3.200000e+01 : f32
    %814 = vector.broadcast %cst_265 : f32 to vector<48x1xf32>
    %815 = arith.divf %813, %814 : vector<48x1xf32>
    %816 = vector.broadcast %808 : vector<48x1xf32> to vector<48x32xf32>
    %817 = arith.subf %802, %816 : vector<48x32xf32>
    %cst_266 = arith.constant 9.99999974E-6 : f32
    %818 = vector.broadcast %cst_266 : f32 to vector<48x1xf32>
    %819 = arith.addf %815, %818 : vector<48x1xf32>
    %820 = math.rsqrt %819 : vector<48x1xf32>
    %821 = vector.broadcast %820 : vector<48x1xf32> to vector<48x32xf32>
    %822 = arith.mulf %817, %821 : vector<48x32xf32>
    %823 = vector.broadcast %803 : vector<1x32xf32> to vector<48x32xf32>
    %824 = arith.mulf %822, %823 : vector<48x32xf32>
    %825 = vector.broadcast %804 : vector<1x32xf32> to vector<48x32xf32>
    %826 = arith.addf %824, %825 : vector<48x32xf32>
    %c0_267 = arith.constant 0 : index
    %c0_268 = arith.constant 0 : index
    %827 = vector.load %arg25[%c0_267, %c0_268] : memref<32x128xbf16, #tpu.memory_space<vmem>>, vector<32x128xbf16>
    %828 = arith.truncf %826 : vector<48x32xf32> to vector<48x32xbf16>
    %cst_269 = arith.constant dense<0.000000e+00> : vector<48x128xf32>
    %829 = tpu.matmul %828, %827, %cst_269 {dimension_numbers = #tpu.dot_dimension_numbers<[1], [0], [0], [1], [0, 0, 1, 1], [], []>} : vector<48x32xbf16>, vector<32x128xbf16>, vector<48x128xf32> -> vector<48x128xf32>
    %c0_270 = arith.constant 0 : index
    %c0_271 = arith.constant 0 : index
    %830 = vector.load %arg26[%c0_270, %c0_271] : memref<1x128xf32, #tpu.memory_space<vmem>>, vector<1x128xf32>
    %831 = vector.broadcast %830 : vector<1x128xf32> to vector<48x128xf32>
    %832 = arith.addf %829, %831 : vector<48x128xf32>
    %c0_272 = arith.constant 0 : index
    %c0_273 = arith.constant 0 : index
    %833 = vector.load %arg27[%c0_272, %c0_273] : memref<48x128xf32, #tpu.memory_space<vmem>>, vector<48x128xf32>
    tpu.vector_store %arg27[%c0_272, %c0_273], %832 {strides = array<i32>} : memref<48x128xf32, #tpu.memory_space<vmem>>, vector<48x128xf32>,
    return
  }
}

</mosaic_0001>

<llo_original>
// kernel: decoder_forward.1
$region0: #{decoder_forward.1}
  #allocation0 [shape = 'u32[]', space=smem, size = 0x4, offset = 0x4, fixed_abs, tag = 'smem constant byte address 0x4 - core index']
  #allocation1 [shape = 'u32[144,128]{1,0:T(1,128)}', space=vmem, size = 0x12000, scoped, tag = 'internal scratch']
  %s0 = inlined_call_operand.vmem [shape: f32[6,16], index: 0, kind: input, shape index: {}]
  %s1 = inlined_call_operand.vmem [shape: bf16[48,16], index: 1, kind: input, shape index: {}]
  %s2 = inlined_call_operand.vmem [shape: f32[8,32], index: 2, kind: input, shape index: {}]
  %s3 = inlined_call_operand.vmem [shape: bf16[16,32], index: 3, kind: input, shape index: {}]
  %s4 = inlined_call_operand.vmem [shape: f32[1,32], index: 4, kind: input, shape index: {}]
  %s5 = inlined_call_operand.vmem [shape: bf16[16,128], index: 5, kind: input, shape index: {}]
  %s6 = inlined_call_operand.vmem [shape: f32[1,128], index: 6, kind: input, shape index: {}]
  %s7 = inlined_call_operand.vmem [shape: f32[1,32], index: 7, kind: input, shape index: {}]
  %s8 = inlined_call_operand.vmem [shape: f32[1,32], index: 8, kind: input, shape index: {}]
  %s9 = inlined_call_operand.vmem [shape: bf16[2,32,96], index: 9, kind: input, shape index: {}]
  %s10 = inlined_call_operand.vmem [shape: f32[2,1,96], index: 10, kind: input, shape index: {}]
  %s11 = inlined_call_operand.vmem [shape: bf16[2,32,32], index: 11, kind: input, shape index: {}]
  %s12 = inlined_call_operand.vmem [shape: f32[2,1,32], index: 12, kind: input, shape index: {}]
  %s13 = inlined_call_operand.vmem [shape: f32[2,1,32], index: 13, kind: input, shape index: {}]
  %s14 = inlined_call_operand.vmem [shape: f32[2,1,32], index: 14, kind: input, shape index: {}]
  %s15 = inlined_call_operand.vmem [shape: bf16[2,32,64], index: 15, kind: input, shape index: {}]
  %s16 = inlined_call_operand.vmem [shape: f32[2,1,64], index: 16, kind: input, shape index: {}]
  %s17 = inlined_call_operand.vmem [shape: bf16[2,64,32], index: 17, kind: input, shape index: {}]
  %s18 = inlined_call_operand.vmem [shape: f32[2,1,32], index: 18, kind: input, shape index: {}]
  %s19 = inlined_call_operand.vmem [shape: f32[2,1,32], index: 19, kind: input, shape index: {}]
  %s20 = inlined_call_operand.vmem [shape: f32[2,1,32], index: 20, kind: input, shape index: {}]
  %s21 = inlined_call_operand.vmem [shape: bf16[32,32], index: 21, kind: input, shape index: {}]
  %s22 = inlined_call_operand.vmem [shape: f32[1,32], index: 22, kind: input, shape index: {}]
  %s23 = inlined_call_operand.vmem [shape: f32[1,32], index: 23, kind: input, shape index: {}]
  %s24 = inlined_call_operand.vmem [shape: f32[1,32], index: 24, kind: input, shape index: {}]
  %s25 = inlined_call_operand.vmem [shape: bf16[32,128], index: 25, kind: input, shape index: {}]
  %s26 = inlined_call_operand.vmem [shape: f32[1,128], index: 26, kind: input, shape index: {}]
  %s27 = inlined_call_operand.hbm [shape: f32[48,128], index: 27, kind: output, shape index: {0}]
  %s28 = inlined_call_operand.vmem [shape: f32[6,128], index: 28, kind: output, shape index: {1}]
  %29 = xla_tuple %s27, %s28
  %s30 = sld [smem:[#allocation0]]
  $region126: #{decoder_forward.1} parent=0
    _
  %s32 = ssub.s32 1, %s30
  %s33 = scalar_select 0, %s32, %s30
  $region1: #{decoder_forward.1} parent=0
    #allocation2 [shape = 'u8[24576]{0}', space=vmem, size = 0x6000, scoped, tag = 'output window, operand 0, single buffered']
    #allocation3 [shape = 's32[1]{0}', space=sflag, size = 0x4, scoped, tag = 'scoped memory for decoder_forward.1']
    %34 = vsyncpa [#allocation3], 0
    // Predicated region
    $region2: #{decoder_forward.1} parent=1 // pred_check
      _
    $region3: #{decoder_forward.1} parent=1 // pred_check_branch
      %36 = sbr.rel (0) target = $region5
    $region4: #{decoder_forward.1} parent=1 // pred_region
      _
    $region5: #{decoder_forward.1} parent=1 // pred_fallthru
      _
    // Predicated region
    $region6: #{decoder_forward.1} parent=1 // pred_check
      _
    $region7: #{decoder_forward.1} parent=1 // pred_check_branch
      %38 = sbr.rel (0) target = $region9
    $region8: #{decoder_forward.1} parent=1 // pred_region
      _
    $region9: #{decoder_forward.1} parent=1 // pred_fallthru
      _
    // Predicated region
    $region10: #{decoder_forward.1} parent=1 // pred_check
      _
    $region11: #{decoder_forward.1} parent=1 // pred_check_branch
      %40 = sbr.rel (0) target = $region13
    $region12: #{decoder_forward.1} parent=1 // pred_region
      _
    $region13: #{decoder_forward.1} parent=1 // pred_fallthru
      _
    // Predicated region
    $region14: #{decoder_forward.1} parent=1 // pred_check
      _
    $region15: #{decoder_forward.1} parent=1 // pred_check_branch
      %42 = sbr.rel (0) target = $region17
    $region16: #{decoder_forward.1} parent=1 // pred_region
      _
    $region17: #{decoder_forward.1} parent=1 // pred_fallthru
      _
    // Predicated region
    $region18: #{decoder_forward.1} parent=1 // pred_check
      _
    $region19: #{decoder_forward.1} parent=1 // pred_check_branch
      %44 = sbr.rel (0) target = $region21
    $region20: #{decoder_forward.1} parent=1 // pred_region
      _
    $region21: #{decoder_forward.1} parent=1 // pred_fallthru
      _
    // Predicated region
    $region22: #{decoder_forward.1} parent=1 // pred_check
      _
    $region23: #{decoder_forward.1} parent=1 // pred_check_branch
      %46 = sbr.rel (0) target = $region25
    $region24: #{decoder_forward.1} parent=1 // pred_region
      _
    $region25: #{decoder_forward.1} parent=1 // pred_fallthru
      _
    // Predicated region
    $region26: #{decoder_forward.1} parent=1 // pred_check
      _
    $region27: #{decoder_forward.1} parent=1 // pred_check_branch
      %48 = sbr.rel (0) target = $region29
    $region28: #{decoder_forward.1} parent=1 // pred_region
      _
    $region29: #{decoder_forward.1} parent=1 // pred_fallthru
      _
    // Predicated region
    $region30: #{decoder_forward.1} parent=1 // pred_check
      _
    $region31: #{decoder_forward.1} parent=1 // pred_check_branch
      %50 = sbr.rel (0) target = $region33
    $region32: #{decoder_forward.1} parent=1 // pred_region
      _
    $region33: #{decoder_forward.1} parent=1 // pred_fallthru
      _
    // Predicated region
    $region34: #{decoder_forward.1} parent=1 // pred_check
      _
    $region35: #{decoder_forward.1} parent=1 // pred_check_branch
      %52 = sbr.rel (0) target = $region37
    $region36: #{decoder_forward.1} parent=1 // pred_region
      _
    $region37: #{decoder_forward.1} parent=1 // pred_fallthru
      _
    // Predicated region
    $region38: #{decoder_forward.1} parent=1 // pred_check
      _
    $region39: #{decoder_forward.1} parent=1 // pred_check_branch
      %54 = sbr.rel (0) target = $region41
    $region40: #{decoder_forward.1} parent=1 // pred_region
      _
    $region41: #{decoder_forward.1} parent=1 // pred_fallthru
      _
    // Predicated region
    $region42: #{decoder_forward.1} parent=1 // pred_check
      _
    $region43: #{decoder_forward.1} parent=1 // pred_check_branch
      %56 = sbr.rel (0) target = $region45
    $region44: #{decoder_forward.1} parent=1 // pred_region
      _
    $region45: #{decoder_forward.1} parent=1 // pred_fallthru
      _
    // Predicated region
    $region46: #{decoder_forward.1} parent=1 // pred_check
      _
    $region47: #{decoder_forward.1} parent=1 // pred_check_branch
      %58 = sbr.rel (0) target = $region49
    $region48: #{decoder_forward.1} parent=1 // pred_region
      _
    $region49: #{decoder_forward.1} parent=1 // pred_fallthru
      _
    // Predicated region
    $region50: #{decoder_forward.1} parent=1 // pred_check
      _
    $region51: #{decoder_forward.1} parent=1 // pred_check_branch
      %60 = sbr.rel (0) target = $region53
    $region52: #{decoder_forward.1} parent=1 // pred_region
      _
    $region53: #{decoder_forward.1} parent=1 // pred_fallthru
      _
    // Predicated region
    $region54: #{decoder_forward.1} parent=1 // pred_check
      _
    $region55: #{decoder_forward.1} parent=1 // pred_check_branch
      %62 = sbr.rel (0) target = $region57
    $region56: #{decoder_forward.1} parent=1 // pred_region
      _
    $region57: #{decoder_forward.1} parent=1 // pred_fallthru
      _
    // Predicated region
    $region58: #{decoder_forward.1} parent=1 // pred_check
      _
    $region59: #{decoder_forward.1} parent=1 // pred_check_branch
      %64 = sbr.rel (0) target = $region61
    $region60: #{decoder_forward.1} parent=1 // pred_region
      _
    $region61: #{decoder_forward.1} parent=1 // pred_fallthru
      _
    // Predicated region
    $region62: #{decoder_forward.1} parent=1 // pred_check
      _
    $region63: #{decoder_forward.1} parent=1 // pred_check_branch
      %66 = sbr.rel (0) target = $region65
    $region64: #{decoder_forward.1} parent=1 // pred_region
      _
    $region65: #{decoder_forward.1} parent=1 // pred_fallthru
      _
    // Predicated region
    $region66: #{decoder_forward.1} parent=1 // pred_check
      _
    $region67: #{decoder_forward.1} parent=1 // pred_check_branch
      %68 = sbr.rel (0) target = $region69
    $region68: #{decoder_forward.1} parent=1 // pred_region
      _
    $region69: #{decoder_forward.1} parent=1 // pred_fallthru
      _
    // Predicated region
    $region70: #{decoder_forward.1} parent=1 // pred_check
      _
    $region71: #{decoder_forward.1} parent=1 // pred_check_branch
      %70 = sbr.rel (0) target = $region73
    $region72: #{decoder_forward.1} parent=1 // pred_region
      _
    $region73: #{decoder_forward.1} parent=1 // pred_fallthru
      _
    // Predicated region
    $region74: #{decoder_forward.1} parent=1 // pred_check
      _
    $region75: #{decoder_forward.1} parent=1 // pred_check_branch
      %72 = sbr.rel (0) target = $region77
    $region76: #{decoder_forward.1} parent=1 // pred_region
      _
    $region77: #{decoder_forward.1} parent=1 // pred_fallthru
      _
    // Predicated region
    $region78: #{decoder_forward.1} parent=1 // pred_check
      _
    $region79: #{decoder_forward.1} parent=1 // pred_check_branch
      %74 = sbr.rel (0) target = $region81
    $region80: #{decoder_forward.1} parent=1 // pred_region
      _
    $region81: #{decoder_forward.1} parent=1 // pred_fallthru
      _
    // Predicated region
    $region82: #{decoder_forward.1} parent=1 // pred_check
      _
    $region83: #{decoder_forward.1} parent=1 // pred_check_branch
      %76 = sbr.rel (0) target = $region85
    $region84: #{decoder_forward.1} parent=1 // pred_region
      _
    $region85: #{decoder_forward.1} parent=1 // pred_fallthru
      _
    // Predicated region
    $region86: #{decoder_forward.1} parent=1 // pred_check
      _
    $region87: #{decoder_forward.1} parent=1 // pred_check_branch
      %78 = sbr.rel (0) target = $region89
    $region88: #{decoder_forward.1} parent=1 // pred_region
      _
    $region89: #{decoder_forward.1} parent=1 // pred_fallthru
      _
    // Predicated region
    $region90: #{decoder_forward.1} parent=1 // pred_check
      _
    $region91: #{decoder_forward.1} parent=1 // pred_check_branch
      %80 = sbr.rel (0) target = $region93
    $region92: #{decoder_forward.1} parent=1 // pred_region
      _
    $region93: #{decoder_forward.1} parent=1 // pred_fallthru
      _
    // Predicated region
    $region94: #{decoder_forward.1} parent=1 // pred_check
      _
    $region95: #{decoder_forward.1} parent=1 // pred_check_branch
      %82 = sbr.rel (0) target = $region97
    $region96: #{decoder_forward.1} parent=1 // pred_region
      _
    $region97: #{decoder_forward.1} parent=1 // pred_fallthru
      _
    // Predicated region
    $region98: #{decoder_forward.1} parent=1 // pred_check
      _
    $region99: #{decoder_forward.1} parent=1 // pred_check_branch
      %84 = sbr.rel (0) target = $region101
    $region100: #{decoder_forward.1} parent=1 // pred_region
      _
    $region101: #{decoder_forward.1} parent=1 // pred_fallthru
      _
    // Predicated region
    $region102: #{decoder_forward.1} parent=1 // pred_check
      _
    $region103: #{decoder_forward.1} parent=1 // pred_check_branch
      %86 = sbr.rel (0) target = $region105
    $region104: #{decoder_forward.1} parent=1 // pred_region
      _
    $region105: #{decoder_forward.1} parent=1 // pred_fallthru
      _
    // Predicated region
    $region106: #{decoder_forward.1} parent=1 // pred_check
      _
    $region107: #{decoder_forward.1} parent=1 // pred_check_branch
      %88 = sbr.rel (0) target = $region109
    $region108: #{decoder_forward.1} parent=1 // pred_region
      _
    $region109: #{decoder_forward.1} parent=1 // pred_fallthru
      _
    %v90 = vld [vmem:[%s0] sm:$0x3f]
    %v91 = vld [vmem:[%s5] sm:$0xf]
    %v92 = vld [vmem:[%s5 + $0x4] sm:$0xf]
    %v93 = vpack.c.bf16 %v90, %v90
    %v94 = vld [vmem:[%s6] sm:$0x1]
    %v96 = vlaneseq
    %v97 = vshrl.u32 %v96, 7
    %v98 = vsub.s32 0, %v97
    %v99 = vrot.slane %v94, %v98
    %v103 = vunpack.c.l.b16 %v91
    %v104 = vunpack.c.l.b16 %v92
    %v105 = vpack.c.b16 %v104, %v103
    %vm107 = vcmask 130048
    %v109 = vsel %vm107, %v93, 0
    %111 = vmatprep.subr.bf16.mxu0 0
    %112 = vmatpush1.bf16.msra.mxu0 %v105
    %113 = vmatprep.subr.bf16.mxu0 0
    %114 = vmatpush1.bf16.msra.mxu0 0
    %115 = vmatprep.subr.bf16.mxu0 0
    %116 = vmatpush1.bf16.msra.mxu0 0
    %117 = vmatprep.subr.bf16.mxu0 0
    %118 = vmatpush1.bf16.msra.mxu0 0
    %119 = vmatprep.subr.bf16.mxu0 0
    %120 = vmatpush1.bf16.msra.mxu0 0
    %121 = vmatprep.subr.bf16.mxu0 0
    %122 = vmatpush1.bf16.msra.mxu0 0
    %123 = vmatprep.subr.bf16.mxu0 0
    %124 = vmatpush1.bf16.msra.mxu0 0
    %125 = vmatprep.subr.bf16.mxu0 0
    %126 = vmatpush1.bf16.msra.mxu0 0
    %127 = vmatprep.subr.bf16.mxu0 0
    %128 = vmatpush1.bf16.msra.mxu0 0
    %129 = vmatprep.subr.bf16.mxu0 0
    %130 = vmatpush1.bf16.msra.mxu0 0
    %131 = vmatprep.subr.bf16.mxu0 0
    %132 = vmatpush1.bf16.msra.mxu0 0
    %133 = vmatprep.subr.bf16.mxu0 0
    %134 = vmatpush1.bf16.msra.mxu0 0
    %135 = vmatprep.subr.bf16.mxu0 0
    %136 = vmatpush1.bf16.msra.mxu0 0
    %137 = vmatprep.subr.bf16.mxu0 0
    %138 = vmatpush1.bf16.msra.mxu0 0
    %139 = vmatprep.subr.bf16.mxu0 0
    %140 = vmatpush1.bf16.msra.mxu0 0
    %141 = vmatprep.subr.bf16.mxu0 0
    %142 = vmatpush1.bf16.msra.mxu0 0
    %143 = vmatprep.mubr.bf16.mxu0 0
    %144 = vmatmul.mubr.bf16.gmra.mrb[0].mxu0 %v109
    %v145 = vpop.f32.mrb[0].mxu0
    %v146 = vadd.f32 %v99, %v145
    %v147 = vpop.f32.mrb[0].mxu0
    %v148 = vpop.f32.mrb[0].mxu0
    %v149 = vpop.f32.mrb[0].mxu0
    %150 = vdwg.mxu0
    %151 = vst [vmem:[%s28] sm:$0x3f] %v146
    %v152 = vld [vmem:[%s1] sm:$0xf]
    %v153 = vld [vmem:[%s1 + $0x4] sm:$0xf]
    %v154 = vld [vmem:[%s1 + $0x8] sm:$0xf]
    %v155 = vld [vmem:[%s1 + $0xc] sm:$0xf]
    %v156 = vld [vmem:[%s1 + $0x10] sm:$0xf]
    %v157 = vld [vmem:[%s1 + $0x14] sm:$0xf]
    %v158 = vld [vmem:[%s3] sm:$0xf]
    %v159 = vld [vmem:[%s3 + $0x4] sm:$0xf]
    %v160 = vld [vmem:[%s4] sm:$0x1]
    %v162 = vlaneseq
    %v163 = vshrl.u32 %v162, 7
    %v164 = vsub.s32 0, %v163
    %v165 = vrot.slane %v160, %v164
    %v173 = vunpack.c.l.b16 %v152
    %v174 = vunpack.c.l.b16 %v153
    %v175 = vunpack.c.l.b16 %v154
    %v176 = vunpack.c.l.b16 %v155
    %v177 = vunpack.c.l.b16 %v156
    %v178 = vunpack.c.l.b16 %v157
    %v179 = vpack.c.b16 %v174, %v173
    %v180 = vpack.c.b16 %v176, %v175
    %v181 = vpack.c.b16 %v178, %v177
    %v184 = vunpack.c.l.b16 %v158
    %v185 = vunpack.c.l.b16 %v159
    %v186 = vpack.c.b16 %v185, %v184
    %v189 = vsel %vm107, %v179, 0
    %v192 = vsel %vm107, %v180, 0
    %v195 = vsel %vm107, %v181, 0
    %197 = vmatprep.subr.bf16.mxu0 0
    %198 = vmatpush1.bf16.msra.mxu0 %v186
    %199 = vmatprep.subr.bf16.mxu0 0
    %200 = vmatpush1.bf16.msra.mxu0 0
    %201 = vmatprep.subr.bf16.mxu0 0
    %202 = vmatpush1.bf16.msra.mxu0 0
    %203 = vmatprep.subr.bf16.mxu0 0
    %204 = vmatpush1.bf16.msra.mxu0 0
    %205 = vmatprep.subr.bf16.mxu0 0
    %206 = vmatpush1.bf16.msra.mxu0 0
    %207 = vmatprep.subr.bf16.mxu0 0
    %208 = vmatpush1.bf16.msra.mxu0 0
    %209 = vmatprep.subr.bf16.mxu0 0
    %210 = vmatpush1.bf16.msra.mxu0 0
    %211 = vmatprep.subr.bf16.mxu0 0
    %212 = vmatpush1.bf16.msra.mxu0 0
    %213 = vmatprep.subr.bf16.mxu0 0
    %214 = vmatpush1.bf16.msra.mxu0 0
    %215 = vmatprep.subr.bf16.mxu0 0
    %216 = vmatpush1.bf16.msra.mxu0 0
    %217 = vmatprep.subr.bf16.mxu0 0
    %218 = vmatpush1.bf16.msra.mxu0 0
    %219 = vmatprep.subr.bf16.mxu0 0
    %220 = vmatpush1.bf16.msra.mxu0 0
    %221 = vmatprep.subr.bf16.mxu0 0
    %222 = vmatpush1.bf16.msra.mxu0 0
    %223 = vmatprep.subr.bf16.mxu0 0
    %224 = vmatpush1.bf16.msra.mxu0 0
    %225 = vmatprep.subr.bf16.mxu0 0
    %226 = vmatpush1.bf16.msra.mxu0 0
    %227 = vmatprep.subr.bf16.mxu0 0
    %228 = vmatpush1.bf16.msra.mxu0 0
    %229 = vmatprep.mubr.bf16.mxu0 0
    %230 = vmatmul.mubr.bf16.gmra.mrb[0].mxu0 %v189
    %v231 = vpop.f32.mrb[0].mxu0
    %v232 = vadd.f32 %v165, %v231
    %v233 = vpop.f32.mrb[0].mxu0
    %v234 = vpop.f32.mrb[0].mxu0
    %v235 = vadd.f32 %v165, %v234
    %v236 = vpop.f32.mrb[0].mxu0
    %237 = vmatprep.mubr.bf16.mxu0 0
    %238 = vmatmul.mubr.bf16.gmra.mrb[0].mxu0 %v192
    %v239 = vpop.f32.mrb[0].mxu0
    %v240 = vadd.f32 %v165, %v239
    %v241 = vpop.f32.mrb[0].mxu0
    %v242 = vpop.f32.mrb[0].mxu0
    %v243 = vadd.f32 %v165, %v242
    %v244 = vpop.f32.mrb[0].mxu0
    %245 = vmatprep.mubr.bf16.mxu0 0
    %246 = vmatmul.mubr.bf16.gmra.mrb[0].mxu0 %v195
    %v247 = vpop.f32.mrb[0].mxu0
    %v248 = vadd.f32 %v165, %v247
    %v249 = vpop.f32.mrb[0].mxu0
    %v250 = vpop.f32.mrb[0].mxu0
    %v251 = vadd.f32 %v165, %v250
    %v252 = vpop.f32.mrb[0].mxu0
    %253 = vdwg.mxu0
    %v254 = vld [vmem:[%s2] sm:$0xff]
    %v255 = vadd.f32 %v232, %v254
    %v256 = vadd.f32 %v235, %v254
    %v257 = vadd.f32 %v240, %v254
    %v258 = vadd.f32 %v243, %v254
    %v259 = vadd.f32 %v248, %v254
    %v260 = vadd.f32 %v251, %v254
    %v261 = vld [vmem:[%s7] sm:$0x1]
    %v262 = vld [vmem:[%s8] sm:$0x1]
    %vm263 = vcmask 261120
    %v264 = vsel %vm263, %v255, 0.0
    %265 = vadd.xlane.f32.xlu0 %v264
    %v266 = vpop.xlane.xlu0 %265
    %v267 = vsel %vm263, %v256, 0.0
    %268 = vadd.xlane.f32.xlu0 %v267
    %v269 = vpop.xlane.xlu0 %268
    %v270 = vsel %vm263, %v257, 0.0
    %271 = vadd.xlane.f32.xlu0 %v270
    %v272 = vpop.xlane.xlu0 %271
    %v273 = vsel %vm263, %v258, 0.0
    %274 = vadd.xlane.f32.xlu0 %v273
    %v275 = vpop.xlane.xlu0 %274
    %v276 = vsel %vm263, %v259, 0.0
    %277 = vadd.xlane.f32.xlu0 %v276
    %v278 = vpop.xlane.xlu0 %277
    %v279 = vsel %vm263, %v260, 0.0
    %280 = vadd.xlane.f32.xlu0 %v279
    %v281 = vpop.xlane.xlu0 %280
    %v282 = vrcp.pop 32.0
    %v283 = vmul.f32 %v266, %v282
    %v284 = vmul.f32 %v269, %v282
    %v285 = vmul.f32 %v272, %v282
    %v286 = vmul.f32 %v275, %v282
    %v287 = vmul.f32 %v278, %v282
    %v288 = vmul.f32 %v281, %v282
    %v289 = vsub.f32 %v255, %v283
    %v290 = vsub.f32 %v256, %v284
    %v291 = vsub.f32 %v257, %v285
    %v292 = vsub.f32 %v258, %v286
    %v293 = vsub.f32 %v259, %v287
    %v294 = vsub.f32 %v260, %v288
    %v295 = vmul.f32 %v289, %v289
    %v296 = vmul.f32 %v290, %v290
    %v297 = vmul.f32 %v291, %v291
    %v298 = vmul.f32 %v292, %v292
    %v299 = vmul.f32 %v293, %v293
    %v300 = vmul.f32 %v294, %v294
    %v301 = vsel %vm263, %v295, 0.0
    %302 = vadd.xlane.f32.xlu0 %v301
    %v303 = vpop.xlane.xlu0 %302
    %v304 = vsel %vm263, %v296, 0.0
    %305 = vadd.xlane.f32.xlu0 %v304
    %v306 = vpop.xlane.xlu0 %305
    %v307 = vsel %vm263, %v297, 0.0
    %308 = vadd.xlane.f32.xlu0 %v307
    %v309 = vpop.xlane.xlu0 %308
    %v310 = vsel %vm263, %v298, 0.0
    %311 = vadd.xlane.f32.xlu0 %v310
    %v312 = vpop.xlane.xlu0 %311
    %v313 = vsel %vm263, %v299, 0.0
    %314 = vadd.xlane.f32.xlu0 %v313
    %v315 = vpop.xlane.xlu0 %314
    %v316 = vsel %vm263, %v300, 0.0
    %317 = vadd.xlane.f32.xlu0 %v316
    %v318 = vpop.xlane.xlu0 %317
    %v319 = vmul.f32 %v303, %v282
    %v320 = vmul.f32 %v306, %v282
    %v321 = vmul.f32 %v309, %v282
    %v322 = vmul.f32 %v312, %v282
    %v323 = vmul.f32 %v315, %v282
    %v324 = vmul.f32 %v318, %v282
    %v325 = vadd.f32 %v319, 1e-05
    %v326 = vadd.f32 %v320, 1e-05
    %v327 = vadd.f32 %v321, 1e-05
    %v328 = vadd.f32 %v322, 1e-05
    %v329 = vadd.f32 %v323, 1e-05
    %v330 = vadd.f32 %v324, 1e-05
    %v331 = vrsqrt.pop %v325
    %v332 = vrsqrt.pop %v326
    %v333 = vrsqrt.pop %v327
    %v334 = vrsqrt.pop %v328
    %v335 = vrsqrt.pop %v329
    %v336 = vrsqrt.pop %v330
    %v337 = vmul.f32 %v289, %v331
    %v338 = vmul.f32 %v290, %v332
    %v339 = vmul.f32 %v291, %v333
    %v340 = vmul.f32 %v292, %v334
    %v341 = vmul.f32 %v293, %v335
    %v342 = vmul.f32 %v294, %v336
    %v344 = vlaneseq
    %v345 = vshrl.u32 %v344, 7
    %v346 = vsub.s32 0, %v345
    %v347 = vrot.slane %v261, %v346
    %v349 = vmul.f32 %v337, %v347
    %v350 = vmul.f32 %v338, %v347
    %v351 = vmul.f32 %v339, %v347
    %v352 = vmul.f32 %v340, %v347
    %v353 = vmul.f32 %v341, %v347
    %v354 = vmul.f32 %v342, %v347
    %v356 = vlaneseq
    %v357 = vshrl.u32 %v356, 7
    %v358 = vsub.s32 0, %v357
    %v359 = vrot.slane %v262, %v358
    %v361 = vadd.f32 %v349, %v359
    %v362 = vadd.f32 %v350, %v359
    %v363 = vadd.f32 %v351, %v359
    %v364 = vadd.f32 %v352, %v359
    %v365 = vadd.f32 %v353, %v359
    %v366 = vadd.f32 %v354, %v359
    %v367 = vld [vmem:[%s9] sm:$0xf]
    %v368 = vld [vmem:[%s9 + $0x4] sm:$0xf]
    %v369 = vld [vmem:[%s9 + $0x8] sm:$0xf]
    %v370 = vld [vmem:[%s9 + $0xc] sm:$0xf]
    %v371 = vpack.c.bf16 %v362, %v361
    %v372 = vpack.c.bf16 %v364, %v363
    %v373 = vpack.c.bf16 %v366, %v365
    %v374 = vld [vmem:[%s10] sm:$0x1]
    %v376 = vlaneseq
    %v377 = vshrl.u32 %v376, 7
    %v378 = vsub.s32 0, %v377
    %v379 = vrot.slane %v374, %v378
    %v385 = vunpack.c.l.b16 %v367
    %v386 = vunpack.c.l.b16 %v368
    %v387 = vunpack.c.l.b16 %v369
    %v388 = vunpack.c.l.b16 %v370
    %v389 = vpack.c.b16 %v386, %v385
    %v390 = vpack.c.b16 %v388, %v387
    %v394 = vsel %vm263, %v371, 0
    %v397 = vsel %vm263, %v372, 0
    %v400 = vsel %vm263, %v373, 0
    %402 = vmatprep.subr.bf16.mxu0 0
    %403 = vmatpush1.bf16.msra.mxu0 %v389
    %404 = vmatprep.subr.bf16.mxu0 0
    %405 = vmatpush1.bf16.msra.mxu0 %v390
    %406 = vmatprep.subr.bf16.mxu0 0
    %407 = vmatpush1.bf16.msra.mxu0 0
    %408 = vmatprep.subr.bf16.mxu0 0
    %409 = vmatpush1.bf16.msra.mxu0 0
    %410 = vmatprep.subr.bf16.mxu0 0
    %411 = vmatpush1.bf16.msra.mxu0 0
    %412 = vmatprep.subr.bf16.mxu0 0
    %413 = vmatpush1.bf16.msra.mxu0 0
    %414 = vmatprep.subr.bf16.mxu0 0
    %415 = vmatpush1.bf16.msra.mxu0 0
    %416 = vmatprep.subr.bf16.mxu0 0
    %417 = vmatpush1.bf16.msra.mxu0 0
    %418 = vmatprep.subr.bf16.mxu0 0
    %419 = vmatpush1.bf16.msra.mxu0 0
    %420 = vmatprep.subr.bf16.mxu0 0
    %421 = vmatpush1.bf16.msra.mxu0 0
    %422 = vmatprep.subr.bf16.mxu0 0
    %423 = vmatpush1.bf16.msra.mxu0 0
    %424 = vmatprep.subr.bf16.mxu0 0
    %425 = vmatpush1.bf16.msra.mxu0 0
    %426 = vmatprep.subr.bf16.mxu0 0
    %427 = vmatpush1.bf16.msra.mxu0 0
    %428 = vmatprep.subr.bf16.mxu0 0
    %429 = vmatpush1.bf16.msra.mxu0 0
    %430 = vmatprep.subr.bf16.mxu0 0
    %431 = vmatpush1.bf16.msra.mxu0 0
    %432 = vmatprep.subr.bf16.mxu0 0
    %433 = vmatpush1.bf16.msra.mxu0 0
    %434 = vmatprep.mubr.bf16.mxu0 0
    %435 = vmatmul.mubr.bf16.gmra.mrb[0].mxu0 %v394
    %v436 = vpop.f32.mrb[0].mxu0
    %v437 = vadd.f32 %v379, %v436
    %v438 = vpop.f32.mrb[0].mxu0
    %v439 = vpop.f32.mrb[0].mxu0
    %v440 = vadd.f32 %v379, %v439
    %v441 = vpop.f32.mrb[0].mxu0
    %442 = vmatprep.mubr.bf16.mxu0 0
    %443 = vmatmul.mubr.bf16.gmra.mrb[0].mxu0 %v397
    %v444 = vpop.f32.mrb[0].mxu0
    %v445 = vadd.f32 %v379, %v444
    %v446 = vpop.f32.mrb[0].mxu0
    %v447 = vpop.f32.mrb[0].mxu0
    %v448 = vadd.f32 %v379, %v447
    %v449 = vpop.f32.mrb[0].mxu0
    %450 = vmatprep.mubr.bf16.mxu0 0
    %451 = vmatmul.mubr.bf16.gmra.mrb[0].mxu0 %v400
    %v452 = vpop.f32.mrb[0].mxu0
    %v453 = vadd.f32 %v379, %v452
    %v454 = vpop.f32.mrb[0].mxu0
    %v455 = vpop.f32.mrb[0].mxu0
    %v456 = vadd.f32 %v379, %v455
    %v457 = vpop.f32.mrb[0].mxu0
    %458 = vdwg.mxu0
    %v459 = vpack.c.bf16 %v437, %v437
    %461 = vrot.lane.b32.xlu0 %v459, 96
    %v462 = vpop.permute.xlu0 %461
    %v464 = vsel %vm107, %v459, 0
    %v467 = vsel %vm107, %v462, 0
    %469 = vmatprep.subr.bf16.mxu0 0
    %470 = vmatpush1.bf16.xpose.msra.mxu0 %v467
    %471 = vmatprep.subr.bf16.mxu0 0
    %472 = vmatpush1.bf16.xpose.msra.mxu0 0
    %473 = vmatprep.subr.bf16.mxu0 0
    %474 = vmatpush1.bf16.xpose.msra.mxu0 0
    %475 = vmatprep.subr.bf16.mxu0 0
    %476 = vmatpush1.bf16.xpose.msra.mxu0 0
    %477 = vmatprep.subr.bf16.mxu0 0
    %478 = vmatpush1.bf16.xpose.msra.mxu0 0
    %479 = vmatprep.subr.bf16.mxu0 0
    %480 = vmatpush1.bf16.xpose.msra.mxu0 0
    %481 = vmatprep.subr.bf16.mxu0 0
    %482 = vmatpush1.bf16.xpose.msra.mxu0 0
    %483 = vmatprep.subr.bf16.mxu0 0
    %484 = vmatpush1.bf16.xpose.msra.mxu0 0
    %485 = vmatprep.subr.bf16.mxu0 0
    %486 = vmatpush1.bf16.xpose.msra.mxu0 0
    %487 = vmatprep.subr.bf16.mxu0 0
    %488 = vmatpush1.bf16.xpose.msra.mxu0 0
    %489 = vmatprep.subr.bf16.mxu0 0
    %490 = vmatpush1.bf16.xpose.msra.mxu0 0
    %491 = vmatprep.subr.bf16.mxu0 0
    %492 = vmatpush1.bf16.xpose.msra.mxu0 0
    %493 = vmatprep.subr.bf16.mxu0 0
    %494 = vmatpush1.bf16.xpose.msra.mxu0 0
    %495 = vmatprep.subr.bf16.mxu0 0
    %496 = vmatpush1.bf16.xpose.msra.mxu0 0
    %497 = vmatprep.subr.bf16.mxu0 0
    %498 = vmatpush1.bf16.xpose.msra.mxu0 0
    %499 = vmatprep.subr.bf16.mxu0 0
    %500 = vmatpush1.bf16.xpose.msra.mxu0 0
    %501 = vmatprep.mubr.bf16.mxu0 0
    %502 = vmatmul.mubr.bf16.gmra.mrb[0].mxu0 %v464
    %v503 = vpop.f32.mrb[0].mxu0
    %v504 = vadd.f32 0.0, %v503
    %v505 = vpop.f32.mrb[0].mxu0
    %v506 = vpop.f32.mrb[0].mxu0
    %v507 = vpop.f32.mrb[0].mxu0
    %508 = vdwg.mxu0
    %v509 = vmul.f32 %v504, 0.25
    %vm510 = vcmask 64512
    %v511 = vsel %vm510, %v509, -inf
    %512 = vmax.xlane.f32.xlu0 %v511
    %v513 = vpop.xlane.xlu0 %512
    %v514 = vsub.f32 %v509, %v513
    %v515 = vmul.f32 %v514, 1.442695
    %v516 = vpow.pop %v515
    %v517 = vsel %vm510, %v516, 0.0
    %518 = vadd.xlane.f32.xlu0 %v517
    %v519 = vpop.xlane.xlu0 %518
    %v520 = vrcp.pop %v519
    %v521 = vmul.f32 %v516, %v520
    %v522 = vpack.c.bf16 %v521, %v521
    %523 = vrot.lane.b32.xlu0 %v459, 64
    %v524 = vpop.permute.xlu0 %523
    %v526 = vsel %vm510, %v522, 0
    %vm528 = vcmask 1043456
    %v530 = vsel %vm528, %v524, 0
    %532 = vmatprep.subr.bf16.mxu0 0
    %533 = vmatpush1.bf16.msra.mxu0 %v530
    %534 = vmatprep.subr.bf16.mxu0 0
    %535 = vmatpush1.bf16.msra.mxu0 0
    %536 = vmatprep.subr.bf16.mxu0 0
    %537 = vmatpush1.bf16.msra.mxu0 0
    %538 = vmatprep.subr.bf16.mxu0 0
    %539 = vmatpush1.bf16.msra.mxu0 0
    %540 = vmatprep.subr.bf16.mxu0 0
    %541 = vmatpush1.bf16.msra.mxu0 0
    %542 = vmatprep.subr.bf16.mxu0 0
    %543 = vmatpush1.bf16.msra.mxu0 0
    %544 = vmatprep.subr.bf16.mxu0 0
    %545 = vmatpush1.bf16.msra.mxu0 0
    %546 = vmatprep.subr.bf16.mxu0 0
    %547 = vmatpush1.bf16.msra.mxu0 0
    %548 = vmatprep.subr.bf16.mxu0 0
    %549 = vmatpush1.bf16.msra.mxu0 0
    %550 = vmatprep.subr.bf16.mxu0 0
    %551 = vmatpush1.bf16.msra.mxu0 0
    %552 = vmatprep.subr.bf16.mxu0 0
    %553 = vmatpush1.bf16.msra.mxu0 0
    %554 = vmatprep.subr.bf16.mxu0 0
    %555 = vmatpush1.bf16.msra.mxu0 0
    %556 = vmatprep.subr.bf16.mxu0 0
    %557 = vmatpush1.bf16.msra.mxu0 0
    %558 = vmatprep.subr.bf16.mxu0 0
    %559 = vmatpush1.bf16.msra.mxu0 0
    %560 = vmatprep.subr.bf16.mxu0 0
    %561 = vmatpush1.bf16.msra.mxu0 0
    %562 = vmatprep.subr.bf16.mxu0 0
    %563 = vmatpush1.bf16.msra.mxu0 0
    %564 = vmatprep.mubr.bf16.mxu0 0
    %565 = vmatmul.mubr.bf16.gmra.mrb[0].mxu0 %v526
    %v566 = vpop.f32.mrb[0].mxu0
    %v567 = vadd.f32 0.0, %v566
    %v568 = vpop.f32.mrb[0].mxu0
    %v569 = vpop.f32.mrb[0].mxu0
    %v570 = vpop.f32.mrb[0].mxu0
    %571 = vdwg.mxu0
    %572 = vrot.lane.b32.xlu0 %v459, 112
    %v573 = vpop.permute.xlu0 %572
    %574 = vrot.lane.b32.xlu0 %v459, 80
    %v575 = vpop.permute.xlu0 %574
    %v577 = vsel %vm107, %v573, 0
    %v580 = vsel %vm107, %v575, 0
    %582 = vmatprep.subr.bf16.mxu0 0
    %583 = vmatpush1.bf16.xpose.msra.mxu0 %v580
    %584 = vmatprep.subr.bf16.mxu0 0
    %585 = vmatpush1.bf16.xpose.msra.mxu0 0
    %586 = vmatprep.subr.bf16.mxu0 0
    %587 = vmatpush1.bf16.xpose.msra.mxu0 0
    %588 = vmatprep.subr.bf16.mxu0 0
    %589 = vmatpush1.bf16.xpose.msra.mxu0 0
    %590 = vmatprep.subr.bf16.mxu0 0
    %591 = vmatpush1.bf16.xpose.msra.mxu0 0
    %592 = vmatprep.subr.bf16.mxu0 0
    %593 = vmatpush1.bf16.xpose.msra.mxu0 0
    %594 = vmatprep.subr.bf16.mxu0 0
    %595 = vmatpush1.bf16.xpose.msra.mxu0 0
    %596 = vmatprep.subr.bf16.mxu0 0
    %597 = vmatpush1.bf16.xpose.msra.mxu0 0
    %598 = vmatprep.subr.bf16.mxu0 0
    %599 = vmatpush1.bf16.xpose.msra.mxu0 0
    %600 = vmatprep.subr.bf16.mxu0 0
    %601 = vmatpush1.bf16.xpose.msra.mxu0 0
    %602 = vmatprep.subr.bf16.mxu0 0
    %603 = vmatpush1.bf16.xpose.msra.mxu0 0
    %604 = vmatprep.subr.bf16.mxu0 0
    %605 = vmatpush1.bf16.xpose.msra.mxu0 0
    %606 = vmatprep.subr.bf16.mxu0 0
    %607 = vmatpush1.bf16.xpose.msra.mxu0 0
    %608 = vmatprep.subr.bf16.mxu0 0
    %609 = vmatpush1.bf16.xpose.msra.mxu0 0
    %610 = vmatprep.subr.bf16.mxu0 0
    %611 = vmatpush1.bf16.xpose.msra.mxu0 0
    %612 = vmatprep.subr.bf16.mxu0 0
    %613 = vmatpush1.bf16.xpose.msra.mxu0 0
    %614 = vmatprep.mubr.bf16.mxu0 0
    %615 = vmatmul.mubr.bf16.gmra.mrb[0].mxu0 %v577
    %v616 = vpop.f32.mrb[0].mxu0
    %v617 = vadd.f32 0.0, %v616
    %v618 = vpop.f32.mrb[0].mxu0
    %v619 = vpop.f32.mrb[0].mxu0
    %v620 = vpop.f32.mrb[0].mxu0
    %621 = vdwg.mxu0
    %v622 = vmul.f32 %v617, 0.25
    %v623 = vsel %vm510, %v622, -inf
    %624 = vmax.xlane.f32.xlu0 %v623
    %v625 = vpop.xlane.xlu0 %624
    %v626 = vsub.f32 %v622, %v625
    %v627 = vmul.f32 %v626, 1.442695
    %v628 = vpow.pop %v627
    %v629 = vsel %vm510, %v628, 0.0
    %630 = vadd.xlane.f32.xlu0 %v629
    %v631 = vpop.xlane.xlu0 %630
    %v632 = vrcp.pop %v631
    %v633 = vmul.f32 %v628, %v632
    %v634 = vpack.c.bf16 %v633, %v633
    %635 = vrot.lane.b32.xlu0 %v459, 48
    %v636 = vpop.permute.xlu0 %635
    %v638 = vsel %vm510, %v634, 0
    %v641 = vsel %vm528, %v636, 0
    %643 = vmatprep.subr.bf16.mxu0 0
    %644 = vmatpush1.bf16.msra.mxu0 %v641
    %645 = vmatprep.subr.bf16.mxu0 0
    %646 = vmatpush1.bf16.msra.mxu0 0
    %647 = vmatprep.subr.bf16.mxu0 0
    %648 = vmatpush1.bf16.msra.mxu0 0
    %649 = vmatprep.subr.bf16.mxu0 0
    %650 = vmatpush1.bf16.msra.mxu0 0
    %651 = vmatprep.subr.bf16.mxu0 0
    %652 = vmatpush1.bf16.msra.mxu0 0
    %653 = vmatprep.subr.bf16.mxu0 0
    %654 = vmatpush1.bf16.msra.mxu0 0
    %655 = vmatprep.subr.bf16.mxu0 0
    %656 = vmatpush1.bf16.msra.mxu0 0
    %657 = vmatprep.subr.bf16.mxu0 0
    %658 = vmatpush1.bf16.msra.mxu0 0
    %659 = vmatprep.subr.bf16.mxu0 0
    %660 = vmatpush1.bf16.msra.mxu0 0
    %661 = vmatprep.subr.bf16.mxu0 0
    %662 = vmatpush1.bf16.msra.mxu0 0
    %663 = vmatprep.subr.bf16.mxu0 0
    %664 = vmatpush1.bf16.msra.mxu0 0
    %665 = vmatprep.subr.bf16.mxu0 0
    %666 = vmatpush1.bf16.msra.mxu0 0
    %667 = vmatprep.subr.bf16.mxu0 0
    %668 = vmatpush1.bf16.msra.mxu0 0
    %669 = vmatprep.subr.bf16.mxu0 0
    %670 = vmatpush1.bf16.msra.mxu0 0
    %671 = vmatprep.subr.bf16.mxu0 0
    %672 = vmatpush1.bf16.msra.mxu0 0
    %673 = vmatprep.subr.bf16.mxu0 0
    %674 = vmatpush1.bf16.msra.mxu0 0
    %675 = vmatprep.mubr.bf16.mxu0 0
    %676 = vmatmul.mubr.bf16.gmra.mrb[0].mxu0 %v638
    %v677 = vpop.f32.mrb[0].mxu0
    %v678 = vadd.f32 0.0, %v677
    %v679 = vpop.f32.mrb[0].mxu0
    %v680 = vpop.f32.mrb[0].mxu0
    %v681 = vpop.f32.mrb[0].mxu0
    %682 = vdwg.mxu0
    %684 = vrot.lane.b32.xlu0 %v678, 16
    %v685 = vpop.permute.xlu0 %684
    %v687 = vsel %vm107, %v567, %v685
    %v688 = vpack.c.bf16 %v440, %v440
    %690 = vrot.lane.b32.xlu0 %v688, 96
    %v691 = vpop.permute.xlu0 %690
    %v693 = vsel %vm107, %v688, 0
    %v696 = vsel %vm107, %v691, 0
    %698 = vmatprep.subr.bf16.mxu0 0
    %699 = vmatpush1.bf16.xpose.msra.mxu0 %v696
    %700 = vmatprep.subr.bf16.mxu0 0
    %701 = vmatpush1.bf16.xpose.msra.mxu0 0
    %702 = vmatprep.subr.bf16.mxu0 0
    %703 = vmatpush1.bf16.xpose.msra.mxu0 0
    %704 = vmatprep.subr.bf16.mxu0 0
    %705 = vmatpush1.bf16.xpose.msra.mxu0 0
    %706 = vmatprep.subr.bf16.mxu0 0
    %707 = vmatpush1.bf16.xpose.msra.mxu0 0
    %708 = vmatprep.subr.bf16.mxu0 0
    %709 = vmatpush1.bf16.xpose.msra.mxu0 0
    %710 = vmatprep.subr.bf16.mxu0 0
    %711 = vmatpush1.bf16.xpose.msra.mxu0 0
    %712 = vmatprep.subr.bf16.mxu0 0
    %713 = vmatpush1.bf16.xpose.msra.mxu0 0
    %714 = vmatprep.subr.bf16.mxu0 0
    %715 = vmatpush1.bf16.xpose.msra.mxu0 0
    %716 = vmatprep.subr.bf16.mxu0 0
    %717 = vmatpush1.bf16.xpose.msra.mxu0 0
    %718 = vmatprep.subr.bf16.mxu0 0
    %719 = vmatpush1.bf16.xpose.msra.mxu0 0
    %720 = vmatprep.subr.bf16.mxu0 0
    %721 = vmatpush1.bf16.xpose.msra.mxu0 0
    %722 = vmatprep.subr.bf16.mxu0 0
    %723 = vmatpush1.bf16.xpose.msra.mxu0 0
    %724 = vmatprep.subr.bf16.mxu0 0
    %725 = vmatpush1.bf16.xpose.msra.mxu0 0
    %726 = vmatprep.subr.bf16.mxu0 0
    %727 = vmatpush1.bf16.xpose.msra.mxu0 0
    %728 = vmatprep.subr.bf16.mxu0 0
    %729 = vmatpush1.bf16.xpose.msra.mxu0 0
    %730 = vmatprep.mubr.bf16.mxu0 0
    %731 = vmatmul.mubr.bf16.gmra.mrb[0].mxu0 %v693
    %v732 = vpop.f32.mrb[0].mxu0
    %v733 = vadd.f32 0.0, %v732
    %v734 = vpop.f32.mrb[0].mxu0
    %v735 = vpop.f32.mrb[0].mxu0
    %v736 = vpop.f32.mrb[0].mxu0
    %737 = vdwg.mxu0
    %v738 = vmul.f32 %v733, 0.25
    %v739 = vsel %vm510, %v738, -inf
    %740 = vmax.xlane.f32.xlu0 %v739
    %v741 = vpop.xlane.xlu0 %740
    %v742 = vsub.f32 %v738, %v741
    %v743 = vmul.f32 %v742, 1.442695
    %v744 = vpow.pop %v743
    %v745 = vsel %vm510, %v744, 0.0
    %746 = vadd.xlane.f32.xlu0 %v745
    %v747 = vpop.xlane.xlu0 %746
    %v748 = vrcp.pop %v747
    %v749 = vmul.f32 %v744, %v748
    %v750 = vpack.c.bf16 %v749, %v749
    %751 = vrot.lane.b32.xlu0 %v688, 64
    %v752 = vpop.permute.xlu0 %751
    %v754 = vsel %vm510, %v750, 0
    %v757 = vsel %vm528, %v752, 0
    %759 = vmatprep.subr.bf16.mxu0 0
    %760 = vmatpush1.bf16.msra.mxu0 %v757
    %761 = vmatprep.subr.bf16.mxu0 0
    %762 = vmatpush1.bf16.msra.mxu0 0
    %763 = vmatprep.subr.bf16.mxu0 0
    %764 = vmatpush1.bf16.msra.mxu0 0
    %765 = vmatprep.subr.bf16.mxu0 0
    %766 = vmatpush1.bf16.msra.mxu0 0
    %767 = vmatprep.subr.bf16.mxu0 0
    %768 = vmatpush1.bf16.msra.mxu0 0
    %769 = vmatprep.subr.bf16.mxu0 0
    %770 = vmatpush1.bf16.msra.mxu0 0
    %771 = vmatprep.subr.bf16.mxu0 0
    %772 = vmatpush1.bf16.msra.mxu0 0
    %773 = vmatprep.subr.bf16.mxu0 0
    %774 = vmatpush1.bf16.msra.mxu0 0
    %775 = vmatprep.subr.bf16.mxu0 0
    %776 = vmatpush1.bf16.msra.mxu0 0
    %777 = vmatprep.subr.bf16.mxu0 0
    %778 = vmatpush1.bf16.msra.mxu0 0
    %779 = vmatprep.subr.bf16.mxu0 0
    %780 = vmatpush1.bf16.msra.mxu0 0
    %781 = vmatprep.subr.bf16.mxu0 0
    %782 = vmatpush1.bf16.msra.mxu0 0
    %783 = vmatprep.subr.bf16.mxu0 0
    %784 = vmatpush1.bf16.msra.mxu0 0
    %785 = vmatprep.subr.bf16.mxu0 0
    %786 = vmatpush1.bf16.msra.mxu0 0
    %787 = vmatprep.subr.bf16.mxu0 0
    %788 = vmatpush1.bf16.msra.mxu0 0
    %789 = vmatprep.subr.bf16.mxu0 0
    %790 = vmatpush1.bf16.msra.mxu0 0
    %791 = vmatprep.mubr.bf16.mxu0 0
    %792 = vmatmul.mubr.bf16.gmra.mrb[0].mxu0 %v754
    %v793 = vpop.f32.mrb[0].mxu0
    %v794 = vadd.f32 0.0, %v793
    %v795 = vpop.f32.mrb[0].mxu0
    %v796 = vpop.f32.mrb[0].mxu0
    %v797 = vpop.f32.mrb[0].mxu0
    %798 = vdwg.mxu0
    %799 = vrot.lane.b32.xlu0 %v688, 112
    %v800 = vpop.permute.xlu0 %799
    %801 = vrot.lane.b32.xlu0 %v688, 80
    %v802 = vpop.permute.xlu0 %801
    %v804 = vsel %vm107, %v800, 0
    %v807 = vsel %vm107, %v802, 0
    %809 = vmatprep.subr.bf16.mxu0 0
    %810 = vmatpush1.bf16.xpose.msra.mxu0 %v807
    %811 = vmatprep.subr.bf16.mxu0 0
    %812 = vmatpush1.bf16.xpose.msra.mxu0 0
    %813 = vmatprep.subr.bf16.mxu0 0
    %814 = vmatpush1.bf16.xpose.msra.mxu0 0
    %815 = vmatprep.subr.bf16.mxu0 0
    %816 = vmatpush1.bf16.xpose.msra.mxu0 0
    %817 = vmatprep.subr.bf16.mxu0 0
    %818 = vmatpush1.bf16.xpose.msra.mxu0 0
    %819 = vmatprep.subr.bf16.mxu0 0
    %820 = vmatpush1.bf16.xpose.msra.mxu0 0
    %821 = vmatprep.subr.bf16.mxu0 0
    %822 = vmatpush1.bf16.xpose.msra.mxu0 0
    %823 = vmatprep.subr.bf16.mxu0 0
    %824 = vmatpush1.bf16.xpose.msra.mxu0 0
    %825 = vmatprep.subr.bf16.mxu0 0
    %826 = vmatpush1.bf16.xpose.msra.mxu0 0
    %827 = vmatprep.subr.bf16.mxu0 0
    %828 = vmatpush1.bf16.xpose.msra.mxu0 0
    %829 = vmatprep.subr.bf16.mxu0 0
    %830 = vmatpush1.bf16.xpose.msra.mxu0 0
    %831 = vmatprep.subr.bf16.mxu0 0
    %832 = vmatpush1.bf16.xpose.msra.mxu0 0
    %833 = vmatprep.subr.bf16.mxu0 0
    %834 = vmatpush1.bf16.xpose.msra.mxu0 0
    %835 = vmatprep.subr.bf16.mxu0 0
    %836 = vmatpush1.bf16.xpose.msra.mxu0 0
    %837 = vmatprep.subr.bf16.mxu0 0
    %838 = vmatpush1.bf16.xpose.msra.mxu0 0
    %839 = vmatprep.subr.bf16.mxu0 0
    %840 = vmatpush1.bf16.xpose.msra.mxu0 0
    %841 = vmatprep.mubr.bf16.mxu0 0
    %842 = vmatmul.mubr.bf16.gmra.mrb[0].mxu0 %v804
    %v843 = vpop.f32.mrb[0].mxu0
    %v844 = vadd.f32 0.0, %v843
    %v845 = vpop.f32.mrb[0].mxu0
    %v846 = vpop.f32.mrb[0].mxu0
    %v847 = vpop.f32.mrb[0].mxu0
    %848 = vdwg.mxu0
    %v849 = vmul.f32 %v844, 0.25
    %v850 = vsel %vm510, %v849, -inf
    %851 = vmax.xlane.f32.xlu0 %v850
    %v852 = vpop.xlane.xlu0 %851
    %v853 = vsub.f32 %v849, %v852
    %v854 = vmul.f32 %v853, 1.442695
    %v855 = vpow.pop %v854
    %v856 = vsel %vm510, %v855, 0.0
    %857 = vadd.xlane.f32.xlu0 %v856
    %v858 = vpop.xlane.xlu0 %857
    %v859 = vrcp.pop %v858
    %v860 = vmul.f32 %v855, %v859
    %v861 = vpack.c.bf16 %v860, %v860
    %862 = vrot.lane.b32.xlu0 %v688, 48
    %v863 = vpop.permute.xlu0 %862
    %v865 = vsel %vm510, %v861, 0
    %v868 = vsel %vm528, %v863, 0
    %870 = vmatprep.subr.bf16.mxu0 0
    %871 = vmatpush1.bf16.msra.mxu0 %v868
    %872 = vmatprep.subr.bf16.mxu0 0
    %873 = vmatpush1.bf16.msra.mxu0 0
    %874 = vmatprep.subr.bf16.mxu0 0
    %875 = vmatpush1.bf16.msra.mxu0 0
    %876 = vmatprep.subr.bf16.mxu0 0
    %877 = vmatpush1.bf16.msra.mxu0 0
    %878 = vmatprep.subr.bf16.mxu0 0
    %879 = vmatpush1.bf16.msra.mxu0 0
    %880 = vmatprep.subr.bf16.mxu0 0
    %881 = vmatpush1.bf16.msra.mxu0 0
    %882 = vmatprep.subr.bf16.mxu0 0
    %883 = vmatpush1.bf16.msra.mxu0 0
    %884 = vmatprep.subr.bf16.mxu0 0
    %885 = vmatpush1.bf16.msra.mxu0 0
    %886 = vmatprep.subr.bf16.mxu0 0
    %887 = vmatpush1.bf16.msra.mxu0 0
    %888 = vmatprep.subr.bf16.mxu0 0
    %889 = vmatpush1.bf16.msra.mxu0 0
    %890 = vmatprep.subr.bf16.mxu0 0
    %891 = vmatpush1.bf16.msra.mxu0 0
    %892 = vmatprep.subr.bf16.mxu0 0
    %893 = vmatpush1.bf16.msra.mxu0 0
    %894 = vmatprep.subr.bf16.mxu0 0
    %895 = vmatpush1.bf16.msra.mxu0 0
    %896 = vmatprep.subr.bf16.mxu0 0
    %897 = vmatpush1.bf16.msra.mxu0 0
    %898 = vmatprep.subr.bf16.mxu0 0
    %899 = vmatpush1.bf16.msra.mxu0 0
    %900 = vmatprep.subr.bf16.mxu0 0
    %901 = vmatpush1.bf16.msra.mxu0 0
    %902 = vmatprep.mubr.bf16.mxu0 0
    %903 = vmatmul.mubr.bf16.gmra.mrb[0].mxu0 %v865
    %v904 = vpop.f32.mrb[0].mxu0
    %v905 = vadd.f32 0.0, %v904
    %v906 = vpop.f32.mrb[0].mxu0
    %v907 = vpop.f32.mrb[0].mxu0
    %v908 = vpop.f32.mrb[0].mxu0
    %909 = vdwg.mxu0
    %911 = vrot.lane.b32.xlu0 %v905, 16
    %v912 = vpop.permute.xlu0 %911
    %v914 = vsel %vm107, %v794, %v912
    %v915 = vpack.c.bf16 %v445, %v445
    %917 = vrot.lane.b32.xlu0 %v915, 96
    %v918 = vpop.permute.xlu0 %917
    %v920 = vsel %vm107, %v915, 0
    %v923 = vsel %vm107, %v918, 0
    %925 = vmatprep.subr.bf16.mxu0 0
    %926 = vmatpush1.bf16.xpose.msra.mxu0 %v923
    %927 = vmatprep.subr.bf16.mxu0 0
    %928 = vmatpush1.bf16.xpose.msra.mxu0 0
    %929 = vmatprep.subr.bf16.mxu0 0
    %930 = vmatpush1.bf16.xpose.msra.mxu0 0
    %931 = vmatprep.subr.bf16.mxu0 0
    %932 = vmatpush1.bf16.xpose.msra.mxu0 0
    %933 = vmatprep.subr.bf16.mxu0 0
    %934 = vmatpush1.bf16.xpose.msra.mxu0 0
    %935 = vmatprep.subr.bf16.mxu0 0
    %936 = vmatpush1.bf16.xpose.msra.mxu0 0
    %937 = vmatprep.subr.bf16.mxu0 0
    %938 = vmatpush1.bf16.xpose.msra.mxu0 0
    %939 = vmatprep.subr.bf16.mxu0 0
    %940 = vmatpush1.bf16.xpose.msra.mxu0 0
    %941 = vmatprep.subr.bf16.mxu0 0
    %942 = vmatpush1.bf16.xpose.msra.mxu0 0
    %943 = vmatprep.subr.bf16.mxu0 0
    %944 = vmatpush1.bf16.xpose.msra.mxu0 0
    %945 = vmatprep.subr.bf16.mxu0 0
    %946 = vmatpush1.bf16.xpose.msra.mxu0 0
    %947 = vmatprep.subr.bf16.mxu0 0
    %948 = vmatpush1.bf16.xpose.msra.mxu0 0
    %949 = vmatprep.subr.bf16.mxu0 0
    %950 = vmatpush1.bf16.xpose.msra.mxu0 0
    %951 = vmatprep.subr.bf16.mxu0 0
    %952 = vmatpush1.bf16.xpose.msra.mxu0 0
    %953 = vmatprep.subr.bf16.mxu0 0
    %954 = vmatpush1.bf16.xpose.msra.mxu0 0
    %955 = vmatprep.subr.bf16.mxu0 0
    %956 = vmatpush1.bf16.xpose.msra.mxu0 0
    %957 = vmatprep.mubr.bf16.mxu0 0
    %958 = vmatmul.mubr.bf16.gmra.mrb[0].mxu0 %v920
    %v959 = vpop.f32.mrb[0].mxu0
    %v960 = vadd.f32 0.0, %v959
    %v961 = vpop.f32.mrb[0].mxu0
    %v962 = vpop.f32.mrb[0].mxu0
    %v963 = vpop.f32.mrb[0].mxu0
    %964 = vdwg.mxu0
    %v965 = vmul.f32 %v960, 0.25
    %v966 = vsel %vm510, %v965, -inf
    %967 = vmax.xlane.f32.xlu0 %v966
    %v968 = vpop.xlane.xlu0 %967
    %v969 = vsub.f32 %v965, %v968
    %v970 = vmul.f32 %v969, 1.442695
    %v971 = vpow.pop %v970
    %v972 = vsel %vm510, %v971, 0.0
    %973 = vadd.xlane.f32.xlu0 %v972
    %v974 = vpop.xlane.xlu0 %973
    %v975 = vrcp.pop %v974
    %v976 = vmul.f32 %v971, %v975
    %v977 = vpack.c.bf16 %v976, %v976
    %978 = vrot.lane.b32.xlu0 %v915, 64
    %v979 = vpop.permute.xlu0 %978
    %v981 = vsel %vm510, %v977, 0
    %v984 = vsel %vm528, %v979, 0
    %986 = vmatprep.subr.bf16.mxu0 0
    %987 = vmatpush1.bf16.msra.mxu0 %v984
    %988 = vmatprep.subr.bf16.mxu0 0
    %989 = vmatpush1.bf16.msra.mxu0 0
    %990 = vmatprep.subr.bf16.mxu0 0
    %991 = vmatpush1.bf16.msra.mxu0 0
    %992 = vmatprep.subr.bf16.mxu0 0
    %993 = vmatpush1.bf16.msra.mxu0 0
    %994 = vmatprep.subr.bf16.mxu0 0
    %995 = vmatpush1.bf16.msra.mxu0 0
    %996 = vmatprep.subr.bf16.mxu0 0
    %997 = vmatpush1.bf16.msra.mxu0 0
    %998 = vmatprep.subr.bf16.mxu0 0
    %999 = vmatpush1.bf16.msra.mxu0 0
    %1000 = vmatprep.subr.bf16.mxu0 0
    %1001 = vmatpush1.bf16.msra.mxu0 0
    %1002 = vmatprep.subr.bf16.mxu0 0
    %1003 = vmatpush1.bf16.msra.mxu0 0
    %1004 = vmatprep.subr.bf16.mxu0 0
    %1005 = vmatpush1.bf16.msra.mxu0 0
    %1006 = vmatprep.subr.bf16.mxu0 0
    %1007 = vmatpush1.bf16.msra.mxu0 0
    %1008 = vmatprep.subr.bf16.mxu0 0
    %1009 = vmatpush1.bf16.msra.mxu0 0
    %1010 = vmatprep.subr.bf16.mxu0 0
    %1011 = vmatpush1.bf16.msra.mxu0 0
    %1012 = vmatprep.subr.bf16.mxu0 0
    %1013 = vmatpush1.bf16.msra.mxu0 0
    %1014 = vmatprep.subr.bf16.mxu0 0
    %1015 = vmatpush1.bf16.msra.mxu0 0
    %1016 = vmatprep.subr.bf16.mxu0 0
    %1017 = vmatpush1.bf16.msra.mxu0 0
    %1018 = vmatprep.mubr.bf16.mxu0 0
    %1019 = vmatmul.mubr.bf16.gmra.mrb[0].mxu0 %v981
    %v1020 = vpop.f32.mrb[0].mxu0
    %v1021 = vadd.f32 0.0, %v1020
    %v1022 = vpop.f32.mrb[0].mxu0
    %v1023 = vpop.f32.mrb[0].mxu0
    %v1024 = vpop.f32.mrb[0].mxu0
    %1025 = vdwg.mxu0
    %1026 = vrot.lane.b32.xlu0 %v915, 112
    %v1027 = vpop.permute.xlu0 %1026
    %1028 = vrot.lane.b32.xlu0 %v915, 80
    %v1029 = vpop.permute.xlu0 %1028
    %v1031 = vsel %vm107, %v1027, 0
    %v1034 = vsel %vm107, %v1029, 0
    %1036 = vmatprep.subr.bf16.mxu0 0
    %1037 = vmatpush1.bf16.xpose.msra.mxu0 %v1034
    %1038 = vmatprep.subr.bf16.mxu0 0
    %1039 = vmatpush1.bf16.xpose.msra.mxu0 0
    %1040 = vmatprep.subr.bf16.mxu0 0
    %1041 = vmatpush1.bf16.xpose.msra.mxu0 0
    %1042 = vmatprep.subr.bf16.mxu0 0
    %1043 = vmatpush1.bf16.xpose.msra.mxu0 0
    %1044 = vmatprep.subr.bf16.mxu0 0
    %1045 = vmatpush1.bf16.xpose.msra.mxu0 0
    %1046 = vmatprep.subr.bf16.mxu0 0
    %1047 = vmatpush1.bf16.xpose.msra.mxu0 0
    %1048 = vmatprep.subr.bf16.mxu0 0
    %1049 = vmatpush1.bf16.xpose.msra.mxu0 0
    %1050 = vmatprep.subr.bf16.mxu0 0
    %1051 = vmatpush1.bf16.xpose.msra.mxu0 0
    %1052 = vmatprep.subr.bf16.mxu0 0
    %1053 = vmatpush1.bf16.xpose.msra.mxu0 0
    %1054 = vmatprep.subr.bf16.mxu0 0
    %1055 = vmatpush1.bf16.xpose.msra.mxu0 0
    %1056 = vmatprep.subr.bf16.mxu0 0
    %1057 = vmatpush1.bf16.xpose.msra.mxu0 0
    %1058 = vmatprep.subr.bf16.mxu0 0
    %1059 = vmatpush1.bf16.xpose.msra.mxu0 0
    %1060 = vmatprep.subr.bf16.mxu0 0
    %1061 = vmatpush1.bf16.xpose.msra.mxu0 0
    %1062 = vmatprep.subr.bf16.mxu0 0
    %1063 = vmatpush1.bf16.xpose.msra.mxu0 0
    %1064 = vmatprep.subr.bf16.mxu0 0
    %1065 = vmatpush1.bf16.xpose.msra.mxu0 0
    %1066 = vmatprep.subr.bf16.mxu0 0
    %1067 = vmatpush1.bf16.xpose.msra.mxu0 0
    %1068 = vmatprep.mubr.bf16.mxu0 0
    %1069 = vmatmul.mubr.bf16.gmra.mrb[0].mxu0 %v1031
    %v1070 = vpop.f32.mrb[0].mxu0
    %v1071 = vadd.f32 0.0, %v1070
    %v1072 = vpop.f32.mrb[0].mxu0
    %v1073 = vpop.f32.mrb[0].mxu0
    %v1074 = vpop.f32.mrb[0].mxu0
    %1075 = vdwg.mxu0
    %v1076 = vmul.f32 %v1071, 0.25
    %v1077 = vsel %vm510, %v1076, -inf
    %1078 = vmax.xlane.f32.xlu0 %v1077
    %v1079 = vpop.xlane.xlu0 %1078
    %v1080 = vsub.f32 %v1076, %v1079
    %v1081 = vmul.f32 %v1080, 1.442695
    %v1082 = vpow.pop %v1081
    %v1083 = vsel %vm510, %v1082, 0.0
    %1084 = vadd.xlane.f32.xlu0 %v1083
    %v1085 = vpop.xlane.xlu0 %1084
    %v1086 = vrcp.pop %v1085
    %v1087 = vmul.f32 %v1082, %v1086
    %v1088 = vpack.c.bf16 %v1087, %v1087
    %1089 = vrot.lane.b32.xlu0 %v915, 48
    %v1090 = vpop.permute.xlu0 %1089
    %v1092 = vsel %vm510, %v1088, 0
    %v1095 = vsel %vm528, %v1090, 0
    %1097 = vmatprep.subr.bf16.mxu0 0
    %1098 = vmatpush1.bf16.msra.mxu0 %v1095
    %1099 = vmatprep.subr.bf16.mxu0 0
    %1100 = vmatpush1.bf16.msra.mxu0 0
    %1101 = vmatprep.subr.bf16.mxu0 0
    %1102 = vmatpush1.bf16.msra.mxu0 0
    %1103 = vmatprep.subr.bf16.mxu0 0
    %1104 = vmatpush1.bf16.msra.mxu0 0
    %1105 = vmatprep.subr.bf16.mxu0 0
    %1106 = vmatpush1.bf16.msra.mxu0 0
    %1107 = vmatprep.subr.bf16.mxu0 0
    %1108 = vmatpush1.bf16.msra.mxu0 0
    %1109 = vmatprep.subr.bf16.mxu0 0
    %1110 = vmatpush1.bf16.msra.mxu0 0
    %1111 = vmatprep.subr.bf16.mxu0 0
    %1112 = vmatpush1.bf16.msra.mxu0 0
    %1113 = vmatprep.subr.bf16.mxu0 0
    %1114 = vmatpush1.bf16.msra.mxu0 0
    %1115 = vmatprep.subr.bf16.mxu0 0
    %1116 = vmatpush1.bf16.msra.mxu0 0
    %1117 = vmatprep.subr.bf16.mxu0 0
    %1118 = vmatpush1.bf16.msra.mxu0 0
    %1119 = vmatprep.subr.bf16.mxu0 0
    %1120 = vmatpush1.bf16.msra.mxu0 0
    %1121 = vmatprep.subr.bf16.mxu0 0
    %1122 = vmatpush1.bf16.msra.mxu0 0
    %1123 = vmatprep.subr.bf16.mxu0 0
    %1124 = vmatpush1.bf16.msra.mxu0 0
    %1125 = vmatprep.subr.bf16.mxu0 0
    %1126 = vmatpush1.bf16.msra.mxu0 0
    %1127 = vmatprep.subr.bf16.mxu0 0
    %1128 = vmatpush1.bf16.msra.mxu0 0
    %1129 = vmatprep.mubr.bf16.mxu0 0
    %1130 = vmatmul.mubr.bf16.gmra.mrb[0].mxu0 %v1092
    %v1131 = vpop.f32.mrb[0].mxu0
    %v1132 = vadd.f32 0.0, %v1131
    %v1133 = vpop.f32.mrb[0].mxu0
    %v1134 = vpop.f32.mrb[0].mxu0
    %v1135 = vpop.f32.mrb[0].mxu0
    %1136 = vdwg.mxu0
    %1138 = vrot.lane.b32.xlu0 %v1132, 16
    %v1139 = vpop.permute.xlu0 %1138
    %v1141 = vsel %vm107, %v1021, %v1139
    %v1142 = vpack.c.bf16 %v448, %v448
    %1144 = vrot.lane.b32.xlu0 %v1142, 96
    %v1145 = vpop.permute.xlu0 %1144
    %v1147 = vsel %vm107, %v1142, 0
    %v1150 = vsel %vm107, %v1145, 0
    %1152 = vmatprep.subr.bf16.mxu0 0
    %1153 = vmatpush1.bf16.xpose.msra.mxu0 %v1150
    %1154 = vmatprep.subr.bf16.mxu0 0
    %1155 = vmatpush1.bf16.xpose.msra.mxu0 0
    %1156 = vmatprep.subr.bf16.mxu0 0
    %1157 = vmatpush1.bf16.xpose.msra.mxu0 0
    %1158 = vmatprep.subr.bf16.mxu0 0
    %1159 = vmatpush1.bf16.xpose.msra.mxu0 0
    %1160 = vmatprep.subr.bf16.mxu0 0
    %1161 = vmatpush1.bf16.xpose.msra.mxu0 0
    %1162 = vmatprep.subr.bf16.mxu0 0
    %1163 = vmatpush1.bf16.xpose.msra.mxu0 0
    %1164 = vmatprep.subr.bf16.mxu0 0
    %1165 = vmatpush1.bf16.xpose.msra.mxu0 0
    %1166 = vmatprep.subr.bf16.mxu0 0
    %1167 = vmatpush1.bf16.xpose.msra.mxu0 0
    %1168 = vmatprep.subr.bf16.mxu0 0
    %1169 = vmatpush1.bf16.xpose.msra.mxu0 0
    %1170 = vmatprep.subr.bf16.mxu0 0
    %1171 = vmatpush1.bf16.xpose.msra.mxu0 0
    %1172 = vmatprep.subr.bf16.mxu0 0
    %1173 = vmatpush1.bf16.xpose.msra.mxu0 0
    %1174 = vmatprep.subr.bf16.mxu0 0
    %1175 = vmatpush1.bf16.xpose.msra.mxu0 0
    %1176 = vmatprep.subr.bf16.mxu0 0
    %1177 = vmatpush1.bf16.xpose.msra.mxu0 0
    %1178 = vmatprep.subr.bf16.mxu0 0
    %1179 = vmatpush1.bf16.xpose.msra.mxu0 0
    %1180 = vmatprep.subr.bf16.mxu0 0
    %1181 = vmatpush1.bf16.xpose.msra.mxu0 0
    %1182 = vmatprep.subr.bf16.mxu0 0
    %1183 = vmatpush1.bf16.xpose.msra.mxu0 0
    %1184 = vmatprep.mubr.bf16.mxu0 0
    %1185 = vmatmul.mubr.bf16.gmra.mrb[0].mxu0 %v1147
    %v1186 = vpop.f32.mrb[0].mxu0
    %v1187 = vadd.f32 0.0, %v1186
    %v1188 = vpop.f32.mrb[0].mxu0
    %v1189 = vpop.f32.mrb[0].mxu0
    %v1190 = vpop.f32.mrb[0].mxu0
    %1191 = vdwg.mxu0
    %v1192 = vmul.f32 %v1187, 0.25
    %v1193 = vsel %vm510, %v1192, -inf
    %1194 = vmax.xlane.f32.xlu0 %v1193
    %v1195 = vpop.xlane.xlu0 %1194
    %v1196 = vsub.f32 %v1192, %v1195
    %v1197 = vmul.f32 %v1196, 1.442695
    %v1198 = vpow.pop %v1197
    %v1199 = vsel %vm510, %v1198, 0.0
    %1200 = vadd.xlane.f32.xlu0 %v1199
    %v1201 = vpop.xlane.xlu0 %1200
    %v1202 = vrcp.pop %v1201
    %v1203 = vmul.f32 %v1198, %v1202
    %v1204 = vpack.c.bf16 %v1203, %v1203
    %1205 = vrot.lane.b32.xlu0 %v1142, 64
    %v1206 = vpop.permute.xlu0 %1205
    %v1208 = vsel %vm510, %v1204, 0
    %v1211 = vsel %vm528, %v1206, 0
    %1213 = vmatprep.subr.bf16.mxu0 0
    %1214 = vmatpush1.bf16.msra.mxu0 %v1211
    %1215 = vmatprep.subr.bf16.mxu0 0
    %1216 = vmatpush1.bf16.msra.mxu0 0
    %1217 = vmatprep.subr.bf16.mxu0 0
    %1218 = vmatpush1.bf16.msra.mxu0 0
    %1219 = vmatprep.subr.bf16.mxu0 0
    %1220 = vmatpush1.bf16.msra.mxu0 0
    %1221 = vmatprep.subr.bf16.mxu0 0
    %1222 = vmatpush1.bf16.msra.mxu0 0
    %1223 = vmatprep.subr.bf16.mxu0 0
    %1224 = vmatpush1.bf16.msra.mxu0 0
    %1225 = vmatprep.subr.bf16.mxu0 0
    %1226 = vmatpush1.bf16.msra.mxu0 0
    %1227 = vmatprep.subr.bf16.mxu0 0
    %1228 = vmatpush1.bf16.msra.mxu0 0
    %1229 = vmatprep.subr.bf16.mxu0 0
    %1230 = vmatpush1.bf16.msra.mxu0 0
    %1231 = vmatprep.subr.bf16.mxu0 0
    %1232 = vmatpush1.bf16.msra.mxu0 0
    %1233 = vmatprep.subr.bf16.mxu0 0
    %1234 = vmatpush1.bf16.msra.mxu0 0
    %1235 = vmatprep.subr.bf16.mxu0 0
    %1236 = vmatpush1.bf16.msra.mxu0 0
    %1237 = vmatprep.subr.bf16.mxu0 0
    %1238 = vmatpush1.bf16.msra.mxu0 0
    %1239 = vmatprep.subr.bf16.mxu0 0
    %1240 = vmatpush1.bf16.msra.mxu0 0
    %1241 = vmatprep.subr.bf16.mxu0 0
    %1242 = vmatpush1.bf16.msra.mxu0 0
    %1243 = vmatprep.subr.bf16.mxu0 0
    %1244 = vmatpush1.bf16.msra.mxu0 0
    %1245 = vmatprep.mubr.bf16.mxu0 0
    %1246 = vmatmul.mubr.bf16.gmra.mrb[0].mxu0 %v1208
    %v1247 = vpop.f32.mrb[0].mxu0
    %v1248 = vadd.f32 0.0, %v1247
    %v1249 = vpop.f32.mrb[0].mxu0
    %v1250 = vpop.f32.mrb[0].mxu0
    %v1251 = vpop.f32.mrb[0].mxu0
    %1252 = vdwg.mxu0
    %1253 = vrot.lane.b32.xlu0 %v1142, 112
    %v1254 = vpop.permute.xlu0 %1253
    %1255 = vrot.lane.b32.xlu0 %v1142, 80
    %v1256 = vpop.permute.xlu0 %1255
    %v1258 = vsel %vm107, %v1254, 0
    %v1261 = vsel %vm107, %v1256, 0
    %1263 = vmatprep.subr.bf16.mxu0 0
    %1264 = vmatpush1.bf16.xpose.msra.mxu0 %v1261
    %1265 = vmatprep.subr.bf16.mxu0 0
    %1266 = vmatpush1.bf16.xpose.msra.mxu0 0
    %1267 = vmatprep.subr.bf16.mxu0 0
    %1268 = vmatpush1.bf16.xpose.msra.mxu0 0
    %1269 = vmatprep.subr.bf16.mxu0 0
    %1270 = vmatpush1.bf16.xpose.msra.mxu0 0
    %1271 = vmatprep.subr.bf16.mxu0 0
    %1272 = vmatpush1.bf16.xpose.msra.mxu0 0
    %1273 = vmatprep.subr.bf16.mxu0 0
    %1274 = vmatpush1.bf16.xpose.msra.mxu0 0
    %1275 = vmatprep.subr.bf16.mxu0 0
    %1276 = vmatpush1.bf16.xpose.msra.mxu0 0
    %1277 = vmatprep.subr.bf16.mxu0 0
    %1278 = vmatpush1.bf16.xpose.msra.mxu0 0
    %1279 = vmatprep.subr.bf16.mxu0 0
    %1280 = vmatpush1.bf16.xpose.msra.mxu0 0
    %1281 = vmatprep.subr.bf16.mxu0 0
    %1282 = vmatpush1.bf16.xpose.msra.mxu0 0
    %1283 = vmatprep.subr.bf16.mxu0 0
    %1284 = vmatpush1.bf16.xpose.msra.mxu0 0
    %1285 = vmatprep.subr.bf16.mxu0 0
    %1286 = vmatpush1.bf16.xpose.msra.mxu0 0
    %1287 = vmatprep.subr.bf16.mxu0 0
    %1288 = vmatpush1.bf16.xpose.msra.mxu0 0
    %1289 = vmatprep.subr.bf16.mxu0 0
    %1290 = vmatpush1.bf16.xpose.msra.mxu0 0
    %1291 = vmatprep.subr.bf16.mxu0 0
    %1292 = vmatpush1.bf16.xpose.msra.mxu0 0
    %1293 = vmatprep.subr.bf16.mxu0 0
    %1294 = vmatpush1.bf16.xpose.msra.mxu0 0
    %1295 = vmatprep.mubr.bf16.mxu0 0
    %1296 = vmatmul.mubr.bf16.gmra.mrb[0].mxu0 %v1258
    %v1297 = vpop.f32.mrb[0].mxu0
    %v1298 = vadd.f32 0.0, %v1297
    %v1299 = vpop.f32.mrb[0].mxu0
    %v1300 = vpop.f32.mrb[0].mxu0
    %v1301 = vpop.f32.mrb[0].mxu0
    %1302 = vdwg.mxu0
    %v1303 = vmul.f32 %v1298, 0.25
    %v1304 = vsel %vm510, %v1303, -inf
    %1305 = vmax.xlane.f32.xlu0 %v1304
    %v1306 = vpop.xlane.xlu0 %1305
    %v1307 = vsub.f32 %v1303, %v1306
    %v1308 = vmul.f32 %v1307, 1.442695
    %v1309 = vpow.pop %v1308
    %v1310 = vsel %vm510, %v1309, 0.0
    %1311 = vadd.xlane.f32.xlu0 %v1310
    %v1312 = vpop.xlane.xlu0 %1311
    %v1313 = vrcp.pop %v1312
    %v1314 = vmul.f32 %v1309, %v1313
    %v1315 = vpack.c.bf16 %v1314, %v1314
    %1316 = vrot.lane.b32.xlu0 %v1142, 48
    %v1317 = vpop.permute.xlu0 %1316
    %v1319 = vsel %vm510, %v1315, 0
    %v1322 = vsel %vm528, %v1317, 0
    %1324 = vmatprep.subr.bf16.mxu0 0
    %1325 = vmatpush1.bf16.msra.mxu0 %v1322
    %1326 = vmatprep.subr.bf16.mxu0 0
    %1327 = vmatpush1.bf16.msra.mxu0 0
    %1328 = vmatprep.subr.bf16.mxu0 0
    %1329 = vmatpush1.bf16.msra.mxu0 0
    %1330 = vmatprep.subr.bf16.mxu0 0
    %1331 = vmatpush1.bf16.msra.mxu0 0
    %1332 = vmatprep.subr.bf16.mxu0 0
    %1333 = vmatpush1.bf16.msra.mxu0 0
    %1334 = vmatprep.subr.bf16.mxu0 0
    %1335 = vmatpush1.bf16.msra.mxu0 0
    %1336 = vmatprep.subr.bf16.mxu0 0
    %1337 = vmatpush1.bf16.msra.mxu0 0
    %1338 = vmatprep.subr.bf16.mxu0 0
    %1339 = vmatpush1.bf16.msra.mxu0 0
    %1340 = vmatprep.subr.bf16.mxu0 0
    %1341 = vmatpush1.bf16.msra.mxu0 0
    %1342 = vmatprep.subr.bf16.mxu0 0
    %1343 = vmatpush1.bf16.msra.mxu0 0
    %1344 = vmatprep.subr.bf16.mxu0 0
    %1345 = vmatpush1.bf16.msra.mxu0 0
    %1346 = vmatprep.subr.bf16.mxu0 0
    %1347 = vmatpush1.bf16.msra.mxu0 0
    %1348 = vmatprep.subr.bf16.mxu0 0
    %1349 = vmatpush1.bf16.msra.mxu0 0
    %1350 = vmatprep.subr.bf16.mxu0 0
    %1351 = vmatpush1.bf16.msra.mxu0 0
    %1352 = vmatprep.subr.bf16.mxu0 0
    %1353 = vmatpush1.bf16.msra.mxu0 0
    %1354 = vmatprep.subr.bf16.mxu0 0
    %1355 = vmatpush1.bf16.msra.mxu0 0
    %1356 = vmatprep.mubr.bf16.mxu0 0
    %1357 = vmatmul.mubr.bf16.gmra.mrb[0].mxu0 %v1319
    %v1358 = vpop.f32.mrb[0].mxu0
    %v1359 = vadd.f32 0.0, %v1358
    %v1360 = vpop.f32.mrb[0].mxu0
    %v1361 = vpop.f32.mrb[0].mxu0
    %v1362 = vpop.f32.mrb[0].mxu0
    %1363 = vdwg.mxu0
    %1365 = vrot.lane.b32.xlu0 %v1359, 16
    %v1366 = vpop.permute.xlu0 %1365
    %v1368 = vsel %vm107, %v1248, %v1366
    %v1369 = vpack.c.bf16 %v453, %v453
    %1371 = vrot.lane.b32.xlu0 %v1369, 96
    %v1372 = vpop.permute.xlu0 %1371
    %v1374 = vsel %vm107, %v1369, 0
    %v1377 = vsel %vm107, %v1372, 0
    %1379 = vmatprep.subr.bf16.mxu0 0
    %1380 = vmatpush1.bf16.xpose.msra.mxu0 %v1377
    %1381 = vmatprep.subr.bf16.mxu0 0
    %1382 = vmatpush1.bf16.xpose.msra.mxu0 0
    %1383 = vmatprep.subr.bf16.mxu0 0
    %1384 = vmatpush1.bf16.xpose.msra.mxu0 0
    %1385 = vmatprep.subr.bf16.mxu0 0
    %1386 = vmatpush1.bf16.xpose.msra.mxu0 0
    %1387 = vmatprep.subr.bf16.mxu0 0
    %1388 = vmatpush1.bf16.xpose.msra.mxu0 0
    %1389 = vmatprep.subr.bf16.mxu0 0
    %1390 = vmatpush1.bf16.xpose.msra.mxu0 0
    %1391 = vmatprep.subr.bf16.mxu0 0
    %1392 = vmatpush1.bf16.xpose.msra.mxu0 0
    %1393 = vmatprep.subr.bf16.mxu0 0
    %1394 = vmatpush1.bf16.xpose.msra.mxu0 0
    %1395 = vmatprep.subr.bf16.mxu0 0
    %1396 = vmatpush1.bf16.xpose.msra.mxu0 0
    %1397 = vmatprep.subr.bf16.mxu0 0
    %1398 = vmatpush1.bf16.xpose.msra.mxu0 0
    %1399 = vmatprep.subr.bf16.mxu0 0
    %1400 = vmatpush1.bf16.xpose.msra.mxu0 0
    %1401 = vmatprep.subr.bf16.mxu0 0
    %1402 = vmatpush1.bf16.xpose.msra.mxu0 0
    %1403 = vmatprep.subr.bf16.mxu0 0
    %1404 = vmatpush1.bf16.xpose.msra.mxu0 0
    %1405 = vmatprep.subr.bf16.mxu0 0
    %1406 = vmatpush1.bf16.xpose.msra.mxu0 0
    %1407 = vmatprep.subr.bf16.mxu0 0
    %1408 = vmatpush1.bf16.xpose.msra.mxu0 0
    %1409 = vmatprep.subr.bf16.mxu0 0
    %1410 = vmatpush1.bf16.xpose.msra.mxu0 0
    %1411 = vmatprep.mubr.bf16.mxu0 0
    %1412 = vmatmul.mubr.bf16.gmra.mrb[0].mxu0 %v1374
    %v1413 = vpop.f32.mrb[0].mxu0
    %v1414 = vadd.f32 0.0, %v1413
    %v1415 = vpop.f32.mrb[0].mxu0
    %v1416 = vpop.f32.mrb[0].mxu0
    %v1417 = vpop.f32.mrb[0].mxu0
    %1418 = vdwg.mxu0
    %v1419 = vmul.f32 %v1414, 0.25
    %v1420 = vsel %vm510, %v1419, -inf
    %1421 = vmax.xlane.f32.xlu0 %v1420
    %v1422 = vpop.xlane.xlu0 %1421
    %v1423 = vsub.f32 %v1419, %v1422
    %v1424 = vmul.f32 %v1423, 1.442695
    %v1425 = vpow.pop %v1424
    %v1426 = vsel %vm510, %v1425, 0.0
    %1427 = vadd.xlane.f32.xlu0 %v1426
    %v1428 = vpop.xlane.xlu0 %1427
    %v1429 = vrcp.pop %v1428
    %v1430 = vmul.f32 %v1425, %v1429
    %v1431 = vpack.c.bf16 %v1430, %v1430
    %1432 = vrot.lane.b32.xlu0 %v1369, 64
    %v1433 = vpop.permute.xlu0 %1432
    %v1435 = vsel %vm510, %v1431, 0
    %v1438 = vsel %vm528, %v1433, 0
    %1440 = vmatprep.subr.bf16.mxu0 0
    %1441 = vmatpush1.bf16.msra.mxu0 %v1438
    %1442 = vmatprep.subr.bf16.mxu0 0
    %1443 = vmatpush1.bf16.msra.mxu0 0
    %1444 = vmatprep.subr.bf16.mxu0 0
    %1445 = vmatpush1.bf16.msra.mxu0 0
    %1446 = vmatprep.subr.bf16.mxu0 0
    %1447 = vmatpush1.bf16.msra.mxu0 0
    %1448 = vmatprep.subr.bf16.mxu0 0
    %1449 = vmatpush1.bf16.msra.mxu0 0
    %1450 = vmatprep.subr.bf16.mxu0 0
    %1451 = vmatpush1.bf16.msra.mxu0 0
    %1452 = vmatprep.subr.bf16.mxu0 0
    %1453 = vmatpush1.bf16.msra.mxu0 0
    %1454 = vmatprep.subr.bf16.mxu0 0
    %1455 = vmatpush1.bf16.msra.mxu0 0
    %1456 = vmatprep.subr.bf16.mxu0 0
    %1457 = vmatpush1.bf16.msra.mxu0 0
    %1458 = vmatprep.subr.bf16.mxu0 0
    %1459 = vmatpush1.bf16.msra.mxu0 0
    %1460 = vmatprep.subr.bf16.mxu0 0
    %1461 = vmatpush1.bf16.msra.mxu0 0
    %1462 = vmatprep.subr.bf16.mxu0 0
    %1463 = vmatpush1.bf16.msra.mxu0 0
    %1464 = vmatprep.subr.bf16.mxu0 0
    %1465 = vmatpush1.bf16.msra.mxu0 0
    %1466 = vmatprep.subr.bf16.mxu0 0
    %1467 = vmatpush1.bf16.msra.mxu0 0
    %1468 = vmatprep.subr.bf16.mxu0 0
    %1469 = vmatpush1.bf16.msra.mxu0 0
    %1470 = vmatprep.subr.bf16.mxu0 0
    %1471 = vmatpush1.bf16.msra.mxu0 0
    %1472 = vmatprep.mubr.bf16.mxu0 0
    %1473 = vmatmul.mubr.bf16.gmra.mrb[0].mxu0 %v1435
    %v1474 = vpop.f32.mrb[0].mxu0
    %v1475 = vadd.f32 0.0, %v1474
    %v1476 = vpop.f32.mrb[0].mxu0
    %v1477 = vpop.f32.mrb[0].mxu0
    %v1478 = vpop.f32.mrb[0].mxu0
    %1479 = vdwg.mxu0
    %1480 = vrot.lane.b32.xlu0 %v1369, 112
    %v1481 = vpop.permute.xlu0 %1480
    %1482 = vrot.lane.b32.xlu0 %v1369, 80
    %v1483 = vpop.permute.xlu0 %1482
    %v1485 = vsel %vm107, %v1481, 0
    %v1488 = vsel %vm107, %v1483, 0
    %1490 = vmatprep.subr.bf16.mxu0 0
    %1491 = vmatpush1.bf16.xpose.msra.mxu0 %v1488
    %1492 = vmatprep.subr.bf16.mxu0 0
    %1493 = vmatpush1.bf16.xpose.msra.mxu0 0
    %1494 = vmatprep.subr.bf16.mxu0 0
    %1495 = vmatpush1.bf16.xpose.msra.mxu0 0
    %1496 = vmatprep.subr.bf16.mxu0 0
    %1497 = vmatpush1.bf16.xpose.msra.mxu0 0
    %1498 = vmatprep.subr.bf16.mxu0 0
    %1499 = vmatpush1.bf16.xpose.msra.mxu0 0
    %1500 = vmatprep.subr.bf16.mxu0 0
    %1501 = vmatpush1.bf16.xpose.msra.mxu0 0
    %1502 = vmatprep.subr.bf16.mxu0 0
    %1503 = vmatpush1.bf16.xpose.msra.mxu0 0
    %1504 = vmatprep.subr.bf16.mxu0 0
    %1505 = vmatpush1.bf16.xpose.msra.mxu0 0
    %1506 = vmatprep.subr.bf16.mxu0 0
    %1507 = vmatpush1.bf16.xpose.msra.mxu0 0
    %1508 = vmatprep.subr.bf16.mxu0 0
    %1509 = vmatpush1.bf16.xpose.msra.mxu0 0
    %1510 = vmatprep.subr.bf16.mxu0 0
    %1511 = vmatpush1.bf16.xpose.msra.mxu0 0
    %1512 = vmatprep.subr.bf16.mxu0 0
    %1513 = vmatpush1.bf16.xpose.msra.mxu0 0
    %1514 = vmatprep.subr.bf16.mxu0 0
    %1515 = vmatpush1.bf16.xpose.msra.mxu0 0
    %1516 = vmatprep.subr.bf16.mxu0 0
    %1517 = vmatpush1.bf16.xpose.msra.mxu0 0
    %1518 = vmatprep.subr.bf16.mxu0 0
    %1519 = vmatpush1.bf16.xpose.msra.mxu0 0
    %1520 = vmatprep.subr.bf16.mxu0 0
    %1521 = vmatpush1.bf16.xpose.msra.mxu0 0
    %1522 = vmatprep.mubr.bf16.mxu0 0
    %1523 = vmatmul.mubr.bf16.gmra.mrb[0].mxu0 %v1485
    %v1524 = vpop.f32.mrb[0].mxu0
    %v1525 = vadd.f32 0.0, %v1524
    %v1526 = vpop.f32.mrb[0].mxu0
    %v1527 = vpop.f32.mrb[0].mxu0
    %v1528 = vpop.f32.mrb[0].mxu0
    %1529 = vdwg.mxu0
    %v1530 = vmul.f32 %v1525, 0.25
    %v1531 = vsel %vm510, %v1530, -inf
    %1532 = vmax.xlane.f32.xlu0 %v1531
    %v1533 = vpop.xlane.xlu0 %1532
    %v1534 = vsub.f32 %v1530, %v1533
    %v1535 = vmul.f32 %v1534, 1.442695
    %v1536 = vpow.pop %v1535
    %v1537 = vsel %vm510, %v1536, 0.0
    %1538 = vadd.xlane.f32.xlu0 %v1537
    %v1539 = vpop.xlane.xlu0 %1538
    %v1540 = vrcp.pop %v1539
    %v1541 = vmul.f32 %v1536, %v1540
    %v1542 = vpack.c.bf16 %v1541, %v1541
    %1543 = vrot.lane.b32.xlu0 %v1369, 48
    %v1544 = vpop.permute.xlu0 %1543
    %v1546 = vsel %vm510, %v1542, 0
    %v1549 = vsel %vm528, %v1544, 0
    %1551 = vmatprep.subr.bf16.mxu0 0
    %1552 = vmatpush1.bf16.msra.mxu0 %v1549
    %1553 = vmatprep.subr.bf16.mxu0 0
    %1554 = vmatpush1.bf16.msra.mxu0 0
    %1555 = vmatprep.subr.bf16.mxu0 0
    %1556 = vmatpush1.bf16.msra.mxu0 0
    %1557 = vmatprep.subr.bf16.mxu0 0
    %1558 = vmatpush1.bf16.msra.mxu0 0
    %1559 = vmatprep.subr.bf16.mxu0 0
    %1560 = vmatpush1.bf16.msra.mxu0 0
    %1561 = vmatprep.subr.bf16.mxu0 0
    %1562 = vmatpush1.bf16.msra.mxu0 0
    %1563 = vmatprep.subr.bf16.mxu0 0
    %1564 = vmatpush1.bf16.msra.mxu0 0
    %1565 = vmatprep.subr.bf16.mxu0 0
    %1566 = vmatpush1.bf16.msra.mxu0 0
    %1567 = vmatprep.subr.bf16.mxu0 0
    %1568 = vmatpush1.bf16.msra.mxu0 0
    %1569 = vmatprep.subr.bf16.mxu0 0
    %1570 = vmatpush1.bf16.msra.mxu0 0
    %1571 = vmatprep.subr.bf16.mxu0 0
    %1572 = vmatpush1.bf16.msra.mxu0 0
    %1573 = vmatprep.subr.bf16.mxu0 0
    %1574 = vmatpush1.bf16.msra.mxu0 0
    %1575 = vmatprep.subr.bf16.mxu0 0
    %1576 = vmatpush1.bf16.msra.mxu0 0
    %1577 = vmatprep.subr.bf16.mxu0 0
    %1578 = vmatpush1.bf16.msra.mxu0 0
    %1579 = vmatprep.subr.bf16.mxu0 0
    %1580 = vmatpush1.bf16.msra.mxu0 0
    %1581 = vmatprep.subr.bf16.mxu0 0
    %1582 = vmatpush1.bf16.msra.mxu0 0
    %1583 = vmatprep.mubr.bf16.mxu0 0
    %1584 = vmatmul.mubr.bf16.gmra.mrb[0].mxu0 %v1546
    %v1585 = vpop.f32.mrb[0].mxu0
    %v1586 = vadd.f32 0.0, %v1585
    %v1587 = vpop.f32.mrb[0].mxu0
    %v1588 = vpop.f32.mrb[0].mxu0
    %v1589 = vpop.f32.mrb[0].mxu0
    %1590 = vdwg.mxu0
    %1592 = vrot.lane.b32.xlu0 %v1586, 16
    %v1593 = vpop.permute.xlu0 %1592
    %v1595 = vsel %vm107, %v1475, %v1593
    %v1596 = vpack.c.bf16 %v456, %v456
    %1598 = vrot.lane.b32.xlu0 %v1596, 96
    %v1599 = vpop.permute.xlu0 %1598
    %v1601 = vsel %vm107, %v1596, 0
    %v1604 = vsel %vm107, %v1599, 0
    %1606 = vmatprep.subr.bf16.mxu0 0
    %1607 = vmatpush1.bf16.xpose.msra.mxu0 %v1604
    %1608 = vmatprep.subr.bf16.mxu0 0
    %1609 = vmatpush1.bf16.xpose.msra.mxu0 0
    %1610 = vmatprep.subr.bf16.mxu0 0
    %1611 = vmatpush1.bf16.xpose.msra.mxu0 0
    %1612 = vmatprep.subr.bf16.mxu0 0
    %1613 = vmatpush1.bf16.xpose.msra.mxu0 0
    %1614 = vmatprep.subr.bf16.mxu0 0
    %1615 = vmatpush1.bf16.xpose.msra.mxu0 0
    %1616 = vmatprep.subr.bf16.mxu0 0
    %1617 = vmatpush1.bf16.xpose.msra.mxu0 0
    %1618 = vmatprep.subr.bf16.mxu0 0
    %1619 = vmatpush1.bf16.xpose.msra.mxu0 0
    %1620 = vmatprep.subr.bf16.mxu0 0
    %1621 = vmatpush1.bf16.xpose.msra.mxu0 0
    %1622 = vmatprep.subr.bf16.mxu0 0
    %1623 = vmatpush1.bf16.xpose.msra.mxu0 0
    %1624 = vmatprep.subr.bf16.mxu0 0
    %1625 = vmatpush1.bf16.xpose.msra.mxu0 0
    %1626 = vmatprep.subr.bf16.mxu0 0
    %1627 = vmatpush1.bf16.xpose.msra.mxu0 0
    %1628 = vmatprep.subr.bf16.mxu0 0
    %1629 = vmatpush1.bf16.xpose.msra.mxu0 0
    %1630 = vmatprep.subr.bf16.mxu0 0
    %1631 = vmatpush1.bf16.xpose.msra.mxu0 0
    %1632 = vmatprep.subr.bf16.mxu0 0
    %1633 = vmatpush1.bf16.xpose.msra.mxu0 0
    %1634 = vmatprep.subr.bf16.mxu0 0
    %1635 = vmatpush1.bf16.xpose.msra.mxu0 0
    %1636 = vmatprep.subr.bf16.mxu0 0
    %1637 = vmatpush1.bf16.xpose.msra.mxu0 0
    %1638 = vmatprep.mubr.bf16.mxu0 0
    %1639 = vmatmul.mubr.bf16.gmra.mrb[0].mxu0 %v1601
    %v1640 = vpop.f32.mrb[0].mxu0
    %v1641 = vadd.f32 0.0, %v1640
    %v1642 = vpop.f32.mrb[0].mxu0
    %v1643 = vpop.f32.mrb[0].mxu0
    %v1644 = vpop.f32.mrb[0].mxu0
    %1645 = vdwg.mxu0
    %v1646 = vmul.f32 %v1641, 0.25
    %v1647 = vsel %vm510, %v1646, -inf
    %1648 = vmax.xlane.f32.xlu0 %v1647
    %v1649 = vpop.xlane.xlu0 %1648
    %v1650 = vsub.f32 %v1646, %v1649
    %v1651 = vmul.f32 %v1650, 1.442695
    %v1652 = vpow.pop %v1651
    %v1653 = vsel %vm510, %v1652, 0.0
    %1654 = vadd.xlane.f32.xlu0 %v1653
    %v1655 = vpop.xlane.xlu0 %1654
    %v1656 = vrcp.pop %v1655
    %v1657 = vmul.f32 %v1652, %v1656
    %v1658 = vpack.c.bf16 %v1657, %v1657
    %1659 = vrot.lane.b32.xlu0 %v1596, 64
    %v1660 = vpop.permute.xlu0 %1659
    %v1662 = vsel %vm510, %v1658, 0
    %v1665 = vsel %vm528, %v1660, 0
    %1667 = vmatprep.subr.bf16.mxu0 0
    %1668 = vmatpush1.bf16.msra.mxu0 %v1665
    %1669 = vmatprep.subr.bf16.mxu0 0
    %1670 = vmatpush1.bf16.msra.mxu0 0
    %1671 = vmatprep.subr.bf16.mxu0 0
    %1672 = vmatpush1.bf16.msra.mxu0 0
    %1673 = vmatprep.subr.bf16.mxu0 0
    %1674 = vmatpush1.bf16.msra.mxu0 0
    %1675 = vmatprep.subr.bf16.mxu0 0
    %1676 = vmatpush1.bf16.msra.mxu0 0
    %1677 = vmatprep.subr.bf16.mxu0 0
    %1678 = vmatpush1.bf16.msra.mxu0 0
    %1679 = vmatprep.subr.bf16.mxu0 0
    %1680 = vmatpush1.bf16.msra.mxu0 0
    %1681 = vmatprep.subr.bf16.mxu0 0
    %1682 = vmatpush1.bf16.msra.mxu0 0
    %1683 = vmatprep.subr.bf16.mxu0 0
    %1684 = vmatpush1.bf16.msra.mxu0 0
    %1685 = vmatprep.subr.bf16.mxu0 0
    %1686 = vmatpush1.bf16.msra.mxu0 0
    %1687 = vmatprep.subr.bf16.mxu0 0
    %1688 = vmatpush1.bf16.msra.mxu0 0
    %1689 = vmatprep.subr.bf16.mxu0 0
    %1690 = vmatpush1.bf16.msra.mxu0 0
    %1691 = vmatprep.subr.bf16.mxu0 0
    %1692 = vmatpush1.bf16.msra.mxu0 0
    %1693 = vmatprep.subr.bf16.mxu0 0
    %1694 = vmatpush1.bf16.msra.mxu0 0
    %1695 = vmatprep.subr.bf16.mxu0 0
    %1696 = vmatpush1.bf16.msra.mxu0 0
    %1697 = vmatprep.subr.bf16.mxu0 0
    %1698 = vmatpush1.bf16.msra.mxu0 0
    %1699 = vmatprep.mubr.bf16.mxu0 0
    %1700 = vmatmul.mubr.bf16.gmra.mrb[0].mxu0 %v1662
    %v1701 = vpop.f32.mrb[0].mxu0
    %v1702 = vadd.f32 0.0, %v1701
    %v1703 = vpop.f32.mrb[0].mxu0
    %v1704 = vpop.f32.mrb[0].mxu0
    %v1705 = vpop.f32.mrb[0].mxu0
    %1706 = vdwg.mxu0
    %1707 = vrot.lane.b32.xlu0 %v1596, 112
    %v1708 = vpop.permute.xlu0 %1707
    %1709 = vrot.lane.b32.xlu0 %v1596, 80
    %v1710 = vpop.permute.xlu0 %1709
    %v1712 = vsel %vm107, %v1708, 0
    %v1715 = vsel %vm107, %v1710, 0
    %1717 = vmatprep.subr.bf16.mxu0 0
    %1718 = vmatpush1.bf16.xpose.msra.mxu0 %v1715
    %1719 = vmatprep.subr.bf16.mxu0 0
    %1720 = vmatpush1.bf16.xpose.msra.mxu0 0
    %1721 = vmatprep.subr.bf16.mxu0 0
    %1722 = vmatpush1.bf16.xpose.msra.mxu0 0
    %1723 = vmatprep.subr.bf16.mxu0 0
    %1724 = vmatpush1.bf16.xpose.msra.mxu0 0
    %1725 = vmatprep.subr.bf16.mxu0 0
    %1726 = vmatpush1.bf16.xpose.msra.mxu0 0
    %1727 = vmatprep.subr.bf16.mxu0 0
    %1728 = vmatpush1.bf16.xpose.msra.mxu0 0
    %1729 = vmatprep.subr.bf16.mxu0 0
    %1730 = vmatpush1.bf16.xpose.msra.mxu0 0
    %1731 = vmatprep.subr.bf16.mxu0 0
    %1732 = vmatpush1.bf16.xpose.msra.mxu0 0
    %1733 = vmatprep.subr.bf16.mxu0 0
    %1734 = vmatpush1.bf16.xpose.msra.mxu0 0
    %1735 = vmatprep.subr.bf16.mxu0 0
    %1736 = vmatpush1.bf16.xpose.msra.mxu0 0
    %1737 = vmatprep.subr.bf16.mxu0 0
    %1738 = vmatpush1.bf16.xpose.msra.mxu0 0
    %1739 = vmatprep.subr.bf16.mxu0 0
    %1740 = vmatpush1.bf16.xpose.msra.mxu0 0
    %1741 = vmatprep.subr.bf16.mxu0 0
    %1742 = vmatpush1.bf16.xpose.msra.mxu0 0
    %1743 = vmatprep.subr.bf16.mxu0 0
    %1744 = vmatpush1.bf16.xpose.msra.mxu0 0
    %1745 = vmatprep.subr.bf16.mxu0 0
    %1746 = vmatpush1.bf16.xpose.msra.mxu0 0
    %1747 = vmatprep.subr.bf16.mxu0 0
    %1748 = vmatpush1.bf16.xpose.msra.mxu0 0
    %1749 = vmatprep.mubr.bf16.mxu0 0
    %1750 = vmatmul.mubr.bf16.gmra.mrb[0].mxu0 %v1712
    %v1751 = vpop.f32.mrb[0].mxu0
    %v1752 = vadd.f32 0.0, %v1751
    %v1753 = vpop.f32.mrb[0].mxu0
    %v1754 = vpop.f32.mrb[0].mxu0
    %v1755 = vpop.f32.mrb[0].mxu0
    %1756 = vdwg.mxu0
    %v1757 = vmul.f32 %v1752, 0.25
    %v1758 = vsel %vm510, %v1757, -inf
    %1759 = vmax.xlane.f32.xlu0 %v1758
    %v1760 = vpop.xlane.xlu0 %1759
    %v1761 = vsub.f32 %v1757, %v1760
    %v1762 = vmul.f32 %v1761, 1.442695
    %v1763 = vpow.pop %v1762
    %v1764 = vsel %vm510, %v1763, 0.0
    %1765 = vadd.xlane.f32.xlu0 %v1764
    %v1766 = vpop.xlane.xlu0 %1765
    %v1767 = vrcp.pop %v1766
    %v1768 = vmul.f32 %v1763, %v1767
    %v1769 = vpack.c.bf16 %v1768, %v1768
    %1770 = vrot.lane.b32.xlu0 %v1596, 48
    %v1771 = vpop.permute.xlu0 %1770
    %v1773 = vsel %vm510, %v1769, 0
    %v1776 = vsel %vm528, %v1771, 0
    %1778 = vmatprep.subr.bf16.mxu0 0
    %1779 = vmatpush1.bf16.msra.mxu0 %v1776
    %1780 = vmatprep.subr.bf16.mxu0 0
    %1781 = vmatpush1.bf16.msra.mxu0 0
    %1782 = vmatprep.subr.bf16.mxu0 0
    %1783 = vmatpush1.bf16.msra.mxu0 0
    %1784 = vmatprep.subr.bf16.mxu0 0
    %1785 = vmatpush1.bf16.msra.mxu0 0
    %1786 = vmatprep.subr.bf16.mxu0 0
    %1787 = vmatpush1.bf16.msra.mxu0 0
    %1788 = vmatprep.subr.bf16.mxu0 0
    %1789 = vmatpush1.bf16.msra.mxu0 0
    %1790 = vmatprep.subr.bf16.mxu0 0
    %1791 = vmatpush1.bf16.msra.mxu0 0
    %1792 = vmatprep.subr.bf16.mxu0 0
    %1793 = vmatpush1.bf16.msra.mxu0 0
    %1794 = vmatprep.subr.bf16.mxu0 0
    %1795 = vmatpush1.bf16.msra.mxu0 0
    %1796 = vmatprep.subr.bf16.mxu0 0
    %1797 = vmatpush1.bf16.msra.mxu0 0
    %1798 = vmatprep.subr.bf16.mxu0 0
    %1799 = vmatpush1.bf16.msra.mxu0 0
    %1800 = vmatprep.subr.bf16.mxu0 0
    %1801 = vmatpush1.bf16.msra.mxu0 0
    %1802 = vmatprep.subr.bf16.mxu0 0
    %1803 = vmatpush1.bf16.msra.mxu0 0
    %1804 = vmatprep.subr.bf16.mxu0 0
    %1805 = vmatpush1.bf16.msra.mxu0 0
    %1806 = vmatprep.subr.bf16.mxu0 0
    %1807 = vmatpush1.bf16.msra.mxu0 0
    %1808 = vmatprep.subr.bf16.mxu0 0
    %1809 = vmatpush1.bf16.msra.mxu0 0
    %1810 = vmatprep.mubr.bf16.mxu0 0
    %1811 = vmatmul.mubr.bf16.gmra.mrb[0].mxu0 %v1773
    %v1812 = vpop.f32.mrb[0].mxu0
    %v1813 = vadd.f32 0.0, %v1812
    %v1814 = vpop.f32.mrb[0].mxu0
    %v1815 = vpop.f32.mrb[0].mxu0
    %v1816 = vpop.f32.mrb[0].mxu0
    %1817 = vdwg.mxu0
    %1819 = vrot.lane.b32.xlu0 %v1813, 16
    %v1820 = vpop.permute.xlu0 %1819
    %v1822 = vsel %vm107, %v1702, %v1820
    %v1823 = vld [vmem:[%s11] sm:$0xf]
    %v1824 = vld [vmem:[%s11 + $0x4] sm:$0xf]
    %v1825 = vld [vmem:[%s11 + $0x8] sm:$0xf]
    %v1826 = vld [vmem:[%s11 + $0xc] sm:$0xf]
    %v1827 = vpack.c.bf16 %v914, %v687
    %v1828 = vpack.c.bf16 %v1368, %v1141
    %v1829 = vpack.c.bf16 %v1822, %v1595
    %v1830 = vld [vmem:[%s12] sm:$0x1]
    %v1832 = vlaneseq
    %v1833 = vshrl.u32 %v1832, 7
    %v1834 = vsub.s32 0, %v1833
    %v1835 = vrot.slane %v1830, %v1834
    %v1841 = vunpack.c.l.b16 %v1823
    %v1842 = vunpack.c.l.b16 %v1824
    %v1843 = vunpack.c.l.b16 %v1825
    %v1844 = vunpack.c.l.b16 %v1826
    %v1845 = vpack.c.b16 %v1842, %v1841
    %v1846 = vpack.c.b16 %v1844, %v1843
    %v1850 = vsel %vm263, %v1827, 0
    %v1853 = vsel %vm263, %v1828, 0
    %v1856 = vsel %vm263, %v1829, 0
    %1858 = vmatprep.subr.bf16.mxu0 0
    %1859 = vmatpush1.bf16.msra.mxu0 %v1845
    %1860 = vmatprep.subr.bf16.mxu0 0
    %1861 = vmatpush1.bf16.msra.mxu0 %v1846
    %1862 = vmatprep.subr.bf16.mxu0 0
    %1863 = vmatpush1.bf16.msra.mxu0 0
    %1864 = vmatprep.subr.bf16.mxu0 0
    %1865 = vmatpush1.bf16.msra.mxu0 0
    %1866 = vmatprep.subr.bf16.mxu0 0
    %1867 = vmatpush1.bf16.msra.mxu0 0
    %1868 = vmatprep.subr.bf16.mxu0 0
    %1869 = vmatpush1.bf16.msra.mxu0 0
    %1870 = vmatprep.subr.bf16.mxu0 0
    %1871 = vmatpush1.bf16.msra.mxu0 0
    %1872 = vmatprep.subr.bf16.mxu0 0
    %1873 = vmatpush1.bf16.msra.mxu0 0
    %1874 = vmatprep.subr.bf16.mxu0 0
    %1875 = vmatpush1.bf16.msra.mxu0 0
    %1876 = vmatprep.subr.bf16.mxu0 0
    %1877 = vmatpush1.bf16.msra.mxu0 0
    %1878 = vmatprep.subr.bf16.mxu0 0
    %1879 = vmatpush1.bf16.msra.mxu0 0
    %1880 = vmatprep.subr.bf16.mxu0 0
    %1881 = vmatpush1.bf16.msra.mxu0 0
    %1882 = vmatprep.subr.bf16.mxu0 0
    %1883 = vmatpush1.bf16.msra.mxu0 0
    %1884 = vmatprep.subr.bf16.mxu0 0
    %1885 = vmatpush1.bf16.msra.mxu0 0
    %1886 = vmatprep.subr.bf16.mxu0 0
    %1887 = vmatpush1.bf16.msra.mxu0 0
    %1888 = vmatprep.subr.bf16.mxu0 0
    %1889 = vmatpush1.bf16.msra.mxu0 0
    %1890 = vmatprep.mubr.bf16.mxu0 0
    %1891 = vmatmul.mubr.bf16.gmra.mrb[0].mxu0 %v1850
    %v1892 = vpop.f32.mrb[0].mxu0
    %v1893 = vadd.f32 %v1835, %v1892
    %v1894 = vpop.f32.mrb[0].mxu0
    %v1895 = vpop.f32.mrb[0].mxu0
    %v1896 = vadd.f32 %v1835, %v1895
    %v1897 = vpop.f32.mrb[0].mxu0
    %1898 = vmatprep.mubr.bf16.mxu0 0
    %1899 = vmatmul.mubr.bf16.gmra.mrb[0].mxu0 %v1853
    %v1900 = vpop.f32.mrb[0].mxu0
    %v1901 = vadd.f32 %v1835, %v1900
    %v1902 = vpop.f32.mrb[0].mxu0
    %v1903 = vpop.f32.mrb[0].mxu0
    %v1904 = vadd.f32 %v1835, %v1903
    %v1905 = vpop.f32.mrb[0].mxu0
    %1906 = vmatprep.mubr.bf16.mxu0 0
    %1907 = vmatmul.mubr.bf16.gmra.mrb[0].mxu0 %v1856
    %v1908 = vpop.f32.mrb[0].mxu0
    %v1909 = vadd.f32 %v1835, %v1908
    %v1910 = vpop.f32.mrb[0].mxu0
    %v1911 = vpop.f32.mrb[0].mxu0
    %v1912 = vadd.f32 %v1835, %v1911
    %v1913 = vpop.f32.mrb[0].mxu0
    %1914 = vdwg.mxu0
    %v1915 = vadd.f32 %v1893, %v361
    %v1916 = vadd.f32 %v1896, %v362
    %v1917 = vadd.f32 %v1901, %v363
    %v1918 = vadd.f32 %v1904, %v364
    %v1919 = vadd.f32 %v1909, %v365
    %v1920 = vadd.f32 %v1912, %v366
    %v1921 = vld [vmem:[%s13] sm:$0x1]
    %v1922 = vld [vmem:[%s14] sm:$0x1]
    %v1923 = vsel %vm263, %v1915, 0.0
    %1924 = vadd.xlane.f32.xlu0 %v1923
    %v1925 = vpop.xlane.xlu0 %1924
    %v1926 = vsel %vm263, %v1916, 0.0
    %1927 = vadd.xlane.f32.xlu0 %v1926
    %v1928 = vpop.xlane.xlu0 %1927
    %v1929 = vsel %vm263, %v1917, 0.0
    %1930 = vadd.xlane.f32.xlu0 %v1929
    %v1931 = vpop.xlane.xlu0 %1930
    %v1932 = vsel %vm263, %v1918, 0.0
    %1933 = vadd.xlane.f32.xlu0 %v1932
    %v1934 = vpop.xlane.xlu0 %1933
    %v1935 = vsel %vm263, %v1919, 0.0
    %1936 = vadd.xlane.f32.xlu0 %v1935
    %v1937 = vpop.xlane.xlu0 %1936
    %v1938 = vsel %vm263, %v1920, 0.0
    %1939 = vadd.xlane.f32.xlu0 %v1938
    %v1940 = vpop.xlane.xlu0 %1939
    %v1941 = vmul.f32 %v1925, %v282
    %v1942 = vmul.f32 %v1928, %v282
    %v1943 = vmul.f32 %v1931, %v282
    %v1944 = vmul.f32 %v1934, %v282
    %v1945 = vmul.f32 %v1937, %v282
    %v1946 = vmul.f32 %v1940, %v282
    %v1947 = vsub.f32 %v1915, %v1941
    %v1948 = vsub.f32 %v1916, %v1942
    %v1949 = vsub.f32 %v1917, %v1943
    %v1950 = vsub.f32 %v1918, %v1944
    %v1951 = vsub.f32 %v1919, %v1945
    %v1952 = vsub.f32 %v1920, %v1946
    %v1953 = vmul.f32 %v1947, %v1947
    %v1954 = vmul.f32 %v1948, %v1948
    %v1955 = vmul.f32 %v1949, %v1949
    %v1956 = vmul.f32 %v1950, %v1950
    %v1957 = vmul.f32 %v1951, %v1951
    %v1958 = vmul.f32 %v1952, %v1952
    %v1959 = vsel %vm263, %v1953, 0.0
    %1960 = vadd.xlane.f32.xlu0 %v1959
    %v1961 = vpop.xlane.xlu0 %1960
    %v1962 = vsel %vm263, %v1954, 0.0
    %1963 = vadd.xlane.f32.xlu0 %v1962
    %v1964 = vpop.xlane.xlu0 %1963
    %v1965 = vsel %vm263, %v1955, 0.0
    %1966 = vadd.xlane.f32.xlu0 %v1965
    %v1967 = vpop.xlane.xlu0 %1966
    %v1968 = vsel %vm263, %v1956, 0.0
    %1969 = vadd.xlane.f32.xlu0 %v1968
    %v1970 = vpop.xlane.xlu0 %1969
    %v1971 = vsel %vm263, %v1957, 0.0
    %1972 = vadd.xlane.f32.xlu0 %v1971
    %v1973 = vpop.xlane.xlu0 %1972
    %v1974 = vsel %vm263, %v1958, 0.0
    %1975 = vadd.xlane.f32.xlu0 %v1974
    %v1976 = vpop.xlane.xlu0 %1975
    %v1977 = vmul.f32 %v1961, %v282
    %v1978 = vmul.f32 %v1964, %v282
    %v1979 = vmul.f32 %v1967, %v282
    %v1980 = vmul.f32 %v1970, %v282
    %v1981 = vmul.f32 %v1973, %v282
    %v1982 = vmul.f32 %v1976, %v282
    %v1983 = vadd.f32 %v1977, 1e-05
    %v1984 = vadd.f32 %v1978, 1e-05
    %v1985 = vadd.f32 %v1979, 1e-05
    %v1986 = vadd.f32 %v1980, 1e-05
    %v1987 = vadd.f32 %v1981, 1e-05
    %v1988 = vadd.f32 %v1982, 1e-05
    %v1989 = vrsqrt.pop %v1983
    %v1990 = vrsqrt.pop %v1984
    %v1991 = vrsqrt.pop %v1985
    %v1992 = vrsqrt.pop %v1986
    %v1993 = vrsqrt.pop %v1987
    %v1994 = vrsqrt.pop %v1988
    %v1995 = vmul.f32 %v1947, %v1989
    %v1996 = vmul.f32 %v1948, %v1990
    %v1997 = vmul.f32 %v1949, %v1991
    %v1998 = vmul.f32 %v1950, %v1992
    %v1999 = vmul.f32 %v1951, %v1993
    %v2000 = vmul.f32 %v1952, %v1994
    %v2002 = vlaneseq
    %v2003 = vshrl.u32 %v2002, 7
    %v2004 = vsub.s32 0, %v2003
    %v2005 = vrot.slane %v1921, %v2004
    %v2007 = vmul.f32 %v1995, %v2005
    %v2008 = vmul.f32 %v1996, %v2005
    %v2009 = vmul.f32 %v1997, %v2005
    %v2010 = vmul.f32 %v1998, %v2005
    %v2011 = vmul.f32 %v1999, %v2005
    %v2012 = vmul.f32 %v2000, %v2005
    %v2014 = vlaneseq
    %v2015 = vshrl.u32 %v2014, 7
    %v2016 = vsub.s32 0, %v2015
    %v2017 = vrot.slane %v1922, %v2016
    %v2019 = vadd.f32 %v2007, %v2017
    %v2020 = vadd.f32 %v2008, %v2017
    %v2021 = vadd.f32 %v2009, %v2017
    %v2022 = vadd.f32 %v2010, %v2017
    %v2023 = vadd.f32 %v2011, %v2017
    %v2024 = vadd.f32 %v2012, %v2017
    %v2025 = vld [vmem:[%s15] sm:$0xf]
    %v2026 = vld [vmem:[%s15 + $0x4] sm:$0xf]
    %v2027 = vld [vmem:[%s15 + $0x8] sm:$0xf]
    %v2028 = vld [vmem:[%s15 + $0xc] sm:$0xf]
    %v2029 = vpack.c.bf16 %v2020, %v2019
    %v2030 = vpack.c.bf16 %v2022, %v2021
    %v2031 = vpack.c.bf16 %v2024, %v2023
    %v2032 = vld [vmem:[%s16] sm:$0x1]
    %v2034 = vlaneseq
    %v2035 = vshrl.u32 %v2034, 7
    %v2036 = vsub.s32 0, %v2035
    %v2037 = vrot.slane %v2032, %v2036
    %v2043 = vunpack.c.l.b16 %v2025
    %v2044 = vunpack.c.l.b16 %v2026
    %v2045 = vunpack.c.l.b16 %v2027
    %v2046 = vunpack.c.l.b16 %v2028
    %v2047 = vpack.c.b16 %v2044, %v2043
    %v2048 = vpack.c.b16 %v2046, %v2045
    %v2052 = vsel %vm263, %v2029, 0
    %v2055 = vsel %vm263, %v2030, 0
    %v2058 = vsel %vm263, %v2031, 0
    %2060 = vmatprep.subr.bf16.mxu0 0
    %2061 = vmatpush1.bf16.msra.mxu0 %v2047
    %2062 = vmatprep.subr.bf16.mxu0 0
    %2063 = vmatpush1.bf16.msra.mxu0 %v2048
    %2064 = vmatprep.subr.bf16.mxu0 0
    %2065 = vmatpush1.bf16.msra.mxu0 0
    %2066 = vmatprep.subr.bf16.mxu0 0
    %2067 = vmatpush1.bf16.msra.mxu0 0
    %2068 = vmatprep.subr.bf16.mxu0 0
    %2069 = vmatpush1.bf16.msra.mxu0 0
    %2070 = vmatprep.subr.bf16.mxu0 0
    %2071 = vmatpush1.bf16.msra.mxu0 0
    %2072 = vmatprep.subr.bf16.mxu0 0
    %2073 = vmatpush1.bf16.msra.mxu0 0
    %2074 = vmatprep.subr.bf16.mxu0 0
    %2075 = vmatpush1.bf16.msra.mxu0 0
    %2076 = vmatprep.subr.bf16.mxu0 0
    %2077 = vmatpush1.bf16.msra.mxu0 0
    %2078 = vmatprep.subr.bf16.mxu0 0
    %2079 = vmatpush1.bf16.msra.mxu0 0
    %2080 = vmatprep.subr.bf16.mxu0 0
    %2081 = vmatpush1.bf16.msra.mxu0 0
    %2082 = vmatprep.subr.bf16.mxu0 0
    %2083 = vmatpush1.bf16.msra.mxu0 0
    %2084 = vmatprep.subr.bf16.mxu0 0
    %2085 = vmatpush1.bf16.msra.mxu0 0
    %2086 = vmatprep.subr.bf16.mxu0 0
    %2087 = vmatpush1.bf16.msra.mxu0 0
    %2088 = vmatprep.subr.bf16.mxu0 0
    %2089 = vmatpush1.bf16.msra.mxu0 0
    %2090 = vmatprep.subr.bf16.mxu0 0
    %2091 = vmatpush1.bf16.msra.mxu0 0
    %2092 = vmatprep.mubr.bf16.mxu0 0
    %2093 = vmatmul.mubr.bf16.gmra.mrb[0].mxu0 %v2052
    %v2094 = vpop.f32.mrb[0].mxu0
    %v2095 = vadd.f32 %v2037, %v2094
    %v2096 = vpop.f32.mrb[0].mxu0
    %v2097 = vpop.f32.mrb[0].mxu0
    %v2098 = vadd.f32 %v2037, %v2097
    %v2099 = vpop.f32.mrb[0].mxu0
    %2100 = vmatprep.mubr.bf16.mxu0 0
    %2101 = vmatmul.mubr.bf16.gmra.mrb[0].mxu0 %v2055
    %v2102 = vpop.f32.mrb[0].mxu0
    %v2103 = vadd.f32 %v2037, %v2102
    %v2104 = vpop.f32.mrb[0].mxu0
    %v2105 = vpop.f32.mrb[0].mxu0
    %v2106 = vadd.f32 %v2037, %v2105
    %v2107 = vpop.f32.mrb[0].mxu0
    %2108 = vmatprep.mubr.bf16.mxu0 0
    %2109 = vmatmul.mubr.bf16.gmra.mrb[0].mxu0 %v2058
    %v2110 = vpop.f32.mrb[0].mxu0
    %v2111 = vadd.f32 %v2037, %v2110
    %v2112 = vpop.f32.mrb[0].mxu0
    %v2113 = vpop.f32.mrb[0].mxu0
    %v2114 = vadd.f32 %v2037, %v2113
    %v2115 = vpop.f32.mrb[0].mxu0
    %2116 = vdwg.mxu0
    %v2117 = vmul.f32 %v2095, 0.5
    %v2118 = vmul.f32 %v2098, 0.5
    %v2119 = vmul.f32 %v2103, 0.5
    %v2120 = vmul.f32 %v2106, 0.5
    %v2121 = vmul.f32 %v2111, 0.5
    %v2122 = vmul.f32 %v2114, 0.5
    %v2123 = vmul.f32 %v2095, 0.70710677
    %v2124 = vmul.f32 %v2098, 0.70710677
    %v2125 = vmul.f32 %v2103, 0.70710677
    %v2126 = vmul.f32 %v2106, 0.70710677
    %v2127 = vmul.f32 %v2111, 0.70710677
    %v2128 = vmul.f32 %v2114, 0.70710677
    %v2129 = verf.f32.pop %v2123
    %v2130 = verf.f32.pop %v2124
    %v2131 = verf.f32.pop %v2125
    %v2132 = verf.f32.pop %v2126
    %v2133 = verf.f32.pop %v2127
    %v2134 = verf.f32.pop %v2128
    %v2135 = vadd.f32 %v2129, 1.0
    %v2136 = vadd.f32 %v2130, 1.0
    %v2137 = vadd.f32 %v2131, 1.0
    %v2138 = vadd.f32 %v2132, 1.0
    %v2139 = vadd.f32 %v2133, 1.0
    %v2140 = vadd.f32 %v2134, 1.0
    %v2141 = vmul.f32 %v2117, %v2135
    %v2142 = vmul.f32 %v2118, %v2136
    %v2143 = vmul.f32 %v2119, %v2137
    %v2144 = vmul.f32 %v2120, %v2138
    %v2145 = vmul.f32 %v2121, %v2139
    %v2146 = vmul.f32 %v2122, %v2140
    %v2147 = vld [vmem:[%s17] sm:$0xf]
    %v2148 = vld [vmem:[%s17 + $0x4] sm:$0xf]
    %v2149 = vld [vmem:[%s17 + $0x8] sm:$0xf]
    %v2150 = vld [vmem:[%s17 + $0xc] sm:$0xf]
    %v2151 = vld [vmem:[%s17 + $0x10] sm:$0xf]
    %v2152 = vld [vmem:[%s17 + $0x14] sm:$0xf]
    %v2153 = vld [vmem:[%s17 + $0x18] sm:$0xf]
    %v2154 = vld [vmem:[%s17 + $0x1c] sm:$0xf]
    %v2155 = vpack.c.bf16 %v2142, %v2141
    %v2156 = vpack.c.bf16 %v2144, %v2143
    %v2157 = vpack.c.bf16 %v2146, %v2145
    %v2158 = vld [vmem:[%s18] sm:$0x1]
    %v2160 = vlaneseq
    %v2161 = vshrl.u32 %v2160, 7
    %v2162 = vsub.s32 0, %v2161
    %v2163 = vrot.slane %v2158, %v2162
    %v2173 = vunpack.c.l.b16 %v2147
    %v2174 = vunpack.c.l.b16 %v2148
    %v2175 = vunpack.c.l.b16 %v2149
    %v2176 = vunpack.c.l.b16 %v2150
    %v2177 = vunpack.c.l.b16 %v2151
    %v2178 = vunpack.c.l.b16 %v2152
    %v2179 = vunpack.c.l.b16 %v2153
    %v2180 = vunpack.c.l.b16 %v2154
    %v2181 = vpack.c.b16 %v2174, %v2173
    %v2182 = vpack.c.b16 %v2176, %v2175
    %v2183 = vpack.c.b16 %v2178, %v2177
    %v2184 = vpack.c.b16 %v2180, %v2179
    %vm2189 = vcmask 523264
    %v2191 = vsel %vm2189, %v2155, 0
    %v2194 = vsel %vm2189, %v2156, 0
    %v2197 = vsel %vm2189, %v2157, 0
    %2199 = vmatprep.subr.bf16.mxu0 0
    %2200 = vmatpush1.bf16.msra.mxu0 %v2181
    %2201 = vmatprep.subr.bf16.mxu0 0
    %2202 = vmatpush1.bf16.msra.mxu0 %v2182
    %2203 = vmatprep.subr.bf16.mxu0 0
    %2204 = vmatpush1.bf16.msra.mxu0 %v2183
    %2205 = vmatprep.subr.bf16.mxu0 0
    %2206 = vmatpush1.bf16.msra.mxu0 %v2184
    %2207 = vmatprep.subr.bf16.mxu0 0
    %2208 = vmatpush1.bf16.msra.mxu0 0
    %2209 = vmatprep.subr.bf16.mxu0 0
    %2210 = vmatpush1.bf16.msra.mxu0 0
    %2211 = vmatprep.subr.bf16.mxu0 0
    %2212 = vmatpush1.bf16.msra.mxu0 0
    %2213 = vmatprep.subr.bf16.mxu0 0
    %2214 = vmatpush1.bf16.msra.mxu0 0
    %2215 = vmatprep.subr.bf16.mxu0 0
    %2216 = vmatpush1.bf16.msra.mxu0 0
    %2217 = vmatprep.subr.bf16.mxu0 0
    %2218 = vmatpush1.bf16.msra.mxu0 0
    %2219 = vmatprep.subr.bf16.mxu0 0
    %2220 = vmatpush1.bf16.msra.mxu0 0
    %2221 = vmatprep.subr.bf16.mxu0 0
    %2222 = vmatpush1.bf16.msra.mxu0 0
    %2223 = vmatprep.subr.bf16.mxu0 0
    %2224 = vmatpush1.bf16.msra.mxu0 0
    %2225 = vmatprep.subr.bf16.mxu0 0
    %2226 = vmatpush1.bf16.msra.mxu0 0
    %2227 = vmatprep.subr.bf16.mxu0 0
    %2228 = vmatpush1.bf16.msra.mxu0 0
    %2229 = vmatprep.subr.bf16.mxu0 0
    %2230 = vmatpush1.bf16.msra.mxu0 0
    %2231 = vmatprep.mubr.bf16.mxu0 0
    %2232 = vmatmul.mubr.bf16.gmra.mrb[0].mxu0 %v2191
    %v2233 = vpop.f32.mrb[0].mxu0
    %v2234 = vadd.f32 %v2163, %v2233
    %v2235 = vpop.f32.mrb[0].mxu0
    %v2236 = vpop.f32.mrb[0].mxu0
    %v2237 = vadd.f32 %v2163, %v2236
    %v2238 = vpop.f32.mrb[0].mxu0
    %2239 = vmatprep.mubr.bf16.mxu0 0
    %2240 = vmatmul.mubr.bf16.gmra.mrb[0].mxu0 %v2194
    %v2241 = vpop.f32.mrb[0].mxu0
    %v2242 = vadd.f32 %v2163, %v2241
    %v2243 = vpop.f32.mrb[0].mxu0
    %v2244 = vpop.f32.mrb[0].mxu0
    %v2245 = vadd.f32 %v2163, %v2244
    %v2246 = vpop.f32.mrb[0].mxu0
    %2247 = vmatprep.mubr.bf16.mxu0 0
    %2248 = vmatmul.mubr.bf16.gmra.mrb[0].mxu0 %v2197
    %v2249 = vpop.f32.mrb[0].mxu0
    %v2250 = vadd.f32 %v2163, %v2249
    %v2251 = vpop.f32.mrb[0].mxu0
    %v2252 = vpop.f32.mrb[0].mxu0
    %v2253 = vadd.f32 %v2163, %v2252
    %v2254 = vpop.f32.mrb[0].mxu0
    %2255 = vdwg.mxu0
    %v2256 = vadd.f32 %v2234, %v2019
    %v2257 = vadd.f32 %v2237, %v2020
    %v2258 = vadd.f32 %v2242, %v2021
    %v2259 = vadd.f32 %v2245, %v2022
    %v2260 = vadd.f32 %v2250, %v2023
    %v2261 = vadd.f32 %v2253, %v2024
    %v2262 = vld [vmem:[%s19] sm:$0x1]
    %v2263 = vld [vmem:[%s20] sm:$0x1]
    %v2264 = vsel %vm263, %v2256, 0.0
    %2265 = vadd.xlane.f32.xlu0 %v2264
    %v2266 = vpop.xlane.xlu0 %2265
    %v2267 = vsel %vm263, %v2257, 0.0
    %2268 = vadd.xlane.f32.xlu0 %v2267
    %v2269 = vpop.xlane.xlu0 %2268
    %v2270 = vsel %vm263, %v2258, 0.0
    %2271 = vadd.xlane.f32.xlu0 %v2270
    %v2272 = vpop.xlane.xlu0 %2271
    %v2273 = vsel %vm263, %v2259, 0.0
    %2274 = vadd.xlane.f32.xlu0 %v2273
    %v2275 = vpop.xlane.xlu0 %2274
    %v2276 = vsel %vm263, %v2260, 0.0
    %2277 = vadd.xlane.f32.xlu0 %v2276
    %v2278 = vpop.xlane.xlu0 %2277
    %v2279 = vsel %vm263, %v2261, 0.0
    %2280 = vadd.xlane.f32.xlu0 %v2279
    %v2281 = vpop.xlane.xlu0 %2280
    %v2282 = vmul.f32 %v2266, %v282
    %v2283 = vmul.f32 %v2269, %v282
    %v2284 = vmul.f32 %v2272, %v282
    %v2285 = vmul.f32 %v2275, %v282
    %v2286 = vmul.f32 %v2278, %v282
    %v2287 = vmul.f32 %v2281, %v282
    %v2288 = vsub.f32 %v2256, %v2282
    %v2289 = vsub.f32 %v2257, %v2283
    %v2290 = vsub.f32 %v2258, %v2284
    %v2291 = vsub.f32 %v2259, %v2285
    %v2292 = vsub.f32 %v2260, %v2286
    %v2293 = vsub.f32 %v2261, %v2287
    %v2294 = vmul.f32 %v2288, %v2288
    %v2295 = vmul.f32 %v2289, %v2289
    %v2296 = vmul.f32 %v2290, %v2290
    %v2297 = vmul.f32 %v2291, %v2291
    %v2298 = vmul.f32 %v2292, %v2292
    %v2299 = vmul.f32 %v2293, %v2293
    %v2300 = vsel %vm263, %v2294, 0.0
    %2301 = vadd.xlane.f32.xlu0 %v2300
    %v2302 = vpop.xlane.xlu0 %2301
    %v2303 = vsel %vm263, %v2295, 0.0
    %2304 = vadd.xlane.f32.xlu0 %v2303
    %v2305 = vpop.xlane.xlu0 %2304
    %v2306 = vsel %vm263, %v2296, 0.0
    %2307 = vadd.xlane.f32.xlu0 %v2306
    %v2308 = vpop.xlane.xlu0 %2307
    %v2309 = vsel %vm263, %v2297, 0.0
    %2310 = vadd.xlane.f32.xlu0 %v2309
    %v2311 = vpop.xlane.xlu0 %2310
    %v2312 = vsel %vm263, %v2298, 0.0
    %2313 = vadd.xlane.f32.xlu0 %v2312
    %v2314 = vpop.xlane.xlu0 %2313
    %v2315 = vsel %vm263, %v2299, 0.0
    %2316 = vadd.xlane.f32.xlu0 %v2315
    %v2317 = vpop.xlane.xlu0 %2316
    %v2318 = vmul.f32 %v2302, %v282
    %v2319 = vmul.f32 %v2305, %v282
    %v2320 = vmul.f32 %v2308, %v282
    %v2321 = vmul.f32 %v2311, %v282
    %v2322 = vmul.f32 %v2314, %v282
    %v2323 = vmul.f32 %v2317, %v282
    %v2324 = vadd.f32 %v2318, 1e-05
    %v2325 = vadd.f32 %v2319, 1e-05
    %v2326 = vadd.f32 %v2320, 1e-05
    %v2327 = vadd.f32 %v2321, 1e-05
    %v2328 = vadd.f32 %v2322, 1e-05
    %v2329 = vadd.f32 %v2323, 1e-05
    %v2330 = vrsqrt.pop %v2324
    %v2331 = vrsqrt.pop %v2325
    %v2332 = vrsqrt.pop %v2326
    %v2333 = vrsqrt.pop %v2327
    %v2334 = vrsqrt.pop %v2328
    %v2335 = vrsqrt.pop %v2329
    %v2336 = vmul.f32 %v2288, %v2330
    %v2337 = vmul.f32 %v2289, %v2331
    %v2338 = vmul.f32 %v2290, %v2332
    %v2339 = vmul.f32 %v2291, %v2333
    %v2340 = vmul.f32 %v2292, %v2334
    %v2341 = vmul.f32 %v2293, %v2335
    %v2343 = vlaneseq
    %v2344 = vshrl.u32 %v2343, 7
    %v2345 = vsub.s32 0, %v2344
    %v2346 = vrot.slane %v2262, %v2345
    %v2348 = vmul.f32 %v2336, %v2346
    %v2349 = vmul.f32 %v2337, %v2346
    %v2350 = vmul.f32 %v2338, %v2346
    %v2351 = vmul.f32 %v2339, %v2346
    %v2352 = vmul.f32 %v2340, %v2346
    %v2353 = vmul.f32 %v2341, %v2346
    %v2355 = vlaneseq
    %v2356 = vshrl.u32 %v2355, 7
    %v2357 = vsub.s32 0, %v2356
    %v2358 = vrot.slane %v2263, %v2357
    %v2360 = vadd.f32 %v2348, %v2358
    %v2361 = vadd.f32 %v2349, %v2358
    %v2362 = vadd.f32 %v2350, %v2358
    %v2363 = vadd.f32 %v2351, %v2358
    %v2364 = vadd.f32 %v2352, %v2358
    %v2365 = vadd.f32 %v2353, %v2358
    %s2366 = scalar_lea.vmem %s9, 16
    %v2367 = vld [vmem:[%s2366] sm:$0xf]
    %v2368 = vld [vmem:[%s2366 + $0x4] sm:$0xf]
    %v2369 = vld [vmem:[%s2366 + $0x8] sm:$0xf]
    %v2370 = vld [vmem:[%s2366 + $0xc] sm:$0xf]
    %v2371 = vpack.c.bf16 %v2361, %v2360
    %v2372 = vpack.c.bf16 %v2363, %v2362
    %v2373 = vpack.c.bf16 %v2365, %v2364
    %s2374 = scalar_lea.vmem %s10, 1
    %v2375 = vld [vmem:[%s2374] sm:$0x1]
    %v2377 = vlaneseq
    %v2378 = vshrl.u32 %v2377, 7
    %v2379 = vsub.s32 0, %v2378
    %v2380 = vrot.slane %v2375, %v2379
    %v2386 = vunpack.c.l.b16 %v2367
    %v2387 = vunpack.c.l.b16 %v2368
    %v2388 = vunpack.c.l.b16 %v2369
    %v2389 = vunpack.c.l.b16 %v2370
    %v2390 = vpack.c.b16 %v2387, %v2386
    %v2391 = vpack.c.b16 %v2389, %v2388
    %v2395 = vsel %vm263, %v2371, 0
    %v2398 = vsel %vm263, %v2372, 0
    %v2401 = vsel %vm263, %v2373, 0
    %2403 = vmatprep.subr.bf16.mxu0 0
    %2404 = vmatpush1.bf16.msra.mxu0 %v2390
    %2405 = vmatprep.subr.bf16.mxu0 0
    %2406 = vmatpush1.bf16.msra.mxu0 %v2391
    %2407 = vmatprep.subr.bf16.mxu0 0
    %2408 = vmatpush1.bf16.msra.mxu0 0
    %2409 = vmatprep.subr.bf16.mxu0 0
    %2410 = vmatpush1.bf16.msra.mxu0 0
    %2411 = vmatprep.subr.bf16.mxu0 0
    %2412 = vmatpush1.bf16.msra.mxu0 0
    %2413 = vmatprep.subr.bf16.mxu0 0
    %2414 = vmatpush1.bf16.msra.mxu0 0
    %2415 = vmatprep.subr.bf16.mxu0 0
    %2416 = vmatpush1.bf16.msra.mxu0 0
    %2417 = vmatprep.subr.bf16.mxu0 0
    %2418 = vmatpush1.bf16.msra.mxu0 0
    %2419 = vmatprep.subr.bf16.mxu0 0
    %2420 = vmatpush1.bf16.msra.mxu0 0
    %2421 = vmatprep.subr.bf16.mxu0 0
    %2422 = vmatpush1.bf16.msra.mxu0 0
    %2423 = vmatprep.subr.bf16.mxu0 0
    %2424 = vmatpush1.bf16.msra.mxu0 0
    %2425 = vmatprep.subr.bf16.mxu0 0
    %2426 = vmatpush1.bf16.msra.mxu0 0
    %2427 = vmatprep.subr.bf16.mxu0 0
    %2428 = vmatpush1.bf16.msra.mxu0 0
    %2429 = vmatprep.subr.bf16.mxu0 0
    %2430 = vmatpush1.bf16.msra.mxu0 0
    %2431 = vmatprep.subr.bf16.mxu0 0
    %2432 = vmatpush1.bf16.msra.mxu0 0
    %2433 = vmatprep.subr.bf16.mxu0 0
    %2434 = vmatpush1.bf16.msra.mxu0 0
    %2435 = vmatprep.mubr.bf16.mxu0 0
    %2436 = vmatmul.mubr.bf16.gmra.mrb[0].mxu0 %v2395
    %v2437 = vpop.f32.mrb[0].mxu0
    %v2438 = vadd.f32 %v2380, %v2437
    %v2439 = vpop.f32.mrb[0].mxu0
    %v2440 = vpop.f32.mrb[0].mxu0
    %v2441 = vadd.f32 %v2380, %v2440
    %v2442 = vpop.f32.mrb[0].mxu0
    %2443 = vmatprep.mubr.bf16.mxu0 0
    %2444 = vmatmul.mubr.bf16.gmra.mrb[0].mxu0 %v2398
    %v2445 = vpop.f32.mrb[0].mxu0
    %v2446 = vadd.f32 %v2380, %v2445
    %v2447 = vpop.f32.mrb[0].mxu0
    %v2448 = vpop.f32.mrb[0].mxu0
    %v2449 = vadd.f32 %v2380, %v2448
    %v2450 = vpop.f32.mrb[0].mxu0
    %2451 = vmatprep.mubr.bf16.mxu0 0
    %2452 = vmatmul.mubr.bf16.gmra.mrb[0].mxu0 %v2401
    %v2453 = vpop.f32.mrb[0].mxu0
    %v2454 = vadd.f32 %v2380, %v2453
    %v2455 = vpop.f32.mrb[0].mxu0
    %v2456 = vpop.f32.mrb[0].mxu0
    %v2457 = vadd.f32 %v2380, %v2456
    %v2458 = vpop.f32.mrb[0].mxu0
    %2459 = vdwg.mxu0
    %v2460 = vpack.c.bf16 %v2438, %v2438
    %2462 = vrot.lane.b32.xlu0 %v2460, 96
    %v2463 = vpop.permute.xlu0 %2462
    %v2465 = vsel %vm107, %v2460, 0
    %v2468 = vsel %vm107, %v2463, 0
    %2470 = vmatprep.subr.bf16.mxu0 0
    %2471 = vmatpush1.bf16.xpose.msra.mxu0 %v2468
    %2472 = vmatprep.subr.bf16.mxu0 0
    %2473 = vmatpush1.bf16.xpose.msra.mxu0 0
    %2474 = vmatprep.subr.bf16.mxu0 0
    %2475 = vmatpush1.bf16.xpose.msra.mxu0 0
    %2476 = vmatprep.subr.bf16.mxu0 0
    %2477 = vmatpush1.bf16.xpose.msra.mxu0 0
    %2478 = vmatprep.subr.bf16.mxu0 0
    %2479 = vmatpush1.bf16.xpose.msra.mxu0 0
    %2480 = vmatprep.subr.bf16.mxu0 0
    %2481 = vmatpush1.bf16.xpose.msra.mxu0 0
    %2482 = vmatprep.subr.bf16.mxu0 0
    %2483 = vmatpush1.bf16.xpose.msra.mxu0 0
    %2484 = vmatprep.subr.bf16.mxu0 0
    %2485 = vmatpush1.bf16.xpose.msra.mxu0 0
    %2486 = vmatprep.subr.bf16.mxu0 0
    %2487 = vmatpush1.bf16.xpose.msra.mxu0 0
    %2488 = vmatprep.subr.bf16.mxu0 0
    %2489 = vmatpush1.bf16.xpose.msra.mxu0 0
    %2490 = vmatprep.subr.bf16.mxu0 0
    %2491 = vmatpush1.bf16.xpose.msra.mxu0 0
    %2492 = vmatprep.subr.bf16.mxu0 0
    %2493 = vmatpush1.bf16.xpose.msra.mxu0 0
    %2494 = vmatprep.subr.bf16.mxu0 0
    %2495 = vmatpush1.bf16.xpose.msra.mxu0 0
    %2496 = vmatprep.subr.bf16.mxu0 0
    %2497 = vmatpush1.bf16.xpose.msra.mxu0 0
    %2498 = vmatprep.subr.bf16.mxu0 0
    %2499 = vmatpush1.bf16.xpose.msra.mxu0 0
    %2500 = vmatprep.subr.bf16.mxu0 0
    %2501 = vmatpush1.bf16.xpose.msra.mxu0 0
    %2502 = vmatprep.mubr.bf16.mxu0 0
    %2503 = vmatmul.mubr.bf16.gmra.mrb[0].mxu0 %v2465
    %v2504 = vpop.f32.mrb[0].mxu0
    %v2505 = vadd.f32 0.0, %v2504
    %v2506 = vpop.f32.mrb[0].mxu0
    %v2507 = vpop.f32.mrb[0].mxu0
    %v2508 = vpop.f32.mrb[0].mxu0
    %2509 = vdwg.mxu0
    %v2510 = vmul.f32 %v2505, 0.25
    %v2511 = vsel %vm510, %v2510, -inf
    %2512 = vmax.xlane.f32.xlu0 %v2511
    %v2513 = vpop.xlane.xlu0 %2512
    %v2514 = vsub.f32 %v2510, %v2513
    %v2515 = vmul.f32 %v2514, 1.442695
    %v2516 = vpow.pop %v2515
    %v2517 = vsel %vm510, %v2516, 0.0
    %2518 = vadd.xlane.f32.xlu0 %v2517
    %v2519 = vpop.xlane.xlu0 %2518
    %v2520 = vrcp.pop %v2519
    %v2521 = vmul.f32 %v2516, %v2520
    %v2522 = vpack.c.bf16 %v2521, %v2521
    %2523 = vrot.lane.b32.xlu0 %v2460, 64
    %v2524 = vpop.permute.xlu0 %2523
    %v2526 = vsel %vm510, %v2522, 0
    %v2529 = vsel %vm528, %v2524, 0
    %2531 = vmatprep.subr.bf16.mxu0 0
    %2532 = vmatpush1.bf16.msra.mxu0 %v2529
    %2533 = vmatprep.subr.bf16.mxu0 0
    %2534 = vmatpush1.bf16.msra.mxu0 0
    %2535 = vmatprep.subr.bf16.mxu0 0
    %2536 = vmatpush1.bf16.msra.mxu0 0
    %2537 = vmatprep.subr.bf16.mxu0 0
    %2538 = vmatpush1.bf16.msra.mxu0 0
    %2539 = vmatprep.subr.bf16.mxu0 0
    %2540 = vmatpush1.bf16.msra.mxu0 0
    %2541 = vmatprep.subr.bf16.mxu0 0
    %2542 = vmatpush1.bf16.msra.mxu0 0
    %2543 = vmatprep.subr.bf16.mxu0 0
    %2544 = vmatpush1.bf16.msra.mxu0 0
    %2545 = vmatprep.subr.bf16.mxu0 0
    %2546 = vmatpush1.bf16.msra.mxu0 0
    %2547 = vmatprep.subr.bf16.mxu0 0
    %2548 = vmatpush1.bf16.msra.mxu0 0
    %2549 = vmatprep.subr.bf16.mxu0 0
    %2550 = vmatpush1.bf16.msra.mxu0 0
    %2551 = vmatprep.subr.bf16.mxu0 0
    %2552 = vmatpush1.bf16.msra.mxu0 0
    %2553 = vmatprep.subr.bf16.mxu0 0
    %2554 = vmatpush1.bf16.msra.mxu0 0
    %2555 = vmatprep.subr.bf16.mxu0 0
    %2556 = vmatpush1.bf16.msra.mxu0 0
    %2557 = vmatprep.subr.bf16.mxu0 0
    %2558 = vmatpush1.bf16.msra.mxu0 0
    %2559 = vmatprep.subr.bf16.mxu0 0
    %2560 = vmatpush1.bf16.msra.mxu0 0
    %2561 = vmatprep.subr.bf16.mxu0 0
    %2562 = vmatpush1.bf16.msra.mxu0 0
    %2563 = vmatprep.mubr.bf16.mxu0 0
    %2564 = vmatmul.mubr.bf16.gmra.mrb[0].mxu0 %v2526
    %v2565 = vpop.f32.mrb[0].mxu0
    %v2566 = vadd.f32 0.0, %v2565
    %v2567 = vpop.f32.mrb[0].mxu0
    %v2568 = vpop.f32.mrb[0].mxu0
    %v2569 = vpop.f32.mrb[0].mxu0
    %2570 = vdwg.mxu0
    %2571 = vrot.lane.b32.xlu0 %v2460, 112
    %v2572 = vpop.permute.xlu0 %2571
    %2573 = vrot.lane.b32.xlu0 %v2460, 80
    %v2574 = vpop.permute.xlu0 %2573
    %v2576 = vsel %vm107, %v2572, 0
    %v2579 = vsel %vm107, %v2574, 0
    %2581 = vmatprep.subr.bf16.mxu0 0
    %2582 = vmatpush1.bf16.xpose.msra.mxu0 %v2579
    %2583 = vmatprep.subr.bf16.mxu0 0
    %2584 = vmatpush1.bf16.xpose.msra.mxu0 0
    %2585 = vmatprep.subr.bf16.mxu0 0
    %2586 = vmatpush1.bf16.xpose.msra.mxu0 0
    %2587 = vmatprep.subr.bf16.mxu0 0
    %2588 = vmatpush1.bf16.xpose.msra.mxu0 0
    %2589 = vmatprep.subr.bf16.mxu0 0
    %2590 = vmatpush1.bf16.xpose.msra.mxu0 0
    %2591 = vmatprep.subr.bf16.mxu0 0
    %2592 = vmatpush1.bf16.xpose.msra.mxu0 0
    %2593 = vmatprep.subr.bf16.mxu0 0
    %2594 = vmatpush1.bf16.xpose.msra.mxu0 0
    %2595 = vmatprep.subr.bf16.mxu0 0
    %2596 = vmatpush1.bf16.xpose.msra.mxu0 0
    %2597 = vmatprep.subr.bf16.mxu0 0
    %2598 = vmatpush1.bf16.xpose.msra.mxu0 0
    %2599 = vmatprep.subr.bf16.mxu0 0
    %2600 = vmatpush1.bf16.xpose.msra.mxu0 0
    %2601 = vmatprep.subr.bf16.mxu0 0
    %2602 = vmatpush1.bf16.xpose.msra.mxu0 0
    %2603 = vmatprep.subr.bf16.mxu0 0
    %2604 = vmatpush1.bf16.xpose.msra.mxu0 0
    %2605 = vmatprep.subr.bf16.mxu0 0
    %2606 = vmatpush1.bf16.xpose.msra.mxu0 0
    %2607 = vmatprep.subr.bf16.mxu0 0
    %2608 = vmatpush1.bf16.xpose.msra.mxu0 0
    %2609 = vmatprep.subr.bf16.mxu0 0
    %2610 = vmatpush1.bf16.xpose.msra.mxu0 0
    %2611 = vmatprep.subr.bf16.mxu0 0
    %2612 = vmatpush1.bf16.xpose.msra.mxu0 0
    %2613 = vmatprep.mubr.bf16.mxu0 0
    %2614 = vmatmul.mubr.bf16.gmra.mrb[0].mxu0 %v2576
    %v2615 = vpop.f32.mrb[0].mxu0
    %v2616 = vadd.f32 0.0, %v2615
    %v2617 = vpop.f32.mrb[0].mxu0
    %v2618 = vpop.f32.mrb[0].mxu0
    %v2619 = vpop.f32.mrb[0].mxu0
    %2620 = vdwg.mxu0
    %v2621 = vmul.f32 %v2616, 0.25
    %v2622 = vsel %vm510, %v2621, -inf
    %2623 = vmax.xlane.f32.xlu0 %v2622
    %v2624 = vpop.xlane.xlu0 %2623
    %v2625 = vsub.f32 %v2621, %v2624
    %v2626 = vmul.f32 %v2625, 1.442695
    %v2627 = vpow.pop %v2626
    %v2628 = vsel %vm510, %v2627, 0.0
    %2629 = vadd.xlane.f32.xlu0 %v2628
    %v2630 = vpop.xlane.xlu0 %2629
    %v2631 = vrcp.pop %v2630
    %v2632 = vmul.f32 %v2627, %v2631
    %v2633 = vpack.c.bf16 %v2632, %v2632
    %2634 = vrot.lane.b32.xlu0 %v2460, 48
    %v2635 = vpop.permute.xlu0 %2634
    %v2637 = vsel %vm510, %v2633, 0
    %v2640 = vsel %vm528, %v2635, 0
    %2642 = vmatprep.subr.bf16.mxu0 0
    %2643 = vmatpush1.bf16.msra.mxu0 %v2640
    %2644 = vmatprep.subr.bf16.mxu0 0
    %2645 = vmatpush1.bf16.msra.mxu0 0
    %2646 = vmatprep.subr.bf16.mxu0 0
    %2647 = vmatpush1.bf16.msra.mxu0 0
    %2648 = vmatprep.subr.bf16.mxu0 0
    %2649 = vmatpush1.bf16.msra.mxu0 0
    %2650 = vmatprep.subr.bf16.mxu0 0
    %2651 = vmatpush1.bf16.msra.mxu0 0
    %2652 = vmatprep.subr.bf16.mxu0 0
    %2653 = vmatpush1.bf16.msra.mxu0 0
    %2654 = vmatprep.subr.bf16.mxu0 0
    %2655 = vmatpush1.bf16.msra.mxu0 0
    %2656 = vmatprep.subr.bf16.mxu0 0
    %2657 = vmatpush1.bf16.msra.mxu0 0
    %2658 = vmatprep.subr.bf16.mxu0 0
    %2659 = vmatpush1.bf16.msra.mxu0 0
    %2660 = vmatprep.subr.bf16.mxu0 0
    %2661 = vmatpush1.bf16.msra.mxu0 0
    %2662 = vmatprep.subr.bf16.mxu0 0
    %2663 = vmatpush1.bf16.msra.mxu0 0
    %2664 = vmatprep.subr.bf16.mxu0 0
    %2665 = vmatpush1.bf16.msra.mxu0 0
    %2666 = vmatprep.subr.bf16.mxu0 0
    %2667 = vmatpush1.bf16.msra.mxu0 0
    %2668 = vmatprep.subr.bf16.mxu0 0
    %2669 = vmatpush1.bf16.msra.mxu0 0
    %2670 = vmatprep.subr.bf16.mxu0 0
    %2671 = vmatpush1.bf16.msra.mxu0 0
    %2672 = vmatprep.subr.bf16.mxu0 0
    %2673 = vmatpush1.bf16.msra.mxu0 0
    %2674 = vmatprep.mubr.bf16.mxu0 0
    %2675 = vmatmul.mubr.bf16.gmra.mrb[0].mxu0 %v2637
    %v2676 = vpop.f32.mrb[0].mxu0
    %v2677 = vadd.f32 0.0, %v2676
    %v2678 = vpop.f32.mrb[0].mxu0
    %v2679 = vpop.f32.mrb[0].mxu0
    %v2680 = vpop.f32.mrb[0].mxu0
    %2681 = vdwg.mxu0
    %2683 = vrot.lane.b32.xlu0 %v2677, 16
    %v2684 = vpop.permute.xlu0 %2683
    %v2686 = vsel %vm107, %v2566, %v2684
    %v2687 = vpack.c.bf16 %v2441, %v2441
    %2689 = vrot.lane.b32.xlu0 %v2687, 96
    %v2690 = vpop.permute.xlu0 %2689
    %v2692 = vsel %vm107, %v2687, 0
    %v2695 = vsel %vm107, %v2690, 0
    %2697 = vmatprep.subr.bf16.mxu0 0
    %2698 = vmatpush1.bf16.xpose.msra.mxu0 %v2695
    %2699 = vmatprep.subr.bf16.mxu0 0
    %2700 = vmatpush1.bf16.xpose.msra.mxu0 0
    %2701 = vmatprep.subr.bf16.mxu0 0
    %2702 = vmatpush1.bf16.xpose.msra.mxu0 0
    %2703 = vmatprep.subr.bf16.mxu0 0
    %2704 = vmatpush1.bf16.xpose.msra.mxu0 0
    %2705 = vmatprep.subr.bf16.mxu0 0
    %2706 = vmatpush1.bf16.xpose.msra.mxu0 0
    %2707 = vmatprep.subr.bf16.mxu0 0
    %2708 = vmatpush1.bf16.xpose.msra.mxu0 0
    %2709 = vmatprep.subr.bf16.mxu0 0
    %2710 = vmatpush1.bf16.xpose.msra.mxu0 0
    %2711 = vmatprep.subr.bf16.mxu0 0
    %2712 = vmatpush1.bf16.xpose.msra.mxu0 0
    %2713 = vmatprep.subr.bf16.mxu0 0
    %2714 = vmatpush1.bf16.xpose.msra.mxu0 0
    %2715 = vmatprep.subr.bf16.mxu0 0
    %2716 = vmatpush1.bf16.xpose.msra.mxu0 0
    %2717 = vmatprep.subr.bf16.mxu0 0
    %2718 = vmatpush1.bf16.xpose.msra.mxu0 0
    %2719 = vmatprep.subr.bf16.mxu0 0
    %2720 = vmatpush1.bf16.xpose.msra.mxu0 0
    %2721 = vmatprep.subr.bf16.mxu0 0
    %2722 = vmatpush1.bf16.xpose.msra.mxu0 0
    %2723 = vmatprep.subr.bf16.mxu0 0
    %2724 = vmatpush1.bf16.xpose.msra.mxu0 0
    %2725 = vmatprep.subr.bf16.mxu0 0
    %2726 = vmatpush1.bf16.xpose.msra.mxu0 0
    %2727 = vmatprep.subr.bf16.mxu0 0
    %2728 = vmatpush1.bf16.xpose.msra.mxu0 0
    %2729 = vmatprep.mubr.bf16.mxu0 0
    %2730 = vmatmul.mubr.bf16.gmra.mrb[0].mxu0 %v2692
    %v2731 = vpop.f32.mrb[0].mxu0
    %v2732 = vadd.f32 0.0, %v2731
    %v2733 = vpop.f32.mrb[0].mxu0
    %v2734 = vpop.f32.mrb[0].mxu0
    %v2735 = vpop.f32.mrb[0].mxu0
    %2736 = vdwg.mxu0
    %v2737 = vmul.f32 %v2732, 0.25
    %v2738 = vsel %vm510, %v2737, -inf
    %2739 = vmax.xlane.f32.xlu0 %v2738
    %v2740 = vpop.xlane.xlu0 %2739
    %v2741 = vsub.f32 %v2737, %v2740
    %v2742 = vmul.f32 %v2741, 1.442695
    %v2743 = vpow.pop %v2742
    %v2744 = vsel %vm510, %v2743, 0.0
    %2745 = vadd.xlane.f32.xlu0 %v2744
    %v2746 = vpop.xlane.xlu0 %2745
    %v2747 = vrcp.pop %v2746
    %v2748 = vmul.f32 %v2743, %v2747
    %v2749 = vpack.c.bf16 %v2748, %v2748
    %2750 = vrot.lane.b32.xlu0 %v2687, 64
    %v2751 = vpop.permute.xlu0 %2750
    %v2753 = vsel %vm510, %v2749, 0
    %v2756 = vsel %vm528, %v2751, 0
    %2758 = vmatprep.subr.bf16.mxu0 0
    %2759 = vmatpush1.bf16.msra.mxu0 %v2756
    %2760 = vmatprep.subr.bf16.mxu0 0
    %2761 = vmatpush1.bf16.msra.mxu0 0
    %2762 = vmatprep.subr.bf16.mxu0 0
    %2763 = vmatpush1.bf16.msra.mxu0 0
    %2764 = vmatprep.subr.bf16.mxu0 0
    %2765 = vmatpush1.bf16.msra.mxu0 0
    %2766 = vmatprep.subr.bf16.mxu0 0
    %2767 = vmatpush1.bf16.msra.mxu0 0
    %2768 = vmatprep.subr.bf16.mxu0 0
    %2769 = vmatpush1.bf16.msra.mxu0 0
    %2770 = vmatprep.subr.bf16.mxu0 0
    %2771 = vmatpush1.bf16.msra.mxu0 0
    %2772 = vmatprep.subr.bf16.mxu0 0
    %2773 = vmatpush1.bf16.msra.mxu0 0
    %2774 = vmatprep.subr.bf16.mxu0 0
    %2775 = vmatpush1.bf16.msra.mxu0 0
    %2776 = vmatprep.subr.bf16.mxu0 0
    %2777 = vmatpush1.bf16.msra.mxu0 0
    %2778 = vmatprep.subr.bf16.mxu0 0
    %2779 = vmatpush1.bf16.msra.mxu0 0
    %2780 = vmatprep.subr.bf16.mxu0 0
    %2781 = vmatpush1.bf16.msra.mxu0 0
    %2782 = vmatprep.subr.bf16.mxu0 0
    %2783 = vmatpush1.bf16.msra.mxu0 0
    %2784 = vmatprep.subr.bf16.mxu0 0
    %2785 = vmatpush1.bf16.msra.mxu0 0
    %2786 = vmatprep.subr.bf16.mxu0 0
    %2787 = vmatpush1.bf16.msra.mxu0 0
    %2788 = vmatprep.subr.bf16.mxu0 0
    %2789 = vmatpush1.bf16.msra.mxu0 0
    %2790 = vmatprep.mubr.bf16.mxu0 0
    %2791 = vmatmul.mubr.bf16.gmra.mrb[0].mxu0 %v2753
    %v2792 = vpop.f32.mrb[0].mxu0
    %v2793 = vadd.f32 0.0, %v2792
    %v2794 = vpop.f32.mrb[0].mxu0
    %v2795 = vpop.f32.mrb[0].mxu0
    %v2796 = vpop.f32.mrb[0].mxu0
    %2797 = vdwg.mxu0
    %2798 = vrot.lane.b32.xlu0 %v2687, 112
    %v2799 = vpop.permute.xlu0 %2798
    %2800 = vrot.lane.b32.xlu0 %v2687, 80
    %v2801 = vpop.permute.xlu0 %2800
    %v2803 = vsel %vm107, %v2799, 0
    %v2806 = vsel %vm107, %v2801, 0
    %2808 = vmatprep.subr.bf16.mxu0 0
    %2809 = vmatpush1.bf16.xpose.msra.mxu0 %v2806
    %2810 = vmatprep.subr.bf16.mxu0 0
    %2811 = vmatpush1.bf16.xpose.msra.mxu0 0
    %2812 = vmatprep.subr.bf16.mxu0 0
    %2813 = vmatpush1.bf16.xpose.msra.mxu0 0
    %2814 = vmatprep.subr.bf16.mxu0 0
    %2815 = vmatpush1.bf16.xpose.msra.mxu0 0
    %2816 = vmatprep.subr.bf16.mxu0 0
    %2817 = vmatpush1.bf16.xpose.msra.mxu0 0
    %2818 = vmatprep.subr.bf16.mxu0 0
    %2819 = vmatpush1.bf16.xpose.msra.mxu0 0
    %2820 = vmatprep.subr.bf16.mxu0 0
    %2821 = vmatpush1.bf16.xpose.msra.mxu0 0
    %2822 = vmatprep.subr.bf16.mxu0 0
    %2823 = vmatpush1.bf16.xpose.msra.mxu0 0
    %2824 = vmatprep.subr.bf16.mxu0 0
    %2825 = vmatpush1.bf16.xpose.msra.mxu0 0
    %2826 = vmatprep.subr.bf16.mxu0 0
    %2827 = vmatpush1.bf16.xpose.msra.mxu0 0
    %2828 = vmatprep.subr.bf16.mxu0 0
    %2829 = vmatpush1.bf16.xpose.msra.mxu0 0
    %2830 = vmatprep.subr.bf16.mxu0 0
    %2831 = vmatpush1.bf16.xpose.msra.mxu0 0
    %2832 = vmatprep.subr.bf16.mxu0 0
    %2833 = vmatpush1.bf16.xpose.msra.mxu0 0
    %2834 = vmatprep.subr.bf16.mxu0 0
    %2835 = vmatpush1.bf16.xpose.msra.mxu0 0
    %2836 = vmatprep.subr.bf16.mxu0 0
    %2837 = vmatpush1.bf16.xpose.msra.mxu0 0
    %2838 = vmatprep.subr.bf16.mxu0 0
    %2839 = vmatpush1.bf16.xpose.msra.mxu0 0
    %2840 = vmatprep.mubr.bf16.mxu0 0
    %2841 = vmatmul.mubr.bf16.gmra.mrb[0].mxu0 %v2803
    %v2842 = vpop.f32.mrb[0].mxu0
    %v2843 = vadd.f32 0.0, %v2842
    %v2844 = vpop.f32.mrb[0].mxu0
    %v2845 = vpop.f32.mrb[0].mxu0
    %v2846 = vpop.f32.mrb[0].mxu0
    %2847 = vdwg.mxu0
    %v2848 = vmul.f32 %v2843, 0.25
    %v2849 = vsel %vm510, %v2848, -inf
    %2850 = vmax.xlane.f32.xlu0 %v2849
    %v2851 = vpop.xlane.xlu0 %2850
    %v2852 = vsub.f32 %v2848, %v2851
    %v2853 = vmul.f32 %v2852, 1.442695
    %v2854 = vpow.pop %v2853
    %v2855 = vsel %vm510, %v2854, 0.0
    %2856 = vadd.xlane.f32.xlu0 %v2855
    %v2857 = vpop.xlane.xlu0 %2856
    %v2858 = vrcp.pop %v2857
    %v2859 = vmul.f32 %v2854, %v2858
    %v2860 = vpack.c.bf16 %v2859, %v2859
    %2861 = vrot.lane.b32.xlu0 %v2687, 48
    %v2862 = vpop.permute.xlu0 %2861
    %v2864 = vsel %vm510, %v2860, 0
    %v2867 = vsel %vm528, %v2862, 0
    %2869 = vmatprep.subr.bf16.mxu0 0
    %2870 = vmatpush1.bf16.msra.mxu0 %v2867
    %2871 = vmatprep.subr.bf16.mxu0 0
    %2872 = vmatpush1.bf16.msra.mxu0 0
    %2873 = vmatprep.subr.bf16.mxu0 0
    %2874 = vmatpush1.bf16.msra.mxu0 0
    %2875 = vmatprep.subr.bf16.mxu0 0
    %2876 = vmatpush1.bf16.msra.mxu0 0
    %2877 = vmatprep.subr.bf16.mxu0 0
    %2878 = vmatpush1.bf16.msra.mxu0 0
    %2879 = vmatprep.subr.bf16.mxu0 0
    %2880 = vmatpush1.bf16.msra.mxu0 0
    %2881 = vmatprep.subr.bf16.mxu0 0
    %2882 = vmatpush1.bf16.msra.mxu0 0
    %2883 = vmatprep.subr.bf16.mxu0 0
    %2884 = vmatpush1.bf16.msra.mxu0 0
    %2885 = vmatprep.subr.bf16.mxu0 0
    %2886 = vmatpush1.bf16.msra.mxu0 0
    %2887 = vmatprep.subr.bf16.mxu0 0
    %2888 = vmatpush1.bf16.msra.mxu0 0
    %2889 = vmatprep.subr.bf16.mxu0 0
    %2890 = vmatpush1.bf16.msra.mxu0 0
    %2891 = vmatprep.subr.bf16.mxu0 0
    %2892 = vmatpush1.bf16.msra.mxu0 0
    %2893 = vmatprep.subr.bf16.mxu0 0
    %2894 = vmatpush1.bf16.msra.mxu0 0
    %2895 = vmatprep.subr.bf16.mxu0 0
    %2896 = vmatpush1.bf16.msra.mxu0 0
    %2897 = vmatprep.subr.bf16.mxu0 0
    %2898 = vmatpush1.bf16.msra.mxu0 0
    %2899 = vmatprep.subr.bf16.mxu0 0
    %2900 = vmatpush1.bf16.msra.mxu0 0
    %2901 = vmatprep.mubr.bf16.mxu0 0
    %2902 = vmatmul.mubr.bf16.gmra.mrb[0].mxu0 %v2864
    %v2903 = vpop.f32.mrb[0].mxu0
    %v2904 = vadd.f32 0.0, %v2903
    %v2905 = vpop.f32.mrb[0].mxu0
    %v2906 = vpop.f32.mrb[0].mxu0
    %v2907 = vpop.f32.mrb[0].mxu0
    %2908 = vdwg.mxu0
    %2910 = vrot.lane.b32.xlu0 %v2904, 16
    %v2911 = vpop.permute.xlu0 %2910
    %v2913 = vsel %vm107, %v2793, %v2911
    %v2914 = vpack.c.bf16 %v2446, %v2446
    %2916 = vrot.lane.b32.xlu0 %v2914, 96
    %v2917 = vpop.permute.xlu0 %2916
    %v2919 = vsel %vm107, %v2914, 0
    %v2922 = vsel %vm107, %v2917, 0
    %2924 = vmatprep.subr.bf16.mxu0 0
    %2925 = vmatpush1.bf16.xpose.msra.mxu0 %v2922
    %2926 = vmatprep.subr.bf16.mxu0 0
    %2927 = vmatpush1.bf16.xpose.msra.mxu0 0
    %2928 = vmatprep.subr.bf16.mxu0 0
    %2929 = vmatpush1.bf16.xpose.msra.mxu0 0
    %2930 = vmatprep.subr.bf16.mxu0 0
    %2931 = vmatpush1.bf16.xpose.msra.mxu0 0
    %2932 = vmatprep.subr.bf16.mxu0 0
    %2933 = vmatpush1.bf16.xpose.msra.mxu0 0
    %2934 = vmatprep.subr.bf16.mxu0 0
    %2935 = vmatpush1.bf16.xpose.msra.mxu0 0
    %2936 = vmatprep.subr.bf16.mxu0 0
    %2937 = vmatpush1.bf16.xpose.msra.mxu0 0
    %2938 = vmatprep.subr.bf16.mxu0 0
    %2939 = vmatpush1.bf16.xpose.msra.mxu0 0
    %2940 = vmatprep.subr.bf16.mxu0 0
    %2941 = vmatpush1.bf16.xpose.msra.mxu0 0
    %2942 = vmatprep.subr.bf16.mxu0 0
    %2943 = vmatpush1.bf16.xpose.msra.mxu0 0
    %2944 = vmatprep.subr.bf16.mxu0 0
    %2945 = vmatpush1.bf16.xpose.msra.mxu0 0
    %2946 = vmatprep.subr.bf16.mxu0 0
    %2947 = vmatpush1.bf16.xpose.msra.mxu0 0
    %2948 = vmatprep.subr.bf16.mxu0 0
    %2949 = vmatpush1.bf16.xpose.msra.mxu0 0
    %2950 = vmatprep.subr.bf16.mxu0 0
    %2951 = vmatpush1.bf16.xpose.msra.mxu0 0
    %2952 = vmatprep.subr.bf16.mxu0 0
    %2953 = vmatpush1.bf16.xpose.msra.mxu0 0
    %2954 = vmatprep.subr.bf16.mxu0 0
    %2955 = vmatpush1.bf16.xpose.msra.mxu0 0
    %2956 = vmatprep.mubr.bf16.mxu0 0
    %2957 = vmatmul.mubr.bf16.gmra.mrb[0].mxu0 %v2919
    %v2958 = vpop.f32.mrb[0].mxu0
    %v2959 = vadd.f32 0.0, %v2958
    %v2960 = vpop.f32.mrb[0].mxu0
    %v2961 = vpop.f32.mrb[0].mxu0
    %v2962 = vpop.f32.mrb[0].mxu0
    %2963 = vdwg.mxu0
    %v2964 = vmul.f32 %v2959, 0.25
    %v2965 = vsel %vm510, %v2964, -inf
    %2966 = vmax.xlane.f32.xlu0 %v2965
    %v2967 = vpop.xlane.xlu0 %2966
    %v2968 = vsub.f32 %v2964, %v2967
    %v2969 = vmul.f32 %v2968, 1.442695
    %v2970 = vpow.pop %v2969
    %v2971 = vsel %vm510, %v2970, 0.0
    %2972 = vadd.xlane.f32.xlu0 %v2971
    %v2973 = vpop.xlane.xlu0 %2972
    %v2974 = vrcp.pop %v2973
    %v2975 = vmul.f32 %v2970, %v2974
    %v2976 = vpack.c.bf16 %v2975, %v2975
    %2977 = vrot.lane.b32.xlu0 %v2914, 64
    %v2978 = vpop.permute.xlu0 %2977
    %v2980 = vsel %vm510, %v2976, 0
    %v2983 = vsel %vm528, %v2978, 0
    %2985 = vmatprep.subr.bf16.mxu0 0
    %2986 = vmatpush1.bf16.msra.mxu0 %v2983
    %2987 = vmatprep.subr.bf16.mxu0 0
    %2988 = vmatpush1.bf16.msra.mxu0 0
    %2989 = vmatprep.subr.bf16.mxu0 0
    %2990 = vmatpush1.bf16.msra.mxu0 0
    %2991 = vmatprep.subr.bf16.mxu0 0
    %2992 = vmatpush1.bf16.msra.mxu0 0
    %2993 = vmatprep.subr.bf16.mxu0 0
    %2994 = vmatpush1.bf16.msra.mxu0 0
    %2995 = vmatprep.subr.bf16.mxu0 0
    %2996 = vmatpush1.bf16.msra.mxu0 0
    %2997 = vmatprep.subr.bf16.mxu0 0
    %2998 = vmatpush1.bf16.msra.mxu0 0
    %2999 = vmatprep.subr.bf16.mxu0 0
    %3000 = vmatpush1.bf16.msra.mxu0 0
    %3001 = vmatprep.subr.bf16.mxu0 0
    %3002 = vmatpush1.bf16.msra.mxu0 0
    %3003 = vmatprep.subr.bf16.mxu0 0
    %3004 = vmatpush1.bf16.msra.mxu0 0
    %3005 = vmatprep.subr.bf16.mxu0 0
    %3006 = vmatpush1.bf16.msra.mxu0 0
    %3007 = vmatprep.subr.bf16.mxu0 0
    %3008 = vmatpush1.bf16.msra.mxu0 0
    %3009 = vmatprep.subr.bf16.mxu0 0
    %3010 = vmatpush1.bf16.msra.mxu0 0
    %3011 = vmatprep.subr.bf16.mxu0 0
    %3012 = vmatpush1.bf16.msra.mxu0 0
    %3013 = vmatprep.subr.bf16.mxu0 0
    %3014 = vmatpush1.bf16.msra.mxu0 0
    %3015 = vmatprep.subr.bf16.mxu0 0
    %3016 = vmatpush1.bf16.msra.mxu0 0
    %3017 = vmatprep.mubr.bf16.mxu0 0
    %3018 = vmatmul.mubr.bf16.gmra.mrb[0].mxu0 %v2980
    %v3019 = vpop.f32.mrb[0].mxu0
    %v3020 = vadd.f32 0.0, %v3019
    %v3021 = vpop.f32.mrb[0].mxu0
    %v3022 = vpop.f32.mrb[0].mxu0
    %v3023 = vpop.f32.mrb[0].mxu0
    %3024 = vdwg.mxu0
    %3025 = vrot.lane.b32.xlu0 %v2914, 112
    %v3026 = vpop.permute.xlu0 %3025
    %3027 = vrot.lane.b32.xlu0 %v2914, 80
    %v3028 = vpop.permute.xlu0 %3027
    %v3030 = vsel %vm107, %v3026, 0
    %v3033 = vsel %vm107, %v3028, 0
    %3035 = vmatprep.subr.bf16.mxu0 0
    %3036 = vmatpush1.bf16.xpose.msra.mxu0 %v3033
    %3037 = vmatprep.subr.bf16.mxu0 0
    %3038 = vmatpush1.bf16.xpose.msra.mxu0 0
    %3039 = vmatprep.subr.bf16.mxu0 0
    %3040 = vmatpush1.bf16.xpose.msra.mxu0 0
    %3041 = vmatprep.subr.bf16.mxu0 0
    %3042 = vmatpush1.bf16.xpose.msra.mxu0 0
    %3043 = vmatprep.subr.bf16.mxu0 0
    %3044 = vmatpush1.bf16.xpose.msra.mxu0 0
    %3045 = vmatprep.subr.bf16.mxu0 0
    %3046 = vmatpush1.bf16.xpose.msra.mxu0 0
    %3047 = vmatprep.subr.bf16.mxu0 0
    %3048 = vmatpush1.bf16.xpose.msra.mxu0 0
    %3049 = vmatprep.subr.bf16.mxu0 0
    %3050 = vmatpush1.bf16.xpose.msra.mxu0 0
    %3051 = vmatprep.subr.bf16.mxu0 0
    %3052 = vmatpush1.bf16.xpose.msra.mxu0 0
    %3053 = vmatprep.subr.bf16.mxu0 0
    %3054 = vmatpush1.bf16.xpose.msra.mxu0 0
    %3055 = vmatprep.subr.bf16.mxu0 0
    %3056 = vmatpush1.bf16.xpose.msra.mxu0 0
    %3057 = vmatprep.subr.bf16.mxu0 0
    %3058 = vmatpush1.bf16.xpose.msra.mxu0 0
    %3059 = vmatprep.subr.bf16.mxu0 0
    %3060 = vmatpush1.bf16.xpose.msra.mxu0 0
    %3061 = vmatprep.subr.bf16.mxu0 0
    %3062 = vmatpush1.bf16.xpose.msra.mxu0 0
    %3063 = vmatprep.subr.bf16.mxu0 0
    %3064 = vmatpush1.bf16.xpose.msra.mxu0 0
    %3065 = vmatprep.subr.bf16.mxu0 0
    %3066 = vmatpush1.bf16.xpose.msra.mxu0 0
    %3067 = vmatprep.mubr.bf16.mxu0 0
    %3068 = vmatmul.mubr.bf16.gmra.mrb[0].mxu0 %v3030
    %v3069 = vpop.f32.mrb[0].mxu0
    %v3070 = vadd.f32 0.0, %v3069
    %v3071 = vpop.f32.mrb[0].mxu0
    %v3072 = vpop.f32.mrb[0].mxu0
    %v3073 = vpop.f32.mrb[0].mxu0
    %3074 = vdwg.mxu0
    %v3075 = vmul.f32 %v3070, 0.25
    %v3076 = vsel %vm510, %v3075, -inf
    %3077 = vmax.xlane.f32.xlu0 %v3076
    %v3078 = vpop.xlane.xlu0 %3077
    %v3079 = vsub.f32 %v3075, %v3078
    %v3080 = vmul.f32 %v3079, 1.442695
    %v3081 = vpow.pop %v3080
    %v3082 = vsel %vm510, %v3081, 0.0
    %3083 = vadd.xlane.f32.xlu0 %v3082
    %v3084 = vpop.xlane.xlu0 %3083
    %v3085 = vrcp.pop %v3084
    %v3086 = vmul.f32 %v3081, %v3085
    %v3087 = vpack.c.bf16 %v3086, %v3086
    %3088 = vrot.lane.b32.xlu0 %v2914, 48
    %v3089 = vpop.permute.xlu0 %3088
    %v3091 = vsel %vm510, %v3087, 0
    %v3094 = vsel %vm528, %v3089, 0
    %3096 = vmatprep.subr.bf16.mxu0 0
    %3097 = vmatpush1.bf16.msra.mxu0 %v3094
    %3098 = vmatprep.subr.bf16.mxu0 0
    %3099 = vmatpush1.bf16.msra.mxu0 0
    %3100 = vmatprep.subr.bf16.mxu0 0
    %3101 = vmatpush1.bf16.msra.mxu0 0
    %3102 = vmatprep.subr.bf16.mxu0 0
    %3103 = vmatpush1.bf16.msra.mxu0 0
    %3104 = vmatprep.subr.bf16.mxu0 0
    %3105 = vmatpush1.bf16.msra.mxu0 0
    %3106 = vmatprep.subr.bf16.mxu0 0
    %3107 = vmatpush1.bf16.msra.mxu0 0
    %3108 = vmatprep.subr.bf16.mxu0 0
    %3109 = vmatpush1.bf16.msra.mxu0 0
    %3110 = vmatprep.subr.bf16.mxu0 0
    %3111 = vmatpush1.bf16.msra.mxu0 0
    %3112 = vmatprep.subr.bf16.mxu0 0
    %3113 = vmatpush1.bf16.msra.mxu0 0
    %3114 = vmatprep.subr.bf16.mxu0 0
    %3115 = vmatpush1.bf16.msra.mxu0 0
    %3116 = vmatprep.subr.bf16.mxu0 0
    %3117 = vmatpush1.bf16.msra.mxu0 0
    %3118 = vmatprep.subr.bf16.mxu0 0
    %3119 = vmatpush1.bf16.msra.mxu0 0
    %3120 = vmatprep.subr.bf16.mxu0 0
    %3121 = vmatpush1.bf16.msra.mxu0 0
    %3122 = vmatprep.subr.bf16.mxu0 0
    %3123 = vmatpush1.bf16.msra.mxu0 0
    %3124 = vmatprep.subr.bf16.mxu0 0
    %3125 = vmatpush1.bf16.msra.mxu0 0
    %3126 = vmatprep.subr.bf16.mxu0 0
    %3127 = vmatpush1.bf16.msra.mxu0 0
    %3128 = vmatprep.mubr.bf16.mxu0 0
    %3129 = vmatmul.mubr.bf16.gmra.mrb[0].mxu0 %v3091
    %v3130 = vpop.f32.mrb[0].mxu0
    %v3131 = vadd.f32 0.0, %v3130
    %v3132 = vpop.f32.mrb[0].mxu0
    %v3133 = vpop.f32.mrb[0].mxu0
    %v3134 = vpop.f32.mrb[0].mxu0
    %3135 = vdwg.mxu0
    %3137 = vrot.lane.b32.xlu0 %v3131, 16
    %v3138 = vpop.permute.xlu0 %3137
    %v3140 = vsel %vm107, %v3020, %v3138
    %v3141 = vpack.c.bf16 %v2449, %v2449
    %3143 = vrot.lane.b32.xlu0 %v3141, 96
    %v3144 = vpop.permute.xlu0 %3143
    %v3146 = vsel %vm107, %v3141, 0
    %v3149 = vsel %vm107, %v3144, 0
    %3151 = vmatprep.subr.bf16.mxu0 0
    %3152 = vmatpush1.bf16.xpose.msra.mxu0 %v3149
    %3153 = vmatprep.subr.bf16.mxu0 0
    %3154 = vmatpush1.bf16.xpose.msra.mxu0 0
    %3155 = vmatprep.subr.bf16.mxu0 0
    %3156 = vmatpush1.bf16.xpose.msra.mxu0 0
    %3157 = vmatprep.subr.bf16.mxu0 0
    %3158 = vmatpush1.bf16.xpose.msra.mxu0 0
    %3159 = vmatprep.subr.bf16.mxu0 0
    %3160 = vmatpush1.bf16.xpose.msra.mxu0 0
    %3161 = vmatprep.subr.bf16.mxu0 0
    %3162 = vmatpush1.bf16.xpose.msra.mxu0 0
    %3163 = vmatprep.subr.bf16.mxu0 0
    %3164 = vmatpush1.bf16.xpose.msra.mxu0 0
    %3165 = vmatprep.subr.bf16.mxu0 0
    %3166 = vmatpush1.bf16.xpose.msra.mxu0 0
    %3167 = vmatprep.subr.bf16.mxu0 0
    %3168 = vmatpush1.bf16.xpose.msra.mxu0 0
    %3169 = vmatprep.subr.bf16.mxu0 0
    %3170 = vmatpush1.bf16.xpose.msra.mxu0 0
    %3171 = vmatprep.subr.bf16.mxu0 0
    %3172 = vmatpush1.bf16.xpose.msra.mxu0 0
    %3173 = vmatprep.subr.bf16.mxu0 0
    %3174 = vmatpush1.bf16.xpose.msra.mxu0 0
    %3175 = vmatprep.subr.bf16.mxu0 0
    %3176 = vmatpush1.bf16.xpose.msra.mxu0 0
    %3177 = vmatprep.subr.bf16.mxu0 0
    %3178 = vmatpush1.bf16.xpose.msra.mxu0 0
    %3179 = vmatprep.subr.bf16.mxu0 0
    %3180 = vmatpush1.bf16.xpose.msra.mxu0 0
    %3181 = vmatprep.subr.bf16.mxu0 0
    %3182 = vmatpush1.bf16.xpose.msra.mxu0 0
    %3183 = vmatprep.mubr.bf16.mxu0 0
    %3184 = vmatmul.mubr.bf16.gmra.mrb[0].mxu0 %v3146
    %v3185 = vpop.f32.mrb[0].mxu0
    %v3186 = vadd.f32 0.0, %v3185
    %v3187 = vpop.f32.mrb[0].mxu0
    %v3188 = vpop.f32.mrb[0].mxu0
    %v3189 = vpop.f32.mrb[0].mxu0
    %3190 = vdwg.mxu0
    %v3191 = vmul.f32 %v3186, 0.25
    %v3192 = vsel %vm510, %v3191, -inf
    %3193 = vmax.xlane.f32.xlu0 %v3192
    %v3194 = vpop.xlane.xlu0 %3193
    %v3195 = vsub.f32 %v3191, %v3194
    %v3196 = vmul.f32 %v3195, 1.442695
    %v3197 = vpow.pop %v3196
    %v3198 = vsel %vm510, %v3197, 0.0
    %3199 = vadd.xlane.f32.xlu0 %v3198
    %v3200 = vpop.xlane.xlu0 %3199
    %v3201 = vrcp.pop %v3200
    %v3202 = vmul.f32 %v3197, %v3201
    %v3203 = vpack.c.bf16 %v3202, %v3202
    %3204 = vrot.lane.b32.xlu0 %v3141, 64
    %v3205 = vpop.permute.xlu0 %3204
    %v3207 = vsel %vm510, %v3203, 0
    %v3210 = vsel %vm528, %v3205, 0
    %3212 = vmatprep.subr.bf16.mxu0 0
    %3213 = vmatpush1.bf16.msra.mxu0 %v3210
    %3214 = vmatprep.subr.bf16.mxu0 0
    %3215 = vmatpush1.bf16.msra.mxu0 0
    %3216 = vmatprep.subr.bf16.mxu0 0
    %3217 = vmatpush1.bf16.msra.mxu0 0
    %3218 = vmatprep.subr.bf16.mxu0 0
    %3219 = vmatpush1.bf16.msra.mxu0 0
    %3220 = vmatprep.subr.bf16.mxu0 0
    %3221 = vmatpush1.bf16.msra.mxu0 0
    %3222 = vmatprep.subr.bf16.mxu0 0
    %3223 = vmatpush1.bf16.msra.mxu0 0
    %3224 = vmatprep.subr.bf16.mxu0 0
    %3225 = vmatpush1.bf16.msra.mxu0 0
    %3226 = vmatprep.subr.bf16.mxu0 0
    %3227 = vmatpush1.bf16.msra.mxu0 0
    %3228 = vmatprep.subr.bf16.mxu0 0
    %3229 = vmatpush1.bf16.msra.mxu0 0
    %3230 = vmatprep.subr.bf16.mxu0 0
    %3231 = vmatpush1.bf16.msra.mxu0 0
    %3232 = vmatprep.subr.bf16.mxu0 0
    %3233 = vmatpush1.bf16.msra.mxu0 0
    %3234 = vmatprep.subr.bf16.mxu0 0
    %3235 = vmatpush1.bf16.msra.mxu0 0
    %3236 = vmatprep.subr.bf16.mxu0 0
    %3237 = vmatpush1.bf16.msra.mxu0 0
    %3238 = vmatprep.subr.bf16.mxu0 0
    %3239 = vmatpush1.bf16.msra.mxu0 0
    %3240 = vmatprep.subr.bf16.mxu0 0
    %3241 = vmatpush1.bf16.msra.mxu0 0
    %3242 = vmatprep.subr.bf16.mxu0 0
    %3243 = vmatpush1.bf16.msra.mxu0 0
    %3244 = vmatprep.mubr.bf16.mxu0 0
    %3245 = vmatmul.mubr.bf16.gmra.mrb[0].mxu0 %v3207
    %v3246 = vpop.f32.mrb[0].mxu0
    %v3247 = vadd.f32 0.0, %v3246
    %v3248 = vpop.f32.mrb[0].mxu0
    %v3249 = vpop.f32.mrb[0].mxu0
    %v3250 = vpop.f32.mrb[0].mxu0
    %3251 = vdwg.mxu0
    %3252 = vrot.lane.b32.xlu0 %v3141, 112
    %v3253 = vpop.permute.xlu0 %3252
    %3254 = vrot.lane.b32.xlu0 %v3141, 80
    %v3255 = vpop.permute.xlu0 %3254
    %v3257 = vsel %vm107, %v3253, 0
    %v3260 = vsel %vm107, %v3255, 0
    %3262 = vmatprep.subr.bf16.mxu0 0
    %3263 = vmatpush1.bf16.xpose.msra.mxu0 %v3260
    %3264 = vmatprep.subr.bf16.mxu0 0
    %3265 = vmatpush1.bf16.xpose.msra.mxu0 0
    %3266 = vmatprep.subr.bf16.mxu0 0
    %3267 = vmatpush1.bf16.xpose.msra.mxu0 0
    %3268 = vmatprep.subr.bf16.mxu0 0
    %3269 = vmatpush1.bf16.xpose.msra.mxu0 0
    %3270 = vmatprep.subr.bf16.mxu0 0
    %3271 = vmatpush1.bf16.xpose.msra.mxu0 0
    %3272 = vmatprep.subr.bf16.mxu0 0
    %3273 = vmatpush1.bf16.xpose.msra.mxu0 0
    %3274 = vmatprep.subr.bf16.mxu0 0
    %3275 = vmatpush1.bf16.xpose.msra.mxu0 0
    %3276 = vmatprep.subr.bf16.mxu0 0
    %3277 = vmatpush1.bf16.xpose.msra.mxu0 0
    %3278 = vmatprep.subr.bf16.mxu0 0
    %3279 = vmatpush1.bf16.xpose.msra.mxu0 0
    %3280 = vmatprep.subr.bf16.mxu0 0
    %3281 = vmatpush1.bf16.xpose.msra.mxu0 0
    %3282 = vmatprep.subr.bf16.mxu0 0
    %3283 = vmatpush1.bf16.xpose.msra.mxu0 0
    %3284 = vmatprep.subr.bf16.mxu0 0
    %3285 = vmatpush1.bf16.xpose.msra.mxu0 0
    %3286 = vmatprep.subr.bf16.mxu0 0
    %3287 = vmatpush1.bf16.xpose.msra.mxu0 0
    %3288 = vmatprep.subr.bf16.mxu0 0
    %3289 = vmatpush1.bf16.xpose.msra.mxu0 0
    %3290 = vmatprep.subr.bf16.mxu0 0
    %3291 = vmatpush1.bf16.xpose.msra.mxu0 0
    %3292 = vmatprep.subr.bf16.mxu0 0
    %3293 = vmatpush1.bf16.xpose.msra.mxu0 0
    %3294 = vmatprep.mubr.bf16.mxu0 0
    %3295 = vmatmul.mubr.bf16.gmra.mrb[0].mxu0 %v3257
    %v3296 = vpop.f32.mrb[0].mxu0
    %v3297 = vadd.f32 0.0, %v3296
    %v3298 = vpop.f32.mrb[0].mxu0
    %v3299 = vpop.f32.mrb[0].mxu0
    %v3300 = vpop.f32.mrb[0].mxu0
    %3301 = vdwg.mxu0
    %v3302 = vmul.f32 %v3297, 0.25
    %v3303 = vsel %vm510, %v3302, -inf
    %3304 = vmax.xlane.f32.xlu0 %v3303
    %v3305 = vpop.xlane.xlu0 %3304
    %v3306 = vsub.f32 %v3302, %v3305
    %v3307 = vmul.f32 %v3306, 1.442695
    %v3308 = vpow.pop %v3307
    %v3309 = vsel %vm510, %v3308, 0.0
    %3310 = vadd.xlane.f32.xlu0 %v3309
    %v3311 = vpop.xlane.xlu0 %3310
    %v3312 = vrcp.pop %v3311
    %v3313 = vmul.f32 %v3308, %v3312
    %v3314 = vpack.c.bf16 %v3313, %v3313
    %3315 = vrot.lane.b32.xlu0 %v3141, 48
    %v3316 = vpop.permute.xlu0 %3315
    %v3318 = vsel %vm510, %v3314, 0
    %v3321 = vsel %vm528, %v3316, 0
    %3323 = vmatprep.subr.bf16.mxu0 0
    %3324 = vmatpush1.bf16.msra.mxu0 %v3321
    %3325 = vmatprep.subr.bf16.mxu0 0
    %3326 = vmatpush1.bf16.msra.mxu0 0
    %3327 = vmatprep.subr.bf16.mxu0 0
    %3328 = vmatpush1.bf16.msra.mxu0 0
    %3329 = vmatprep.subr.bf16.mxu0 0
    %3330 = vmatpush1.bf16.msra.mxu0 0
    %3331 = vmatprep.subr.bf16.mxu0 0
    %3332 = vmatpush1.bf16.msra.mxu0 0
    %3333 = vmatprep.subr.bf16.mxu0 0
    %3334 = vmatpush1.bf16.msra.mxu0 0
    %3335 = vmatprep.subr.bf16.mxu0 0
    %3336 = vmatpush1.bf16.msra.mxu0 0
    %3337 = vmatprep.subr.bf16.mxu0 0
    %3338 = vmatpush1.bf16.msra.mxu0 0
    %3339 = vmatprep.subr.bf16.mxu0 0
    %3340 = vmatpush1.bf16.msra.mxu0 0
    %3341 = vmatprep.subr.bf16.mxu0 0
    %3342 = vmatpush1.bf16.msra.mxu0 0
    %3343 = vmatprep.subr.bf16.mxu0 0
    %3344 = vmatpush1.bf16.msra.mxu0 0
    %3345 = vmatprep.subr.bf16.mxu0 0
    %3346 = vmatpush1.bf16.msra.mxu0 0
    %3347 = vmatprep.subr.bf16.mxu0 0
    %3348 = vmatpush1.bf16.msra.mxu0 0
    %3349 = vmatprep.subr.bf16.mxu0 0
    %3350 = vmatpush1.bf16.msra.mxu0 0
    %3351 = vmatprep.subr.bf16.mxu0 0
    %3352 = vmatpush1.bf16.msra.mxu0 0
    %3353 = vmatprep.subr.bf16.mxu0 0
    %3354 = vmatpush1.bf16.msra.mxu0 0
    %3355 = vmatprep.mubr.bf16.mxu0 0
    %3356 = vmatmul.mubr.bf16.gmra.mrb[0].mxu0 %v3318
    %v3357 = vpop.f32.mrb[0].mxu0
    %v3358 = vadd.f32 0.0, %v3357
    %v3359 = vpop.f32.mrb[0].mxu0
    %v3360 = vpop.f32.mrb[0].mxu0
    %v3361 = vpop.f32.mrb[0].mxu0
    %3362 = vdwg.mxu0
    %3364 = vrot.lane.b32.xlu0 %v3358, 16
    %v3365 = vpop.permute.xlu0 %3364
    %v3367 = vsel %vm107, %v3247, %v3365
    %v3368 = vpack.c.bf16 %v2454, %v2454
    %3370 = vrot.lane.b32.xlu0 %v3368, 96
    %v3371 = vpop.permute.xlu0 %3370
    %v3373 = vsel %vm107, %v3368, 0
    %v3376 = vsel %vm107, %v3371, 0
    %3378 = vmatprep.subr.bf16.mxu0 0
    %3379 = vmatpush1.bf16.xpose.msra.mxu0 %v3376
    %3380 = vmatprep.subr.bf16.mxu0 0
    %3381 = vmatpush1.bf16.xpose.msra.mxu0 0
    %3382 = vmatprep.subr.bf16.mxu0 0
    %3383 = vmatpush1.bf16.xpose.msra.mxu0 0
    %3384 = vmatprep.subr.bf16.mxu0 0
    %3385 = vmatpush1.bf16.xpose.msra.mxu0 0
    %3386 = vmatprep.subr.bf16.mxu0 0
    %3387 = vmatpush1.bf16.xpose.msra.mxu0 0
    %3388 = vmatprep.subr.bf16.mxu0 0
    %3389 = vmatpush1.bf16.xpose.msra.mxu0 0
    %3390 = vmatprep.subr.bf16.mxu0 0
    %3391 = vmatpush1.bf16.xpose.msra.mxu0 0
    %3392 = vmatprep.subr.bf16.mxu0 0
    %3393 = vmatpush1.bf16.xpose.msra.mxu0 0
    %3394 = vmatprep.subr.bf16.mxu0 0
    %3395 = vmatpush1.bf16.xpose.msra.mxu0 0
    %3396 = vmatprep.subr.bf16.mxu0 0
    %3397 = vmatpush1.bf16.xpose.msra.mxu0 0
    %3398 = vmatprep.subr.bf16.mxu0 0
    %3399 = vmatpush1.bf16.xpose.msra.mxu0 0
    %3400 = vmatprep.subr.bf16.mxu0 0
    %3401 = vmatpush1.bf16.xpose.msra.mxu0 0
    %3402 = vmatprep.subr.bf16.mxu0 0
    %3403 = vmatpush1.bf16.xpose.msra.mxu0 0
    %3404 = vmatprep.subr.bf16.mxu0 0
    %3405 = vmatpush1.bf16.xpose.msra.mxu0 0
    %3406 = vmatprep.subr.bf16.mxu0 0
    %3407 = vmatpush1.bf16.xpose.msra.mxu0 0
    %3408 = vmatprep.subr.bf16.mxu0 0
    %3409 = vmatpush1.bf16.xpose.msra.mxu0 0
    %3410 = vmatprep.mubr.bf16.mxu0 0
    %3411 = vmatmul.mubr.bf16.gmra.mrb[0].mxu0 %v3373
    %v3412 = vpop.f32.mrb[0].mxu0
    %v3413 = vadd.f32 0.0, %v3412
    %v3414 = vpop.f32.mrb[0].mxu0
    %v3415 = vpop.f32.mrb[0].mxu0
    %v3416 = vpop.f32.mrb[0].mxu0
    %3417 = vdwg.mxu0
    %v3418 = vmul.f32 %v3413, 0.25
    %v3419 = vsel %vm510, %v3418, -inf
    %3420 = vmax.xlane.f32.xlu0 %v3419
    %v3421 = vpop.xlane.xlu0 %3420
    %v3422 = vsub.f32 %v3418, %v3421
    %v3423 = vmul.f32 %v3422, 1.442695
    %v3424 = vpow.pop %v3423
    %v3425 = vsel %vm510, %v3424, 0.0
    %3426 = vadd.xlane.f32.xlu0 %v3425
    %v3427 = vpop.xlane.xlu0 %3426
    %v3428 = vrcp.pop %v3427
    %v3429 = vmul.f32 %v3424, %v3428
    %v3430 = vpack.c.bf16 %v3429, %v3429
    %3431 = vrot.lane.b32.xlu0 %v3368, 64
    %v3432 = vpop.permute.xlu0 %3431
    %v3434 = vsel %vm510, %v3430, 0
    %v3437 = vsel %vm528, %v3432, 0
    %3439 = vmatprep.subr.bf16.mxu0 0
    %3440 = vmatpush1.bf16.msra.mxu0 %v3437
    %3441 = vmatprep.subr.bf16.mxu0 0
    %3442 = vmatpush1.bf16.msra.mxu0 0
    %3443 = vmatprep.subr.bf16.mxu0 0
    %3444 = vmatpush1.bf16.msra.mxu0 0
    %3445 = vmatprep.subr.bf16.mxu0 0
    %3446 = vmatpush1.bf16.msra.mxu0 0
    %3447 = vmatprep.subr.bf16.mxu0 0
    %3448 = vmatpush1.bf16.msra.mxu0 0
    %3449 = vmatprep.subr.bf16.mxu0 0
    %3450 = vmatpush1.bf16.msra.mxu0 0
    %3451 = vmatprep.subr.bf16.mxu0 0
    %3452 = vmatpush1.bf16.msra.mxu0 0
    %3453 = vmatprep.subr.bf16.mxu0 0
    %3454 = vmatpush1.bf16.msra.mxu0 0
    %3455 = vmatprep.subr.bf16.mxu0 0
    %3456 = vmatpush1.bf16.msra.mxu0 0
    %3457 = vmatprep.subr.bf16.mxu0 0
    %3458 = vmatpush1.bf16.msra.mxu0 0
    %3459 = vmatprep.subr.bf16.mxu0 0
    %3460 = vmatpush1.bf16.msra.mxu0 0
    %3461 = vmatprep.subr.bf16.mxu0 0
    %3462 = vmatpush1.bf16.msra.mxu0 0
    %3463 = vmatprep.subr.bf16.mxu0 0
    %3464 = vmatpush1.bf16.msra.mxu0 0
    %3465 = vmatprep.subr.bf16.mxu0 0
    %3466 = vmatpush1.bf16.msra.mxu0 0
    %3467 = vmatprep.subr.bf16.mxu0 0
    %3468 = vmatpush1.bf16.msra.mxu0 0
    %3469 = vmatprep.subr.bf16.mxu0 0
    %3470 = vmatpush1.bf16.msra.mxu0 0
    %3471 = vmatprep.mubr.bf16.mxu0 0
    %3472 = vmatmul.mubr.bf16.gmra.mrb[0].mxu0 %v3434
    %v3473 = vpop.f32.mrb[0].mxu0
    %v3474 = vadd.f32 0.0, %v3473
    %v3475 = vpop.f32.mrb[0].mxu0
    %v3476 = vpop.f32.mrb[0].mxu0
    %v3477 = vpop.f32.mrb[0].mxu0
    %3478 = vdwg.mxu0
    %3479 = vrot.lane.b32.xlu0 %v3368, 112
    %v3480 = vpop.permute.xlu0 %3479
    %3481 = vrot.lane.b32.xlu0 %v3368, 80
    %v3482 = vpop.permute.xlu0 %3481
    %v3484 = vsel %vm107, %v3480, 0
    %v3487 = vsel %vm107, %v3482, 0
    %3489 = vmatprep.subr.bf16.mxu0 0
    %3490 = vmatpush1.bf16.xpose.msra.mxu0 %v3487
    %3491 = vmatprep.subr.bf16.mxu0 0
    %3492 = vmatpush1.bf16.xpose.msra.mxu0 0
    %3493 = vmatprep.subr.bf16.mxu0 0
    %3494 = vmatpush1.bf16.xpose.msra.mxu0 0
    %3495 = vmatprep.subr.bf16.mxu0 0
    %3496 = vmatpush1.bf16.xpose.msra.mxu0 0
    %3497 = vmatprep.subr.bf16.mxu0 0
    %3498 = vmatpush1.bf16.xpose.msra.mxu0 0
    %3499 = vmatprep.subr.bf16.mxu0 0
    %3500 = vmatpush1.bf16.xpose.msra.mxu0 0
    %3501 = vmatprep.subr.bf16.mxu0 0
    %3502 = vmatpush1.bf16.xpose.msra.mxu0 0
    %3503 = vmatprep.subr.bf16.mxu0 0
    %3504 = vmatpush1.bf16.xpose.msra.mxu0 0
    %3505 = vmatprep.subr.bf16.mxu0 0
    %3506 = vmatpush1.bf16.xpose.msra.mxu0 0
    %3507 = vmatprep.subr.bf16.mxu0 0
    %3508 = vmatpush1.bf16.xpose.msra.mxu0 0
    %3509 = vmatprep.subr.bf16.mxu0 0
    %3510 = vmatpush1.bf16.xpose.msra.mxu0 0
    %3511 = vmatprep.subr.bf16.mxu0 0
    %3512 = vmatpush1.bf16.xpose.msra.mxu0 0
    %3513 = vmatprep.subr.bf16.mxu0 0
    %3514 = vmatpush1.bf16.xpose.msra.mxu0 0
    %3515 = vmatprep.subr.bf16.mxu0 0
    %3516 = vmatpush1.bf16.xpose.msra.mxu0 0
    %3517 = vmatprep.subr.bf16.mxu0 0
    %3518 = vmatpush1.bf16.xpose.msra.mxu0 0
    %3519 = vmatprep.subr.bf16.mxu0 0
    %3520 = vmatpush1.bf16.xpose.msra.mxu0 0
    %3521 = vmatprep.mubr.bf16.mxu0 0
    %3522 = vmatmul.mubr.bf16.gmra.mrb[0].mxu0 %v3484
    %v3523 = vpop.f32.mrb[0].mxu0
    %v3524 = vadd.f32 0.0, %v3523
    %v3525 = vpop.f32.mrb[0].mxu0
    %v3526 = vpop.f32.mrb[0].mxu0
    %v3527 = vpop.f32.mrb[0].mxu0
    %3528 = vdwg.mxu0
    %v3529 = vmul.f32 %v3524, 0.25
    %v3530 = vsel %vm510, %v3529, -inf
    %3531 = vmax.xlane.f32.xlu0 %v3530
    %v3532 = vpop.xlane.xlu0 %3531
    %v3533 = vsub.f32 %v3529, %v3532
    %v3534 = vmul.f32 %v3533, 1.442695
    %v3535 = vpow.pop %v3534
    %v3536 = vsel %vm510, %v3535, 0.0
    %3537 = vadd.xlane.f32.xlu0 %v3536
    %v3538 = vpop.xlane.xlu0 %3537
    %v3539 = vrcp.pop %v3538
    %v3540 = vmul.f32 %v3535, %v3539
    %v3541 = vpack.c.bf16 %v3540, %v3540
    %3542 = vrot.lane.b32.xlu0 %v3368, 48
    %v3543 = vpop.permute.xlu0 %3542
    %v3545 = vsel %vm510, %v3541, 0
    %v3548 = vsel %vm528, %v3543, 0
    %3550 = vmatprep.subr.bf16.mxu0 0
    %3551 = vmatpush1.bf16.msra.mxu0 %v3548
    %3552 = vmatprep.subr.bf16.mxu0 0
    %3553 = vmatpush1.bf16.msra.mxu0 0
    %3554 = vmatprep.subr.bf16.mxu0 0
    %3555 = vmatpush1.bf16.msra.mxu0 0
    %3556 = vmatprep.subr.bf16.mxu0 0
    %3557 = vmatpush1.bf16.msra.mxu0 0
    %3558 = vmatprep.subr.bf16.mxu0 0
    %3559 = vmatpush1.bf16.msra.mxu0 0
    %3560 = vmatprep.subr.bf16.mxu0 0
    %3561 = vmatpush1.bf16.msra.mxu0 0
    %3562 = vmatprep.subr.bf16.mxu0 0
    %3563 = vmatpush1.bf16.msra.mxu0 0
    %3564 = vmatprep.subr.bf16.mxu0 0
    %3565 = vmatpush1.bf16.msra.mxu0 0
    %3566 = vmatprep.subr.bf16.mxu0 0
    %3567 = vmatpush1.bf16.msra.mxu0 0
    %3568 = vmatprep.subr.bf16.mxu0 0
    %3569 = vmatpush1.bf16.msra.mxu0 0
    %3570 = vmatprep.subr.bf16.mxu0 0
    %3571 = vmatpush1.bf16.msra.mxu0 0
    %3572 = vmatprep.subr.bf16.mxu0 0
    %3573 = vmatpush1.bf16.msra.mxu0 0
    %3574 = vmatprep.subr.bf16.mxu0 0
    %3575 = vmatpush1.bf16.msra.mxu0 0
    %3576 = vmatprep.subr.bf16.mxu0 0
    %3577 = vmatpush1.bf16.msra.mxu0 0
    %3578 = vmatprep.subr.bf16.mxu0 0
    %3579 = vmatpush1.bf16.msra.mxu0 0
    %3580 = vmatprep.subr.bf16.mxu0 0
    %3581 = vmatpush1.bf16.msra.mxu0 0
    %3582 = vmatprep.mubr.bf16.mxu0 0
    %3583 = vmatmul.mubr.bf16.gmra.mrb[0].mxu0 %v3545
    %v3584 = vpop.f32.mrb[0].mxu0
    %v3585 = vadd.f32 0.0, %v3584
    %v3586 = vpop.f32.mrb[0].mxu0
    %v3587 = vpop.f32.mrb[0].mxu0
    %v3588 = vpop.f32.mrb[0].mxu0
    %3589 = vdwg.mxu0
    %3591 = vrot.lane.b32.xlu0 %v3585, 16
    %v3592 = vpop.permute.xlu0 %3591
    %v3594 = vsel %vm107, %v3474, %v3592
    %v3595 = vpack.c.bf16 %v2457, %v2457
    %3597 = vrot.lane.b32.xlu0 %v3595, 96
    %v3598 = vpop.permute.xlu0 %3597
    %v3600 = vsel %vm107, %v3595, 0
    %v3603 = vsel %vm107, %v3598, 0
    %3605 = vmatprep.subr.bf16.mxu0 0
    %3606 = vmatpush1.bf16.xpose.msra.mxu0 %v3603
    %3607 = vmatprep.subr.bf16.mxu0 0
    %3608 = vmatpush1.bf16.xpose.msra.mxu0 0
    %3609 = vmatprep.subr.bf16.mxu0 0
    %3610 = vmatpush1.bf16.xpose.msra.mxu0 0
    %3611 = vmatprep.subr.bf16.mxu0 0
    %3612 = vmatpush1.bf16.xpose.msra.mxu0 0
    %3613 = vmatprep.subr.bf16.mxu0 0
    %3614 = vmatpush1.bf16.xpose.msra.mxu0 0
    %3615 = vmatprep.subr.bf16.mxu0 0
    %3616 = vmatpush1.bf16.xpose.msra.mxu0 0
    %3617 = vmatprep.subr.bf16.mxu0 0
    %3618 = vmatpush1.bf16.xpose.msra.mxu0 0
    %3619 = vmatprep.subr.bf16.mxu0 0
    %3620 = vmatpush1.bf16.xpose.msra.mxu0 0
    %3621 = vmatprep.subr.bf16.mxu0 0
    %3622 = vmatpush1.bf16.xpose.msra.mxu0 0
    %3623 = vmatprep.subr.bf16.mxu0 0
    %3624 = vmatpush1.bf16.xpose.msra.mxu0 0
    %3625 = vmatprep.subr.bf16.mxu0 0
    %3626 = vmatpush1.bf16.xpose.msra.mxu0 0
    %3627 = vmatprep.subr.bf16.mxu0 0
    %3628 = vmatpush1.bf16.xpose.msra.mxu0 0
    %3629 = vmatprep.subr.bf16.mxu0 0
    %3630 = vmatpush1.bf16.xpose.msra.mxu0 0
    %3631 = vmatprep.subr.bf16.mxu0 0
    %3632 = vmatpush1.bf16.xpose.msra.mxu0 0
    %3633 = vmatprep.subr.bf16.mxu0 0
    %3634 = vmatpush1.bf16.xpose.msra.mxu0 0
    %3635 = vmatprep.subr.bf16.mxu0 0
    %3636 = vmatpush1.bf16.xpose.msra.mxu0 0
    %3637 = vmatprep.mubr.bf16.mxu0 0
    %3638 = vmatmul.mubr.bf16.gmra.mrb[0].mxu0 %v3600
    %v3639 = vpop.f32.mrb[0].mxu0
    %v3640 = vadd.f32 0.0, %v3639
    %v3641 = vpop.f32.mrb[0].mxu0
    %v3642 = vpop.f32.mrb[0].mxu0
    %v3643 = vpop.f32.mrb[0].mxu0
    %3644 = vdwg.mxu0
    %v3645 = vmul.f32 %v3640, 0.25
    %v3646 = vsel %vm510, %v3645, -inf
    %3647 = vmax.xlane.f32.xlu0 %v3646
    %v3648 = vpop.xlane.xlu0 %3647
    %v3649 = vsub.f32 %v3645, %v3648
    %v3650 = vmul.f32 %v3649, 1.442695
    %v3651 = vpow.pop %v3650
    %v3652 = vsel %vm510, %v3651, 0.0
    %3653 = vadd.xlane.f32.xlu0 %v3652
    %v3654 = vpop.xlane.xlu0 %3653
    %v3655 = vrcp.pop %v3654
    %v3656 = vmul.f32 %v3651, %v3655
    %v3657 = vpack.c.bf16 %v3656, %v3656
    %3658 = vrot.lane.b32.xlu0 %v3595, 64
    %v3659 = vpop.permute.xlu0 %3658
    %v3661 = vsel %vm510, %v3657, 0
    %v3664 = vsel %vm528, %v3659, 0
    %3666 = vmatprep.subr.bf16.mxu0 0
    %3667 = vmatpush1.bf16.msra.mxu0 %v3664
    %3668 = vmatprep.subr.bf16.mxu0 0
    %3669 = vmatpush1.bf16.msra.mxu0 0
    %3670 = vmatprep.subr.bf16.mxu0 0
    %3671 = vmatpush1.bf16.msra.mxu0 0
    %3672 = vmatprep.subr.bf16.mxu0 0
    %3673 = vmatpush1.bf16.msra.mxu0 0
    %3674 = vmatprep.subr.bf16.mxu0 0
    %3675 = vmatpush1.bf16.msra.mxu0 0
    %3676 = vmatprep.subr.bf16.mxu0 0
    %3677 = vmatpush1.bf16.msra.mxu0 0
    %3678 = vmatprep.subr.bf16.mxu0 0
    %3679 = vmatpush1.bf16.msra.mxu0 0
    %3680 = vmatprep.subr.bf16.mxu0 0
    %3681 = vmatpush1.bf16.msra.mxu0 0
    %3682 = vmatprep.subr.bf16.mxu0 0
    %3683 = vmatpush1.bf16.msra.mxu0 0
    %3684 = vmatprep.subr.bf16.mxu0 0
    %3685 = vmatpush1.bf16.msra.mxu0 0
    %3686 = vmatprep.subr.bf16.mxu0 0
    %3687 = vmatpush1.bf16.msra.mxu0 0
    %3688 = vmatprep.subr.bf16.mxu0 0
    %3689 = vmatpush1.bf16.msra.mxu0 0
    %3690 = vmatprep.subr.bf16.mxu0 0
    %3691 = vmatpush1.bf16.msra.mxu0 0
    %3692 = vmatprep.subr.bf16.mxu0 0
    %3693 = vmatpush1.bf16.msra.mxu0 0
    %3694 = vmatprep.subr.bf16.mxu0 0
    %3695 = vmatpush1.bf16.msra.mxu0 0
    %3696 = vmatprep.subr.bf16.mxu0 0
    %3697 = vmatpush1.bf16.msra.mxu0 0
    %3698 = vmatprep.mubr.bf16.mxu0 0
    %3699 = vmatmul.mubr.bf16.gmra.mrb[0].mxu0 %v3661
    %v3700 = vpop.f32.mrb[0].mxu0
    %v3701 = vadd.f32 0.0, %v3700
    %v3702 = vpop.f32.mrb[0].mxu0
    %v3703 = vpop.f32.mrb[0].mxu0
    %v3704 = vpop.f32.mrb[0].mxu0
    %3705 = vdwg.mxu0
    %3706 = vrot.lane.b32.xlu0 %v3595, 112
    %v3707 = vpop.permute.xlu0 %3706
    %3708 = vrot.lane.b32.xlu0 %v3595, 80
    %v3709 = vpop.permute.xlu0 %3708
    %v3711 = vsel %vm107, %v3707, 0
    %v3714 = vsel %vm107, %v3709, 0
    %3716 = vmatprep.subr.bf16.mxu0 0
    %3717 = vmatpush1.bf16.xpose.msra.mxu0 %v3714
    %3718 = vmatprep.subr.bf16.mxu0 0
    %3719 = vmatpush1.bf16.xpose.msra.mxu0 0
    %3720 = vmatprep.subr.bf16.mxu0 0
    %3721 = vmatpush1.bf16.xpose.msra.mxu0 0
    %3722 = vmatprep.subr.bf16.mxu0 0
    %3723 = vmatpush1.bf16.xpose.msra.mxu0 0
    %3724 = vmatprep.subr.bf16.mxu0 0
    %3725 = vmatpush1.bf16.xpose.msra.mxu0 0
    %3726 = vmatprep.subr.bf16.mxu0 0
    %3727 = vmatpush1.bf16.xpose.msra.mxu0 0
    %3728 = vmatprep.subr.bf16.mxu0 0
    %3729 = vmatpush1.bf16.xpose.msra.mxu0 0
    %3730 = vmatprep.subr.bf16.mxu0 0
    %3731 = vmatpush1.bf16.xpose.msra.mxu0 0
    %3732 = vmatprep.subr.bf16.mxu0 0
    %3733 = vmatpush1.bf16.xpose.msra.mxu0 0
    %3734 = vmatprep.subr.bf16.mxu0 0
    %3735 = vmatpush1.bf16.xpose.msra.mxu0 0
    %3736 = vmatprep.subr.bf16.mxu0 0
    %3737 = vmatpush1.bf16.xpose.msra.mxu0 0
    %3738 = vmatprep.subr.bf16.mxu0 0
    %3739 = vmatpush1.bf16.xpose.msra.mxu0 0
    %3740 = vmatprep.subr.bf16.mxu0 0
    %3741 = vmatpush1.bf16.xpose.msra.mxu0 0
    %3742 = vmatprep.subr.bf16.mxu0 0
    %3743 = vmatpush1.bf16.xpose.msra.mxu0 0
    %3744 = vmatprep.subr.bf16.mxu0 0
    %3745 = vmatpush1.bf16.xpose.msra.mxu0 0
    %3746 = vmatprep.subr.bf16.mxu0 0
    %3747 = vmatpush1.bf16.xpose.msra.mxu0 0
    %3748 = vmatprep.mubr.bf16.mxu0 0
    %3749 = vmatmul.mubr.bf16.gmra.mrb[0].mxu0 %v3711
    %v3750 = vpop.f32.mrb[0].mxu0
    %v3751 = vadd.f32 0.0, %v3750
    %v3752 = vpop.f32.mrb[0].mxu0
    %v3753 = vpop.f32.mrb[0].mxu0
    %v3754 = vpop.f32.mrb[0].mxu0
    %3755 = vdwg.mxu0
    %v3756 = vmul.f32 %v3751, 0.25
    %v3757 = vsel %vm510, %v3756, -inf
    %3758 = vmax.xlane.f32.xlu0 %v3757
    %v3759 = vpop.xlane.xlu0 %3758
    %v3760 = vsub.f32 %v3756, %v3759
    %v3761 = vmul.f32 %v3760, 1.442695
    %v3762 = vpow.pop %v3761
    %v3763 = vsel %vm510, %v3762, 0.0
    %3764 = vadd.xlane.f32.xlu0 %v3763
    %v3765 = vpop.xlane.xlu0 %3764
    %v3766 = vrcp.pop %v3765
    %v3767 = vmul.f32 %v3762, %v3766
    %v3768 = vpack.c.bf16 %v3767, %v3767
    %3769 = vrot.lane.b32.xlu0 %v3595, 48
    %v3770 = vpop.permute.xlu0 %3769
    %v3772 = vsel %vm510, %v3768, 0
    %v3775 = vsel %vm528, %v3770, 0
    %3777 = vmatprep.subr.bf16.mxu0 0
    %3778 = vmatpush1.bf16.msra.mxu0 %v3775
    %3779 = vmatprep.subr.bf16.mxu0 0
    %3780 = vmatpush1.bf16.msra.mxu0 0
    %3781 = vmatprep.subr.bf16.mxu0 0
    %3782 = vmatpush1.bf16.msra.mxu0 0
    %3783 = vmatprep.subr.bf16.mxu0 0
    %3784 = vmatpush1.bf16.msra.mxu0 0
    %3785 = vmatprep.subr.bf16.mxu0 0
    %3786 = vmatpush1.bf16.msra.mxu0 0
    %3787 = vmatprep.subr.bf16.mxu0 0
    %3788 = vmatpush1.bf16.msra.mxu0 0
    %3789 = vmatprep.subr.bf16.mxu0 0
    %3790 = vmatpush1.bf16.msra.mxu0 0
    %3791 = vmatprep.subr.bf16.mxu0 0
    %3792 = vmatpush1.bf16.msra.mxu0 0
    %3793 = vmatprep.subr.bf16.mxu0 0
    %3794 = vmatpush1.bf16.msra.mxu0 0
    %3795 = vmatprep.subr.bf16.mxu0 0
    %3796 = vmatpush1.bf16.msra.mxu0 0
    %3797 = vmatprep.subr.bf16.mxu0 0
    %3798 = vmatpush1.bf16.msra.mxu0 0
    %3799 = vmatprep.subr.bf16.mxu0 0
    %3800 = vmatpush1.bf16.msra.mxu0 0
    %3801 = vmatprep.subr.bf16.mxu0 0
    %3802 = vmatpush1.bf16.msra.mxu0 0
    %3803 = vmatprep.subr.bf16.mxu0 0
    %3804 = vmatpush1.bf16.msra.mxu0 0
    %3805 = vmatprep.subr.bf16.mxu0 0
    %3806 = vmatpush1.bf16.msra.mxu0 0
    %3807 = vmatprep.subr.bf16.mxu0 0
    %3808 = vmatpush1.bf16.msra.mxu0 0
    %3809 = vmatprep.mubr.bf16.mxu0 0
    %3810 = vmatmul.mubr.bf16.gmra.mrb[0].mxu0 %v3772
    %v3811 = vpop.f32.mrb[0].mxu0
    %v3812 = vadd.f32 0.0, %v3811
    %v3813 = vpop.f32.mrb[0].mxu0
    %v3814 = vpop.f32.mrb[0].mxu0
    %v3815 = vpop.f32.mrb[0].mxu0
    %3816 = vdwg.mxu0
    %3818 = vrot.lane.b32.xlu0 %v3812, 16
    %v3819 = vpop.permute.xlu0 %3818
    %v3821 = vsel %vm107, %v3701, %v3819
    %s3822 = scalar_lea.vmem %s11, 16
    %v3823 = vld [vmem:[%s3822] sm:$0xf]
    %v3824 = vld [vmem:[%s3822 + $0x4] sm:$0xf]
    %v3825 = vld [vmem:[%s3822 + $0x8] sm:$0xf]
    %v3826 = vld [vmem:[%s3822 + $0xc] sm:$0xf]
    %v3827 = vpack.c.bf16 %v2913, %v2686
    %v3828 = vpack.c.bf16 %v3367, %v3140
    %v3829 = vpack.c.bf16 %v3821, %v3594
    %s3830 = scalar_lea.vmem %s12, 1
    %v3831 = vld [vmem:[%s3830] sm:$0x1]
    %v3833 = vlaneseq
    %v3834 = vshrl.u32 %v3833, 7
    %v3835 = vsub.s32 0, %v3834
    %v3836 = vrot.slane %v3831, %v3835
    %v3842 = vunpack.c.l.b16 %v3823
    %v3843 = vunpack.c.l.b16 %v3824
    %v3844 = vunpack.c.l.b16 %v3825
    %v3845 = vunpack.c.l.b16 %v3826
    %v3846 = vpack.c.b16 %v3843, %v3842
    %v3847 = vpack.c.b16 %v3845, %v3844
    %v3851 = vsel %vm263, %v3827, 0
    %v3854 = vsel %vm263, %v3828, 0
    %v3857 = vsel %vm263, %v3829, 0
    %3859 = vmatprep.subr.bf16.mxu0 0
    %3860 = vmatpush1.bf16.msra.mxu0 %v3846
    %3861 = vmatprep.subr.bf16.mxu0 0
    %3862 = vmatpush1.bf16.msra.mxu0 %v3847
    %3863 = vmatprep.subr.bf16.mxu0 0
    %3864 = vmatpush1.bf16.msra.mxu0 0
    %3865 = vmatprep.subr.bf16.mxu0 0
    %3866 = vmatpush1.bf16.msra.mxu0 0
    %3867 = vmatprep.subr.bf16.mxu0 0
    %3868 = vmatpush1.bf16.msra.mxu0 0
    %3869 = vmatprep.subr.bf16.mxu0 0
    %3870 = vmatpush1.bf16.msra.mxu0 0
    %3871 = vmatprep.subr.bf16.mxu0 0
    %3872 = vmatpush1.bf16.msra.mxu0 0
    %3873 = vmatprep.subr.bf16.mxu0 0
    %3874 = vmatpush1.bf16.msra.mxu0 0
    %3875 = vmatprep.subr.bf16.mxu0 0
    %3876 = vmatpush1.bf16.msra.mxu0 0
    %3877 = vmatprep.subr.bf16.mxu0 0
    %3878 = vmatpush1.bf16.msra.mxu0 0
    %3879 = vmatprep.subr.bf16.mxu0 0
    %3880 = vmatpush1.bf16.msra.mxu0 0
    %3881 = vmatprep.subr.bf16.mxu0 0
    %3882 = vmatpush1.bf16.msra.mxu0 0
    %3883 = vmatprep.subr.bf16.mxu0 0
    %3884 = vmatpush1.bf16.msra.mxu0 0
    %3885 = vmatprep.subr.bf16.mxu0 0
    %3886 = vmatpush1.bf16.msra.mxu0 0
    %3887 = vmatprep.subr.bf16.mxu0 0
    %3888 = vmatpush1.bf16.msra.mxu0 0
    %3889 = vmatprep.subr.bf16.mxu0 0
    %3890 = vmatpush1.bf16.msra.mxu0 0
    %3891 = vmatprep.mubr.bf16.mxu0 0
    %3892 = vmatmul.mubr.bf16.gmra.mrb[0].mxu0 %v3851
    %v3893 = vpop.f32.mrb[0].mxu0
    %v3894 = vadd.f32 %v3836, %v3893
    %v3895 = vpop.f32.mrb[0].mxu0
    %v3896 = vpop.f32.mrb[0].mxu0
    %v3897 = vadd.f32 %v3836, %v3896
    %v3898 = vpop.f32.mrb[0].mxu0
    %3899 = vmatprep.mubr.bf16.mxu0 0
    %3900 = vmatmul.mubr.bf16.gmra.mrb[0].mxu0 %v3854
    %v3901 = vpop.f32.mrb[0].mxu0
    %v3902 = vadd.f32 %v3836, %v3901
    %v3903 = vpop.f32.mrb[0].mxu0
    %v3904 = vpop.f32.mrb[0].mxu0
    %v3905 = vadd.f32 %v3836, %v3904
    %v3906 = vpop.f32.mrb[0].mxu0
    %3907 = vmatprep.mubr.bf16.mxu0 0
    %3908 = vmatmul.mubr.bf16.gmra.mrb[0].mxu0 %v3857
    %v3909 = vpop.f32.mrb[0].mxu0
    %v3910 = vadd.f32 %v3836, %v3909
    %v3911 = vpop.f32.mrb[0].mxu0
    %v3912 = vpop.f32.mrb[0].mxu0
    %v3913 = vadd.f32 %v3836, %v3912
    %v3914 = vpop.f32.mrb[0].mxu0
    %3915 = vdwg.mxu0
    %v3916 = vadd.f32 %v3894, %v2360
    %v3917 = vadd.f32 %v3897, %v2361
    %v3918 = vadd.f32 %v3902, %v2362
    %v3919 = vadd.f32 %v3905, %v2363
    %v3920 = vadd.f32 %v3910, %v2364
    %v3921 = vadd.f32 %v3913, %v2365
    %s3922 = scalar_lea.vmem %s13, 1
    %v3923 = vld [vmem:[%s3922] sm:$0x1]
    %s3924 = scalar_lea.vmem %s14, 1
    %v3925 = vld [vmem:[%s3924] sm:$0x1]
    %v3926 = vsel %vm263, %v3916, 0.0
    %3927 = vadd.xlane.f32.xlu0 %v3926
    %v3928 = vpop.xlane.xlu0 %3927
    %v3929 = vsel %vm263, %v3917, 0.0
    %3930 = vadd.xlane.f32.xlu0 %v3929
    %v3931 = vpop.xlane.xlu0 %3930
    %v3932 = vsel %vm263, %v3918, 0.0
    %3933 = vadd.xlane.f32.xlu0 %v3932
    %v3934 = vpop.xlane.xlu0 %3933
    %v3935 = vsel %vm263, %v3919, 0.0
    %3936 = vadd.xlane.f32.xlu0 %v3935
    %v3937 = vpop.xlane.xlu0 %3936
    %v3938 = vsel %vm263, %v3920, 0.0
    %3939 = vadd.xlane.f32.xlu0 %v3938
    %v3940 = vpop.xlane.xlu0 %3939
    %v3941 = vsel %vm263, %v3921, 0.0
    %3942 = vadd.xlane.f32.xlu0 %v3941
    %v3943 = vpop.xlane.xlu0 %3942
    %v3944 = vmul.f32 %v3928, %v282
    %v3945 = vmul.f32 %v3931, %v282
    %v3946 = vmul.f32 %v3934, %v282
    %v3947 = vmul.f32 %v3937, %v282
    %v3948 = vmul.f32 %v3940, %v282
    %v3949 = vmul.f32 %v3943, %v282
    %v3950 = vsub.f32 %v3916, %v3944
    %v3951 = vsub.f32 %v3917, %v3945
    %v3952 = vsub.f32 %v3918, %v3946
    %v3953 = vsub.f32 %v3919, %v3947
    %v3954 = vsub.f32 %v3920, %v3948
    %v3955 = vsub.f32 %v3921, %v3949
    %v3956 = vmul.f32 %v3950, %v3950
    %v3957 = vmul.f32 %v3951, %v3951
    %v3958 = vmul.f32 %v3952, %v3952
    %v3959 = vmul.f32 %v3953, %v3953
    %v3960 = vmul.f32 %v3954, %v3954
    %v3961 = vmul.f32 %v3955, %v3955
    %v3962 = vsel %vm263, %v3956, 0.0
    %3963 = vadd.xlane.f32.xlu0 %v3962
    %v3964 = vpop.xlane.xlu0 %3963
    %v3965 = vsel %vm263, %v3957, 0.0
    %3966 = vadd.xlane.f32.xlu0 %v3965
    %v3967 = vpop.xlane.xlu0 %3966
    %v3968 = vsel %vm263, %v3958, 0.0
    %3969 = vadd.xlane.f32.xlu0 %v3968
    %v3970 = vpop.xlane.xlu0 %3969
    %v3971 = vsel %vm263, %v3959, 0.0
    %3972 = vadd.xlane.f32.xlu0 %v3971
    %v3973 = vpop.xlane.xlu0 %3972
    %v3974 = vsel %vm263, %v3960, 0.0
    %3975 = vadd.xlane.f32.xlu0 %v3974
    %v3976 = vpop.xlane.xlu0 %3975
    %v3977 = vsel %vm263, %v3961, 0.0
    %3978 = vadd.xlane.f32.xlu0 %v3977
    %v3979 = vpop.xlane.xlu0 %3978
    %v3980 = vmul.f32 %v3964, %v282
    %v3981 = vmul.f32 %v3967, %v282
    %v3982 = vmul.f32 %v3970, %v282
    %v3983 = vmul.f32 %v3973, %v282
    %v3984 = vmul.f32 %v3976, %v282
    %v3985 = vmul.f32 %v3979, %v282
    %v3986 = vadd.f32 %v3980, 1e-05
    %v3987 = vadd.f32 %v3981, 1e-05
    %v3988 = vadd.f32 %v3982, 1e-05
    %v3989 = vadd.f32 %v3983, 1e-05
    %v3990 = vadd.f32 %v3984, 1e-05
    %v3991 = vadd.f32 %v3985, 1e-05
    %v3992 = vrsqrt.pop %v3986
    %v3993 = vrsqrt.pop %v3987
    %v3994 = vrsqrt.pop %v3988
    %v3995 = vrsqrt.pop %v3989
    %v3996 = vrsqrt.pop %v3990
    %v3997 = vrsqrt.pop %v3991
    %v3998 = vmul.f32 %v3950, %v3992
    %v3999 = vmul.f32 %v3951, %v3993
    %v4000 = vmul.f32 %v3952, %v3994
    %v4001 = vmul.f32 %v3953, %v3995
    %v4002 = vmul.f32 %v3954, %v3996
    %v4003 = vmul.f32 %v3955, %v3997
    %v4005 = vlaneseq
    %v4006 = vshrl.u32 %v4005, 7
    %v4007 = vsub.s32 0, %v4006
    %v4008 = vrot.slane %v3923, %v4007
    %v4010 = vmul.f32 %v3998, %v4008
    %v4011 = vmul.f32 %v3999, %v4008
    %v4012 = vmul.f32 %v4000, %v4008
    %v4013 = vmul.f32 %v4001, %v4008
    %v4014 = vmul.f32 %v4002, %v4008
    %v4015 = vmul.f32 %v4003, %v4008
    %v4017 = vlaneseq
    %v4018 = vshrl.u32 %v4017, 7
    %v4019 = vsub.s32 0, %v4018
    %v4020 = vrot.slane %v3925, %v4019
    %v4022 = vadd.f32 %v4010, %v4020
    %v4023 = vadd.f32 %v4011, %v4020
    %v4024 = vadd.f32 %v4012, %v4020
    %v4025 = vadd.f32 %v4013, %v4020
    %v4026 = vadd.f32 %v4014, %v4020
    %v4027 = vadd.f32 %v4015, %v4020
    %s4028 = scalar_lea.vmem %s15, 16
    %v4029 = vld [vmem:[%s4028] sm:$0xf]
    %v4030 = vld [vmem:[%s4028 + $0x4] sm:$0xf]
    %v4031 = vld [vmem:[%s4028 + $0x8] sm:$0xf]
    %v4032 = vld [vmem:[%s4028 + $0xc] sm:$0xf]
    %v4033 = vpack.c.bf16 %v4023, %v4022
    %v4034 = vpack.c.bf16 %v4025, %v4024
    %v4035 = vpack.c.bf16 %v4027, %v4026
    %s4036 = scalar_lea.vmem %s16, 1
    %v4037 = vld [vmem:[%s4036] sm:$0x1]
    %v4039 = vlaneseq
    %v4040 = vshrl.u32 %v4039, 7
    %v4041 = vsub.s32 0, %v4040
    %v4042 = vrot.slane %v4037, %v4041
    %v4048 = vunpack.c.l.b16 %v4029
    %v4049 = vunpack.c.l.b16 %v4030
    %v4050 = vunpack.c.l.b16 %v4031
    %v4051 = vunpack.c.l.b16 %v4032
    %v4052 = vpack.c.b16 %v4049, %v4048
    %v4053 = vpack.c.b16 %v4051, %v4050
    %v4057 = vsel %vm263, %v4033, 0
    %v4060 = vsel %vm263, %v4034, 0
    %v4063 = vsel %vm263, %v4035, 0
    %4065 = vmatprep.subr.bf16.mxu0 0
    %4066 = vmatpush1.bf16.msra.mxu0 %v4052
    %4067 = vmatprep.subr.bf16.mxu0 0
    %4068 = vmatpush1.bf16.msra.mxu0 %v4053
    %4069 = vmatprep.subr.bf16.mxu0 0
    %4070 = vmatpush1.bf16.msra.mxu0 0
    %4071 = vmatprep.subr.bf16.mxu0 0
    %4072 = vmatpush1.bf16.msra.mxu0 0
    %4073 = vmatprep.subr.bf16.mxu0 0
    %4074 = vmatpush1.bf16.msra.mxu0 0
    %4075 = vmatprep.subr.bf16.mxu0 0
    %4076 = vmatpush1.bf16.msra.mxu0 0
    %4077 = vmatprep.subr.bf16.mxu0 0
    %4078 = vmatpush1.bf16.msra.mxu0 0
    %4079 = vmatprep.subr.bf16.mxu0 0
    %4080 = vmatpush1.bf16.msra.mxu0 0
    %4081 = vmatprep.subr.bf16.mxu0 0
    %4082 = vmatpush1.bf16.msra.mxu0 0
    %4083 = vmatprep.subr.bf16.mxu0 0
    %4084 = vmatpush1.bf16.msra.mxu0 0
    %4085 = vmatprep.subr.bf16.mxu0 0
    %4086 = vmatpush1.bf16.msra.mxu0 0
    %4087 = vmatprep.subr.bf16.mxu0 0
    %4088 = vmatpush1.bf16.msra.mxu0 0
    %4089 = vmatprep.subr.bf16.mxu0 0
    %4090 = vmatpush1.bf16.msra.mxu0 0
    %4091 = vmatprep.subr.bf16.mxu0 0
    %4092 = vmatpush1.bf16.msra.mxu0 0
    %4093 = vmatprep.subr.bf16.mxu0 0
    %4094 = vmatpush1.bf16.msra.mxu0 0
    %4095 = vmatprep.subr.bf16.mxu0 0
    %4096 = vmatpush1.bf16.msra.mxu0 0
    %4097 = vmatprep.mubr.bf16.mxu0 0
    %4098 = vmatmul.mubr.bf16.gmra.mrb[0].mxu0 %v4057
    %v4099 = vpop.f32.mrb[0].mxu0
    %v4100 = vadd.f32 %v4042, %v4099
    %v4101 = vpop.f32.mrb[0].mxu0
    %v4102 = vpop.f32.mrb[0].mxu0
    %v4103 = vadd.f32 %v4042, %v4102
    %v4104 = vpop.f32.mrb[0].mxu0
    %4105 = vmatprep.mubr.bf16.mxu0 0
    %4106 = vmatmul.mubr.bf16.gmra.mrb[0].mxu0 %v4060
    %v4107 = vpop.f32.mrb[0].mxu0
    %v4108 = vadd.f32 %v4042, %v4107
    %v4109 = vpop.f32.mrb[0].mxu0
    %v4110 = vpop.f32.mrb[0].mxu0
    %v4111 = vadd.f32 %v4042, %v4110
    %v4112 = vpop.f32.mrb[0].mxu0
    %4113 = vmatprep.mubr.bf16.mxu0 0
    %4114 = vmatmul.mubr.bf16.gmra.mrb[0].mxu0 %v4063
    %v4115 = vpop.f32.mrb[0].mxu0
    %v4116 = vadd.f32 %v4042, %v4115
    %v4117 = vpop.f32.mrb[0].mxu0
    %v4118 = vpop.f32.mrb[0].mxu0
    %v4119 = vadd.f32 %v4042, %v4118
    %v4120 = vpop.f32.mrb[0].mxu0
    %4121 = vdwg.mxu0
    %v4122 = vmul.f32 %v4100, 0.5
    %v4123 = vmul.f32 %v4103, 0.5
    %v4124 = vmul.f32 %v4108, 0.5
    %v4125 = vmul.f32 %v4111, 0.5
    %v4126 = vmul.f32 %v4116, 0.5
    %v4127 = vmul.f32 %v4119, 0.5
    %v4128 = vmul.f32 %v4100, 0.70710677
    %v4129 = vmul.f32 %v4103, 0.70710677
    %v4130 = vmul.f32 %v4108, 0.70710677
    %v4131 = vmul.f32 %v4111, 0.70710677
    %v4132 = vmul.f32 %v4116, 0.70710677
    %v4133 = vmul.f32 %v4119, 0.70710677
    %v4134 = verf.f32.pop %v4128
    %v4135 = verf.f32.pop %v4129
    %v4136 = verf.f32.pop %v4130
    %v4137 = verf.f32.pop %v4131
    %v4138 = verf.f32.pop %v4132
    %v4139 = verf.f32.pop %v4133
    %v4140 = vadd.f32 %v4134, 1.0
    %v4141 = vadd.f32 %v4135, 1.0
    %v4142 = vadd.f32 %v4136, 1.0
    %v4143 = vadd.f32 %v4137, 1.0
    %v4144 = vadd.f32 %v4138, 1.0
    %v4145 = vadd.f32 %v4139, 1.0
    %v4146 = vmul.f32 %v4122, %v4140
    %v4147 = vmul.f32 %v4123, %v4141
    %v4148 = vmul.f32 %v4124, %v4142
    %v4149 = vmul.f32 %v4125, %v4143
    %v4150 = vmul.f32 %v4126, %v4144
    %v4151 = vmul.f32 %v4127, %v4145
    %s4152 = scalar_lea.vmem %s17, 32
    %v4153 = vld [vmem:[%s4152] sm:$0xf]
    %v4154 = vld [vmem:[%s4152 + $0x4] sm:$0xf]
    %v4155 = vld [vmem:[%s4152 + $0x8] sm:$0xf]
    %v4156 = vld [vmem:[%s4152 + $0xc] sm:$0xf]
    %v4157 = vld [vmem:[%s4152 + $0x10] sm:$0xf]
    %v4158 = vld [vmem:[%s4152 + $0x14] sm:$0xf]
    %v4159 = vld [vmem:[%s4152 + $0x18] sm:$0xf]
    %v4160 = vld [vmem:[%s4152 + $0x1c] sm:$0xf]
    %v4161 = vpack.c.bf16 %v4147, %v4146
    %v4162 = vpack.c.bf16 %v4149, %v4148
    %v4163 = vpack.c.bf16 %v4151, %v4150
    %s4164 = scalar_lea.vmem %s18, 1
    %v4165 = vld [vmem:[%s4164] sm:$0x1]
    %v4167 = vlaneseq
    %v4168 = vshrl.u32 %v4167, 7
    %v4169 = vsub.s32 0, %v4168
    %v4170 = vrot.slane %v4165, %v4169
    %v4180 = vunpack.c.l.b16 %v4153
    %v4181 = vunpack.c.l.b16 %v4154
    %v4182 = vunpack.c.l.b16 %v4155
    %v4183 = vunpack.c.l.b16 %v4156
    %v4184 = vunpack.c.l.b16 %v4157
    %v4185 = vunpack.c.l.b16 %v4158
    %v4186 = vunpack.c.l.b16 %v4159
    %v4187 = vunpack.c.l.b16 %v4160
    %v4188 = vpack.c.b16 %v4181, %v4180
    %v4189 = vpack.c.b16 %v4183, %v4182
    %v4190 = vpack.c.b16 %v4185, %v4184
    %v4191 = vpack.c.b16 %v4187, %v4186
    %v4197 = vsel %vm2189, %v4161, 0
    %v4200 = vsel %vm2189, %v4162, 0
    %v4203 = vsel %vm2189, %v4163, 0
    %4205 = vmatprep.subr.bf16.mxu0 0
    %4206 = vmatpush1.bf16.msra.mxu0 %v4188
    %4207 = vmatprep.subr.bf16.mxu0 0
    %4208 = vmatpush1.bf16.msra.mxu0 %v4189
    %4209 = vmatprep.subr.bf16.mxu0 0
    %4210 = vmatpush1.bf16.msra.mxu0 %v4190
    %4211 = vmatprep.subr.bf16.mxu0 0
    %4212 = vmatpush1.bf16.msra.mxu0 %v4191
    %4213 = vmatprep.subr.bf16.mxu0 0
    %4214 = vmatpush1.bf16.msra.mxu0 0
    %4215 = vmatprep.subr.bf16.mxu0 0
    %4216 = vmatpush1.bf16.msra.mxu0 0
    %4217 = vmatprep.subr.bf16.mxu0 0
    %4218 = vmatpush1.bf16.msra.mxu0 0
    %4219 = vmatprep.subr.bf16.mxu0 0
    %4220 = vmatpush1.bf16.msra.mxu0 0
    %4221 = vmatprep.subr.bf16.mxu0 0
    %4222 = vmatpush1.bf16.msra.mxu0 0
    %4223 = vmatprep.subr.bf16.mxu0 0
    %4224 = vmatpush1.bf16.msra.mxu0 0
    %4225 = vmatprep.subr.bf16.mxu0 0
    %4226 = vmatpush1.bf16.msra.mxu0 0
    %4227 = vmatprep.subr.bf16.mxu0 0
    %4228 = vmatpush1.bf16.msra.mxu0 0
    %4229 = vmatprep.subr.bf16.mxu0 0
    %4230 = vmatpush1.bf16.msra.mxu0 0
    %4231 = vmatprep.subr.bf16.mxu0 0
    %4232 = vmatpush1.bf16.msra.mxu0 0
    %4233 = vmatprep.subr.bf16.mxu0 0
    %4234 = vmatpush1.bf16.msra.mxu0 0
    %4235 = vmatprep.subr.bf16.mxu0 0
    %4236 = vmatpush1.bf16.msra.mxu0 0
    %4237 = vmatprep.mubr.bf16.mxu0 0
    %4238 = vmatmul.mubr.bf16.gmra.mrb[0].mxu0 %v4197
    %v4239 = vpop.f32.mrb[0].mxu0
    %v4240 = vadd.f32 %v4170, %v4239
    %v4241 = vpop.f32.mrb[0].mxu0
    %v4242 = vpop.f32.mrb[0].mxu0
    %v4243 = vadd.f32 %v4170, %v4242
    %v4244 = vpop.f32.mrb[0].mxu0
    %4245 = vmatprep.mubr.bf16.mxu0 0
    %4246 = vmatmul.mubr.bf16.gmra.mrb[0].mxu0 %v4200
    %v4247 = vpop.f32.mrb[0].mxu0
    %v4248 = vadd.f32 %v4170, %v4247
    %v4249 = vpop.f32.mrb[0].mxu0
    %v4250 = vpop.f32.mrb[0].mxu0
    %v4251 = vadd.f32 %v4170, %v4250
    %v4252 = vpop.f32.mrb[0].mxu0
    %4253 = vmatprep.mubr.bf16.mxu0 0
    %4254 = vmatmul.mubr.bf16.gmra.mrb[0].mxu0 %v4203
    %v4255 = vpop.f32.mrb[0].mxu0
    %v4256 = vadd.f32 %v4170, %v4255
    %v4257 = vpop.f32.mrb[0].mxu0
    %v4258 = vpop.f32.mrb[0].mxu0
    %v4259 = vadd.f32 %v4170, %v4258
    %v4260 = vpop.f32.mrb[0].mxu0
    %4261 = vdwg.mxu0
    %v4262 = vadd.f32 %v4240, %v4022
    %v4263 = vadd.f32 %v4243, %v4023
    %v4264 = vadd.f32 %v4248, %v4024
    %v4265 = vadd.f32 %v4251, %v4025
    %v4266 = vadd.f32 %v4256, %v4026
    %v4267 = vadd.f32 %v4259, %v4027
    %s4268 = scalar_lea.vmem %s19, 1
    %v4269 = vld [vmem:[%s4268] sm:$0x1]
    %s4270 = scalar_lea.vmem %s20, 1
    %v4271 = vld [vmem:[%s4270] sm:$0x1]
    %v4272 = vsel %vm263, %v4262, 0.0
    %4273 = vadd.xlane.f32.xlu0 %v4272
    %v4274 = vpop.xlane.xlu0 %4273
    %v4275 = vsel %vm263, %v4263, 0.0
    %4276 = vadd.xlane.f32.xlu0 %v4275
    %v4277 = vpop.xlane.xlu0 %4276
    %v4278 = vsel %vm263, %v4264, 0.0
    %4279 = vadd.xlane.f32.xlu0 %v4278
    %v4280 = vpop.xlane.xlu0 %4279
    %v4281 = vsel %vm263, %v4265, 0.0
    %4282 = vadd.xlane.f32.xlu0 %v4281
    %v4283 = vpop.xlane.xlu0 %4282
    %v4284 = vsel %vm263, %v4266, 0.0
    %4285 = vadd.xlane.f32.xlu0 %v4284
    %v4286 = vpop.xlane.xlu0 %4285
    %v4287 = vsel %vm263, %v4267, 0.0
    %4288 = vadd.xlane.f32.xlu0 %v4287
    %v4289 = vpop.xlane.xlu0 %4288
    %v4290 = vmul.f32 %v4274, %v282
    %v4291 = vmul.f32 %v4277, %v282
    %v4292 = vmul.f32 %v4280, %v282
    %v4293 = vmul.f32 %v4283, %v282
    %v4294 = vmul.f32 %v4286, %v282
    %v4295 = vmul.f32 %v4289, %v282
    %v4296 = vsub.f32 %v4262, %v4290
    %v4297 = vsub.f32 %v4263, %v4291
    %v4298 = vsub.f32 %v4264, %v4292
    %v4299 = vsub.f32 %v4265, %v4293
    %v4300 = vsub.f32 %v4266, %v4294
    %v4301 = vsub.f32 %v4267, %v4295
    %v4302 = vmul.f32 %v4296, %v4296
    %v4303 = vmul.f32 %v4297, %v4297
    %v4304 = vmul.f32 %v4298, %v4298
    %v4305 = vmul.f32 %v4299, %v4299
    %v4306 = vmul.f32 %v4300, %v4300
    %v4307 = vmul.f32 %v4301, %v4301
    %v4308 = vsel %vm263, %v4302, 0.0
    %4309 = vadd.xlane.f32.xlu0 %v4308
    %v4310 = vpop.xlane.xlu0 %4309
    %v4311 = vsel %vm263, %v4303, 0.0
    %4312 = vadd.xlane.f32.xlu0 %v4311
    %v4313 = vpop.xlane.xlu0 %4312
    %v4314 = vsel %vm263, %v4304, 0.0
    %4315 = vadd.xlane.f32.xlu0 %v4314
    %v4316 = vpop.xlane.xlu0 %4315
    %v4317 = vsel %vm263, %v4305, 0.0
    %4318 = vadd.xlane.f32.xlu0 %v4317
    %v4319 = vpop.xlane.xlu0 %4318
    %v4320 = vsel %vm263, %v4306, 0.0
    %4321 = vadd.xlane.f32.xlu0 %v4320
    %v4322 = vpop.xlane.xlu0 %4321
    %v4323 = vsel %vm263, %v4307, 0.0
    %4324 = vadd.xlane.f32.xlu0 %v4323
    %v4325 = vpop.xlane.xlu0 %4324
    %v4326 = vmul.f32 %v4310, %v282
    %v4327 = vmul.f32 %v4313, %v282
    %v4328 = vmul.f32 %v4316, %v282
    %v4329 = vmul.f32 %v4319, %v282
    %v4330 = vmul.f32 %v4322, %v282
    %v4331 = vmul.f32 %v4325, %v282
    %v4332 = vadd.f32 %v4326, 1e-05
    %v4333 = vadd.f32 %v4327, 1e-05
    %v4334 = vadd.f32 %v4328, 1e-05
    %v4335 = vadd.f32 %v4329, 1e-05
    %v4336 = vadd.f32 %v4330, 1e-05
    %v4337 = vadd.f32 %v4331, 1e-05
    %v4338 = vrsqrt.pop %v4332
    %v4339 = vrsqrt.pop %v4333
    %v4340 = vrsqrt.pop %v4334
    %v4341 = vrsqrt.pop %v4335
    %v4342 = vrsqrt.pop %v4336
    %v4343 = vrsqrt.pop %v4337
    %v4344 = vmul.f32 %v4296, %v4338
    %v4345 = vmul.f32 %v4297, %v4339
    %v4346 = vmul.f32 %v4298, %v4340
    %v4347 = vmul.f32 %v4299, %v4341
    %v4348 = vmul.f32 %v4300, %v4342
    %v4349 = vmul.f32 %v4301, %v4343
    %v4351 = vlaneseq
    %v4352 = vshrl.u32 %v4351, 7
    %v4353 = vsub.s32 0, %v4352
    %v4354 = vrot.slane %v4269, %v4353
    %v4356 = vmul.f32 %v4344, %v4354
    %v4357 = vmul.f32 %v4345, %v4354
    %v4358 = vmul.f32 %v4346, %v4354
    %v4359 = vmul.f32 %v4347, %v4354
    %v4360 = vmul.f32 %v4348, %v4354
    %v4361 = vmul.f32 %v4349, %v4354
    %v4363 = vlaneseq
    %v4364 = vshrl.u32 %v4363, 7
    %v4365 = vsub.s32 0, %v4364
    %v4366 = vrot.slane %v4271, %v4365
    %v4368 = vadd.f32 %v4356, %v4366
    %v4369 = vadd.f32 %v4357, %v4366
    %v4370 = vadd.f32 %v4358, %v4366
    %v4371 = vadd.f32 %v4359, %v4366
    %v4372 = vadd.f32 %v4360, %v4366
    %v4373 = vadd.f32 %v4361, %v4366
    %v4374 = vld [vmem:[%s21] sm:$0xf]
    %v4375 = vld [vmem:[%s21 + $0x4] sm:$0xf]
    %v4376 = vld [vmem:[%s21 + $0x8] sm:$0xf]
    %v4377 = vld [vmem:[%s21 + $0xc] sm:$0xf]
    %v4378 = vpack.c.bf16 %v4369, %v4368
    %v4379 = vpack.c.bf16 %v4371, %v4370
    %v4380 = vpack.c.bf16 %v4373, %v4372
    %v4381 = vld [vmem:[%s22] sm:$0x1]
    %v4383 = vlaneseq
    %v4384 = vshrl.u32 %v4383, 7
    %v4385 = vsub.s32 0, %v4384
    %v4386 = vrot.slane %v4381, %v4385
    %v4392 = vunpack.c.l.b16 %v4374
    %v4393 = vunpack.c.l.b16 %v4375
    %v4394 = vunpack.c.l.b16 %v4376
    %v4395 = vunpack.c.l.b16 %v4377
    %v4396 = vpack.c.b16 %v4393, %v4392
    %v4397 = vpack.c.b16 %v4395, %v4394
    %v4401 = vsel %vm263, %v4378, 0
    %v4404 = vsel %vm263, %v4379, 0
    %v4407 = vsel %vm263, %v4380, 0
    %4409 = vmatprep.subr.bf16.mxu0 0
    %4410 = vmatpush1.bf16.msra.mxu0 %v4396
    %4411 = vmatprep.subr.bf16.mxu0 0
    %4412 = vmatpush1.bf16.msra.mxu0 %v4397
    %4413 = vmatprep.subr.bf16.mxu0 0
    %4414 = vmatpush1.bf16.msra.mxu0 0
    %4415 = vmatprep.subr.bf16.mxu0 0
    %4416 = vmatpush1.bf16.msra.mxu0 0
    %4417 = vmatprep.subr.bf16.mxu0 0
    %4418 = vmatpush1.bf16.msra.mxu0 0
    %4419 = vmatprep.subr.bf16.mxu0 0
    %4420 = vmatpush1.bf16.msra.mxu0 0
    %4421 = vmatprep.subr.bf16.mxu0 0
    %4422 = vmatpush1.bf16.msra.mxu0 0
    %4423 = vmatprep.subr.bf16.mxu0 0
    %4424 = vmatpush1.bf16.msra.mxu0 0
    %4425 = vmatprep.subr.bf16.mxu0 0
    %4426 = vmatpush1.bf16.msra.mxu0 0
    %4427 = vmatprep.subr.bf16.mxu0 0
    %4428 = vmatpush1.bf16.msra.mxu0 0
    %4429 = vmatprep.subr.bf16.mxu0 0
    %4430 = vmatpush1.bf16.msra.mxu0 0
    %4431 = vmatprep.subr.bf16.mxu0 0
    %4432 = vmatpush1.bf16.msra.mxu0 0
    %4433 = vmatprep.subr.bf16.mxu0 0
    %4434 = vmatpush1.bf16.msra.mxu0 0
    %4435 = vmatprep.subr.bf16.mxu0 0
    %4436 = vmatpush1.bf16.msra.mxu0 0
    %4437 = vmatprep.subr.bf16.mxu0 0
    %4438 = vmatpush1.bf16.msra.mxu0 0
    %4439 = vmatprep.subr.bf16.mxu0 0
    %4440 = vmatpush1.bf16.msra.mxu0 0
    %4441 = vmatprep.mubr.bf16.mxu0 0
    %4442 = vmatmul.mubr.bf16.gmra.mrb[0].mxu0 %v4401
    %v4443 = vpop.f32.mrb[0].mxu0
    %v4444 = vadd.f32 %v4386, %v4443
    %v4445 = vpop.f32.mrb[0].mxu0
    %v4446 = vpop.f32.mrb[0].mxu0
    %v4447 = vadd.f32 %v4386, %v4446
    %v4448 = vpop.f32.mrb[0].mxu0
    %4449 = vmatprep.mubr.bf16.mxu0 0
    %4450 = vmatmul.mubr.bf16.gmra.mrb[0].mxu0 %v4404
    %v4451 = vpop.f32.mrb[0].mxu0
    %v4452 = vadd.f32 %v4386, %v4451
    %v4453 = vpop.f32.mrb[0].mxu0
    %v4454 = vpop.f32.mrb[0].mxu0
    %v4455 = vadd.f32 %v4386, %v4454
    %v4456 = vpop.f32.mrb[0].mxu0
    %4457 = vmatprep.mubr.bf16.mxu0 0
    %4458 = vmatmul.mubr.bf16.gmra.mrb[0].mxu0 %v4407
    %v4459 = vpop.f32.mrb[0].mxu0
    %v4460 = vadd.f32 %v4386, %v4459
    %v4461 = vpop.f32.mrb[0].mxu0
    %v4462 = vpop.f32.mrb[0].mxu0
    %v4463 = vadd.f32 %v4386, %v4462
    %v4464 = vpop.f32.mrb[0].mxu0
    %4465 = vdwg.mxu0
    %v4466 = vmul.f32 %v4444, 0.5
    %v4467 = vmul.f32 %v4447, 0.5
    %v4468 = vmul.f32 %v4452, 0.5
    %v4469 = vmul.f32 %v4455, 0.5
    %v4470 = vmul.f32 %v4460, 0.5
    %v4471 = vmul.f32 %v4463, 0.5
    %v4472 = vmul.f32 %v4444, 0.70710677
    %v4473 = vmul.f32 %v4447, 0.70710677
    %v4474 = vmul.f32 %v4452, 0.70710677
    %v4475 = vmul.f32 %v4455, 0.70710677
    %v4476 = vmul.f32 %v4460, 0.70710677
    %v4477 = vmul.f32 %v4463, 0.70710677
    %v4478 = verf.f32.pop %v4472
    %v4479 = verf.f32.pop %v4473
    %v4480 = verf.f32.pop %v4474
    %v4481 = verf.f32.pop %v4475
    %v4482 = verf.f32.pop %v4476
    %v4483 = verf.f32.pop %v4477
    %v4484 = vadd.f32 %v4478, 1.0
    %v4485 = vadd.f32 %v4479, 1.0
    %v4486 = vadd.f32 %v4480, 1.0
    %v4487 = vadd.f32 %v4481, 1.0
    %v4488 = vadd.f32 %v4482, 1.0
    %v4489 = vadd.f32 %v4483, 1.0
    %v4490 = vmul.f32 %v4466, %v4484
    %v4491 = vmul.f32 %v4467, %v4485
    %v4492 = vmul.f32 %v4468, %v4486
    %v4493 = vmul.f32 %v4469, %v4487
    %v4494 = vmul.f32 %v4470, %v4488
    %v4495 = vmul.f32 %v4471, %v4489
    %v4496 = vld [vmem:[%s23] sm:$0x1]
    %v4497 = vld [vmem:[%s24] sm:$0x1]
    %v4498 = vsel %vm263, %v4490, 0.0
    %4499 = vadd.xlane.f32.xlu0 %v4498
    %v4500 = vpop.xlane.xlu0 %4499
    %v4501 = vsel %vm263, %v4491, 0.0
    %4502 = vadd.xlane.f32.xlu0 %v4501
    %v4503 = vpop.xlane.xlu0 %4502
    %v4504 = vsel %vm263, %v4492, 0.0
    %4505 = vadd.xlane.f32.xlu0 %v4504
    %v4506 = vpop.xlane.xlu0 %4505
    %v4507 = vsel %vm263, %v4493, 0.0
    %4508 = vadd.xlane.f32.xlu0 %v4507
    %v4509 = vpop.xlane.xlu0 %4508
    %v4510 = vsel %vm263, %v4494, 0.0
    %4511 = vadd.xlane.f32.xlu0 %v4510
    %v4512 = vpop.xlane.xlu0 %4511
    %v4513 = vsel %vm263, %v4495, 0.0
    %4514 = vadd.xlane.f32.xlu0 %v4513
    %v4515 = vpop.xlane.xlu0 %4514
    %v4516 = vmul.f32 %v4500, %v282
    %v4517 = vmul.f32 %v4503, %v282
    %v4518 = vmul.f32 %v4506, %v282
    %v4519 = vmul.f32 %v4509, %v282
    %v4520 = vmul.f32 %v4512, %v282
    %v4521 = vmul.f32 %v4515, %v282
    %v4522 = vsub.f32 %v4490, %v4516
    %v4523 = vsub.f32 %v4491, %v4517
    %v4524 = vsub.f32 %v4492, %v4518
    %v4525 = vsub.f32 %v4493, %v4519
    %v4526 = vsub.f32 %v4494, %v4520
    %v4527 = vsub.f32 %v4495, %v4521
    %v4528 = vmul.f32 %v4522, %v4522
    %v4529 = vmul.f32 %v4523, %v4523
    %v4530 = vmul.f32 %v4524, %v4524
    %v4531 = vmul.f32 %v4525, %v4525
    %v4532 = vmul.f32 %v4526, %v4526
    %v4533 = vmul.f32 %v4527, %v4527
    %v4534 = vsel %vm263, %v4528, 0.0
    %4535 = vadd.xlane.f32.xlu0 %v4534
    %v4536 = vpop.xlane.xlu0 %4535
    %v4537 = vsel %vm263, %v4529, 0.0
    %4538 = vadd.xlane.f32.xlu0 %v4537
    %v4539 = vpop.xlane.xlu0 %4538
    %v4540 = vsel %vm263, %v4530, 0.0
    %4541 = vadd.xlane.f32.xlu0 %v4540
    %v4542 = vpop.xlane.xlu0 %4541
    %v4543 = vsel %vm263, %v4531, 0.0
    %4544 = vadd.xlane.f32.xlu0 %v4543
    %v4545 = vpop.xlane.xlu0 %4544
    %v4546 = vsel %vm263, %v4532, 0.0
    %4547 = vadd.xlane.f32.xlu0 %v4546
    %v4548 = vpop.xlane.xlu0 %4547
    %v4549 = vsel %vm263, %v4533, 0.0
    %4550 = vadd.xlane.f32.xlu0 %v4549
    %v4551 = vpop.xlane.xlu0 %4550
    %v4552 = vmul.f32 %v4536, %v282
    %v4553 = vmul.f32 %v4539, %v282
    %v4554 = vmul.f32 %v4542, %v282
    %v4555 = vmul.f32 %v4545, %v282
    %v4556 = vmul.f32 %v4548, %v282
    %v4557 = vmul.f32 %v4551, %v282
    %v4558 = vadd.f32 %v4552, 1e-05
    %v4559 = vadd.f32 %v4553, 1e-05
    %v4560 = vadd.f32 %v4554, 1e-05
    %v4561 = vadd.f32 %v4555, 1e-05
    %v4562 = vadd.f32 %v4556, 1e-05
    %v4563 = vadd.f32 %v4557, 1e-05
    %v4564 = vrsqrt.pop %v4558
    %v4565 = vrsqrt.pop %v4559
    %v4566 = vrsqrt.pop %v4560
    %v4567 = vrsqrt.pop %v4561
    %v4568 = vrsqrt.pop %v4562
    %v4569 = vrsqrt.pop %v4563
    %v4570 = vmul.f32 %v4522, %v4564
    %v4571 = vmul.f32 %v4523, %v4565
    %v4572 = vmul.f32 %v4524, %v4566
    %v4573 = vmul.f32 %v4525, %v4567
    %v4574 = vmul.f32 %v4526, %v4568
    %v4575 = vmul.f32 %v4527, %v4569
    %v4577 = vlaneseq
    %v4578 = vshrl.u32 %v4577, 7
    %v4579 = vsub.s32 0, %v4578
    %v4580 = vrot.slane %v4496, %v4579
    %v4582 = vmul.f32 %v4570, %v4580
    %v4583 = vmul.f32 %v4571, %v4580
    %v4584 = vmul.f32 %v4572, %v4580
    %v4585 = vmul.f32 %v4573, %v4580
    %v4586 = vmul.f32 %v4574, %v4580
    %v4587 = vmul.f32 %v4575, %v4580
    %v4589 = vlaneseq
    %v4590 = vshrl.u32 %v4589, 7
    %v4591 = vsub.s32 0, %v4590
    %v4592 = vrot.slane %v4497, %v4591
    %v4594 = vadd.f32 %v4582, %v4592
    %v4595 = vadd.f32 %v4583, %v4592
    %v4596 = vadd.f32 %v4584, %v4592
    %v4597 = vadd.f32 %v4585, %v4592
    %v4598 = vadd.f32 %v4586, %v4592
    %v4599 = vadd.f32 %v4587, %v4592
    %v4600 = vld [vmem:[%s25] sm:$0xf]
    %v4601 = vld [vmem:[%s25 + $0x4] sm:$0xf]
    %v4602 = vld [vmem:[%s25 + $0x8] sm:$0xf]
    %v4603 = vld [vmem:[%s25 + $0xc] sm:$0xf]
    %v4604 = vpack.c.bf16 %v4595, %v4594
    %v4605 = vpack.c.bf16 %v4597, %v4596
    %v4606 = vpack.c.bf16 %v4599, %v4598
    %v4607 = vld [vmem:[%s26] sm:$0x1]
    %v4609 = vlaneseq
    %v4610 = vshrl.u32 %v4609, 7
    %v4611 = vsub.s32 0, %v4610
    %v4612 = vrot.slane %v4607, %v4611
    %v4618 = vunpack.c.l.b16 %v4600
    %v4619 = vunpack.c.l.b16 %v4601
    %v4620 = vunpack.c.l.b16 %v4602
    %v4621 = vunpack.c.l.b16 %v4603
    %v4622 = vpack.c.b16 %v4619, %v4618
    %v4623 = vpack.c.b16 %v4621, %v4620
    %v4627 = vsel %vm263, %v4604, 0
    %v4630 = vsel %vm263, %v4605, 0
    %v4633 = vsel %vm263, %v4606, 0
    %4635 = vmatprep.subr.bf16.mxu0 0
    %4636 = vmatpush1.bf16.msra.mxu0 %v4622
    %4637 = vmatprep.subr.bf16.mxu0 0
    %4638 = vmatpush1.bf16.msra.mxu0 %v4623
    %4639 = vmatprep.subr.bf16.mxu0 0
    %4640 = vmatpush1.bf16.msra.mxu0 0
    %4641 = vmatprep.subr.bf16.mxu0 0
    %4642 = vmatpush1.bf16.msra.mxu0 0
    %4643 = vmatprep.subr.bf16.mxu0 0
    %4644 = vmatpush1.bf16.msra.mxu0 0
    %4645 = vmatprep.subr.bf16.mxu0 0
    %4646 = vmatpush1.bf16.msra.mxu0 0
    %4647 = vmatprep.subr.bf16.mxu0 0
    %4648 = vmatpush1.bf16.msra.mxu0 0
    %4649 = vmatprep.subr.bf16.mxu0 0
    %4650 = vmatpush1.bf16.msra.mxu0 0
    %4651 = vmatprep.subr.bf16.mxu0 0
    %4652 = vmatpush1.bf16.msra.mxu0 0
    %4653 = vmatprep.subr.bf16.mxu0 0
    %4654 = vmatpush1.bf16.msra.mxu0 0
    %4655 = vmatprep.subr.bf16.mxu0 0
    %4656 = vmatpush1.bf16.msra.mxu0 0
    %4657 = vmatprep.subr.bf16.mxu0 0
    %4658 = vmatpush1.bf16.msra.mxu0 0
    %4659 = vmatprep.subr.bf16.mxu0 0
    %4660 = vmatpush1.bf16.msra.mxu0 0
    %4661 = vmatprep.subr.bf16.mxu0 0
    %4662 = vmatpush1.bf16.msra.mxu0 0
    %4663 = vmatprep.subr.bf16.mxu0 0
    %4664 = vmatpush1.bf16.msra.mxu0 0
    %4665 = vmatprep.subr.bf16.mxu0 0
    %4666 = vmatpush1.bf16.msra.mxu0 0
    %4667 = vmatprep.mubr.bf16.mxu0 0
    %4668 = vmatmul.mubr.bf16.gmra.mrb[0].mxu0 %v4627
    %v4669 = vpop.f32.mrb[0].mxu0
    %v4670 = vadd.f32 %v4612, %v4669
    %v4671 = vpop.f32.mrb[0].mxu0
    %v4672 = vpop.f32.mrb[0].mxu0
    %v4673 = vadd.f32 %v4612, %v4672
    %v4674 = vpop.f32.mrb[0].mxu0
    %4675 = vmatprep.mubr.bf16.mxu0 0
    %4676 = vmatmul.mubr.bf16.gmra.mrb[0].mxu0 %v4630
    %v4677 = vpop.f32.mrb[0].mxu0
    %v4678 = vadd.f32 %v4612, %v4677
    %v4679 = vpop.f32.mrb[0].mxu0
    %v4680 = vpop.f32.mrb[0].mxu0
    %v4681 = vadd.f32 %v4612, %v4680
    %v4682 = vpop.f32.mrb[0].mxu0
    %4683 = vmatprep.mubr.bf16.mxu0 0
    %4684 = vmatmul.mubr.bf16.gmra.mrb[0].mxu0 %v4633
    %v4685 = vpop.f32.mrb[0].mxu0
    %v4686 = vadd.f32 %v4612, %v4685
    %v4687 = vpop.f32.mrb[0].mxu0
    %v4688 = vpop.f32.mrb[0].mxu0
    %v4689 = vadd.f32 %v4612, %v4688
    %v4690 = vpop.f32.mrb[0].mxu0
    %4691 = vdwg.mxu0
    %4692 = vst [vmem:[#allocation2] sm:$0xff] %v4670
    %4693 = vst [vmem:[#allocation2 + $0x8] sm:$0xff] %v4673
    %4694 = vst [vmem:[#allocation2 + $0x10] sm:$0xff] %v4678
    %4695 = vst [vmem:[#allocation2 + $0x18] sm:$0xff] %v4681
    %4696 = vst [vmem:[#allocation2 + $0x20] sm:$0xff] %v4686
    %4697 = vst [vmem:[#allocation2 + $0x28] sm:$0xff] %v4689
    // Predicated region
    $region110: #{decoder_forward.1} parent=1 // pred_check
      _
    $region111: #{decoder_forward.1} parent=1 // pred_check_branch
      %4699 = sbr.rel (0) target = $region113
    $region112: #{decoder_forward.1} parent=1 // pred_region
      %s4701 = ssub.s32 768, 768
      %4702 = vsyncadd [#allocation3], %s4701
      %s4703 = sshll.u32 [#allocation2], 4
      %s4704 = int_to_ptr.vmem [resolvable:$true] %s4703
      %4709 = dma.vmem_to_hbm [thread:$0]  %s4704, 768, %s27, [#allocation3], 128, 128, 8
    $region113: #{decoder_forward.1} parent=1 // pred_fallthru
      _
    // Predicated region
    $region114: #{decoder_forward.1} parent=1 // pred_check
      _
    $region115: #{decoder_forward.1} parent=1 // pred_check_branch
      %4711 = sbr.rel (0) target = $region117
    $region116: #{decoder_forward.1} parent=1 // pred_region
      _
    $region117: #{decoder_forward.1} parent=1 // pred_fallthru
      _
    // Predicated region
    $region118: #{decoder_forward.1} parent=1 // pred_check
      _
    $region119: #{decoder_forward.1} parent=1 // pred_check_branch
      %4713 = sbr.rel (0) target = $region121
    $region120: #{decoder_forward.1} parent=1 // pred_region
      %4714 = dma.done [#allocation3], 768
    $region121: #{decoder_forward.1} parent=1 // pred_fallthru
      _
    // Predicated region
    $region122: #{decoder_forward.1} parent=1 // pred_check
      _
    $region123: #{decoder_forward.1} parent=1 // pred_check_branch
      %4716 = sbr.rel (0) target = $region125
    $region124: #{decoder_forward.1} parent=1 // pred_region
      _
    $region125: #{decoder_forward.1} parent=1 // pred_fallthru
      _
    %4717 = vsyncpa [#allocation3], 1

</llo_original>
